<compile_context>
chip_gen: v7x
topology: tpu7x:2x2x1
jax: 0.10.0
libtpu: 0.0.40
codegen_flags: <defaults>
</compile_context>

<pallas_src>
import functools
import math

import jax
import jax.numpy as jnp
from jax.experimental import pallas as pl
from jax.experimental.pallas import tpu as pltpu

_EPS = 1e-5
_INV_STD = 1.0 / math.sqrt(1.0 + _EPS)   # eval-mode BN with running var = 1


def _round_up(v, m):
    return (v + m - 1) // m * m


# --------------------------------------------------------------------------
# Fully fused MAFF kernel: one grid step per batch element.
#   x_ref : ((H+3)*Wx, Cin) bf16 -- wrapper-padded x, flat (row stride Wx)
#   bflat : ((H+7)*Wx, 4C)  f32  -- branch output with 3-px zero halo (scratch)
#   mpad  : (H+2, W+2)      f32  -- channel-mean map with 1-px zero halo
# --------------------------------------------------------------------------
def _maff_kernel(x_ref, w_ref, b_ref, dw_ref, dwb_ref, sp_ref, aw_ref,
                 bng_ref, bnb_ref, o_ref, bflat, mpad, *, H, W, C, Wx):
    C4 = 4 * C
    L = H * Wx                       # rows of the "wide" compute domain
    f32 = jnp.float32

    # ---- four branch convs fused as one packed 3x3 tap set (MXU bf16->f32) --
    # Wide-domain output: acc[h*Wx + w'] = branch[h, w'-3] for w' in [3, 3+W).
    acc = jnp.zeros((L, C4), f32)
    for t in range(9):
        i, j = divmod(t, 3)
        patch = x_ref[pl.ds(i * Wx + j, L), :]            # contiguous view
        acc = acc + jnp.dot(patch, w_ref[t], preferred_element_type=f32)
    acc = acc + b_ref[...]                                 # branch biases

    # ---- place the branch output inside the 3-px depthwise halo -------------
    # Row strides match -> a single contiguous store; then zero ONLY the halo
    # ring (per perf review: no full-buffer memset of the scratch).
    bflat[pl.ds(3 * Wx, L), :] = acc
    pair = Wx - W                    # right halo + slack cols + next row's left halo
    zpair = jnp.zeros((pair, C4), f32)
    bflat[pl.ds(0, 3 * Wx + 3), :] = jnp.zeros((3 * Wx + 3, C4), f32)
    for h in range(H):
        bflat[pl.ds((h + 3) * Wx + W + 3, pair), :] = zpair
    bflat[pl.ds((H + 3) * Wx, 4 * Wx), :] = jnp.zeros((4 * Wx, C4), f32)

    # ---- shared depthwise 3x3, dilation 3, padding 3 (VPU MACs) -------------
    cat = jnp.zeros((L, C4), f32)
    for t in range(9):
        i, j = divmod(t, 3)
        cat = cat + bflat[pl.ds(3 * i * Wx + 3 * j, L), :] * dw_ref[t]
    cat = cat + dwb_ref[...]

    # Compact the wide domain to the valid H x W image once (single relayout).
    cat3 = cat.reshape(H, Wx, C4)[:, :W, :]               # (H, W, 4C)
    cat2 = cat3.reshape(H * W, C4)

    # ---- ScaleSpatialAttention.spatial_wise on the channel mean (2-D) -------
    mean2 = jnp.mean(cat3, axis=-1)                        # (H, W)
    mpad[0:1, :] = jnp.zeros((1, W + 2), f32)              # halo-only zeroing
    mpad[H + 1:H + 2, :] = jnp.zeros((1, W + 2), f32)
    mpad[:, 0:1] = jnp.zeros((H + 2, 1), f32)
    mpad[:, W + 1:W + 2] = jnp.zeros((H + 2, 1), f32)
    mpad[1:1 + H, 1:1 + W] = mean2
    conv = jnp.zeros((H, W), f32)
    for t in range(9):
        i, j = divmod(t, 3)
        conv = conv + mpad[i:i + H, j:j + W] * sp_ref[t]
    y = conv * (sp_ref[9] * _INV_STD) + sp_ref[10]         # eval-mode BN(1)
    sw = jax.nn.sigmoid(jnp.maximum(y, 0.0) * sp_ref[11])  # (H, W)

    # ---- attention_wise: 1x1 conv (4C -> 4) + sigmoid on (sw + cat) ---------
    g2 = (cat3 + sw[:, :, None]).reshape(H * W, C4)
    score = jax.nn.sigmoid(jnp.dot(g2, aw_ref[...],
                                   preferred_element_type=f32))   # (H*W, 4)

    # ---- per-branch weighting + BN + ReLU ------------------------------------
    if C % 128 == 0:
        # Production shapes: lane-aligned branch blocks -> broadcast multiplies,
        # no MXU drain bubble and no (H*W, 4C) expand temporary.
        out = jnp.concatenate(
            [cat2[:, b * C:(b + 1) * C] * score[:, b:b + 1] for b in range(4)],
            axis=-1)
    else:
        # Toy shapes: expand the 4 scores over their C-channel blocks with a
        # tiny 0/1 matmul (block pattern built from iota, no extra input).
        row = jax.lax.broadcasted_iota(jnp.int32, (4, C4), 0)
        col = jax.lax.broadcasted_iota(jnp.int32, (4, C4), 1)
        expand = jnp.where((col >= row * C) & (col < (row + 1) * C), 1.0, 0.0)
        out = cat2 * jnp.dot(score, expand, preferred_element_type=f32)

    out = out * (bng_ref[...] * _INV_STD) + bnb_ref[...]   # eval-mode BN
    out = jnp.maximum(out, 0.0)                            # ReLU

    if C4 % 128 == 0:
        o_ref[...] = out        # (H*W, 4C): already lane-dense, no XLU transpose
    else:
        o_ref[...] = out.T      # toy shapes: (4C, H*W) keeps the store lane-dense


# --------------------------------------------------------------------------
# Weight packing (PyTorch (Cout, Cin, KH, KW) -> per-tap matrices)
# --------------------------------------------------------------------------
def _pack_branch_weights(p, Cin, C):
    C4 = 4 * C
    w = jnp.zeros((3, 3, Cin, C4), jnp.float32)
    # squre 3x3: all taps, channel block [0:C)
    w = w.at[:, :, :, 0:C].set(jnp.transpose(p["squre_w"], (2, 3, 1, 0)))
    # cross_ver 1x3 (pad (0,1)): taps (i=1, j), block [C:2C)
    w = w.at[1, :, :, C:2 * C].set(
        jnp.transpose(p["ver_w"][:, :, 0, :], (2, 1, 0)))
    # cross_hor 3x1 (pad (1,0)): taps (i, j=1), block [2C:3C)
    w = w.at[:, 1, :, 2 * C:3 * C].set(
        jnp.transpose(p["hor_w"][:, :, :, 0], (2, 1, 0)))
    # conv1x1: tap (1,1), block [3C:4C)
    w = w.at[1, 1, :, 3 * C:4 * C].set(
        jnp.transpose(p["c1_w"][:, :, 0, 0], (1, 0)))
    return w.reshape(9, Cin, C4)


# --------------------------------------------------------------------------
# MAFF forward (Pallas): NHWC in -> NCHW out
# --------------------------------------------------------------------------
def maff_forward(x, p):
    N, H, W, Cin = x.shape
    C = p["squre_w"].shape[0]
    C4 = 4 * C
    Wx = _round_up(W + 6, 8)             # flat row stride of the wide domain
    rows_x = (H + 3) * Wx
    rows_b = (H + 7) * Wx

    # Wrapper-side layout plumbing: zero-pad x once (H -> (1, 2), W -> (4, ..))
    # and flatten, so every in-kernel conv tap is a contiguous flat view.
    x_pad = jnp.pad(x, ((0, 0), (1, 2), (4, Wx - W - 4), (0, 0)))
    x_flat = x_pad.reshape(N, rows_x, Cin).astype(jnp.bfloat16)

    w_taps = _pack_branch_weights(p, Cin, C).astype(jnp.bfloat16)   # (9,Cin,4C)
    bias4 = jnp.concatenate(
        [p["squre_b"], p["ver_b"], p["hor_b"], p["c1_b"]]).reshape(1, C4)
    dw_taps = jnp.tile(
        jnp.transpose(p["dw_w"][:, 0], (1, 2, 0)).reshape(9, C), (1, 4))  # (9,4C)
    dw_bias = jnp.tile(p["dw_b"], 4).reshape(1, C4)
    sp = jnp.concatenate(
        [p["sp_w3"].reshape(9),
         jnp.stack([p["sp_bn_g"], p["sp_bn_b"], p["sp_w1"]])]).astype(jnp.float32)
    aw = jnp.transpose(p["att_w"][:, :, 0, 0], (1, 0))               # (4C, 4)
    bn_g = p["bn_g"].reshape(1, C4)
    bn_b = p["bn_b"].reshape(1, C4)

    lane_dense_nhwc = (C4 % 128 == 0)
    if lane_dense_nhwc:
        out_shape = jax.ShapeDtypeStruct((N, H * W, C4), jnp.float32)
        out_spec = pl.BlockSpec((None, H * W, C4), lambda n: (n, 0, 0))
    else:
        out_shape = jax.ShapeDtypeStruct((N, C4, H * W), jnp.float32)
        out_spec = pl.BlockSpec((None, C4, H * W), lambda n: (n, 0, 0))

    cost = pl.CostEstimate(
        flops=int(N * (18 * H * Wx * Cin * C4 + 18 * H * Wx * C4
                       + 16 * H * W * C4)),
        transcendentals=int(N * H * W * 5),
        bytes_accessed=int(x_flat.size * 2 + N * H * W * C4 * 4
                           + w_taps.size * 2
                           + (dw_taps.size + aw.size + 4 * C4) * 4))

    kernel = functools.partial(_maff_kernel, H=H, W=W, C=C, Wx=Wx)
    out = pl.pallas_call(
        kernel,
        out_shape=out_shape,
        grid=(N,),
        in_specs=[
            pl.BlockSpec((None, rows_x, Cin), lambda n: (n, 0, 0)),
            pl.BlockSpec((9, Cin, C4), lambda n: (0, 0, 0)),
            pl.BlockSpec((1, C4), lambda n: (0, 0)),
            pl.BlockSpec((9, C4), lambda n: (0, 0)),
            pl.BlockSpec((1, C4), lambda n: (0, 0)),
            pl.BlockSpec(memory_space=pltpu.MemorySpace.SMEM),
            pl.BlockSpec((C4, 4), lambda n: (0, 0)),
            pl.BlockSpec((1, C4), lambda n: (0, 0)),
            pl.BlockSpec((1, C4), lambda n: (0, 0)),
        ],
        out_specs=out_spec,
        scratch_shapes=[
            pltpu.VMEM((rows_b, C4), jnp.float32),     # 3-px-halo branch output
            pltpu.VMEM((H + 2, W + 2), jnp.float32),   # 1-px-halo channel-mean
        ],
        compiler_params=pltpu.CompilerParams(
            dimension_semantics=("parallel",),
            vmem_limit_bytes=64 * 1024 * 1024),
        cost_estimate=cost,
    )(x_flat, w_taps, bias4, dw_taps, dw_bias, sp, aw, bn_g, bn_b)

    if lane_dense_nhwc:
        return jnp.transpose(out.reshape(N, H, W, C4), (0, 3, 1, 2))   # NCHW
    return out.reshape(N, C4, H, W)                                    # NCHW


# --------------------------------------------------------------------------
# Deterministic parameter init (mimics the module's normal(0, sqrt(2/n)) init)
# --------------------------------------------------------------------------
def init_params(key, in_planes, out_planes):
    C4 = 4 * out_planes
    ks = jax.random.split(key, 13)

    def conv_w(k, cout, cin, kh, kw):
        n = kh * kw * cout
        return jax.random.normal(k, (cout, cin, kh, kw), jnp.float32) * math.sqrt(2.0 / n)

    p = {}
    p["squre_w"] = conv_w(ks[0], out_planes, in_planes, 3, 3)
    p["squre_b"] = 0.1 * jax.random.normal(ks[1], (out_planes,), jnp.float32)
    p["ver_w"] = conv_w(ks[2], out_planes, in_planes, 1, 3)
    p["ver_b"] = 0.1 * jax.random.normal(ks[3], (out_planes,), jnp.float32)
    p["hor_w"] = conv_w(ks[4], out_planes, in_planes, 3, 1)
    p["hor_b"] = 0.1 * jax.random.normal(ks[5], (out_planes,), jnp.float32)
    p["c1_w"] = conv_w(ks[6], out_planes, in_planes, 1, 1)
    p["c1_b"] = 0.1 * jax.random.normal(ks[7], (out_planes,), jnp.float32)
    p["dw_w"] = conv_w(ks[8], out_planes, 1, 3, 3)          # depthwise, groups=out_planes
    p["dw_b"] = 0.1 * jax.random.normal(ks[9], (out_planes,), jnp.float32)
    p["bn_g"] = jnp.ones((C4,), jnp.float32)
    p["bn_b"] = jnp.zeros((C4,), jnp.float32)
    # ScaleSpatialAttention (original hard-codes (512, 64, 4); here 4*out_planes, _, 4)
    p["sp_w3"] = conv_w(ks[10], 1, 1, 3, 3)[0, 0]           # (3, 3)
    p["sp_bn_g"] = jnp.float32(1.0)
    p["sp_bn_b"] = jnp.float32(0.0)
    p["sp_w1"] = conv_w(ks[11], 1, 1, 1, 1)[0, 0, 0, 0]     # scalar
    p["att_w"] = conv_w(ks[12], 4, C4, 1, 1)                # (4, 4C, 1, 1)
    return p


# --------------------------------------------------------------------------
# Pure-JAX reference for the check.  It mirrors the kernel's MXU feed exactly:
# the branch-conv operands (x, branch weights) are rounded to bf16, everything
# else (accumulation, depthwise, attention, BN, ReLU) is f32, so the tolerance
# can stay tight.
# --------------------------------------------------------------------------
def _ref_conv(x, w_pt, b, pad, dil=(1, 1), groups=1):
    w = jnp.transpose(w_pt, (2, 3, 1, 0))  # HWIO
    out = jax.lax.conv_general_dilated(
        x, w, window_strides=(1, 1), padding=pad, rhs_dilation=dil,
        dimension_numbers=("NHWC", "HWIO", "NHWC"),
        feature_group_count=groups,
        precision=jax.lax.Precision.HIGHEST)
    if b is not None:
        out = out + b
    return out


def maff_reference(x, p):
    q = lambda a: a.astype(jnp.bfloat16).astype(jnp.float32)  # bf16 operand feed
    C = p["squre_w"].shape[0]
    xq = q(x)
    s = _ref_conv(xq, q(p["squre_w"]), p["squre_b"], ((1, 1), (1, 1)))
    v = _ref_conv(xq, q(p["ver_w"]), p["ver_b"], ((0, 0), (1, 1)))
    h = _ref_conv(xq, q(p["hor_w"]), p["hor_b"], ((1, 1), (0, 0)))
    c = _ref_conv(xq, q(p["c1_w"]), p["c1_b"], ((0, 0), (0, 0)))
    dw = lambda t: _ref_conv(t, p["dw_w"], p["dw_b"], ((3, 3), (3, 3)),
                             dil=(3, 3), groups=C)
    x1, x2, x3, x4 = dw(s), dw(v), dw(h), dw(c)
    cat = jnp.concatenate([x1, x2, x3, x4], axis=-1)
    m = jnp.mean(cat, axis=-1, keepdims=True)
    sw = _ref_conv(m, p["sp_w3"][None, None], None, ((1, 1), (1, 1)))
    sw = jnp.maximum(sw * (p["sp_bn_g"] * _INV_STD) + p["sp_bn_b"], 0.0)
    sw = jax.nn.sigmoid(sw * p["sp_w1"])
    g = sw + cat
    score = jax.nn.sigmoid(_ref_conv(g, p["att_w"], None, ((0, 0), (0, 0))))
    out = jnp.concatenate([x1 * score[..., 0:1], x2 * score[..., 1:2],
                           x3 * score[..., 2:3], x4 * score[..., 3:4]], axis=-1)
    out = out * (p["bn_g"] * _INV_STD) + p["bn_b"]
    return jnp.maximum(out, 0.0)


if __name__ == "__main__":
    # Small shapes consistent with the module constraints (in_planes == 4*out_planes,
    # as in the original MAFF(512, 128)).
    N, in_planes, out_planes, H, W = 2, 32, 8, 16, 16
    key = jax.random.PRNGKey(0)
    xk, pk = jax.random.split(key)
    x_nchw = jax.random.normal(xk, (N, in_planes, H, W), jnp.float32)
    x = jnp.transpose(x_nchw, (0, 2, 3, 1))  # -> NHWC for the kernel wrapper
    params = init_params(pk, in_planes, out_planes)

    fwd = jax.jit(maff_forward)
    out = jax.block_until_ready(fwd(x, params))            # NCHW (N, 4C, H, W)
    assert out.shape == (N, 4 * out_planes, H, W)

    ref = jax.block_until_ready(maff_reference(x, params))  # NHWC
    out_nhwc = jnp.transpose(out, (0, 2, 3, 1))
    max_err = float(jnp.max(jnp.abs(out_nhwc - ref)))
    if not jnp.allclose(out_nhwc, ref, atol=2e-3, rtol=2e-3):
        raise AssertionError(
            f"Pallas/reference mismatch, max abs err = {max_err}")

    print("KERNEL_OK")
</pallas_src>

<mosaic_0001>
module attributes {stable_mosaic.version = 11 : i64} {
  func.func @_maff_kernel(%arg0: i32, %arg1: memref<1x456x32xbf16, #tpu.memory_space<vmem>>, %arg2: memref<9x32x32xbf16, #tpu.memory_space<vmem>>, %arg3: memref<1x32xf32, #tpu.memory_space<vmem>>, %arg4: memref<9x32xf32, #tpu.memory_space<vmem>>, %arg5: memref<1x32xf32, #tpu.memory_space<vmem>>, %arg6: memref<12xf32, #tpu.memory_space<smem>>, %arg7: memref<32x4xf32, #tpu.memory_space<vmem>>, %arg8: memref<1x32xf32, #tpu.memory_space<vmem>>, %arg9: memref<1x32xf32, #tpu.memory_space<vmem>>, %arg10: memref<1x32x256xf32, #tpu.memory_space<vmem>>, %arg11: memref<552x32xf32, #tpu.memory_space<vmem>>, %arg12: memref<18x18xf32, #tpu.memory_space<vmem>>) attributes {dimension_semantics = [#tpu.dimension_semantics<parallel>], iteration_bounds = array<i64: 2>, scalar_prefetch = 0 : i64, scratch_operands = 2 : i64, tpu.core_type = #tpu.core_type<tc>, window_params = [{transform_indices = @transform_0, window_bounds = array<i64: 1, 456, 32>}, {pipeline_mode = #tpu.pipeline_mode<synchronous>, transform_indices = @transform_1, window_bounds = array<i64: 9, 32, 32>}, {pipeline_mode = #tpu.pipeline_mode<synchronous>, transform_indices = @transform_2, window_bounds = array<i64: 1, 32>}, {pipeline_mode = #tpu.pipeline_mode<synchronous>, transform_indices = @transform_3, window_bounds = array<i64: 9, 32>}, {pipeline_mode = #tpu.pipeline_mode<synchronous>, transform_indices = @transform_4, window_bounds = array<i64: 1, 32>}, {transform_indices = @transform_5, window_bounds = array<i64: 12>}, {pipeline_mode = #tpu.pipeline_mode<synchronous>, transform_indices = @transform_6, window_bounds = array<i64: 32, 4>}, {pipeline_mode = #tpu.pipeline_mode<synchronous>, transform_indices = @transform_7, window_bounds = array<i64: 1, 32>}, {pipeline_mode = #tpu.pipeline_mode<synchronous>, transform_indices = @transform_8, window_bounds = array<i64: 1, 32>}, {transform_indices = @transform_9, window_bounds = array<i64: 1, 32, 256>}]} {
    %cst = arith.constant 0.000000e+00 : f32
    %0 = vector.broadcast %cst : f32 to vector<384x32xf32>
    %c0 = arith.constant 0 : index
    %c0_0 = arith.constant 0 : index
    %c0_1 = arith.constant 0 : index
    %1 = vector.load %arg1[%c0, %c0_0, %c0_1] : memref<1x456x32xbf16, #tpu.memory_space<vmem>>, vector<1x384x32xbf16>
    %2 = vector.shape_cast %1 : vector<1x384x32xbf16> to vector<384x32xbf16>
    %c0_2 = arith.constant 0 : index
    %c0_3 = arith.constant 0 : index
    %c0_4 = arith.constant 0 : index
    %3 = vector.load %arg2[%c0_2, %c0_3, %c0_4] : memref<9x32x32xbf16, #tpu.memory_space<vmem>>, vector<1x32x32xbf16>
    %4 = vector.shape_cast %3 : vector<1x32x32xbf16> to vector<32x32xbf16>
    %cst_5 = arith.constant dense<0.000000e+00> : vector<384x32xf32>
    %5 = tpu.matmul %2, %4, %cst_5 {dimension_numbers = #tpu.dot_dimension_numbers<[1], [0], [0], [1], [0, 0, 1, 1], [], []>} : vector<384x32xbf16>, vector<32x32xbf16>, vector<384x32xf32> -> vector<384x32xf32>
    %6 = arith.addf %0, %5 : vector<384x32xf32>
    %c0_6 = arith.constant 0 : index
    %c1 = arith.constant 1 : index
    %c0_7 = arith.constant 0 : index
    %7 = vector.load %arg1[%c0_6, %c1, %c0_7] : memref<1x456x32xbf16, #tpu.memory_space<vmem>>, vector<1x384x32xbf16>
    %8 = vector.shape_cast %7 : vector<1x384x32xbf16> to vector<384x32xbf16>
    %c1_8 = arith.constant 1 : index
    %c0_9 = arith.constant 0 : index
    %c0_10 = arith.constant 0 : index
    %9 = vector.load %arg2[%c1_8, %c0_9, %c0_10] : memref<9x32x32xbf16, #tpu.memory_space<vmem>>, vector<1x32x32xbf16>
    %10 = vector.shape_cast %9 : vector<1x32x32xbf16> to vector<32x32xbf16>
    %cst_11 = arith.constant dense<0.000000e+00> : vector<384x32xf32>
    %11 = tpu.matmul %8, %10, %cst_11 {dimension_numbers = #tpu.dot_dimension_numbers<[1], [0], [0], [1], [0, 0, 1, 1], [], []>} : vector<384x32xbf16>, vector<32x32xbf16>, vector<384x32xf32> -> vector<384x32xf32>
    %12 = arith.addf %6, %11 : vector<384x32xf32>
    %c0_12 = arith.constant 0 : index
    %c2 = arith.constant 2 : index
    %c0_13 = arith.constant 0 : index
    %13 = vector.load %arg1[%c0_12, %c2, %c0_13] : memref<1x456x32xbf16, #tpu.memory_space<vmem>>, vector<1x384x32xbf16>
    %14 = vector.shape_cast %13 : vector<1x384x32xbf16> to vector<384x32xbf16>
    %c2_14 = arith.constant 2 : index
    %c0_15 = arith.constant 0 : index
    %c0_16 = arith.constant 0 : index
    %15 = vector.load %arg2[%c2_14, %c0_15, %c0_16] : memref<9x32x32xbf16, #tpu.memory_space<vmem>>, vector<1x32x32xbf16>
    %16 = vector.shape_cast %15 : vector<1x32x32xbf16> to vector<32x32xbf16>
    %cst_17 = arith.constant dense<0.000000e+00> : vector<384x32xf32>
    %17 = tpu.matmul %14, %16, %cst_17 {dimension_numbers = #tpu.dot_dimension_numbers<[1], [0], [0], [1], [0, 0, 1, 1], [], []>} : vector<384x32xbf16>, vector<32x32xbf16>, vector<384x32xf32> -> vector<384x32xf32>
    %18 = arith.addf %12, %17 : vector<384x32xf32>
    %c0_18 = arith.constant 0 : index
    %c24 = arith.constant 24 : index
    %c0_19 = arith.constant 0 : index
    %19 = vector.load %arg1[%c0_18, %c24, %c0_19] : memref<1x456x32xbf16, #tpu.memory_space<vmem>>, vector<1x384x32xbf16>
    %20 = vector.shape_cast %19 : vector<1x384x32xbf16> to vector<384x32xbf16>
    %c3 = arith.constant 3 : index
    %c0_20 = arith.constant 0 : index
    %c0_21 = arith.constant 0 : index
    %21 = vector.load %arg2[%c3, %c0_20, %c0_21] : memref<9x32x32xbf16, #tpu.memory_space<vmem>>, vector<1x32x32xbf16>
    %22 = vector.shape_cast %21 : vector<1x32x32xbf16> to vector<32x32xbf16>
    %cst_22 = arith.constant dense<0.000000e+00> : vector<384x32xf32>
    %23 = tpu.matmul %20, %22, %cst_22 {dimension_numbers = #tpu.dot_dimension_numbers<[1], [0], [0], [1], [0, 0, 1, 1], [], []>} : vector<384x32xbf16>, vector<32x32xbf16>, vector<384x32xf32> -> vector<384x32xf32>
    %24 = arith.addf %18, %23 : vector<384x32xf32>
    %c0_23 = arith.constant 0 : index
    %c25 = arith.constant 25 : index
    %c0_24 = arith.constant 0 : index
    %25 = vector.load %arg1[%c0_23, %c25, %c0_24] : memref<1x456x32xbf16, #tpu.memory_space<vmem>>, vector<1x384x32xbf16>
    %26 = vector.shape_cast %25 : vector<1x384x32xbf16> to vector<384x32xbf16>
    %c4 = arith.constant 4 : index
    %c0_25 = arith.constant 0 : index
    %c0_26 = arith.constant 0 : index
    %27 = vector.load %arg2[%c4, %c0_25, %c0_26] : memref<9x32x32xbf16, #tpu.memory_space<vmem>>, vector<1x32x32xbf16>
    %28 = vector.shape_cast %27 : vector<1x32x32xbf16> to vector<32x32xbf16>
    %cst_27 = arith.constant dense<0.000000e+00> : vector<384x32xf32>
    %29 = tpu.matmul %26, %28, %cst_27 {dimension_numbers = #tpu.dot_dimension_numbers<[1], [0], [0], [1], [0, 0, 1, 1], [], []>} : vector<384x32xbf16>, vector<32x32xbf16>, vector<384x32xf32> -> vector<384x32xf32>
    %30 = arith.addf %24, %29 : vector<384x32xf32>
    %c0_28 = arith.constant 0 : index
    %c26 = arith.constant 26 : index
    %c0_29 = arith.constant 0 : index
    %31 = vector.load %arg1[%c0_28, %c26, %c0_29] : memref<1x456x32xbf16, #tpu.memory_space<vmem>>, vector<1x384x32xbf16>
    %32 = vector.shape_cast %31 : vector<1x384x32xbf16> to vector<384x32xbf16>
    %c5 = arith.constant 5 : index
    %c0_30 = arith.constant 0 : index
    %c0_31 = arith.constant 0 : index
    %33 = vector.load %arg2[%c5, %c0_30, %c0_31] : memref<9x32x32xbf16, #tpu.memory_space<vmem>>, vector<1x32x32xbf16>
    %34 = vector.shape_cast %33 : vector<1x32x32xbf16> to vector<32x32xbf16>
    %cst_32 = arith.constant dense<0.000000e+00> : vector<384x32xf32>
    %35 = tpu.matmul %32, %34, %cst_32 {dimension_numbers = #tpu.dot_dimension_numbers<[1], [0], [0], [1], [0, 0, 1, 1], [], []>} : vector<384x32xbf16>, vector<32x32xbf16>, vector<384x32xf32> -> vector<384x32xf32>
    %36 = arith.addf %30, %35 : vector<384x32xf32>
    %c0_33 = arith.constant 0 : index
    %c48 = arith.constant 48 : index
    %c0_34 = arith.constant 0 : index
    %37 = vector.load %arg1[%c0_33, %c48, %c0_34] : memref<1x456x32xbf16, #tpu.memory_space<vmem>>, vector<1x384x32xbf16>
    %38 = vector.shape_cast %37 : vector<1x384x32xbf16> to vector<384x32xbf16>
    %c6 = arith.constant 6 : index
    %c0_35 = arith.constant 0 : index
    %c0_36 = arith.constant 0 : index
    %39 = vector.load %arg2[%c6, %c0_35, %c0_36] : memref<9x32x32xbf16, #tpu.memory_space<vmem>>, vector<1x32x32xbf16>
    %40 = vector.shape_cast %39 : vector<1x32x32xbf16> to vector<32x32xbf16>
    %cst_37 = arith.constant dense<0.000000e+00> : vector<384x32xf32>
    %41 = tpu.matmul %38, %40, %cst_37 {dimension_numbers = #tpu.dot_dimension_numbers<[1], [0], [0], [1], [0, 0, 1, 1], [], []>} : vector<384x32xbf16>, vector<32x32xbf16>, vector<384x32xf32> -> vector<384x32xf32>
    %42 = arith.addf %36, %41 : vector<384x32xf32>
    %c0_38 = arith.constant 0 : index
    %c49 = arith.constant 49 : index
    %c0_39 = arith.constant 0 : index
    %43 = vector.load %arg1[%c0_38, %c49, %c0_39] : memref<1x456x32xbf16, #tpu.memory_space<vmem>>, vector<1x384x32xbf16>
    %44 = vector.shape_cast %43 : vector<1x384x32xbf16> to vector<384x32xbf16>
    %c7 = arith.constant 7 : index
    %c0_40 = arith.constant 0 : index
    %c0_41 = arith.constant 0 : index
    %45 = vector.load %arg2[%c7, %c0_40, %c0_41] : memref<9x32x32xbf16, #tpu.memory_space<vmem>>, vector<1x32x32xbf16>
    %46 = vector.shape_cast %45 : vector<1x32x32xbf16> to vector<32x32xbf16>
    %cst_42 = arith.constant dense<0.000000e+00> : vector<384x32xf32>
    %47 = tpu.matmul %44, %46, %cst_42 {dimension_numbers = #tpu.dot_dimension_numbers<[1], [0], [0], [1], [0, 0, 1, 1], [], []>} : vector<384x32xbf16>, vector<32x32xbf16>, vector<384x32xf32> -> vector<384x32xf32>
    %48 = arith.addf %42, %47 : vector<384x32xf32>
    %c0_43 = arith.constant 0 : index
    %c50 = arith.constant 50 : index
    %c0_44 = arith.constant 0 : index
    %49 = vector.load %arg1[%c0_43, %c50, %c0_44] : memref<1x456x32xbf16, #tpu.memory_space<vmem>>, vector<1x384x32xbf16>
    %50 = vector.shape_cast %49 : vector<1x384x32xbf16> to vector<384x32xbf16>
    %c8 = arith.constant 8 : index
    %c0_45 = arith.constant 0 : index
    %c0_46 = arith.constant 0 : index
    %51 = vector.load %arg2[%c8, %c0_45, %c0_46] : memref<9x32x32xbf16, #tpu.memory_space<vmem>>, vector<1x32x32xbf16>
    %52 = vector.shape_cast %51 : vector<1x32x32xbf16> to vector<32x32xbf16>
    %cst_47 = arith.constant dense<0.000000e+00> : vector<384x32xf32>
    %53 = tpu.matmul %50, %52, %cst_47 {dimension_numbers = #tpu.dot_dimension_numbers<[1], [0], [0], [1], [0, 0, 1, 1], [], []>} : vector<384x32xbf16>, vector<32x32xbf16>, vector<384x32xf32> -> vector<384x32xf32>
    %54 = arith.addf %48, %53 : vector<384x32xf32>
    %c0_48 = arith.constant 0 : index
    %c0_49 = arith.constant 0 : index
    %55 = vector.load %arg3[%c0_48, %c0_49] : memref<1x32xf32, #tpu.memory_space<vmem>>, vector<1x32xf32>
    %56 = vector.broadcast %55 : vector<1x32xf32> to vector<384x32xf32>
    %57 = arith.addf %54, %56 : vector<384x32xf32>
    %c72 = arith.constant 72 : index
    %c0_50 = arith.constant 0 : index
    %58 = vector.load %arg11[%c72, %c0_50] : memref<552x32xf32, #tpu.memory_space<vmem>>, vector<384x32xf32>
    tpu.vector_store %arg11[%c72, %c0_50], %57 {strides = array<i32>} : memref<552x32xf32, #tpu.memory_space<vmem>>, vector<384x32xf32>,
    %cst_51 = arith.constant 0.000000e+00 : f32
    %59 = vector.broadcast %cst_51 : f32 to vector<8x32xf32>
    %cst_52 = arith.constant 0.000000e+00 : f32
    %60 = vector.broadcast %cst_52 : f32 to vector<75x32xf32>
    %c0_53 = arith.constant 0 : index
    %c0_54 = arith.constant 0 : index
    %61 = vector.load %arg11[%c0_53, %c0_54] : memref<552x32xf32, #tpu.memory_space<vmem>>, vector<75x32xf32>
    tpu.vector_store %arg11[%c0_53, %c0_54], %60 {strides = array<i32>} : memref<552x32xf32, #tpu.memory_space<vmem>>, vector<75x32xf32>,
    %c91 = arith.constant 91 : index
    %c0_55 = arith.constant 0 : index
    %62 = vector.load %arg11[%c91, %c0_55] : memref<552x32xf32, #tpu.memory_space<vmem>>, vector<8x32xf32>
    tpu.vector_store %arg11[%c91, %c0_55], %59 {strides = array<i32>} : memref<552x32xf32, #tpu.memory_space<vmem>>, vector<8x32xf32>,
    %c115 = arith.constant 115 : index
    %c0_56 = arith.constant 0 : index
    %63 = vector.load %arg11[%c115, %c0_56] : memref<552x32xf32, #tpu.memory_space<vmem>>, vector<8x32xf32>
    tpu.vector_store %arg11[%c115, %c0_56], %59 {strides = array<i32>} : memref<552x32xf32, #tpu.memory_space<vmem>>, vector<8x32xf32>,
    %c139 = arith.constant 139 : index
    %c0_57 = arith.constant 0 : index
    %64 = vector.load %arg11[%c139, %c0_57] : memref<552x32xf32, #tpu.memory_space<vmem>>, vector<8x32xf32>
    tpu.vector_store %arg11[%c139, %c0_57], %59 {strides = array<i32>} : memref<552x32xf32, #tpu.memory_space<vmem>>, vector<8x32xf32>,
    %c163 = arith.constant 163 : index
    %c0_58 = arith.constant 0 : index
    %65 = vector.load %arg11[%c163, %c0_58] : memref<552x32xf32, #tpu.memory_space<vmem>>, vector<8x32xf32>
    tpu.vector_store %arg11[%c163, %c0_58], %59 {strides = array<i32>} : memref<552x32xf32, #tpu.memory_space<vmem>>, vector<8x32xf32>,
    %c187 = arith.constant 187 : index
    %c0_59 = arith.constant 0 : index
    %66 = vector.load %arg11[%c187, %c0_59] : memref<552x32xf32, #tpu.memory_space<vmem>>, vector<8x32xf32>
    tpu.vector_store %arg11[%c187, %c0_59], %59 {strides = array<i32>} : memref<552x32xf32, #tpu.memory_space<vmem>>, vector<8x32xf32>,
    %c211 = arith.constant 211 : index
    %c0_60 = arith.constant 0 : index
    %67 = vector.load %arg11[%c211, %c0_60] : memref<552x32xf32, #tpu.memory_space<vmem>>, vector<8x32xf32>
    tpu.vector_store %arg11[%c211, %c0_60], %59 {strides = array<i32>} : memref<552x32xf32, #tpu.memory_space<vmem>>, vector<8x32xf32>,
    %c235 = arith.constant 235 : index
    %c0_61 = arith.constant 0 : index
    %68 = vector.load %arg11[%c235, %c0_61] : memref<552x32xf32, #tpu.memory_space<vmem>>, vector<8x32xf32>
    tpu.vector_store %arg11[%c235, %c0_61], %59 {strides = array<i32>} : memref<552x32xf32, #tpu.memory_space<vmem>>, vector<8x32xf32>,
    %c259 = arith.constant 259 : index
    %c0_62 = arith.constant 0 : index
    %69 = vector.load %arg11[%c259, %c0_62] : memref<552x32xf32, #tpu.memory_space<vmem>>, vector<8x32xf32>
    tpu.vector_store %arg11[%c259, %c0_62], %59 {strides = array<i32>} : memref<552x32xf32, #tpu.memory_space<vmem>>, vector<8x32xf32>,
    %c283 = arith.constant 283 : index
    %c0_63 = arith.constant 0 : index
    %70 = vector.load %arg11[%c283, %c0_63] : memref<552x32xf32, #tpu.memory_space<vmem>>, vector<8x32xf32>
    tpu.vector_store %arg11[%c283, %c0_63], %59 {strides = array<i32>} : memref<552x32xf32, #tpu.memory_space<vmem>>, vector<8x32xf32>,
    %c307 = arith.constant 307 : index
    %c0_64 = arith.constant 0 : index
    %71 = vector.load %arg11[%c307, %c0_64] : memref<552x32xf32, #tpu.memory_space<vmem>>, vector<8x32xf32>
    tpu.vector_store %arg11[%c307, %c0_64], %59 {strides = array<i32>} : memref<552x32xf32, #tpu.memory_space<vmem>>, vector<8x32xf32>,
    %c331 = arith.constant 331 : index
    %c0_65 = arith.constant 0 : index
    %72 = vector.load %arg11[%c331, %c0_65] : memref<552x32xf32, #tpu.memory_space<vmem>>, vector<8x32xf32>
    tpu.vector_store %arg11[%c331, %c0_65], %59 {strides = array<i32>} : memref<552x32xf32, #tpu.memory_space<vmem>>, vector<8x32xf32>,
    %c355 = arith.constant 355 : index
    %c0_66 = arith.constant 0 : index
    %73 = vector.load %arg11[%c355, %c0_66] : memref<552x32xf32, #tpu.memory_space<vmem>>, vector<8x32xf32>
    tpu.vector_store %arg11[%c355, %c0_66], %59 {strides = array<i32>} : memref<552x32xf32, #tpu.memory_space<vmem>>, vector<8x32xf32>,
    %c379 = arith.constant 379 : index
    %c0_67 = arith.constant 0 : index
    %74 = vector.load %arg11[%c379, %c0_67] : memref<552x32xf32, #tpu.memory_space<vmem>>, vector<8x32xf32>
    tpu.vector_store %arg11[%c379, %c0_67], %59 {strides = array<i32>} : memref<552x32xf32, #tpu.memory_space<vmem>>, vector<8x32xf32>,
    %c403 = arith.constant 403 : index
    %c0_68 = arith.constant 0 : index
    %75 = vector.load %arg11[%c403, %c0_68] : memref<552x32xf32, #tpu.memory_space<vmem>>, vector<8x32xf32>
    tpu.vector_store %arg11[%c403, %c0_68], %59 {strides = array<i32>} : memref<552x32xf32, #tpu.memory_space<vmem>>, vector<8x32xf32>,
    %c427 = arith.constant 427 : index
    %c0_69 = arith.constant 0 : index
    %76 = vector.load %arg11[%c427, %c0_69] : memref<552x32xf32, #tpu.memory_space<vmem>>, vector<8x32xf32>
    tpu.vector_store %arg11[%c427, %c0_69], %59 {strides = array<i32>} : memref<552x32xf32, #tpu.memory_space<vmem>>, vector<8x32xf32>,
    %c451 = arith.constant 451 : index
    %c0_70 = arith.constant 0 : index
    %77 = vector.load %arg11[%c451, %c0_70] : memref<552x32xf32, #tpu.memory_space<vmem>>, vector<8x32xf32>
    tpu.vector_store %arg11[%c451, %c0_70], %59 {strides = array<i32>} : memref<552x32xf32, #tpu.memory_space<vmem>>, vector<8x32xf32>,
    %cst_71 = arith.constant 0.000000e+00 : f32
    %78 = vector.broadcast %cst_71 : f32 to vector<96x32xf32>
    %c456 = arith.constant 456 : index
    %c0_72 = arith.constant 0 : index
    %79 = vector.load %arg11[%c456, %c0_72] : memref<552x32xf32, #tpu.memory_space<vmem>>, vector<96x32xf32>
    tpu.vector_store %arg11[%c456, %c0_72], %78 {strides = array<i32>} : memref<552x32xf32, #tpu.memory_space<vmem>>, vector<96x32xf32>,
    %cst_73 = arith.constant 0.000000e+00 : f32
    %80 = vector.broadcast %cst_73 : f32 to vector<384x32xf32>
    %c0_74 = arith.constant 0 : index
    %c0_75 = arith.constant 0 : index
    %81 = vector.load %arg11[%c0_74, %c0_75] : memref<552x32xf32, #tpu.memory_space<vmem>>, vector<384x32xf32>
    %c0_76 = arith.constant 0 : index
    %c0_77 = arith.constant 0 : index
    %82 = vector.load %arg4[%c0_76, %c0_77] : memref<9x32xf32, #tpu.memory_space<vmem>>, vector<1x32xf32>
    %83 = vector.shape_cast %82 : vector<1x32xf32> to vector<32xf32>
    %84 = vector.shape_cast %83 : vector<32xf32> to vector<1x32xf32>
    %85 = vector.broadcast %84 : vector<1x32xf32> to vector<384x32xf32>
    %86 = arith.mulf %81, %85 : vector<384x32xf32>
    %87 = arith.addf %80, %86 : vector<384x32xf32>
    %c3_78 = arith.constant 3 : index
    %c0_79 = arith.constant 0 : index
    %88 = vector.load %arg11[%c3_78, %c0_79] : memref<552x32xf32, #tpu.memory_space<vmem>>, vector<384x32xf32>
    %c1_80 = arith.constant 1 : index
    %c0_81 = arith.constant 0 : index
    %89 = vector.load %arg4[%c1_80, %c0_81] : memref<9x32xf32, #tpu.memory_space<vmem>>, vector<1x32xf32>
    %90 = vector.shape_cast %89 : vector<1x32xf32> to vector<32xf32>
    %91 = vector.shape_cast %90 : vector<32xf32> to vector<1x32xf32>
    %92 = vector.broadcast %91 : vector<1x32xf32> to vector<384x32xf32>
    %93 = arith.mulf %88, %92 : vector<384x32xf32>
    %94 = arith.addf %87, %93 : vector<384x32xf32>
    %c6_82 = arith.constant 6 : index
    %c0_83 = arith.constant 0 : index
    %95 = vector.load %arg11[%c6_82, %c0_83] : memref<552x32xf32, #tpu.memory_space<vmem>>, vector<384x32xf32>
    %c2_84 = arith.constant 2 : index
    %c0_85 = arith.constant 0 : index
    %96 = vector.load %arg4[%c2_84, %c0_85] : memref<9x32xf32, #tpu.memory_space<vmem>>, vector<1x32xf32>
    %97 = vector.shape_cast %96 : vector<1x32xf32> to vector<32xf32>
    %98 = vector.shape_cast %97 : vector<32xf32> to vector<1x32xf32>
    %99 = vector.broadcast %98 : vector<1x32xf32> to vector<384x32xf32>
    %100 = arith.mulf %95, %99 : vector<384x32xf32>
    %101 = arith.addf %94, %100 : vector<384x32xf32>
    %c72_86 = arith.constant 72 : index
    %c0_87 = arith.constant 0 : index
    %102 = vector.load %arg11[%c72_86, %c0_87] : memref<552x32xf32, #tpu.memory_space<vmem>>, vector<384x32xf32>
    %c3_88 = arith.constant 3 : index
    %c0_89 = arith.constant 0 : index
    %103 = vector.load %arg4[%c3_88, %c0_89] : memref<9x32xf32, #tpu.memory_space<vmem>>, vector<1x32xf32>
    %104 = vector.shape_cast %103 : vector<1x32xf32> to vector<32xf32>
    %105 = vector.shape_cast %104 : vector<32xf32> to vector<1x32xf32>
    %106 = vector.broadcast %105 : vector<1x32xf32> to vector<384x32xf32>
    %107 = arith.mulf %102, %106 : vector<384x32xf32>
    %108 = arith.addf %101, %107 : vector<384x32xf32>
    %c75 = arith.constant 75 : index
    %c0_90 = arith.constant 0 : index
    %109 = vector.load %arg11[%c75, %c0_90] : memref<552x32xf32, #tpu.memory_space<vmem>>, vector<384x32xf32>
    %c4_91 = arith.constant 4 : index
    %c0_92 = arith.constant 0 : index
    %110 = vector.load %arg4[%c4_91, %c0_92] : memref<9x32xf32, #tpu.memory_space<vmem>>, vector<1x32xf32>
    %111 = vector.shape_cast %110 : vector<1x32xf32> to vector<32xf32>
    %112 = vector.shape_cast %111 : vector<32xf32> to vector<1x32xf32>
    %113 = vector.broadcast %112 : vector<1x32xf32> to vector<384x32xf32>
    %114 = arith.mulf %109, %113 : vector<384x32xf32>
    %115 = arith.addf %108, %114 : vector<384x32xf32>
    %c78 = arith.constant 78 : index
    %c0_93 = arith.constant 0 : index
    %116 = vector.load %arg11[%c78, %c0_93] : memref<552x32xf32, #tpu.memory_space<vmem>>, vector<384x32xf32>
    %c5_94 = arith.constant 5 : index
    %c0_95 = arith.constant 0 : index
    %117 = vector.load %arg4[%c5_94, %c0_95] : memref<9x32xf32, #tpu.memory_space<vmem>>, vector<1x32xf32>
    %118 = vector.shape_cast %117 : vector<1x32xf32> to vector<32xf32>
    %119 = vector.shape_cast %118 : vector<32xf32> to vector<1x32xf32>
    %120 = vector.broadcast %119 : vector<1x32xf32> to vector<384x32xf32>
    %121 = arith.mulf %116, %120 : vector<384x32xf32>
    %122 = arith.addf %115, %121 : vector<384x32xf32>
    %c144 = arith.constant 144 : index
    %c0_96 = arith.constant 0 : index
    %123 = vector.load %arg11[%c144, %c0_96] : memref<552x32xf32, #tpu.memory_space<vmem>>, vector<384x32xf32>
    %c6_97 = arith.constant 6 : index
    %c0_98 = arith.constant 0 : index
    %124 = vector.load %arg4[%c6_97, %c0_98] : memref<9x32xf32, #tpu.memory_space<vmem>>, vector<1x32xf32>
    %125 = vector.shape_cast %124 : vector<1x32xf32> to vector<32xf32>
    %126 = vector.shape_cast %125 : vector<32xf32> to vector<1x32xf32>
    %127 = vector.broadcast %126 : vector<1x32xf32> to vector<384x32xf32>
    %128 = arith.mulf %123, %127 : vector<384x32xf32>
    %129 = arith.addf %122, %128 : vector<384x32xf32>
    %c147 = arith.constant 147 : index
    %c0_99 = arith.constant 0 : index
    %130 = vector.load %arg11[%c147, %c0_99] : memref<552x32xf32, #tpu.memory_space<vmem>>, vector<384x32xf32>
    %c7_100 = arith.constant 7 : index
    %c0_101 = arith.constant 0 : index
    %131 = vector.load %arg4[%c7_100, %c0_101] : memref<9x32xf32, #tpu.memory_space<vmem>>, vector<1x32xf32>
    %132 = vector.shape_cast %131 : vector<1x32xf32> to vector<32xf32>
    %133 = vector.shape_cast %132 : vector<32xf32> to vector<1x32xf32>
    %134 = vector.broadcast %133 : vector<1x32xf32> to vector<384x32xf32>
    %135 = arith.mulf %130, %134 : vector<384x32xf32>
    %136 = arith.addf %129, %135 : vector<384x32xf32>
    %c150 = arith.constant 150 : index
    %c0_102 = arith.constant 0 : index
    %137 = vector.load %arg11[%c150, %c0_102] : memref<552x32xf32, #tpu.memory_space<vmem>>, vector<384x32xf32>
    %c8_103 = arith.constant 8 : index
    %c0_104 = arith.constant 0 : index
    %138 = vector.load %arg4[%c8_103, %c0_104] : memref<9x32xf32, #tpu.memory_space<vmem>>, vector<1x32xf32>
    %139 = vector.shape_cast %138 : vector<1x32xf32> to vector<32xf32>
    %140 = vector.shape_cast %139 : vector<32xf32> to vector<1x32xf32>
    %141 = vector.broadcast %140 : vector<1x32xf32> to vector<384x32xf32>
    %142 = arith.mulf %137, %141 : vector<384x32xf32>
    %143 = arith.addf %136, %142 : vector<384x32xf32>
    %c0_105 = arith.constant 0 : index
    %c0_106 = arith.constant 0 : index
    %144 = vector.load %arg5[%c0_105, %c0_106] : memref<1x32xf32, #tpu.memory_space<vmem>>, vector<1x32xf32>
    %145 = vector.broadcast %144 : vector<1x32xf32> to vector<384x32xf32>
    %146 = arith.addf %143, %145 : vector<384x32xf32>
    %147 = vector.shape_cast %146 : vector<384x32xf32> to vector<16x24x32xf32>
    %148 = vector.extract_strided_slice %147 {offsets = [0, 0, 0], sizes = [16, 16, 32], strides = [1, 1, 1]} : vector<16x24x32xf32> to vector<16x16x32xf32>
    %149 = vector.shape_cast %148 : vector<16x16x32xf32> to vector<256x32xf32>
    %cst_107 = arith.constant dense<0.000000e+00> : vector<16x16xf32>
    %150 = vector.multi_reduction <add>, %148, %cst_107 [2] : vector<16x16x32xf32> to vector<16x16xf32>
    %cst_108 = arith.constant 3.200000e+01 : f32
    %151 = vector.broadcast %cst_108 : f32 to vector<16x16xf32>
    %152 = arith.divf %150, %151 : vector<16x16xf32>
    %cst_109 = arith.constant 0.000000e+00 : f32
    %153 = vector.broadcast %cst_109 : f32 to vector<1x18xf32>
    %c0_110 = arith.constant 0 : index
    %c0_111 = arith.constant 0 : index
    %154 = vector.load %arg12[%c0_110, %c0_111] : memref<18x18xf32, #tpu.memory_space<vmem>>, vector<1x18xf32>
    tpu.vector_store %arg12[%c0_110, %c0_111], %153 {strides = array<i32>} : memref<18x18xf32, #tpu.memory_space<vmem>>, vector<1x18xf32>,
    %cst_112 = arith.constant 0.000000e+00 : f32
    %155 = vector.broadcast %cst_112 : f32 to vector<1x18xf32>
    %c17 = arith.constant 17 : index
    %c0_113 = arith.constant 0 : index
    %156 = vector.load %arg12[%c17, %c0_113] : memref<18x18xf32, #tpu.memory_space<vmem>>, vector<1x18xf32>
    tpu.vector_store %arg12[%c17, %c0_113], %155 {strides = array<i32>} : memref<18x18xf32, #tpu.memory_space<vmem>>, vector<1x18xf32>,
    %cst_114 = arith.constant 0.000000e+00 : f32
    %157 = vector.broadcast %cst_114 : f32 to vector<18x1xf32>
    %c0_115 = arith.constant 0 : index
    %c0_116 = arith.constant 0 : index
    %158 = vector.load %arg12[%c0_115, %c0_116] : memref<18x18xf32, #tpu.memory_space<vmem>>, vector<18x1xf32>
    tpu.vector_store %arg12[%c0_115, %c0_116], %157 {strides = array<i32>} : memref<18x18xf32, #tpu.memory_space<vmem>>, vector<18x1xf32>,
    %cst_117 = arith.constant 0.000000e+00 : f32
    %159 = vector.broadcast %cst_117 : f32 to vector<18x1xf32>
    %c0_118 = arith.constant 0 : index
    %c17_119 = arith.constant 17 : index
    %160 = vector.load %arg12[%c0_118, %c17_119] : memref<18x18xf32, #tpu.memory_space<vmem>>, vector<18x1xf32>
    tpu.vector_store %arg12[%c0_118, %c17_119], %159 {strides = array<i32>} : memref<18x18xf32, #tpu.memory_space<vmem>>, vector<18x1xf32>,
    %c1_120 = arith.constant 1 : index
    %c1_121 = arith.constant 1 : index
    %161 = vector.load %arg12[%c1_120, %c1_121] : memref<18x18xf32, #tpu.memory_space<vmem>>, vector<16x16xf32>
    tpu.vector_store %arg12[%c1_120, %c1_121], %152 {strides = array<i32>} : memref<18x18xf32, #tpu.memory_space<vmem>>, vector<16x16xf32>,
    %cst_122 = arith.constant 0.000000e+00 : f32
    %162 = vector.broadcast %cst_122 : f32 to vector<16x16xf32>
    %c0_123 = arith.constant 0 : index
    %c0_124 = arith.constant 0 : index
    %163 = vector.load %arg12[%c0_123, %c0_124] : memref<18x18xf32, #tpu.memory_space<vmem>>, vector<16x16xf32>
    %c0_125 = arith.constant 0 : index
    %164 = memref.load %arg6[%c0_125] : memref<12xf32, #tpu.memory_space<smem>>
    %165 = vector.broadcast %164 : f32 to vector<16x16xf32>
    %166 = arith.mulf %163, %165 : vector<16x16xf32>
    %167 = arith.addf %162, %166 : vector<16x16xf32>
    %c0_126 = arith.constant 0 : index
    %c1_127 = arith.constant 1 : index
    %168 = vector.load %arg12[%c0_126, %c1_127] : memref<18x18xf32, #tpu.memory_space<vmem>>, vector<16x16xf32>
    %c1_128 = arith.constant 1 : index
    %169 = memref.load %arg6[%c1_128] : memref<12xf32, #tpu.memory_space<smem>>
    %170 = vector.broadcast %169 : f32 to vector<16x16xf32>
    %171 = arith.mulf %168, %170 : vector<16x16xf32>
    %172 = arith.addf %167, %171 : vector<16x16xf32>
    %c0_129 = arith.constant 0 : index
    %c2_130 = arith.constant 2 : index
    %173 = vector.load %arg12[%c0_129, %c2_130] : memref<18x18xf32, #tpu.memory_space<vmem>>, vector<16x16xf32>
    %c2_131 = arith.constant 2 : index
    %174 = memref.load %arg6[%c2_131] : memref<12xf32, #tpu.memory_space<smem>>
    %175 = vector.broadcast %174 : f32 to vector<16x16xf32>
    %176 = arith.mulf %173, %175 : vector<16x16xf32>
    %177 = arith.addf %172, %176 : vector<16x16xf32>
    %c1_132 = arith.constant 1 : index
    %c0_133 = arith.constant 0 : index
    %178 = vector.load %arg12[%c1_132, %c0_133] : memref<18x18xf32, #tpu.memory_space<vmem>>, vector<16x16xf32>
    %c3_134 = arith.constant 3 : index
    %179 = memref.load %arg6[%c3_134] : memref<12xf32, #tpu.memory_space<smem>>
    %180 = vector.broadcast %179 : f32 to vector<16x16xf32>
    %181 = arith.mulf %178, %180 : vector<16x16xf32>
    %182 = arith.addf %177, %181 : vector<16x16xf32>
    %c1_135 = arith.constant 1 : index
    %c1_136 = arith.constant 1 : index
    %183 = vector.load %arg12[%c1_135, %c1_136] : memref<18x18xf32, #tpu.memory_space<vmem>>, vector<16x16xf32>
    %c4_137 = arith.constant 4 : index
    %184 = memref.load %arg6[%c4_137] : memref<12xf32, #tpu.memory_space<smem>>
    %185 = vector.broadcast %184 : f32 to vector<16x16xf32>
    %186 = arith.mulf %183, %185 : vector<16x16xf32>
    %187 = arith.addf %182, %186 : vector<16x16xf32>
    %c1_138 = arith.constant 1 : index
    %c2_139 = arith.constant 2 : index
    %188 = vector.load %arg12[%c1_138, %c2_139] : memref<18x18xf32, #tpu.memory_space<vmem>>, vector<16x16xf32>
    %c5_140 = arith.constant 5 : index
    %189 = memref.load %arg6[%c5_140] : memref<12xf32, #tpu.memory_space<smem>>
    %190 = vector.broadcast %189 : f32 to vector<16x16xf32>
    %191 = arith.mulf %188, %190 : vector<16x16xf32>
    %192 = arith.addf %187, %191 : vector<16x16xf32>
    %c2_141 = arith.constant 2 : index
    %c0_142 = arith.constant 0 : index
    %193 = vector.load %arg12[%c2_141, %c0_142] : memref<18x18xf32, #tpu.memory_space<vmem>>, vector<16x16xf32>
    %c6_143 = arith.constant 6 : index
    %194 = memref.load %arg6[%c6_143] : memref<12xf32, #tpu.memory_space<smem>>
    %195 = vector.broadcast %194 : f32 to vector<16x16xf32>
    %196 = arith.mulf %193, %195 : vector<16x16xf32>
    %197 = arith.addf %192, %196 : vector<16x16xf32>
    %c2_144 = arith.constant 2 : index
    %c1_145 = arith.constant 1 : index
    %198 = vector.load %arg12[%c2_144, %c1_145] : memref<18x18xf32, #tpu.memory_space<vmem>>, vector<16x16xf32>
    %c7_146 = arith.constant 7 : index
    %199 = memref.load %arg6[%c7_146] : memref<12xf32, #tpu.memory_space<smem>>
    %200 = vector.broadcast %199 : f32 to vector<16x16xf32>
    %201 = arith.mulf %198, %200 : vector<16x16xf32>
    %202 = arith.addf %197, %201 : vector<16x16xf32>
    %c2_147 = arith.constant 2 : index
    %c2_148 = arith.constant 2 : index
    %203 = vector.load %arg12[%c2_147, %c2_148] : memref<18x18xf32, #tpu.memory_space<vmem>>, vector<16x16xf32>
    %c8_149 = arith.constant 8 : index
    %204 = memref.load %arg6[%c8_149] : memref<12xf32, #tpu.memory_space<smem>>
    %205 = vector.broadcast %204 : f32 to vector<16x16xf32>
    %206 = arith.mulf %203, %205 : vector<16x16xf32>
    %207 = arith.addf %202, %206 : vector<16x16xf32>
    %c9 = arith.constant 9 : index
    %208 = memref.load %arg6[%c9] : memref<12xf32, #tpu.memory_space<smem>>
    %cst_150 = arith.constant 0.999994993 : f32
    %209 = arith.mulf %208, %cst_150 : f32
    %210 = vector.broadcast %209 : f32 to vector<16x16xf32>
    %211 = arith.mulf %207, %210 : vector<16x16xf32>
    %c10 = arith.constant 10 : index
    %212 = memref.load %arg6[%c10] : memref<12xf32, #tpu.memory_space<smem>>
    %213 = vector.broadcast %212 : f32 to vector<16x16xf32>
    %214 = arith.addf %211, %213 : vector<16x16xf32>
    %cst_151 = arith.constant 0.000000e+00 : f32
    %215 = vector.broadcast %cst_151 : f32 to vector<16x16xf32>
    %216 = arith.maximumf %214, %215 : vector<16x16xf32>
    %c11 = arith.constant 11 : index
    %217 = memref.load %arg6[%c11] : memref<12xf32, #tpu.memory_space<smem>>
    %218 = vector.broadcast %217 : f32 to vector<16x16xf32>
    %219 = arith.mulf %216, %218 : vector<16x16xf32>
    %220 = arith.negf %219 : vector<16x16xf32>
    %221 = math.exp %220 : vector<16x16xf32>
    %cst_152 = arith.constant 1.000000e+00 : f32
    %222 = vector.broadcast %cst_152 : f32 to vector<16x16xf32>
    %223 = arith.addf %222, %221 : vector<16x16xf32>
    %224 = arith.divf %222, %223 : vector<16x16xf32>
    %225 = vector.shape_cast %224 : vector<16x16xf32> to vector<16x16x1xf32>
    %226 = vector.broadcast %225 : vector<16x16x1xf32> to vector<16x16x32xf32>
    %227 = arith.addf %148, %226 : vector<16x16x32xf32>
    %228 = vector.shape_cast %227 : vector<16x16x32xf32> to vector<256x32xf32>
    %c0_153 = arith.constant 0 : index
    %c0_154 = arith.constant 0 : index
    %229 = vector.load %arg7[%c0_153, %c0_154] : memref<32x4xf32, #tpu.memory_space<vmem>>, vector<32x4xf32>
    %cst_155 = arith.constant dense<0.000000e+00> : vector<256x4xf32>
    %230 = tpu.matmul %228, %229, %cst_155 {dimension_numbers = #tpu.dot_dimension_numbers<[1], [0], [0], [1], [0, 0, 1, 1], [], []>} : vector<256x32xf32>, vector<32x4xf32>, vector<256x4xf32> -> vector<256x4xf32>
    %231 = arith.negf %230 : vector<256x4xf32>
    %232 = math.exp %231 : vector<256x4xf32>
    %cst_156 = arith.constant 1.000000e+00 : f32
    %233 = vector.broadcast %cst_156 : f32 to vector<256x4xf32>
    %234 = arith.addf %233, %232 : vector<256x4xf32>
    %235 = arith.divf %233, %234 : vector<256x4xf32>
    %236 = tpu.iota {dimensions = array<i32: 0>} : vector<4x32xi32>
    %237 = tpu.iota {dimensions = array<i32: 1>} : vector<4x32xi32>
    %c8_i32 = arith.constant 8 : i32
    %238 = vector.broadcast %c8_i32 : i32 to vector<4x32xi32>
    %239 = arith.muli %236, %238 : vector<4x32xi32>
    %240 = arith.cmpi sge, %237, %239 : vector<4x32xi32>
    %c1_i32 = arith.constant 1 : i32
    %241 = vector.broadcast %c1_i32 : i32 to vector<4x32xi32>
    %242 = arith.addi %236, %241 : vector<4x32xi32>
    %c8_i32_157 = arith.constant 8 : i32
    %243 = vector.broadcast %c8_i32_157 : i32 to vector<4x32xi32>
    %244 = arith.muli %242, %243 : vector<4x32xi32>
    %245 = arith.cmpi slt, %237, %244 : vector<4x32xi32>
    %246 = arith.andi %240, %245 : vector<4x32xi1>
    %cst_158 = arith.constant 1.000000e+00 : f32
    %cst_159 = arith.constant 0.000000e+00 : f32
    %247 = vector.broadcast %cst_158 : f32 to vector<4x32xf32>
    %248 = vector.broadcast %cst_159 : f32 to vector<4x32xf32>
    %249 = arith.select %246, %247, %248 : vector<4x32xi1>, vector<4x32xf32>
    %cst_160 = arith.constant dense<0.000000e+00> : vector<256x32xf32>
    %250 = tpu.matmul %235, %249, %cst_160 {dimension_numbers = #tpu.dot_dimension_numbers<[1], [0], [0], [1], [0, 0, 1, 1], [], []>} : vector<256x4xf32>, vector<4x32xf32>, vector<256x32xf32> -> vector<256x32xf32>
    %251 = arith.mulf %149, %250 : vector<256x32xf32>
    %c0_161 = arith.constant 0 : index
    %c0_162 = arith.constant 0 : index
    %252 = vector.load %arg8[%c0_161, %c0_162] : memref<1x32xf32, #tpu.memory_space<vmem>>, vector<1x32xf32>
    %cst_163 = arith.constant 0.999994993 : f32
    %253 = vector.broadcast %cst_163 : f32 to vector<1x32xf32>
    %254 = arith.mulf %252, %253 : vector<1x32xf32>
    %255 = vector.broadcast %254 : vector<1x32xf32> to vector<256x32xf32>
    %256 = arith.mulf %251, %255 : vector<256x32xf32>
    %c0_164 = arith.constant 0 : index
    %c0_165 = arith.constant 0 : index
    %257 = vector.load %arg9[%c0_164, %c0_165] : memref<1x32xf32, #tpu.memory_space<vmem>>, vector<1x32xf32>
    %258 = vector.broadcast %257 : vector<1x32xf32> to vector<256x32xf32>
    %259 = arith.addf %256, %258 : vector<256x32xf32>
    %cst_166 = arith.constant 0.000000e+00 : f32
    %260 = vector.broadcast %cst_166 : f32 to vector<256x32xf32>
    %261 = arith.maximumf %259, %260 : vector<256x32xf32>
    %262 = tpu.transpose %261, [1, 0] : vector<256x32xf32> -> vector<32x256xf32>
    %c0_167 = arith.constant 0 : index
    %c0_168 = arith.constant 0 : index
    %c0_169 = arith.constant 0 : index
    %263 = vector.load %arg10[%c0_167, %c0_168, %c0_169] : memref<1x32x256xf32, #tpu.memory_space<vmem>>, vector<1x32x256xf32>
    %264 = vector.shape_cast %263 : vector<1x32x256xf32> to vector<32x256xf32>
    %265 = vector.shape_cast %262 : vector<32x256xf32> to vector<1x32x256xf32>
    tpu.vector_store %arg10[%c0_167, %c0_168, %c0_169], %265 {strides = array<i32>} : memref<1x32x256xf32, #tpu.memory_space<vmem>>, vector<1x32x256xf32>,
    return
  }
  func.func @transform_0(%arg0: i32) -> (i32, i32, i32) {
    %c0_i32 = arith.constant 0 : i32
    %c0_i32_0 = arith.constant 0 : i32
    %c0_i32_1 = arith.constant 0 : i32
    return %arg0, %c0_i32, %c0_i32_0 : i32, i32, i32
  }
  func.func @transform_1(%arg0: i32) -> (i32, i32, i32) {
    %c0_i32 = arith.constant 0 : i32
    %c0_i32_0 = arith.constant 0 : i32
    %c0_i32_1 = arith.constant 0 : i32
    %c0_i32_2 = arith.constant 0 : i32
    return %c0_i32, %c0_i32_0, %c0_i32_1 : i32, i32, i32
  }
  func.func @transform_2(%arg0: i32) -> (i32, i32) {
    %c0_i32 = arith.constant 0 : i32
    %c0_i32_0 = arith.constant 0 : i32
    %c0_i32_1 = arith.constant 0 : i32
    return %c0_i32, %c0_i32_0 : i32, i32
  }
  func.func @transform_3(%arg0: i32) -> (i32, i32) {
    %c0_i32 = arith.constant 0 : i32
    %c0_i32_0 = arith.constant 0 : i32
    %c0_i32_1 = arith.constant 0 : i32
    return %c0_i32, %c0_i32_0 : i32, i32
  }
  func.func @transform_4(%arg0: i32) -> (i32, i32) {
    %c0_i32 = arith.constant 0 : i32
    %c0_i32_0 = arith.constant 0 : i32
    %c0_i32_1 = arith.constant 0 : i32
    return %c0_i32, %c0_i32_0 : i32, i32
  }
  func.func @transform_5(%arg0: i32) -> i32 {
    %c0_i32 = arith.constant 0 : i32
    %c0_i32_0 = arith.constant 0 : i32
    return %c0_i32 : i32
  }
  func.func @transform_6(%arg0: i32) -> (i32, i32) {
    %c0_i32 = arith.constant 0 : i32
    %c0_i32_0 = arith.constant 0 : i32
    %c0_i32_1 = arith.constant 0 : i32
    return %c0_i32, %c0_i32_0 : i32, i32
  }
  func.func @transform_7(%arg0: i32) -> (i32, i32) {
    %c0_i32 = arith.constant 0 : i32
    %c0_i32_0 = arith.constant 0 : i32
    %c0_i32_1 = arith.constant 0 : i32
    return %c0_i32, %c0_i32_0 : i32, i32
  }
  func.func @transform_8(%arg0: i32) -> (i32, i32) {
    %c0_i32 = arith.constant 0 : i32
    %c0_i32_0 = arith.constant 0 : i32
    %c0_i32_1 = arith.constant 0 : i32
    return %c0_i32, %c0_i32_0 : i32, i32
  }
  func.func @transform_9(%arg0: i32) -> (i32, i32, i32) {
    %c0_i32 = arith.constant 0 : i32
    %c0_i32_0 = arith.constant 0 : i32
    %c0_i32_1 = arith.constant 0 : i32
    return %arg0, %c0_i32, %c0_i32_0 : i32, i32, i32
  }
}

</mosaic_0001>

<llo_original>
// kernel: tile.12
$region0: #{tile.12}
  %s0 = inlined_call_operand.vmem [shape: f32[9,4,8], index: 0, kind: input, shape index: {}]
  %s1 = inlined_call_operand.hbm [shape: f32[9,32], index: 1, kind: output, shape index: {}]
  $region1: #{tile.12} parent=0
    #allocation0 [shape = 'u8[8192]{0}', space=vmem, size = 0x2000, scoped, tag = 'operand span for operand 1']
    #allocation1 [shape = 's32[1]{0}', space=sflag, size = 0x4, scoped, tag = 'scoped memory for tile.12']
    #allocation2 [shape = 'u8[36864]{0}', space=vmem, size = 0x9000, scoped, tag = 'scoped mem for input reshape']
    %2 = vsyncpa [#allocation1], 0
    %s4 = sshllo.u32 0, 4
    %s5 = smul.addr 4, 8
    %s6 = scalar_lea.vmem %s0, %s5
    %v7 = vld [vmem:[%s6] sm:%s4]
    %s8 = scalar_lea.vmem [#allocation2], 64
    %9 = vst [vmem:[%s8] sm:%s4] %v7
    %s10 = smul.addr 4, 7
    %s11 = scalar_lea.vmem %s0, %s10
    %v12 = vld [vmem:[%s11] sm:%s4]
    %s13 = scalar_lea.vmem [#allocation2], 56
    %14 = vst [vmem:[%s13] sm:%s4] %v12
    %s15 = smul.addr 4, 6
    %s16 = scalar_lea.vmem %s0, %s15
    %v17 = vld [vmem:[%s16] sm:%s4]
    %s18 = scalar_lea.vmem [#allocation2], 48
    %19 = vst [vmem:[%s18] sm:%s4] %v17
    %s20 = smul.addr 4, 5
    %s21 = scalar_lea.vmem %s0, %s20
    %v22 = vld [vmem:[%s21] sm:%s4]
    %s23 = scalar_lea.vmem [#allocation2], 40
    %24 = vst [vmem:[%s23] sm:%s4] %v22
    %s25 = smul.addr 4, 4
    %s26 = scalar_lea.vmem %s0, %s25
    %v27 = vld [vmem:[%s26] sm:%s4]
    %s28 = scalar_lea.vmem [#allocation2], 32
    %29 = vst [vmem:[%s28] sm:%s4] %v27
    %s30 = smul.addr 4, 3
    %s31 = scalar_lea.vmem %s0, %s30
    %v32 = vld [vmem:[%s31] sm:%s4]
    %s33 = scalar_lea.vmem [#allocation2], 24
    %34 = vst [vmem:[%s33] sm:%s4] %v32
    %s35 = smul.addr 4, 2
    %s36 = scalar_lea.vmem %s0, %s35
    %v37 = vld [vmem:[%s36] sm:%s4]
    %s38 = scalar_lea.vmem [#allocation2], 16
    %39 = vst [vmem:[%s38] sm:%s4] %v37
    %s40 = scalar_lea.vmem %s0, 4
    %v41 = vld [vmem:[%s40] sm:%s4]
    %s42 = scalar_lea.vmem [#allocation2], 8
    %43 = vst [vmem:[%s42] sm:%s4] %v41
    %v44 = vld [vmem:[%s0] sm:%s4]
    %45 = vst [vmem:[#allocation2] sm:%s4] %v44
    %v46 = vld [vmem:[#allocation2] ss:$8 sm:$0xf]
    %v47 = vld [vmem:[#allocation2] ss:$8 sm:$0xf0]
    %vm48 = vcmask 1047556
    %v49 = vsel %vm48, %v47, %v46
    %vm50 = vcmask 64512
    %51 = vst.msk [vmem:[#allocation0] sm:$0xff] %vm50, %v49
    %s52 = scalar_lea.vmem [#allocation2], 64
    %v53 = vld [vmem:[%s52] sm:$0x1]
    %vm54 = vcmask 64512
    %s55 = scalar_lea.vmem [#allocation0], 8
    %56 = vst.msk [vmem:[%s55] sm:$0x1] %vm54, %v53
    %s57 = scalar_lea.vmem [#allocation2], 3
    %v58 = vld [vmem:[%s57] ss:$8 sm:$0xf]
    %s59 = scalar_lea.vmem [#allocation2], 3
    %v60 = vld [vmem:[%s59] ss:$8 sm:$0xf0]
    %vm61 = vcmask 1047556
    %v62 = vsel %vm61, %v60, %v58
    %63 = vrot.lane.b32.xlu0 %v62, 24
    %v64 = vpop.permute.xlu0 %63
    %vm65 = vcmask 261312
    %66 = vst.msk [vmem:[#allocation0] sm:$0xff] %vm65, %v64
    %s67 = scalar_lea.vmem [#allocation2], 67
    %v68 = vld [vmem:[%s67] sm:$0x1]
    %69 = vrot.lane.b32.xlu0 %v68, 24
    %v70 = vpop.permute.xlu0 %69
    %vm71 = vcmask 261312
    %s72 = scalar_lea.vmem [#allocation0], 8
    %73 = vst.msk [vmem:[%s72] sm:$0x1] %vm71, %v70
    %s74 = scalar_lea.vmem [#allocation2], 2
    %v75 = vld [vmem:[%s74] ss:$8 sm:$0xf]
    %s76 = scalar_lea.vmem [#allocation2], 2
    %v77 = vld [vmem:[%s76] ss:$8 sm:$0xf0]
    %vm78 = vcmask 1047556
    %v79 = vsel %vm78, %v77, %v75
    %80 = vrot.lane.b32.xlu0 %v79, 16
    %v81 = vpop.permute.xlu0 %80
    %vm82 = vcmask 195712
    %83 = vst.msk [vmem:[#allocation0] sm:$0xff] %vm82, %v81
    %s84 = scalar_lea.vmem [#allocation2], 66
    %v85 = vld [vmem:[%s84] sm:$0x1]
    %86 = vrot.lane.b32.xlu0 %v85, 16
    %v87 = vpop.permute.xlu0 %86
    %vm88 = vcmask 195712
    %s89 = scalar_lea.vmem [#allocation0], 8
    %90 = vst.msk [vmem:[%s89] sm:$0x1] %vm88, %v87
    %s91 = scalar_lea.vmem [#allocation2], 1
    %v92 = vld [vmem:[%s91] ss:$8 sm:$0xf]
    %s93 = scalar_lea.vmem [#allocation2], 1
    %v94 = vld [vmem:[%s93] ss:$8 sm:$0xf0]
    %vm95 = vcmask 1047556
    %v96 = vsel %vm95, %v94, %v92
    %97 = vrot.lane.b32.xlu0 %v96, 8
    %v98 = vpop.permute.xlu0 %97
    %vm99 = vcmask 130112
    %100 = vst.msk [vmem:[#allocation0] sm:$0xff] %vm99, %v98
    %s101 = scalar_lea.vmem [#allocation2], 65
    %v102 = vld [vmem:[%s101] sm:$0x1]
    %103 = vrot.lane.b32.xlu0 %v102, 8
    %v104 = vpop.permute.xlu0 %103
    %vm105 = vcmask 130112
    %s106 = scalar_lea.vmem [#allocation0], 8
    %107 = vst.msk [vmem:[%s106] sm:$0x1] %vm105, %v104
    %s109 = ssub.s32 256, 256
    %110 = vsyncadd [#allocation1], %s109
    %s112 = sshll.u32 [#allocation0], 4
    %s113 = int_to_ptr.vmem [resolvable:$true] %s112
    %115 = dma.vmem_to_hbm [thread:$0]  %s113, 256, %s1, [#allocation1]
    %116 = dma.done [#allocation1], 256
    %117 = vsyncpa [#allocation1], 1

// kernel: tile.16
$region0: #{tile.16}
  #allocation0 [shape = 's32[1]{0}', space=sflag, size = 0x4, scoped, tag = 'scoped memory for tile.16']
  %s0 = inlined_call_operand.vmem [shape: f32[8], index: 0, kind: input, shape index: {}]
  %s1 = inlined_call_operand.vmem [shape: f32[4,8], index: 1, kind: output, shape index: {}]
  // Predicated region
  $region2: #{tile.16} parent=0 // pred_check
    _
  $region3: #{tile.16} parent=0 // pred_check_branch
    %3 = sbr.rel (0) target = $region5
  $region4: #{tile.16} parent=0 // pred_region
    _
  $region5: #{tile.16} parent=0 // pred_fallthru
    _
  %v4 = vld [vmem:[%s0] ss:$0 sm:$0xff]
  %5 = vst [vmem:[%s1] sm:$0xf] %v4

// kernel: tile.17
$region0: #{tile.17}
  %s0 = inlined_call_operand.vmem [shape: f32[4,8], index: 0, kind: input, shape index: {}]
  %s1 = inlined_call_operand.hbm [shape: f32[1,32], index: 1, kind: output, shape index: {}]
  $region1: #{tile.17} parent=0
    #allocation0 [shape = 'u8[512]{0}', space=vmem, size = 0x400, scoped, tag = 'operand span for operand 1']
    #allocation1 [shape = 's32[1]{0}', space=sflag, size = 0x4, scoped, tag = 'scoped memory for tile.17']
    #allocation2 [shape = 'u8[4096]{0}', space=vmem, size = 0x1000, scoped, tag = 'scoped mem for output reshape']
    #allocation3 [shape = 'u8[4096]{0}', space=vmem, size = 0x1000, scoped, tag = 'scoped mem for input reshape']
    %2 = vsyncpa [#allocation1], 0
    %s4 = sshllo.u32 0, 4
    %v5 = vld [vmem:[%s0] sm:%s4]
    %6 = vst [vmem:[#allocation3] sm:%s4] %v5
    %v7 = vld [vmem:[#allocation3] sm:$0x1]
    %vm8 = vcmask 64512
    %9 = vst.msk [vmem:[#allocation2] sm:$0x1] %vm8, %v7
    %s10 = scalar_lea.vmem [#allocation3], 3
    %v11 = vld [vmem:[%s10] sm:$0x1]
    %12 = vrot.lane.b32.xlu0 %v11, 24
    %v13 = vpop.permute.xlu0 %12
    %vm14 = vcmask 261312
    %15 = vst.msk [vmem:[#allocation2] sm:$0x1] %vm14, %v13
    %s16 = scalar_lea.vmem [#allocation3], 2
    %v17 = vld [vmem:[%s16] sm:$0x1]
    %18 = vrot.lane.b32.xlu0 %v17, 16
    %v19 = vpop.permute.xlu0 %18
    %vm20 = vcmask 195712
    %21 = vst.msk [vmem:[#allocation2] sm:$0x1] %vm20, %v19
    %s22 = scalar_lea.vmem [#allocation3], 1
    %v23 = vld [vmem:[%s22] sm:$0x1]
    %24 = vrot.lane.b32.xlu0 %v23, 8
    %v25 = vpop.permute.xlu0 %24
    %vm26 = vcmask 130112
    %27 = vst.msk [vmem:[#allocation2] sm:$0x1] %vm26, %v25
    %s29 = sshllo.u32 0, 1
    %v31 = vld [vmem:[#allocation2] sm:%s29]
    %s32 = sshllo.u32 0, 1
    %33 = vst [vmem:[#allocation0] sm:%s32] %v31
    %s35 = ssub.s32 16, 16
    %36 = vsyncadd [#allocation1], %s35
    %s38 = sshll.u32 [#allocation0], 4
    %s39 = int_to_ptr.vmem [resolvable:$true] %s38
    %41 = dma.vmem_to_hbm [thread:$0]  %s39, 16, %s1, [#allocation1]
    %42 = dma.done [#allocation1], 16
    %43 = vsyncpa [#allocation1], 1

// kernel: maff_forward.1
$region0: #{maff_forward.1}
  #allocation0 [shape = 'u32[]', space=smem, size = 0x4, offset = 0x4, fixed_abs, tag = 'smem constant byte address 0x4 - core index']
  #allocation1 [shape = 'u32[144,128]{1,0:T(1,128)}', space=vmem, size = 0x12000, scoped, tag = 'internal scratch']
  #allocation2 [shape = 'f32[552,32]{1,0:T(8,128)}', space=vmem, size = 0x45000, scoped, tag = 'scratch operand']
  #allocation3 [shape = 'f32[18,18]{1,0:T(8,128)}', space=vmem, size = 0x3000, scoped, tag = 'scratch operand']
  %s0 = inlined_call_operand.hbm [shape: bf16[2,456,32], index: 0, kind: input, shape index: {}]
  %s1 = inlined_call_operand.hbm [shape: bf16[9,32,32], index: 1, kind: input, shape index: {}]
  %s2 = inlined_call_operand.hbm [shape: f32[1,32], index: 2, kind: input, shape index: {}]
  %s3 = inlined_call_operand.hbm [shape: f32[9,32], index: 3, kind: input, shape index: {}]
  %s4 = inlined_call_operand.hbm [shape: f32[1,32], index: 4, kind: input, shape index: {}]
  %s5 = inlined_call_operand.hbm [shape: f32[12], index: 5, kind: input, shape index: {}]
  %s6 = inlined_call_operand.hbm [shape: f32[32,4], index: 6, kind: input, shape index: {}]
  %s7 = inlined_call_operand.hbm [shape: f32[1,32], index: 7, kind: input, shape index: {}]
  %s8 = inlined_call_operand.hbm [shape: f32[1,32], index: 8, kind: input, shape index: {}]
  %s9 = inlined_call_operand.hbm [shape: f32[2,32,256], index: 9, kind: output, shape index: {}]
  %s10 = sld [smem:[#allocation0]]
  $region105: #{maff_forward.1} parent=0
    _
  %s12 = ssub.s32 1, %s10
  %s13 = scalar_select 0, %s12, %s10
  $region1: #{maff_forward.1} parent=0
    #allocation4 [shape = 'u8[233472]{0}', space=vmem, size = 0x39000, scoped, tag = 'input window, operand 0']
    #allocation5 [shape = 's32[2]{0}', space=sflag, size = 0x8, scoped, tag = 'scoped memory for maff_forward.1']
    #allocation6 [shape = 's32[2]{0}', space=sflag, size = 0x8, scoped, tag = 'scoped memory for maff_forward.1']
    #allocation7 [shape = 's32[2]{0}', space=sflag, size = 0x8, scoped, tag = 'scoped memory for maff_forward.1']
    #allocation8 [shape = 'u8[73728]{0}', space=vmem, size = 0x12000, scoped, tag = 'input window, operand 1, single buffered']
    #allocation9 [shape = 's32[1]{0}', space=sflag, size = 0x4, scoped, tag = 'scoped memory for maff_forward.1']
    #allocation10 [shape = 'u8[512]{0}', space=vmem, size = 0x400, scoped, tag = 'input window, operand 2, single buffered']
    #allocation11 [shape = 'u8[8192]{0}', space=vmem, size = 0x2000, scoped, tag = 'input window, operand 3, single buffered']
    #allocation12 [shape = 's32[1]{0}', space=sflag, size = 0x4, scoped, tag = 'scoped memory for maff_forward.1']
    #allocation13 [shape = 'u8[512]{0}', space=vmem, size = 0x400, scoped, tag = 'input window, operand 4, single buffered']
    #allocation14 [shape = 'u8[512]{0}', space=smem, size = 0x200, scoped, tag = 'input window, operand 5, single buffered']
    #allocation15 [shape = 'u8[16384]{0}', space=vmem, size = 0x4000, scoped, tag = 'input window, operand 6, single buffered']
    #allocation16 [shape = 's32[1]{0}', space=sflag, size = 0x4, scoped, tag = 'scoped memory for maff_forward.1']
    #allocation17 [shape = 'u8[512]{0}', space=vmem, size = 0x400, scoped, tag = 'input window, operand 7, single buffered']
    #allocation18 [shape = 'u8[512]{0}', space=vmem, size = 0x400, scoped, tag = 'input window, operand 8, single buffered']
    #allocation19 [shape = 's32[1]{0}', space=sflag, size = 0x4, scoped, tag = 'scoped memory for maff_forward.1']
    #allocation20 [shape = 'u8[65536]{0}', space=vmem, size = 0x10000, scoped, tag = 'output window, operand 0']
    %14 = vsyncpa [#allocation5], 0
    %s15 = scalar_lea.sflag [#allocation5], 1
    %16 = vsyncpa %s15, 0
    %17 = vsyncpa [#allocation9], 0
    %18 = vsyncpa [#allocation12], 0
    %19 = vsyncpa [#allocation7], 0
    %20 = vsyncpa [#allocation16], 0
    %21 = vsyncpa [#allocation19], 0
    %22 = vsyncpa [#allocation6], 0
    %s23 = scalar_lea.sflag [#allocation6], 1
    %24 = vsyncpa %s23, 0
    loop: start=0, step=1, limit=4
    $region2: #{maff_forward.1} parent=1 // loop_pre_header
      _
    $region3: #{maff_forward.1} parent=1 // loop_header
      %s26 = sphi 0, %s30
      %p27 = scmp.ge.s32.totalorder %s26, 4
      %s36 = sphi 0, %s38
      %s39 = sphi 0, %s36
      %s40 = sphi 0, %s39
      %s56 = sphi 0, %s40
      %s60 = sphi 0, %s60
      %s62 = sphi 0, %s60
      %s63 = sphi 0, %s62
      %s77 = sphi 0, %s63
      %s81 = sphi 0, %s81
      %s83 = sphi 0, %s81
      %s84 = sphi 0, %s83
      %s98 = sphi 0, %s84
      %s102 = sphi 0, %s102
      %s104 = sphi 0, %s102
      %s105 = sphi 0, %s104
      %s119 = sphi 0, %s105
      %s123 = sphi 0, %s123
      %s125 = sphi 0, %s123
      %s126 = sphi 0, %s125
      %s140 = sphi 0, %s126
      %s144 = sphi 0, %s144
      %s146 = sphi 0, %s144
      %s147 = sphi 0, %s146
      %s161 = sphi 0, %s147
      %s165 = sphi 0, %s165
      %s167 = sphi 0, %s165
      %s168 = sphi 0, %s167
      %s182 = sphi 0, %s168
      %s186 = sphi 0, %s186
      %s188 = sphi 0, %s186
      %s189 = sphi 0, %s188
      %s203 = sphi 0, %s189
      %s207 = sphi 0, %s207
      %s209 = sphi 0, %s207
      %s210 = sphi 0, %s209
      %s224 = sphi 0, %s210
      %s230 = sphi 0, %s232
      %s233 = sphi 0, %s230
      %s234 = sphi 0, %s233
      %s250 = sphi 0, %s234
    $region4: #{maff_forward.1} parent=1 // loop_header_branch
      %29 = sbr.rel (%p27) target = $region8
    $region5: #{maff_forward.1} parent=1 // loop_body
      %s31 = ssub.s32 %s26, 1
      %s32 = ssub.s32 %s26, 2
      %s33 = sadd.s32 %s26, 1
      %s34 = ssub.s32 %s26, %s33
      %p35 = scmp.eq.s32.totalorder %s34, 0
      %s37 = sadd.s32 %s36, 1
      %s38 = scalar_select %p35, %s36, %s37
      %p41 = pneg %p35
      %p42 = scmp.eq.s32.totalorder %s26, 1
      %p43 = por %p41, %p42
      %p44 = scmp.ne.s32.totalorder %s36, %s39
      %p45 = scmp.eq.s32.totalorder %s26, 0
      %p46 = por %p44, %p45
      %p47 = scmp.ne.s32.totalorder %s36, %s39
      %p48 = scmp.eq.s32.totalorder %s31, 1
      %p49 = por %p47, %p48
      %p50 = scmp.ne.s32.totalorder %s39, %s40
      %p51 = scmp.eq.s32.totalorder %s31, 0
      %p52 = por %p50, %p51
      %p53 = scmp.ne.s32.totalorder %s39, %s40
      %p54 = scmp.eq.s32.totalorder %s32, 1
      %p55 = por %p53, %p54
      %p57 = scmp.ne.s32.totalorder %s40, %s56
      %p58 = scmp.eq.s32.totalorder %s32, 0
      %p59 = por %p57, %p58
      %s61 = sadd.s32 %s60, 1
      %p64 = scmp.eq.s32.totalorder %s26, 1
      %p65 = scmp.ne.s32.totalorder %s60, %s62
      %p66 = scmp.eq.s32.totalorder %s26, 0
      %p67 = por %p65, %p66
      %p68 = scmp.ne.s32.totalorder %s60, %s62
      %p69 = scmp.eq.s32.totalorder %s31, 1
      %p70 = por %p68, %p69
      %p71 = scmp.ne.s32.totalorder %s62, %s63
      %p72 = scmp.eq.s32.totalorder %s31, 0
      %p73 = por %p71, %p72
      %p74 = scmp.ne.s32.totalorder %s62, %s63
      %p75 = scmp.eq.s32.totalorder %s32, 1
      %p76 = por %p74, %p75
      %p78 = scmp.ne.s32.totalorder %s63, %s77
      %p79 = scmp.eq.s32.totalorder %s32, 0
      %p80 = por %p78, %p79
      %s82 = sadd.s32 %s81, 1
      %p85 = scmp.eq.s32.totalorder %s26, 1
      %p86 = scmp.ne.s32.totalorder %s81, %s83
      %p87 = scmp.eq.s32.totalorder %s26, 0
      %p88 = por %p86, %p87
      %p89 = scmp.ne.s32.totalorder %s81, %s83
      %p90 = scmp.eq.s32.totalorder %s31, 1
      %p91 = por %p89, %p90
      %p92 = scmp.ne.s32.totalorder %s83, %s84
      %p93 = scmp.eq.s32.totalorder %s31, 0
      %p94 = por %p92, %p93
      %p95 = scmp.ne.s32.totalorder %s83, %s84
      %p96 = scmp.eq.s32.totalorder %s32, 1
      %p97 = por %p95, %p96
      %p99 = scmp.ne.s32.totalorder %s84, %s98
      %p100 = scmp.eq.s32.totalorder %s32, 0
      %p101 = por %p99, %p100
      %s103 = sadd.s32 %s102, 1
      %p106 = scmp.eq.s32.totalorder %s26, 1
      %p107 = scmp.ne.s32.totalorder %s102, %s104
      %p108 = scmp.eq.s32.totalorder %s26, 0
      %p109 = por %p107, %p108
      %p110 = scmp.ne.s32.totalorder %s102, %s104
      %p111 = scmp.eq.s32.totalorder %s31, 1
      %p112 = por %p110, %p111
      %p113 = scmp.ne.s32.totalorder %s104, %s105
      %p114 = scmp.eq.s32.totalorder %s31, 0
      %p115 = por %p113, %p114
      %p116 = scmp.ne.s32.totalorder %s104, %s105
      %p117 = scmp.eq.s32.totalorder %s32, 1
      %p118 = por %p116, %p117
      %p120 = scmp.ne.s32.totalorder %s105, %s119
      %p121 = scmp.eq.s32.totalorder %s32, 0
      %p122 = por %p120, %p121
      %s124 = sadd.s32 %s123, 1
      %p127 = scmp.eq.s32.totalorder %s26, 1
      %p128 = scmp.ne.s32.totalorder %s123, %s125
      %p129 = scmp.eq.s32.totalorder %s26, 0
      %p130 = por %p128, %p129
      %p131 = scmp.ne.s32.totalorder %s123, %s125
      %p132 = scmp.eq.s32.totalorder %s31, 1
      %p133 = por %p131, %p132
      %p134 = scmp.ne.s32.totalorder %s125, %s126
      %p135 = scmp.eq.s32.totalorder %s31, 0
      %p136 = por %p134, %p135
      %p137 = scmp.ne.s32.totalorder %s125, %s126
      %p138 = scmp.eq.s32.totalorder %s32, 1
      %p139 = por %p137, %p138
      %p141 = scmp.ne.s32.totalorder %s126, %s140
      %p142 = scmp.eq.s32.totalorder %s32, 0
      %p143 = por %p141, %p142
      %s145 = sadd.s32 %s144, 1
      %p148 = scmp.eq.s32.totalorder %s26, 1
      %p149 = scmp.ne.s32.totalorder %s144, %s146
      %p150 = scmp.eq.s32.totalorder %s26, 0
      %p151 = por %p149, %p150
      %p152 = scmp.ne.s32.totalorder %s144, %s146
      %p153 = scmp.eq.s32.totalorder %s31, 1
      %p154 = por %p152, %p153
      %p155 = scmp.ne.s32.totalorder %s146, %s147
      %p156 = scmp.eq.s32.totalorder %s31, 0
      %p157 = por %p155, %p156
      %p158 = scmp.ne.s32.totalorder %s146, %s147
      %p159 = scmp.eq.s32.totalorder %s32, 1
      %p160 = por %p158, %p159
      %p162 = scmp.ne.s32.totalorder %s147, %s161
      %p163 = scmp.eq.s32.totalorder %s32, 0
      %p164 = por %p162, %p163
      %s166 = sadd.s32 %s165, 1
      %p169 = scmp.eq.s32.totalorder %s26, 1
      %p170 = scmp.ne.s32.totalorder %s165, %s167
      %p171 = scmp.eq.s32.totalorder %s26, 0
      %p172 = por %p170, %p171
      %p173 = scmp.ne.s32.totalorder %s165, %s167
      %p174 = scmp.eq.s32.totalorder %s31, 1
      %p175 = por %p173, %p174
      %p176 = scmp.ne.s32.totalorder %s167, %s168
      %p177 = scmp.eq.s32.totalorder %s31, 0
      %p178 = por %p176, %p177
      %p179 = scmp.ne.s32.totalorder %s167, %s168
      %p180 = scmp.eq.s32.totalorder %s32, 1
      %p181 = por %p179, %p180
      %p183 = scmp.ne.s32.totalorder %s168, %s182
      %p184 = scmp.eq.s32.totalorder %s32, 0
      %p185 = por %p183, %p184
      %s187 = sadd.s32 %s186, 1
      %p190 = scmp.eq.s32.totalorder %s26, 1
      %p191 = scmp.ne.s32.totalorder %s186, %s188
      %p192 = scmp.eq.s32.totalorder %s26, 0
      %p193 = por %p191, %p192
      %p194 = scmp.ne.s32.totalorder %s186, %s188
      %p195 = scmp.eq.s32.totalorder %s31, 1
      %p196 = por %p194, %p195
      %p197 = scmp.ne.s32.totalorder %s188, %s189
      %p198 = scmp.eq.s32.totalorder %s31, 0
      %p199 = por %p197, %p198
      %p200 = scmp.ne.s32.totalorder %s188, %s189
      %p201 = scmp.eq.s32.totalorder %s32, 1
      %p202 = por %p200, %p201
      %p204 = scmp.ne.s32.totalorder %s189, %s203
      %p205 = scmp.eq.s32.totalorder %s32, 0
      %p206 = por %p204, %p205
      %s208 = sadd.s32 %s207, 1
      %p211 = scmp.eq.s32.totalorder %s26, 1
      %p212 = scmp.ne.s32.totalorder %s207, %s209
      %p213 = scmp.eq.s32.totalorder %s26, 0
      %p214 = por %p212, %p213
      %p215 = scmp.ne.s32.totalorder %s207, %s209
      %p216 = scmp.eq.s32.totalorder %s31, 1
      %p217 = por %p215, %p216
      %p218 = scmp.ne.s32.totalorder %s209, %s210
      %p219 = scmp.eq.s32.totalorder %s31, 0
      %p220 = por %p218, %p219
      %p221 = scmp.ne.s32.totalorder %s209, %s210
      %p222 = scmp.eq.s32.totalorder %s32, 1
      %p223 = por %p221, %p222
      %p225 = scmp.ne.s32.totalorder %s210, %s224
      %p226 = scmp.eq.s32.totalorder %s32, 0
      %p227 = por %p225, %p226
      %s228 = ssub.s32 %s26, %s33
      %p229 = scmp.eq.s32.totalorder %s228, 0
      %s231 = sadd.s32 %s230, 1
      %s232 = scalar_select %p229, %s230, %s231
      %p235 = pneg %p229
      %p236 = scmp.eq.s32.totalorder %s26, 1
      %p237 = por %p235, %p236
      %p238 = scmp.ne.s32.totalorder %s230, %s233
      %p239 = scmp.eq.s32.totalorder %s26, 0
      %p240 = por %p238, %p239
      %p241 = scmp.ne.s32.totalorder %s230, %s233
      %p242 = scmp.eq.s32.totalorder %s31, 1
      %p243 = por %p241, %p242
      %p244 = scmp.ne.s32.totalorder %s233, %s234
      %p245 = scmp.eq.s32.totalorder %s31, 0
      %p246 = por %p244, %p245
      %p247 = scmp.ne.s32.totalorder %s233, %s234
      %p248 = scmp.eq.s32.totalorder %s32, 1
      %p249 = por %p247, %p248
      %p251 = scmp.ne.s32.totalorder %s234, %s250
      %p252 = scmp.eq.s32.totalorder %s32, 0
      %p253 = por %p251, %p252
      %p254 = scmp.le.s32.totalorder 1, %s26
      %p255 = scmp.lt.s32.totalorder %s26, 3
      %p256 = pnand %p254, %p255
      %p257 = pneg %p256
      // Predicated region
      $region9: #{maff_forward.1} parent=5 // pred_check
        _
      $region10: #{maff_forward.1} parent=5 // pred_check_branch
        %259 = sbr.rel (%p256) target = $region12
      $region11: #{maff_forward.1} parent=5 // pred_region
        %s260 = ssub.s32 %s26, 1
        // Predicated region
        $region13: #{maff_forward.1} parent=11 // pred_check
          %p261 = pneg %p73
        $region14: #{maff_forward.1} parent=11 // pred_check_branch
          %263 = sbr.rel (%p261) target = $region16
        $region15: #{maff_forward.1} parent=11 // pred_region
          %s265 = ssub.s32 2304, 2304
          %266 = vsyncadd [#allocation9], %s265
          %s267 = sshll.u32 [#allocation8], 4
          %s268 = int_to_ptr.vmem [resolvable:$true] %s267
          %273 = dma.hbm_to_vmem [thread:$0]  %s1, 2304, %s268, [#allocation9], 64, 64, 4
        $region16: #{maff_forward.1} parent=11 // pred_fallthru
          _
        // Predicated region
        $region17: #{maff_forward.1} parent=11 // pred_check
          %p274 = pneg %p94
        $region18: #{maff_forward.1} parent=11 // pred_check_branch
          %276 = sbr.rel (%p274) target = $region20
        $region19: #{maff_forward.1} parent=11 // pred_region
          %s278 = ssub.s32 16, 16
          %279 = vsyncadd [#allocation9], %s278
          %s281 = sshll.u32 [#allocation10], 4
          %s282 = int_to_ptr.vmem [resolvable:$true] %s281
          %284 = dma.hbm_to_vmem [thread:$0]  %s2, 16, %s282, [#allocation9]
        $region20: #{maff_forward.1} parent=11 // pred_fallthru
          _
        // Predicated region
        $region21: #{maff_forward.1} parent=11 // pred_check
          %p285 = pneg %p115
        $region22: #{maff_forward.1} parent=11 // pred_check_branch
          %287 = sbr.rel (%p285) target = $region24
        $region23: #{maff_forward.1} parent=11 // pred_region
          %s289 = ssub.s32 256, 256
          %290 = vsyncadd [#allocation12], %s289
          %s291 = sshll.u32 [#allocation11], 4
          %s292 = int_to_ptr.vmem [resolvable:$true] %s291
          %297 = dma.hbm_to_vmem [thread:$0]  %s3, 256, %s292, [#allocation12], 128, 128, 8
        $region24: #{maff_forward.1} parent=11 // pred_fallthru
          _
        // Predicated region
        $region25: #{maff_forward.1} parent=11 // pred_check
          %p298 = pneg %p136
        $region26: #{maff_forward.1} parent=11 // pred_check_branch
          %300 = sbr.rel (%p298) target = $region28
        $region27: #{maff_forward.1} parent=11 // pred_region
          %s302 = ssub.s32 16, 16
          %303 = vsyncadd [#allocation12], %s302
          %s305 = sshll.u32 [#allocation13], 4
          %s306 = int_to_ptr.vmem [resolvable:$true] %s305
          %308 = dma.hbm_to_vmem [thread:$0]  %s4, 16, %s306, [#allocation12]
        $region28: #{maff_forward.1} parent=11 // pred_fallthru
          _
        // Predicated region
        $region29: #{maff_forward.1} parent=11 // pred_check
          %p309 = pneg %p157
        $region30: #{maff_forward.1} parent=11 // pred_check_branch
          %311 = sbr.rel (%p309) target = $region32
        $region31: #{maff_forward.1} parent=11 // pred_region
          %s313 = ssub.s32 16, 16
          %314 = vsyncadd [#allocation7], %s313
          %317 = dma.hbm_to_smem %s5, 16, [#allocation14], [#allocation7]
        $region32: #{maff_forward.1} parent=11 // pred_fallthru
          _
        // Predicated region
        $region33: #{maff_forward.1} parent=11 // pred_check
          %p318 = pneg %p178
        $region34: #{maff_forward.1} parent=11 // pred_check_branch
          %320 = sbr.rel (%p318) target = $region36
        $region35: #{maff_forward.1} parent=11 // pred_region
          %s322 = ssub.s32 512, 512
          %323 = vsyncadd [#allocation16], %s322
          %s324 = sshll.u32 [#allocation15], 4
          %s325 = int_to_ptr.vmem [resolvable:$true] %s324
          %330 = dma.hbm_to_vmem [thread:$0]  %s6, 512, %s325, [#allocation16], 128, 128, 8
        $region36: #{maff_forward.1} parent=11 // pred_fallthru
          _
        // Predicated region
        $region37: #{maff_forward.1} parent=11 // pred_check
          %p331 = pneg %p199
        $region38: #{maff_forward.1} parent=11 // pred_check_branch
          %333 = sbr.rel (%p331) target = $region40
        $region39: #{maff_forward.1} parent=11 // pred_region
          %s335 = ssub.s32 16, 16
          %336 = vsyncadd [#allocation16], %s335
          %s338 = sshll.u32 [#allocation17], 4
          %s339 = int_to_ptr.vmem [resolvable:$true] %s338
          %341 = dma.hbm_to_vmem [thread:$0]  %s7, 16, %s339, [#allocation16]
        $region40: #{maff_forward.1} parent=11 // pred_fallthru
          _
        // Predicated region
        $region41: #{maff_forward.1} parent=11 // pred_check
          %p342 = pneg %p220
        $region42: #{maff_forward.1} parent=11 // pred_check_branch
          %344 = sbr.rel (%p342) target = $region44
        $region43: #{maff_forward.1} parent=11 // pred_region
          %s346 = ssub.s32 16, 16
          %347 = vsyncadd [#allocation19], %s346
          %s349 = sshll.u32 [#allocation18], 4
          %s350 = int_to_ptr.vmem [resolvable:$true] %s349
          %352 = dma.hbm_to_vmem [thread:$0]  %s8, 16, %s350, [#allocation19]
        $region44: #{maff_forward.1} parent=11 // pred_fallthru
          _
      $region12: #{maff_forward.1} parent=5 // pred_fallthru
        _
      %p353 = scmp.lt.s32.totalorder %s26, 2
      // Predicated region
      $region45: #{maff_forward.1} parent=5 // pred_check
        %p354 = pneg %p353
      $region46: #{maff_forward.1} parent=5 // pred_check_branch
        %356 = sbr.rel (%p354) target = $region48
      $region47: #{maff_forward.1} parent=5 // pred_region
        // Predicated region
        $region49: #{maff_forward.1} parent=47 // pred_check
          %p357 = pneg %p46
        $region50: #{maff_forward.1} parent=47 // pred_check_branch
          %359 = sbr.rel (%p357) target = $region52
        $region51: #{maff_forward.1} parent=47 // pred_region
          %s360 = sand.u32 %s36, 1
          %s361 = scalar_lea.sflag [#allocation5], %s360
          %s362 = sand.u32 %s36, 1
          %s363 = smul.addr %s362, 228
          %s364 = scalar_lea.vmem [#allocation4], %s363
          %s366 = ssub.s32 3648, 3648
          %367 = vsyncadd %s361, %s366
          %s368 = smul.addr %s26, 57
          %s369 = smul.addr %s368, 64
          %s370 = scalar_lea.hbm %s0, %s369
          %s371 = sshll.u32 %s364, 4
          %s372 = int_to_ptr.vmem [resolvable:$true] %s371
          %377 = dma.hbm_to_vmem [thread:$0]  %s370, 3648, %s372, %s361, 64, 64, 4
        $region52: #{maff_forward.1} parent=47 // pred_fallthru
          _
      $region48: #{maff_forward.1} parent=5 // pred_fallthru
        _
      %p378 = scmp.le.s32.totalorder 1, %s26
      %p379 = scmp.lt.s32.totalorder %s26, 3
      %p380 = pnand %p378, %p379
      %p381 = pneg %p380
      // Predicated region
      $region53: #{maff_forward.1} parent=5 // pred_check
        _
      $region54: #{maff_forward.1} parent=5 // pred_check_branch
        %383 = sbr.rel (%p380) target = $region56
      $region55: #{maff_forward.1} parent=5 // pred_region
        %s384 = ssub.s32 %s26, 1
        %s385 = sand.u32 %s39, 1
        %s386 = scalar_lea.sflag [#allocation5], %s385
        %s387 = sand.u32 %s39, 1
        %s388 = smul.addr %s387, 228
        %s389 = scalar_lea.vmem [#allocation4], %s388
        // Predicated region
        $region57: #{maff_forward.1} parent=55 // pred_check
          %p390 = pneg %p52
        $region58: #{maff_forward.1} parent=55 // pred_check_branch
          %392 = sbr.rel (%p390) target = $region60
        $region59: #{maff_forward.1} parent=55 // pred_region
          %393 = dma.done %s386, 3648
        $region60: #{maff_forward.1} parent=55 // pred_fallthru
          _
        // Predicated region
        $region61: #{maff_forward.1} parent=55 // pred_check
          %p394 = pneg %p73
        $region62: #{maff_forward.1} parent=55 // pred_check_branch
          %396 = sbr.rel (%p394) target = $region64
        $region63: #{maff_forward.1} parent=55 // pred_region
          %397 = dma.done [#allocation9], 2304
        $region64: #{maff_forward.1} parent=55 // pred_fallthru
          _
        // Predicated region
        $region65: #{maff_forward.1} parent=55 // pred_check
          %p398 = pneg %p94
        $region66: #{maff_forward.1} parent=55 // pred_check_branch
          %400 = sbr.rel (%p398) target = $region68
        $region67: #{maff_forward.1} parent=55 // pred_region
          %401 = dma.done [#allocation9], 16
        $region68: #{maff_forward.1} parent=55 // pred_fallthru
          _
        // Predicated region
        $region69: #{maff_forward.1} parent=55 // pred_check
          %p402 = pneg %p115
        $region70: #{maff_forward.1} parent=55 // pred_check_branch
          %404 = sbr.rel (%p402) target = $region72
        $region71: #{maff_forward.1} parent=55 // pred_region
          %405 = dma.done [#allocation12], 256
        $region72: #{maff_forward.1} parent=55 // pred_fallthru
          _
        // Predicated region
        $region73: #{maff_forward.1} parent=55 // pred_check
          %p406 = pneg %p136
        $region74: #{maff_forward.1} parent=55 // pred_check_branch
          %408 = sbr.rel (%p406) target = $region76
        $region75: #{maff_forward.1} parent=55 // pred_region
          %409 = dma.done [#allocation12], 16
        $region76: #{maff_forward.1} parent=55 // pred_fallthru
          _
        // Predicated region
        $region77: #{maff_forward.1} parent=55 // pred_check
          %p410 = pneg %p157
        $region78: #{maff_forward.1} parent=55 // pred_check_branch
          %412 = sbr.rel (%p410) target = $region80
        $region79: #{maff_forward.1} parent=55 // pred_region
          %413 = dma.done [#allocation7], 16
        $region80: #{maff_forward.1} parent=55 // pred_fallthru
          _
        // Predicated region
        $region81: #{maff_forward.1} parent=55 // pred_check
          %p414 = pneg %p178
        $region82: #{maff_forward.1} parent=55 // pred_check_branch
          %416 = sbr.rel (%p414) target = $region84
        $region83: #{maff_forward.1} parent=55 // pred_region
          %417 = dma.done [#allocation16], 512
        $region84: #{maff_forward.1} parent=55 // pred_fallthru
          _
        // Predicated region
        $region85: #{maff_forward.1} parent=55 // pred_check
          %p418 = pneg %p199
        $region86: #{maff_forward.1} parent=55 // pred_check_branch
          %420 = sbr.rel (%p418) target = $region88
        $region87: #{maff_forward.1} parent=55 // pred_region
          %421 = dma.done [#allocation16], 16
        $region88: #{maff_forward.1} parent=55 // pred_fallthru
          _
        // Predicated region
        $region89: #{maff_forward.1} parent=55 // pred_check
          %p422 = pneg %p220
        $region90: #{maff_forward.1} parent=55 // pred_check_branch
          %424 = sbr.rel (%p422) target = $region92
        $region91: #{maff_forward.1} parent=55 // pred_region
          %425 = dma.done [#allocation19], 16
        $region92: #{maff_forward.1} parent=55 // pred_fallthru
          _
        %426 = sfence
        %s427 = sand.u32 %s39, 1
        %s428 = scalar_lea.sflag [#allocation5], %s427
        %s429 = sand.u32 %s39, 1
        %s430 = smul.addr %s429, 228
        %s431 = scalar_lea.vmem [#allocation4], %s430
        %p432 = pneg %p52
        %p433 = pneg %p49
        %p434 = pneg %p73
        %p435 = pneg %p70
        %p436 = pneg %p94
        %p437 = pneg %p91
        %p438 = pneg %p115
        %p439 = pneg %p112
        %p440 = pneg %p136
        %p441 = pneg %p133
        %p442 = pneg %p157
        %p443 = pneg %p154
        %p444 = pneg %p178
        %p445 = pneg %p175
        %p446 = pneg %p199
        %p447 = pneg %p196
        %p448 = pneg %p220
        %p449 = pneg %p217
        %p450 = pneg %p246
        %p451 = pneg %p243
        %s452 = sand.u32 %s233, 1
        %s453 = scalar_lea.sflag [#allocation6], %s452
        %s454 = sand.u32 %s233, 1
        %s455 = smul.addr %s454, 64
        %s456 = scalar_lea.vmem [#allocation20], %s455
        %v458 = vld [vmem:[%s389] sm:$0xf]
        %v459 = vld [vmem:[%s389 + $0x4] sm:$0xf]
        %v460 = vld [vmem:[%s389 + $0x8] sm:$0xf]
        %v461 = vld [vmem:[%s389 + $0xc] sm:$0xf]
        %v462 = vld [vmem:[%s389 + $0x10] sm:$0xf]
        %v463 = vld [vmem:[%s389 + $0x14] sm:$0xf]
        %v464 = vld [vmem:[%s389 + $0x18] sm:$0xf]
        %v465 = vld [vmem:[%s389 + $0x1c] sm:$0xf]
        %v466 = vld [vmem:[%s389 + $0x20] sm:$0xf]
        %v467 = vld [vmem:[%s389 + $0x24] sm:$0xf]
        %v468 = vld [vmem:[%s389 + $0x28] sm:$0xf]
        %v469 = vld [vmem:[%s389 + $0x2c] sm:$0xf]
        %v470 = vld [vmem:[%s389 + $0x30] sm:$0xf]
        %v471 = vld [vmem:[%s389 + $0x34] sm:$0xf]
        %v472 = vld [vmem:[%s389 + $0x38] sm:$0xf]
        %v473 = vld [vmem:[%s389 + $0x3c] sm:$0xf]
        %v474 = vld [vmem:[%s389 + $0x40] sm:$0xf]
        %v475 = vld [vmem:[%s389 + $0x44] sm:$0xf]
        %v476 = vld [vmem:[%s389 + $0x48] sm:$0xf]
        %v477 = vld [vmem:[%s389 + $0x4c] sm:$0xf]
        %v478 = vld [vmem:[%s389 + $0x50] sm:$0xf]
        %v479 = vld [vmem:[%s389 + $0x54] sm:$0xf]
        %v480 = vld [vmem:[%s389 + $0x58] sm:$0xf]
        %v481 = vld [vmem:[%s389 + $0x5c] sm:$0xf]
        %v482 = vld [vmem:[%s389 + $0x60] sm:$0xf]
        %v483 = vld [vmem:[%s389 + $0x64] sm:$0xf]
        %v484 = vld [vmem:[%s389 + $0x68] sm:$0xf]
        %v485 = vld [vmem:[%s389 + $0x6c] sm:$0xf]
        %v486 = vld [vmem:[%s389 + $0x70] sm:$0xf]
        %v487 = vld [vmem:[%s389 + $0x74] sm:$0xf]
        %v488 = vld [vmem:[%s389 + $0x78] sm:$0xf]
        %v489 = vld [vmem:[%s389 + $0x7c] sm:$0xf]
        %v490 = vld [vmem:[%s389 + $0x80] sm:$0xf]
        %v491 = vld [vmem:[%s389 + $0x84] sm:$0xf]
        %v492 = vld [vmem:[%s389 + $0x88] sm:$0xf]
        %v493 = vld [vmem:[%s389 + $0x8c] sm:$0xf]
        %v494 = vld [vmem:[%s389 + $0x90] sm:$0xf]
        %v495 = vld [vmem:[%s389 + $0x94] sm:$0xf]
        %v496 = vld [vmem:[%s389 + $0x98] sm:$0xf]
        %v497 = vld [vmem:[%s389 + $0x9c] sm:$0xf]
        %v498 = vld [vmem:[%s389 + $0xa0] sm:$0xf]
        %v499 = vld [vmem:[%s389 + $0xa4] sm:$0xf]
        %v500 = vld [vmem:[%s389 + $0xa8] sm:$0xf]
        %v501 = vld [vmem:[%s389 + $0xac] sm:$0xf]
        %v502 = vld [vmem:[%s389 + $0xb0] sm:$0xf]
        %v503 = vld [vmem:[%s389 + $0xb4] sm:$0xf]
        %v504 = vld [vmem:[%s389 + $0xb8] sm:$0xf]
        %v505 = vld [vmem:[%s389 + $0xbc] sm:$0xf]
        %v506 = vld [vmem:[#allocation8] sm:$0xf]
        %v507 = vld [vmem:[#allocation8 + $0x4] sm:$0xf]
        %v508 = vld [vmem:[#allocation8 + $0x8] sm:$0xf]
        %v509 = vld [vmem:[#allocation8 + $0xc] sm:$0xf]
        %v510 = vld [vmem:[%s389 + $0xc0] sm:$0x1]
        %s511 = scalar_lea.vmem [#allocation8], 16
        %v512 = vld [vmem:[%s511] sm:$0xf]
        %v513 = vld [vmem:[%s511 + $0x4] sm:$0xf]
        %v514 = vld [vmem:[%s511 + $0x8] sm:$0xf]
        %v515 = vld [vmem:[%s511 + $0xc] sm:$0xf]
        %v565 = vunpack.c.l.b16 %v458
        %v566 = vunpack.c.l.b16 %v459
        %v567 = vunpack.c.l.b16 %v460
        %v568 = vunpack.c.l.b16 %v461
        %v569 = vunpack.c.l.b16 %v462
        %v570 = vunpack.c.l.b16 %v463
        %v571 = vunpack.c.l.b16 %v464
        %v572 = vunpack.c.l.b16 %v465
        %v573 = vunpack.c.l.b16 %v466
        %v574 = vunpack.c.l.b16 %v467
        %v575 = vunpack.c.l.b16 %v468
        %v576 = vunpack.c.l.b16 %v469
        %v577 = vunpack.c.l.b16 %v470
        %v578 = vunpack.c.l.b16 %v471
        %v579 = vunpack.c.l.b16 %v472
        %v580 = vunpack.c.l.b16 %v473
        %v581 = vunpack.c.l.b16 %v474
        %v582 = vunpack.c.l.b16 %v475
        %v583 = vunpack.c.l.b16 %v476
        %v584 = vunpack.c.l.b16 %v477
        %v585 = vunpack.c.l.b16 %v478
        %v586 = vunpack.c.l.b16 %v479
        %v587 = vunpack.c.l.b16 %v480
        %v588 = vunpack.c.l.b16 %v481
        %v589 = vunpack.c.l.b16 %v482
        %v590 = vunpack.c.l.b16 %v483
        %v591 = vunpack.c.l.b16 %v484
        %v592 = vunpack.c.l.b16 %v485
        %v593 = vunpack.c.l.b16 %v486
        %v594 = vunpack.c.l.b16 %v487
        %v595 = vunpack.c.l.b16 %v488
        %v596 = vunpack.c.l.b16 %v489
        %v597 = vunpack.c.l.b16 %v490
        %v598 = vunpack.c.l.b16 %v491
        %v599 = vunpack.c.l.b16 %v492
        %v600 = vunpack.c.l.b16 %v493
        %v601 = vunpack.c.l.b16 %v494
        %v602 = vunpack.c.l.b16 %v495
        %v603 = vunpack.c.l.b16 %v496
        %v604 = vunpack.c.l.b16 %v497
        %v605 = vunpack.c.l.b16 %v498
        %v606 = vunpack.c.l.b16 %v499
        %v607 = vunpack.c.l.b16 %v500
        %v608 = vunpack.c.l.b16 %v501
        %v609 = vunpack.c.l.b16 %v502
        %v610 = vunpack.c.l.b16 %v503
        %v611 = vunpack.c.l.b16 %v504
        %v612 = vunpack.c.l.b16 %v505
        %v613 = vunpack.c.l.b16 %v510
        %v614 = vpack.c.b16 %v566, %v565
        %v615 = vpack.c.b16 %v568, %v567
        %v616 = vpack.c.b16 %v570, %v569
        %v617 = vpack.c.b16 %v572, %v571
        %v618 = vpack.c.b16 %v574, %v573
        %v619 = vpack.c.b16 %v576, %v575
        %v620 = vpack.c.b16 %v578, %v577
        %v621 = vpack.c.b16 %v580, %v579
        %v622 = vpack.c.b16 %v582, %v581
        %v623 = vpack.c.b16 %v584, %v583
        %v624 = vpack.c.b16 %v586, %v585
        %v625 = vpack.c.b16 %v588, %v587
        %v626 = vpack.c.b16 %v590, %v589
        %v627 = vpack.c.b16 %v592, %v591
        %v628 = vpack.c.b16 %v594, %v593
        %v629 = vpack.c.b16 %v596, %v595
        %v630 = vpack.c.b16 %v598, %v597
        %v631 = vpack.c.b16 %v600, %v599
        %v632 = vpack.c.b16 %v602, %v601
        %v633 = vpack.c.b16 %v604, %v603
        %v634 = vpack.c.b16 %v606, %v605
        %v635 = vpack.c.b16 %v608, %v607
        %v636 = vpack.c.b16 %v610, %v609
        %v637 = vpack.c.b16 %v612, %v611
        %v638 = vpack.c.b16 %v613, %v613
        %vm639 = vsmask.f32 7424
        %v641 = vshrl.u32 %v614, 16
        %v643 = vshll.u32 %v614, 16
        %v645 = vrot.slane %v643, 1
        %v646 = vor.u32 %v641, %v645
        %v648 = vshll.u32 %v615, 16
        %v650 = vrot.slane %v648, 1
        %v651 = vsel %vm639, %v646, %v650
        %v652 = vshrl.u32 %v615, 16
        %v654 = vor.u32 %v652, %v650
        %v656 = vshll.u32 %v616, 16
        %v658 = vrot.slane %v656, 1
        %v659 = vsel %vm639, %v654, %v658
        %v660 = vshrl.u32 %v616, 16
        %v662 = vor.u32 %v660, %v658
        %v664 = vshll.u32 %v617, 16
        %v666 = vrot.slane %v664, 1
        %v667 = vsel %vm639, %v662, %v666
        %v668 = vshrl.u32 %v617, 16
        %v670 = vor.u32 %v668, %v666
        %v672 = vshll.u32 %v618, 16
        %v674 = vrot.slane %v672, 1
        %v675 = vsel %vm639, %v670, %v674
        %v676 = vshrl.u32 %v618, 16
        %v678 = vor.u32 %v676, %v674
        %v680 = vshll.u32 %v619, 16
        %v682 = vrot.slane %v680, 1
        %v683 = vsel %vm639, %v678, %v682
        %v684 = vshrl.u32 %v619, 16
        %v686 = vor.u32 %v684, %v682
        %v688 = vshll.u32 %v620, 16
        %v690 = vrot.slane %v688, 1
        %v691 = vsel %vm639, %v686, %v690
        %v692 = vshrl.u32 %v620, 16
        %v694 = vor.u32 %v692, %v690
        %v696 = vshll.u32 %v621, 16
        %v698 = vrot.slane %v696, 1
        %v699 = vsel %vm639, %v694, %v698
        %v700 = vshrl.u32 %v621, 16
        %v702 = vor.u32 %v700, %v698
        %v704 = vshll.u32 %v622, 16
        %v706 = vrot.slane %v704, 1
        %v707 = vsel %vm639, %v702, %v706
        %v708 = vshrl.u32 %v622, 16
        %v710 = vor.u32 %v708, %v706
        %v712 = vshll.u32 %v623, 16
        %v714 = vrot.slane %v712, 1
        %v715 = vsel %vm639, %v710, %v714
        %v716 = vshrl.u32 %v623, 16
        %v718 = vor.u32 %v716, %v714
        %v720 = vshll.u32 %v624, 16
        %v722 = vrot.slane %v720, 1
        %v723 = vsel %vm639, %v718, %v722
        %v724 = vshrl.u32 %v624, 16
        %v726 = vor.u32 %v724, %v722
        %v728 = vshll.u32 %v625, 16
        %v730 = vrot.slane %v728, 1
        %v731 = vsel %vm639, %v726, %v730
        %v732 = vshrl.u32 %v625, 16
        %v734 = vor.u32 %v732, %v730
        %v736 = vshll.u32 %v626, 16
        %v738 = vrot.slane %v736, 1
        %v739 = vsel %vm639, %v734, %v738
        %v740 = vshrl.u32 %v626, 16
        %v742 = vor.u32 %v740, %v738
        %v744 = vshll.u32 %v627, 16
        %v746 = vrot.slane %v744, 1
        %v747 = vsel %vm639, %v742, %v746
        %v748 = vshrl.u32 %v627, 16
        %v750 = vor.u32 %v748, %v746
        %v752 = vshll.u32 %v628, 16
        %v754 = vrot.slane %v752, 1
        %v755 = vsel %vm639, %v750, %v754
        %v756 = vshrl.u32 %v628, 16
        %v758 = vor.u32 %v756, %v754
        %v760 = vshll.u32 %v629, 16
        %v762 = vrot.slane %v760, 1
        %v763 = vsel %vm639, %v758, %v762
        %v764 = vshrl.u32 %v629, 16
        %v766 = vor.u32 %v764, %v762
        %v768 = vshll.u32 %v630, 16
        %v770 = vrot.slane %v768, 1
        %v771 = vsel %vm639, %v766, %v770
        %v772 = vshrl.u32 %v630, 16
        %v774 = vor.u32 %v772, %v770
        %v776 = vshll.u32 %v631, 16
        %v778 = vrot.slane %v776, 1
        %v779 = vsel %vm639, %v774, %v778
        %v780 = vshrl.u32 %v631, 16
        %v782 = vor.u32 %v780, %v778
        %v784 = vshll.u32 %v632, 16
        %v786 = vrot.slane %v784, 1
        %v787 = vsel %vm639, %v782, %v786
        %v788 = vshrl.u32 %v632, 16
        %v790 = vor.u32 %v788, %v786
        %v792 = vshll.u32 %v633, 16
        %v794 = vrot.slane %v792, 1
        %v795 = vsel %vm639, %v790, %v794
        %v796 = vshrl.u32 %v633, 16
        %v798 = vor.u32 %v796, %v794
        %v800 = vshll.u32 %v634, 16
        %v802 = vrot.slane %v800, 1
        %v803 = vsel %vm639, %v798, %v802
        %v804 = vshrl.u32 %v634, 16
        %v806 = vor.u32 %v804, %v802
        %v808 = vshll.u32 %v635, 16
        %v810 = vrot.slane %v808, 1
        %v811 = vsel %vm639, %v806, %v810
        %v812 = vshrl.u32 %v635, 16
        %v814 = vor.u32 %v812, %v810
        %v816 = vshll.u32 %v636, 16
        %v818 = vrot.slane %v816, 1
        %v819 = vsel %vm639, %v814, %v818
        %v820 = vshrl.u32 %v636, 16
        %v822 = vor.u32 %v820, %v818
        %v824 = vshll.u32 %v637, 16
        %v826 = vrot.slane %v824, 1
        %v827 = vsel %vm639, %v822, %v826
        %v828 = vshrl.u32 %v637, 16
        %v830 = vor.u32 %v828, %v826
        %v832 = vshll.u32 %v638, 16
        %v834 = vrot.slane %v832, 1
        %v835 = vsel %vm639, %v830, %v834
        %v840 = vunpack.c.l.b16 %v512
        %v841 = vunpack.c.l.b16 %v513
        %v842 = vunpack.c.l.b16 %v514
        %v843 = vunpack.c.l.b16 %v515
        %v844 = vpack.c.b16 %v841, %v840
        %v845 = vpack.c.b16 %v843, %v842
        %vm848 = vcmask 261120
        %v850 = vsel %vm848, %v651, 0
        %v853 = vsel %vm848, %v659, 0
        %v856 = vsel %vm848, %v667, 0
        %v859 = vsel %vm848, %v675, 0
        %v862 = vsel %vm848, %v683, 0
        %v865 = vsel %vm848, %v691, 0
        %v868 = vsel %vm848, %v699, 0
        %v871 = vsel %vm848, %v707, 0
        %v874 = vsel %vm848, %v715, 0
        %v877 = vsel %vm848, %v723, 0
        %v880 = vsel %vm848, %v731, 0
        %v883 = vsel %vm848, %v739, 0
        %v886 = vsel %vm848, %v747, 0
        %v889 = vsel %vm848, %v755, 0
        %v892 = vsel %vm848, %v763, 0
        %v895 = vsel %vm848, %v771, 0
        %v898 = vsel %vm848, %v779, 0
        %v901 = vsel %vm848, %v787, 0
        %v904 = vsel %vm848, %v795, 0
        %v907 = vsel %vm848, %v803, 0
        %v910 = vsel %vm848, %v811, 0
        %v913 = vsel %vm848, %v819, 0
        %v916 = vsel %vm848, %v827, 0
        %v919 = vsel %vm848, %v835, 0
        %921 = vmatprep.subr.bf16.mxu0 0
        %922 = vmatpush1.bf16.msra.mxu0 %v844
        %923 = vmatprep.subr.bf16.mxu0 0
        %924 = vmatpush1.bf16.msra.mxu0 %v845
        %925 = vmatprep.subr.bf16.mxu0 0
        %926 = vmatpush1.bf16.msra.mxu0 0
        %927 = vmatprep.subr.bf16.mxu0 0
        %928 = vmatpush1.bf16.msra.mxu0 0
        %929 = vmatprep.subr.bf16.mxu0 0
        %930 = vmatpush1.bf16.msra.mxu0 0
        %931 = vmatprep.subr.bf16.mxu0 0
        %932 = vmatpush1.bf16.msra.mxu0 0
        %933 = vmatprep.subr.bf16.mxu0 0
        %934 = vmatpush1.bf16.msra.mxu0 0
        %935 = vmatprep.subr.bf16.mxu0 0
        %936 = vmatpush1.bf16.msra.mxu0 0
        %937 = vmatprep.subr.bf16.mxu0 0
        %938 = vmatpush1.bf16.msra.mxu0 0
        %939 = vmatprep.subr.bf16.mxu0 0
        %940 = vmatpush1.bf16.msra.mxu0 0
        %941 = vmatprep.subr.bf16.mxu0 0
        %942 = vmatpush1.bf16.msra.mxu0 0
        %943 = vmatprep.subr.bf16.mxu0 0
        %944 = vmatpush1.bf16.msra.mxu0 0
        %945 = vmatprep.subr.bf16.mxu0 0
        %946 = vmatpush1.bf16.msra.mxu0 0
        %947 = vmatprep.subr.bf16.mxu0 0
        %948 = vmatpush1.bf16.msra.mxu0 0
        %949 = vmatprep.subr.bf16.mxu0 0
        %950 = vmatpush1.bf16.msra.mxu0 0
        %951 = vmatprep.subr.bf16.mxu0 0
        %952 = vmatpush1.bf16.msra.mxu0 0
        %953 = vmatprep.mubr.bf16.mxu0 0
        %954 = vmatmul.mubr.bf16.gmra.mrb[0].mxu0 %v850
        %v955 = vpop.f32.mrb[0].mxu0
        %v956 = vadd.f32 0.0, %v955
        %v957 = vpop.f32.mrb[0].mxu0
        %v958 = vpop.f32.mrb[0].mxu0
        %v959 = vadd.f32 0.0, %v958
        %v960 = vpop.f32.mrb[0].mxu0
        %961 = vmatprep.mubr.bf16.mxu0 0
        %962 = vmatmul.mubr.bf16.gmra.mrb[0].mxu0 %v853
        %v963 = vpop.f32.mrb[0].mxu0
        %v964 = vadd.f32 0.0, %v963
        %v965 = vpop.f32.mrb[0].mxu0
        %v966 = vpop.f32.mrb[0].mxu0
        %v967 = vadd.f32 0.0, %v966
        %v968 = vpop.f32.mrb[0].mxu0
        %969 = vmatprep.mubr.bf16.mxu0 0
        %970 = vmatmul.mubr.bf16.gmra.mrb[0].mxu0 %v856
        %v971 = vpop.f32.mrb[0].mxu0
        %v972 = vadd.f32 0.0, %v971
        %v973 = vpop.f32.mrb[0].mxu0
        %v974 = vpop.f32.mrb[0].mxu0
        %v975 = vadd.f32 0.0, %v974
        %v976 = vpop.f32.mrb[0].mxu0
        %977 = vmatprep.mubr.bf16.mxu0 0
        %978 = vmatmul.mubr.bf16.gmra.mrb[0].mxu0 %v859
        %v979 = vpop.f32.mrb[0].mxu0
        %v980 = vadd.f32 0.0, %v979
        %v981 = vpop.f32.mrb[0].mxu0
        %v982 = vpop.f32.mrb[0].mxu0
        %v983 = vadd.f32 0.0, %v982
        %v984 = vpop.f32.mrb[0].mxu0
        %985 = vmatprep.mubr.bf16.mxu0 0
        %986 = vmatmul.mubr.bf16.gmra.mrb[0].mxu0 %v862
        %v987 = vpop.f32.mrb[0].mxu0
        %v988 = vadd.f32 0.0, %v987
        %v989 = vpop.f32.mrb[0].mxu0
        %v990 = vpop.f32.mrb[0].mxu0
        %v991 = vadd.f32 0.0, %v990
        %v992 = vpop.f32.mrb[0].mxu0
        %993 = vmatprep.mubr.bf16.mxu0 0
        %994 = vmatmul.mubr.bf16.gmra.mrb[0].mxu0 %v865
        %v995 = vpop.f32.mrb[0].mxu0
        %v996 = vadd.f32 0.0, %v995
        %v997 = vpop.f32.mrb[0].mxu0
        %v998 = vpop.f32.mrb[0].mxu0
        %v999 = vadd.f32 0.0, %v998
        %v1000 = vpop.f32.mrb[0].mxu0
        %1001 = vmatprep.mubr.bf16.mxu0 0
        %1002 = vmatmul.mubr.bf16.gmra.mrb[0].mxu0 %v868
        %v1003 = vpop.f32.mrb[0].mxu0
        %v1004 = vadd.f32 0.0, %v1003
        %v1005 = vpop.f32.mrb[0].mxu0
        %v1006 = vpop.f32.mrb[0].mxu0
        %v1007 = vadd.f32 0.0, %v1006
        %v1008 = vpop.f32.mrb[0].mxu0
        %1009 = vmatprep.mubr.bf16.mxu0 0
        %1010 = vmatmul.mubr.bf16.gmra.mrb[0].mxu0 %v871
        %v1011 = vpop.f32.mrb[0].mxu0
        %v1012 = vadd.f32 0.0, %v1011
        %v1013 = vpop.f32.mrb[0].mxu0
        %v1014 = vpop.f32.mrb[0].mxu0
        %v1015 = vadd.f32 0.0, %v1014
        %v1016 = vpop.f32.mrb[0].mxu0
        %1017 = vmatprep.mubr.bf16.mxu0 0
        %1018 = vmatmul.mubr.bf16.gmra.mrb[0].mxu0 %v874
        %v1019 = vpop.f32.mrb[0].mxu0
        %v1020 = vadd.f32 0.0, %v1019
        %v1021 = vpop.f32.mrb[0].mxu0
        %v1022 = vpop.f32.mrb[0].mxu0
        %v1023 = vadd.f32 0.0, %v1022
        %v1024 = vpop.f32.mrb[0].mxu0
        %1025 = vmatprep.mubr.bf16.mxu0 0
        %1026 = vmatmul.mubr.bf16.gmra.mrb[0].mxu0 %v877
        %v1027 = vpop.f32.mrb[0].mxu0
        %v1028 = vadd.f32 0.0, %v1027
        %v1029 = vpop.f32.mrb[0].mxu0
        %v1030 = vpop.f32.mrb[0].mxu0
        %v1031 = vadd.f32 0.0, %v1030
        %v1032 = vpop.f32.mrb[0].mxu0
        %1033 = vmatprep.mubr.bf16.mxu0 0
        %1034 = vmatmul.mubr.bf16.gmra.mrb[0].mxu0 %v880
        %v1035 = vpop.f32.mrb[0].mxu0
        %v1036 = vadd.f32 0.0, %v1035
        %v1037 = vpop.f32.mrb[0].mxu0
        %v1038 = vpop.f32.mrb[0].mxu0
        %v1039 = vadd.f32 0.0, %v1038
        %v1040 = vpop.f32.mrb[0].mxu0
        %1041 = vmatprep.mubr.bf16.mxu0 0
        %1042 = vmatmul.mubr.bf16.gmra.mrb[0].mxu0 %v883
        %v1043 = vpop.f32.mrb[0].mxu0
        %v1044 = vadd.f32 0.0, %v1043
        %v1045 = vpop.f32.mrb[0].mxu0
        %v1046 = vpop.f32.mrb[0].mxu0
        %v1047 = vadd.f32 0.0, %v1046
        %v1048 = vpop.f32.mrb[0].mxu0
        %1049 = vmatprep.mubr.bf16.mxu0 0
        %1050 = vmatmul.mubr.bf16.gmra.mrb[0].mxu0 %v886
        %v1051 = vpop.f32.mrb[0].mxu0
        %v1052 = vadd.f32 0.0, %v1051
        %v1053 = vpop.f32.mrb[0].mxu0
        %v1054 = vpop.f32.mrb[0].mxu0
        %v1055 = vadd.f32 0.0, %v1054
        %v1056 = vpop.f32.mrb[0].mxu0
        %1057 = vmatprep.mubr.bf16.mxu0 0
        %1058 = vmatmul.mubr.bf16.gmra.mrb[0].mxu0 %v889
        %v1059 = vpop.f32.mrb[0].mxu0
        %v1060 = vadd.f32 0.0, %v1059
        %v1061 = vpop.f32.mrb[0].mxu0
        %v1062 = vpop.f32.mrb[0].mxu0
        %v1063 = vadd.f32 0.0, %v1062
        %v1064 = vpop.f32.mrb[0].mxu0
        %1065 = vmatprep.mubr.bf16.mxu0 0
        %1066 = vmatmul.mubr.bf16.gmra.mrb[0].mxu0 %v892
        %v1067 = vpop.f32.mrb[0].mxu0
        %v1068 = vadd.f32 0.0, %v1067
        %v1069 = vpop.f32.mrb[0].mxu0
        %v1070 = vpop.f32.mrb[0].mxu0
        %v1071 = vadd.f32 0.0, %v1070
        %v1072 = vpop.f32.mrb[0].mxu0
        %1073 = vmatprep.mubr.bf16.mxu0 0
        %1074 = vmatmul.mubr.bf16.gmra.mrb[0].mxu0 %v895
        %v1075 = vpop.f32.mrb[0].mxu0
        %v1076 = vadd.f32 0.0, %v1075
        %v1077 = vpop.f32.mrb[0].mxu0
        %v1078 = vpop.f32.mrb[0].mxu0
        %v1079 = vadd.f32 0.0, %v1078
        %v1080 = vpop.f32.mrb[0].mxu0
        %1081 = vmatprep.mubr.bf16.mxu0 0
        %1082 = vmatmul.mubr.bf16.gmra.mrb[0].mxu0 %v898
        %v1083 = vpop.f32.mrb[0].mxu0
        %v1084 = vadd.f32 0.0, %v1083
        %v1085 = vpop.f32.mrb[0].mxu0
        %v1086 = vpop.f32.mrb[0].mxu0
        %v1087 = vadd.f32 0.0, %v1086
        %v1088 = vpop.f32.mrb[0].mxu0
        %1089 = vmatprep.mubr.bf16.mxu0 0
        %1090 = vmatmul.mubr.bf16.gmra.mrb[0].mxu0 %v901
        %v1091 = vpop.f32.mrb[0].mxu0
        %v1092 = vadd.f32 0.0, %v1091
        %v1093 = vpop.f32.mrb[0].mxu0
        %v1094 = vpop.f32.mrb[0].mxu0
        %v1095 = vadd.f32 0.0, %v1094
        %v1096 = vpop.f32.mrb[0].mxu0
        %1097 = vmatprep.mubr.bf16.mxu0 0
        %1098 = vmatmul.mubr.bf16.gmra.mrb[0].mxu0 %v904
        %v1099 = vpop.f32.mrb[0].mxu0
        %v1100 = vadd.f32 0.0, %v1099
        %v1101 = vpop.f32.mrb[0].mxu0
        %v1102 = vpop.f32.mrb[0].mxu0
        %v1103 = vadd.f32 0.0, %v1102
        %v1104 = vpop.f32.mrb[0].mxu0
        %1105 = vmatprep.mubr.bf16.mxu0 0
        %1106 = vmatmul.mubr.bf16.gmra.mrb[0].mxu0 %v907
        %v1107 = vpop.f32.mrb[0].mxu0
        %v1108 = vadd.f32 0.0, %v1107
        %v1109 = vpop.f32.mrb[0].mxu0
        %v1110 = vpop.f32.mrb[0].mxu0
        %v1111 = vadd.f32 0.0, %v1110
        %v1112 = vpop.f32.mrb[0].mxu0
        %1113 = vmatprep.mubr.bf16.mxu0 0
        %1114 = vmatmul.mubr.bf16.gmra.mrb[0].mxu0 %v910
        %v1115 = vpop.f32.mrb[0].mxu0
        %v1116 = vadd.f32 0.0, %v1115
        %v1117 = vpop.f32.mrb[0].mxu0
        %v1118 = vpop.f32.mrb[0].mxu0
        %v1119 = vadd.f32 0.0, %v1118
        %v1120 = vpop.f32.mrb[0].mxu0
        %1121 = vmatprep.mubr.bf16.mxu0 0
        %1122 = vmatmul.mubr.bf16.gmra.mrb[0].mxu0 %v913
        %v1123 = vpop.f32.mrb[0].mxu0
        %v1124 = vadd.f32 0.0, %v1123
        %v1125 = vpop.f32.mrb[0].mxu0
        %v1126 = vpop.f32.mrb[0].mxu0
        %v1127 = vadd.f32 0.0, %v1126
        %v1128 = vpop.f32.mrb[0].mxu0
        %1129 = vmatprep.mubr.bf16.mxu0 0
        %1130 = vmatmul.mubr.bf16.gmra.mrb[0].mxu0 %v916
        %v1131 = vpop.f32.mrb[0].mxu0
        %v1132 = vadd.f32 0.0, %v1131
        %v1133 = vpop.f32.mrb[0].mxu0
        %v1134 = vpop.f32.mrb[0].mxu0
        %v1135 = vadd.f32 0.0, %v1134
        %v1136 = vpop.f32.mrb[0].mxu0
        %1137 = vmatprep.mubr.bf16.mxu0 0
        %1138 = vmatmul.mubr.bf16.gmra.mrb[0].mxu0 %v919
        %v1139 = vpop.f32.mrb[0].mxu0
        %v1140 = vadd.f32 0.0, %v1139
        %v1141 = vpop.f32.mrb[0].mxu0
        %v1142 = vpop.f32.mrb[0].mxu0
        %v1143 = vadd.f32 0.0, %v1142
        %v1144 = vpop.f32.mrb[0].mxu0
        %1145 = vdwg.mxu0
        %v1150 = vunpack.c.l.b16 %v506
        %v1151 = vunpack.c.l.b16 %v507
        %v1152 = vunpack.c.l.b16 %v508
        %v1153 = vunpack.c.l.b16 %v509
        %v1154 = vpack.c.b16 %v1151, %v1150
        %v1155 = vpack.c.b16 %v1153, %v1152
        %v1158 = vsel %vm848, %v614, 0
        %v1160 = vsel %vm848, %v615, 0
        %v1162 = vsel %vm848, %v616, 0
        %v1164 = vsel %vm848, %v617, 0
        %v1166 = vsel %vm848, %v618, 0
        %v1168 = vsel %vm848, %v619, 0
        %v1170 = vsel %vm848, %v620, 0
        %v1172 = vsel %vm848, %v621, 0
        %v1174 = vsel %vm848, %v622, 0
        %v1176 = vsel %vm848, %v623, 0
        %v1178 = vsel %vm848, %v624, 0
        %v1180 = vsel %vm848, %v625, 0
        %v1182 = vsel %vm848, %v626, 0
        %v1184 = vsel %vm848, %v627, 0
        %v1186 = vsel %vm848, %v628, 0
        %v1188 = vsel %vm848, %v629, 0
        %v1190 = vsel %vm848, %v630, 0
        %v1192 = vsel %vm848, %v631, 0
        %v1194 = vsel %vm848, %v632, 0
        %v1196 = vsel %vm848, %v633, 0
        %v1198 = vsel %vm848, %v634, 0
        %v1200 = vsel %vm848, %v635, 0
        %v1202 = vsel %vm848, %v636, 0
        %v1204 = vsel %vm848, %v637, 0
        %1206 = vmatprep.subr.bf16.mxu0 0
        %1207 = vmatpush1.bf16.msra.mxu0 %v1154
        %1208 = vmatprep.subr.bf16.mxu0 0
        %1209 = vmatpush1.bf16.msra.mxu0 %v1155
        %1210 = vmatprep.subr.bf16.mxu0 0
        %1211 = vmatpush1.bf16.msra.mxu0 0
        %1212 = vmatprep.subr.bf16.mxu0 0
        %1213 = vmatpush1.bf16.msra.mxu0 0
        %1214 = vmatprep.subr.bf16.mxu0 0
        %1215 = vmatpush1.bf16.msra.mxu0 0
        %1216 = vmatprep.subr.bf16.mxu0 0
        %1217 = vmatpush1.bf16.msra.mxu0 0
        %1218 = vmatprep.subr.bf16.mxu0 0
        %1219 = vmatpush1.bf16.msra.mxu0 0
        %1220 = vmatprep.subr.bf16.mxu0 0
        %1221 = vmatpush1.bf16.msra.mxu0 0
        %1222 = vmatprep.subr.bf16.mxu0 0
        %1223 = vmatpush1.bf16.msra.mxu0 0
        %1224 = vmatprep.subr.bf16.mxu0 0
        %1225 = vmatpush1.bf16.msra.mxu0 0
        %1226 = vmatprep.subr.bf16.mxu0 0
        %1227 = vmatpush1.bf16.msra.mxu0 0
        %1228 = vmatprep.subr.bf16.mxu0 0
        %1229 = vmatpush1.bf16.msra.mxu0 0
        %1230 = vmatprep.subr.bf16.mxu0 0
        %1231 = vmatpush1.bf16.msra.mxu0 0
        %1232 = vmatprep.subr.bf16.mxu0 0
        %1233 = vmatpush1.bf16.msra.mxu0 0
        %1234 = vmatprep.subr.bf16.mxu0 0
        %1235 = vmatpush1.bf16.msra.mxu0 0
        %1236 = vmatprep.subr.bf16.mxu0 0
        %1237 = vmatpush1.bf16.msra.mxu0 0
        %1238 = vmatprep.mubr.bf16.mxu0 0
        %1239 = vmatmul.mubr.bf16.gmra.mrb[0].mxu0 %v1158
        %v1240 = vpop.f32.mrb[0].mxu0
        %v1241 = vadd.f32 %v956, %v1240
        %v1242 = vpop.f32.mrb[0].mxu0
        %v1243 = vpop.f32.mrb[0].mxu0
        %v1244 = vadd.f32 %v959, %v1243
        %v1245 = vpop.f32.mrb[0].mxu0
        %1246 = vmatprep.mubr.bf16.mxu0 0
        %1247 = vmatmul.mubr.bf16.gmra.mrb[0].mxu0 %v1160
        %v1248 = vpop.f32.mrb[0].mxu0
        %v1249 = vadd.f32 %v964, %v1248
        %v1250 = vpop.f32.mrb[0].mxu0
        %v1251 = vpop.f32.mrb[0].mxu0
        %v1252 = vadd.f32 %v967, %v1251
        %v1253 = vpop.f32.mrb[0].mxu0
        %1254 = vmatprep.mubr.bf16.mxu0 0
        %1255 = vmatmul.mubr.bf16.gmra.mrb[0].mxu0 %v1162
        %v1256 = vpop.f32.mrb[0].mxu0
        %v1257 = vadd.f32 %v972, %v1256
        %v1258 = vpop.f32.mrb[0].mxu0
        %v1259 = vpop.f32.mrb[0].mxu0
        %v1260 = vadd.f32 %v975, %v1259
        %v1261 = vpop.f32.mrb[0].mxu0
        %1262 = vmatprep.mubr.bf16.mxu0 0
        %1263 = vmatmul.mubr.bf16.gmra.mrb[0].mxu0 %v1164
        %v1264 = vpop.f32.mrb[0].mxu0
        %v1265 = vadd.f32 %v980, %v1264
        %v1266 = vpop.f32.mrb[0].mxu0
        %v1267 = vpop.f32.mrb[0].mxu0
        %v1268 = vadd.f32 %v983, %v1267
        %v1269 = vpop.f32.mrb[0].mxu0
        %1270 = vmatprep.mubr.bf16.mxu0 0
        %1271 = vmatmul.mubr.bf16.gmra.mrb[0].mxu0 %v1166
        %v1272 = vpop.f32.mrb[0].mxu0
        %v1273 = vadd.f32 %v988, %v1272
        %v1274 = vpop.f32.mrb[0].mxu0
        %v1275 = vpop.f32.mrb[0].mxu0
        %v1276 = vadd.f32 %v991, %v1275
        %v1277 = vpop.f32.mrb[0].mxu0
        %1278 = vmatprep.mubr.bf16.mxu0 0
        %1279 = vmatmul.mubr.bf16.gmra.mrb[0].mxu0 %v1168
        %v1280 = vpop.f32.mrb[0].mxu0
        %v1281 = vadd.f32 %v996, %v1280
        %v1282 = vpop.f32.mrb[0].mxu0
        %v1283 = vpop.f32.mrb[0].mxu0
        %v1284 = vadd.f32 %v999, %v1283
        %v1285 = vpop.f32.mrb[0].mxu0
        %1286 = vmatprep.mubr.bf16.mxu0 0
        %1287 = vmatmul.mubr.bf16.gmra.mrb[0].mxu0 %v1170
        %v1288 = vpop.f32.mrb[0].mxu0
        %v1289 = vadd.f32 %v1004, %v1288
        %v1290 = vpop.f32.mrb[0].mxu0
        %v1291 = vpop.f32.mrb[0].mxu0
        %v1292 = vadd.f32 %v1007, %v1291
        %v1293 = vpop.f32.mrb[0].mxu0
        %1294 = vmatprep.mubr.bf16.mxu0 0
        %1295 = vmatmul.mubr.bf16.gmra.mrb[0].mxu0 %v1172
        %v1296 = vpop.f32.mrb[0].mxu0
        %v1297 = vadd.f32 %v1012, %v1296
        %v1298 = vpop.f32.mrb[0].mxu0
        %v1299 = vpop.f32.mrb[0].mxu0
        %v1300 = vadd.f32 %v1015, %v1299
        %v1301 = vpop.f32.mrb[0].mxu0
        %1302 = vmatprep.mubr.bf16.mxu0 0
        %1303 = vmatmul.mubr.bf16.gmra.mrb[0].mxu0 %v1174
        %v1304 = vpop.f32.mrb[0].mxu0
        %v1305 = vadd.f32 %v1020, %v1304
        %v1306 = vpop.f32.mrb[0].mxu0
        %v1307 = vpop.f32.mrb[0].mxu0
        %v1308 = vadd.f32 %v1023, %v1307
        %v1309 = vpop.f32.mrb[0].mxu0
        %1310 = vmatprep.mubr.bf16.mxu0 0
        %1311 = vmatmul.mubr.bf16.gmra.mrb[0].mxu0 %v1176
        %v1312 = vpop.f32.mrb[0].mxu0
        %v1313 = vadd.f32 %v1028, %v1312
        %v1314 = vpop.f32.mrb[0].mxu0
        %v1315 = vpop.f32.mrb[0].mxu0
        %v1316 = vadd.f32 %v1031, %v1315
        %v1317 = vpop.f32.mrb[0].mxu0
        %1318 = vmatprep.mubr.bf16.mxu0 0
        %1319 = vmatmul.mubr.bf16.gmra.mrb[0].mxu0 %v1178
        %v1320 = vpop.f32.mrb[0].mxu0
        %v1321 = vadd.f32 %v1036, %v1320
        %v1322 = vpop.f32.mrb[0].mxu0
        %v1323 = vpop.f32.mrb[0].mxu0
        %v1324 = vadd.f32 %v1039, %v1323
        %v1325 = vpop.f32.mrb[0].mxu0
        %1326 = vmatprep.mubr.bf16.mxu0 0
        %1327 = vmatmul.mubr.bf16.gmra.mrb[0].mxu0 %v1180
        %v1328 = vpop.f32.mrb[0].mxu0
        %v1329 = vadd.f32 %v1044, %v1328
        %v1330 = vpop.f32.mrb[0].mxu0
        %v1331 = vpop.f32.mrb[0].mxu0
        %v1332 = vadd.f32 %v1047, %v1331
        %v1333 = vpop.f32.mrb[0].mxu0
        %1334 = vmatprep.mubr.bf16.mxu0 0
        %1335 = vmatmul.mubr.bf16.gmra.mrb[0].mxu0 %v1182
        %v1336 = vpop.f32.mrb[0].mxu0
        %v1337 = vadd.f32 %v1052, %v1336
        %v1338 = vpop.f32.mrb[0].mxu0
        %v1339 = vpop.f32.mrb[0].mxu0
        %v1340 = vadd.f32 %v1055, %v1339
        %v1341 = vpop.f32.mrb[0].mxu0
        %1342 = vmatprep.mubr.bf16.mxu0 0
        %1343 = vmatmul.mubr.bf16.gmra.mrb[0].mxu0 %v1184
        %v1344 = vpop.f32.mrb[0].mxu0
        %v1345 = vadd.f32 %v1060, %v1344
        %v1346 = vpop.f32.mrb[0].mxu0
        %v1347 = vpop.f32.mrb[0].mxu0
        %v1348 = vadd.f32 %v1063, %v1347
        %v1349 = vpop.f32.mrb[0].mxu0
        %1350 = vmatprep.mubr.bf16.mxu0 0
        %1351 = vmatmul.mubr.bf16.gmra.mrb[0].mxu0 %v1186
        %v1352 = vpop.f32.mrb[0].mxu0
        %v1353 = vadd.f32 %v1068, %v1352
        %v1354 = vpop.f32.mrb[0].mxu0
        %v1355 = vpop.f32.mrb[0].mxu0
        %v1356 = vadd.f32 %v1071, %v1355
        %v1357 = vpop.f32.mrb[0].mxu0
        %1358 = vmatprep.mubr.bf16.mxu0 0
        %1359 = vmatmul.mubr.bf16.gmra.mrb[0].mxu0 %v1188
        %v1360 = vpop.f32.mrb[0].mxu0
        %v1361 = vadd.f32 %v1076, %v1360
        %v1362 = vpop.f32.mrb[0].mxu0
        %v1363 = vpop.f32.mrb[0].mxu0
        %v1364 = vadd.f32 %v1079, %v1363
        %v1365 = vpop.f32.mrb[0].mxu0
        %1366 = vmatprep.mubr.bf16.mxu0 0
        %1367 = vmatmul.mubr.bf16.gmra.mrb[0].mxu0 %v1190
        %v1368 = vpop.f32.mrb[0].mxu0
        %v1369 = vadd.f32 %v1084, %v1368
        %v1370 = vpop.f32.mrb[0].mxu0
        %v1371 = vpop.f32.mrb[0].mxu0
        %v1372 = vadd.f32 %v1087, %v1371
        %v1373 = vpop.f32.mrb[0].mxu0
        %1374 = vmatprep.mubr.bf16.mxu0 0
        %1375 = vmatmul.mubr.bf16.gmra.mrb[0].mxu0 %v1192
        %v1376 = vpop.f32.mrb[0].mxu0
        %v1377 = vadd.f32 %v1092, %v1376
        %v1378 = vpop.f32.mrb[0].mxu0
        %v1379 = vpop.f32.mrb[0].mxu0
        %v1380 = vadd.f32 %v1095, %v1379
        %v1381 = vpop.f32.mrb[0].mxu0
        %1382 = vmatprep.mubr.bf16.mxu0 0
        %1383 = vmatmul.mubr.bf16.gmra.mrb[0].mxu0 %v1194
        %v1384 = vpop.f32.mrb[0].mxu0
        %v1385 = vadd.f32 %v1100, %v1384
        %v1386 = vpop.f32.mrb[0].mxu0
        %v1387 = vpop.f32.mrb[0].mxu0
        %v1388 = vadd.f32 %v1103, %v1387
        %v1389 = vpop.f32.mrb[0].mxu0
        %1390 = vmatprep.mubr.bf16.mxu0 0
        %1391 = vmatmul.mubr.bf16.gmra.mrb[0].mxu0 %v1196
        %v1392 = vpop.f32.mrb[0].mxu0
        %v1393 = vadd.f32 %v1108, %v1392
        %v1394 = vpop.f32.mrb[0].mxu0
        %v1395 = vpop.f32.mrb[0].mxu0
        %v1396 = vadd.f32 %v1111, %v1395
        %v1397 = vpop.f32.mrb[0].mxu0
        %1398 = vmatprep.mubr.bf16.mxu0 0
        %1399 = vmatmul.mubr.bf16.gmra.mrb[0].mxu0 %v1198
        %v1400 = vpop.f32.mrb[0].mxu0
        %v1401 = vadd.f32 %v1116, %v1400
        %v1402 = vpop.f32.mrb[0].mxu0
        %v1403 = vpop.f32.mrb[0].mxu0
        %v1404 = vadd.f32 %v1119, %v1403
        %v1405 = vpop.f32.mrb[0].mxu0
        %1406 = vmatprep.mubr.bf16.mxu0 0
        %1407 = vmatmul.mubr.bf16.gmra.mrb[0].mxu0 %v1200
        %v1408 = vpop.f32.mrb[0].mxu0
        %v1409 = vadd.f32 %v1124, %v1408
        %v1410 = vpop.f32.mrb[0].mxu0
        %v1411 = vpop.f32.mrb[0].mxu0
        %v1412 = vadd.f32 %v1127, %v1411
        %v1413 = vpop.f32.mrb[0].mxu0
        %1414 = vmatprep.mubr.bf16.mxu0 0
        %1415 = vmatmul.mubr.bf16.gmra.mrb[0].mxu0 %v1202
        %v1416 = vpop.f32.mrb[0].mxu0
        %v1417 = vadd.f32 %v1132, %v1416
        %v1418 = vpop.f32.mrb[0].mxu0
        %v1419 = vpop.f32.mrb[0].mxu0
        %v1420 = vadd.f32 %v1135, %v1419
        %v1421 = vpop.f32.mrb[0].mxu0
        %1422 = vmatprep.mubr.bf16.mxu0 0
        %1423 = vmatmul.mubr.bf16.gmra.mrb[0].mxu0 %v1204
        %v1424 = vpop.f32.mrb[0].mxu0
        %v1425 = vadd.f32 %v1140, %v1424
        %v1426 = vpop.f32.mrb[0].mxu0
        %v1427 = vpop.f32.mrb[0].mxu0
        %v1428 = vadd.f32 %v1143, %v1427
        %v1429 = vpop.f32.mrb[0].mxu0
        %1430 = vdwg.mxu0
        %v1431 = vld [vmem:[%s389] sm:$0xe]
        %s1432 = scalar_lea.vmem [#allocation8], 32
        %v1433 = vld [vmem:[%s1432] sm:$0xf]
        %v1434 = vld [vmem:[%s1432 + $0x4] sm:$0xf]
        %v1435 = vld [vmem:[%s1432 + $0x8] sm:$0xf]
        %v1436 = vld [vmem:[%s1432 + $0xc] sm:$0xf]
        %v1438 = vunpack.c.l.b16 %v1431
        %v1439 = vpack.c.b16 %v566, %v1438
        %vm1440 = vcmask 1046528
        %v1441 = vrot.slane %v1439, 1
        %v1442 = vrot.slane %v615, 1
        %v1443 = vsel %vm1440, %v1441, %v1442
        %v1444 = vrot.slane %v616, 1
        %v1445 = vsel %vm1440, %v1442, %v1444
        %v1446 = vrot.slane %v617, 1
        %v1447 = vsel %vm1440, %v1444, %v1446
        %v1448 = vrot.slane %v618, 1
        %v1449 = vsel %vm1440, %v1446, %v1448
        %v1450 = vrot.slane %v619, 1
        %v1451 = vsel %vm1440, %v1448, %v1450
        %v1452 = vrot.slane %v620, 1
        %v1453 = vsel %vm1440, %v1450, %v1452
        %v1454 = vrot.slane %v621, 1
        %v1455 = vsel %vm1440, %v1452, %v1454
        %v1456 = vrot.slane %v622, 1
        %v1457 = vsel %vm1440, %v1454, %v1456
        %v1458 = vrot.slane %v623, 1
        %v1459 = vsel %vm1440, %v1456, %v1458
        %v1460 = vrot.slane %v624, 1
        %v1461 = vsel %vm1440, %v1458, %v1460
        %v1462 = vrot.slane %v625, 1
        %v1463 = vsel %vm1440, %v1460, %v1462
        %v1464 = vrot.slane %v626, 1
        %v1465 = vsel %vm1440, %v1462, %v1464
        %v1466 = vrot.slane %v627, 1
        %v1467 = vsel %vm1440, %v1464, %v1466
        %v1468 = vrot.slane %v628, 1
        %v1469 = vsel %vm1440, %v1466, %v1468
        %v1470 = vrot.slane %v629, 1
        %v1471 = vsel %vm1440, %v1468, %v1470
        %v1472 = vrot.slane %v630, 1
        %v1473 = vsel %vm1440, %v1470, %v1472
        %v1474 = vrot.slane %v631, 1
        %v1475 = vsel %vm1440, %v1472, %v1474
        %v1476 = vrot.slane %v632, 1
        %v1477 = vsel %vm1440, %v1474, %v1476
        %v1478 = vrot.slane %v633, 1
        %v1479 = vsel %vm1440, %v1476, %v1478
        %v1480 = vrot.slane %v634, 1
        %v1481 = vsel %vm1440, %v1478, %v1480
        %v1482 = vrot.slane %v635, 1
        %v1483 = vsel %vm1440, %v1480, %v1482
        %v1484 = vrot.slane %v636, 1
        %v1485 = vsel %vm1440, %v1482, %v1484
        %v1486 = vrot.slane %v637, 1
        %v1487 = vsel %vm1440, %v1484, %v1486
        %v1488 = vrot.slane %v638, 1
        %v1489 = vsel %vm1440, %v1486, %v1488
        %v1494 = vunpack.c.l.b16 %v1433
        %v1495 = vunpack.c.l.b16 %v1434
        %v1496 = vunpack.c.l.b16 %v1435
        %v1497 = vunpack.c.l.b16 %v1436
        %v1498 = vpack.c.b16 %v1495, %v1494
        %v1499 = vpack.c.b16 %v1497, %v1496
        %v1503 = vsel %vm848, %v1443, 0
        %v1506 = vsel %vm848, %v1445, 0
        %v1509 = vsel %vm848, %v1447, 0
        %v1512 = vsel %vm848, %v1449, 0
        %v1515 = vsel %vm848, %v1451, 0
        %v1518 = vsel %vm848, %v1453, 0
        %v1521 = vsel %vm848, %v1455, 0
        %v1524 = vsel %vm848, %v1457, 0
        %v1527 = vsel %vm848, %v1459, 0
        %v1530 = vsel %vm848, %v1461, 0
        %v1533 = vsel %vm848, %v1463, 0
        %v1536 = vsel %vm848, %v1465, 0
        %v1539 = vsel %vm848, %v1467, 0
        %v1542 = vsel %vm848, %v1469, 0
        %v1545 = vsel %vm848, %v1471, 0
        %v1548 = vsel %vm848, %v1473, 0
        %v1551 = vsel %vm848, %v1475, 0
        %v1554 = vsel %vm848, %v1477, 0
        %v1557 = vsel %vm848, %v1479, 0
        %v1560 = vsel %vm848, %v1481, 0
        %v1563 = vsel %vm848, %v1483, 0
        %v1566 = vsel %vm848, %v1485, 0
        %v1569 = vsel %vm848, %v1487, 0
        %v1572 = vsel %vm848, %v1489, 0
        %1574 = vmatprep.subr.bf16.mxu0 0
        %1575 = vmatpush1.bf16.msra.mxu0 %v1498
        %1576 = vmatprep.subr.bf16.mxu0 0
        %1577 = vmatpush1.bf16.msra.mxu0 %v1499
        %1578 = vmatprep.subr.bf16.mxu0 0
        %1579 = vmatpush1.bf16.msra.mxu0 0
        %1580 = vmatprep.subr.bf16.mxu0 0
        %1581 = vmatpush1.bf16.msra.mxu0 0
        %1582 = vmatprep.subr.bf16.mxu0 0
        %1583 = vmatpush1.bf16.msra.mxu0 0
        %1584 = vmatprep.subr.bf16.mxu0 0
        %1585 = vmatpush1.bf16.msra.mxu0 0
        %1586 = vmatprep.subr.bf16.mxu0 0
        %1587 = vmatpush1.bf16.msra.mxu0 0
        %1588 = vmatprep.subr.bf16.mxu0 0
        %1589 = vmatpush1.bf16.msra.mxu0 0
        %1590 = vmatprep.subr.bf16.mxu0 0
        %1591 = vmatpush1.bf16.msra.mxu0 0
        %1592 = vmatprep.subr.bf16.mxu0 0
        %1593 = vmatpush1.bf16.msra.mxu0 0
        %1594 = vmatprep.subr.bf16.mxu0 0
        %1595 = vmatpush1.bf16.msra.mxu0 0
        %1596 = vmatprep.subr.bf16.mxu0 0
        %1597 = vmatpush1.bf16.msra.mxu0 0
        %1598 = vmatprep.subr.bf16.mxu0 0
        %1599 = vmatpush1.bf16.msra.mxu0 0
        %1600 = vmatprep.subr.bf16.mxu0 0
        %1601 = vmatpush1.bf16.msra.mxu0 0
        %1602 = vmatprep.subr.bf16.mxu0 0
        %1603 = vmatpush1.bf16.msra.mxu0 0
        %1604 = vmatprep.subr.bf16.mxu0 0
        %1605 = vmatpush1.bf16.msra.mxu0 0
        %1606 = vmatprep.mubr.bf16.mxu0 0
        %1607 = vmatmul.mubr.bf16.gmra.mrb[0].mxu0 %v1503
        %v1608 = vpop.f32.mrb[0].mxu0
        %v1609 = vadd.f32 0.0, %v1608
        %v1610 = vpop.f32.mrb[0].mxu0
        %v1611 = vpop.f32.mrb[0].mxu0
        %v1612 = vadd.f32 0.0, %v1611
        %v1613 = vpop.f32.mrb[0].mxu0
        %1614 = vmatprep.mubr.bf16.mxu0 0
        %1615 = vmatmul.mubr.bf16.gmra.mrb[0].mxu0 %v1506
        %v1616 = vpop.f32.mrb[0].mxu0
        %v1617 = vadd.f32 0.0, %v1616
        %v1618 = vpop.f32.mrb[0].mxu0
        %v1619 = vpop.f32.mrb[0].mxu0
        %v1620 = vadd.f32 0.0, %v1619
        %v1621 = vpop.f32.mrb[0].mxu0
        %1622 = vmatprep.mubr.bf16.mxu0 0
        %1623 = vmatmul.mubr.bf16.gmra.mrb[0].mxu0 %v1509
        %v1624 = vpop.f32.mrb[0].mxu0
        %v1625 = vadd.f32 0.0, %v1624
        %v1626 = vpop.f32.mrb[0].mxu0
        %v1627 = vpop.f32.mrb[0].mxu0
        %v1628 = vadd.f32 0.0, %v1627
        %v1629 = vpop.f32.mrb[0].mxu0
        %1630 = vmatprep.mubr.bf16.mxu0 0
        %1631 = vmatmul.mubr.bf16.gmra.mrb[0].mxu0 %v1512
        %v1632 = vpop.f32.mrb[0].mxu0
        %v1633 = vadd.f32 0.0, %v1632
        %v1634 = vpop.f32.mrb[0].mxu0
        %v1635 = vpop.f32.mrb[0].mxu0
        %v1636 = vadd.f32 0.0, %v1635
        %v1637 = vpop.f32.mrb[0].mxu0
        %1638 = vmatprep.mubr.bf16.mxu0 0
        %1639 = vmatmul.mubr.bf16.gmra.mrb[0].mxu0 %v1515
        %v1640 = vpop.f32.mrb[0].mxu0
        %v1641 = vadd.f32 0.0, %v1640
        %v1642 = vpop.f32.mrb[0].mxu0
        %v1643 = vpop.f32.mrb[0].mxu0
        %v1644 = vadd.f32 0.0, %v1643
        %v1645 = vpop.f32.mrb[0].mxu0
        %1646 = vmatprep.mubr.bf16.mxu0 0
        %1647 = vmatmul.mubr.bf16.gmra.mrb[0].mxu0 %v1518
        %v1648 = vpop.f32.mrb[0].mxu0
        %v1649 = vadd.f32 0.0, %v1648
        %v1650 = vpop.f32.mrb[0].mxu0
        %v1651 = vpop.f32.mrb[0].mxu0
        %v1652 = vadd.f32 0.0, %v1651
        %v1653 = vpop.f32.mrb[0].mxu0
        %1654 = vmatprep.mubr.bf16.mxu0 0
        %1655 = vmatmul.mubr.bf16.gmra.mrb[0].mxu0 %v1521
        %v1656 = vpop.f32.mrb[0].mxu0
        %v1657 = vadd.f32 0.0, %v1656
        %v1658 = vpop.f32.mrb[0].mxu0
        %v1659 = vpop.f32.mrb[0].mxu0
        %v1660 = vadd.f32 0.0, %v1659
        %v1661 = vpop.f32.mrb[0].mxu0
        %1662 = vmatprep.mubr.bf16.mxu0 0
        %1663 = vmatmul.mubr.bf16.gmra.mrb[0].mxu0 %v1524
        %v1664 = vpop.f32.mrb[0].mxu0
        %v1665 = vadd.f32 0.0, %v1664
        %v1666 = vpop.f32.mrb[0].mxu0
        %v1667 = vpop.f32.mrb[0].mxu0
        %v1668 = vadd.f32 0.0, %v1667
        %v1669 = vpop.f32.mrb[0].mxu0
        %1670 = vmatprep.mubr.bf16.mxu0 0
        %1671 = vmatmul.mubr.bf16.gmra.mrb[0].mxu0 %v1527
        %v1672 = vpop.f32.mrb[0].mxu0
        %v1673 = vadd.f32 0.0, %v1672
        %v1674 = vpop.f32.mrb[0].mxu0
        %v1675 = vpop.f32.mrb[0].mxu0
        %v1676 = vadd.f32 0.0, %v1675
        %v1677 = vpop.f32.mrb[0].mxu0
        %1678 = vmatprep.mubr.bf16.mxu0 0
        %1679 = vmatmul.mubr.bf16.gmra.mrb[0].mxu0 %v1530
        %v1680 = vpop.f32.mrb[0].mxu0
        %v1681 = vadd.f32 0.0, %v1680
        %v1682 = vpop.f32.mrb[0].mxu0
        %v1683 = vpop.f32.mrb[0].mxu0
        %v1684 = vadd.f32 0.0, %v1683
        %v1685 = vpop.f32.mrb[0].mxu0
        %1686 = vmatprep.mubr.bf16.mxu0 0
        %1687 = vmatmul.mubr.bf16.gmra.mrb[0].mxu0 %v1533
        %v1688 = vpop.f32.mrb[0].mxu0
        %v1689 = vadd.f32 0.0, %v1688
        %v1690 = vpop.f32.mrb[0].mxu0
        %v1691 = vpop.f32.mrb[0].mxu0
        %v1692 = vadd.f32 0.0, %v1691
        %v1693 = vpop.f32.mrb[0].mxu0
        %1694 = vmatprep.mubr.bf16.mxu0 0
        %1695 = vmatmul.mubr.bf16.gmra.mrb[0].mxu0 %v1536
        %v1696 = vpop.f32.mrb[0].mxu0
        %v1697 = vadd.f32 0.0, %v1696
        %v1698 = vpop.f32.mrb[0].mxu0
        %v1699 = vpop.f32.mrb[0].mxu0
        %v1700 = vadd.f32 0.0, %v1699
        %v1701 = vpop.f32.mrb[0].mxu0
        %1702 = vmatprep.mubr.bf16.mxu0 0
        %1703 = vmatmul.mubr.bf16.gmra.mrb[0].mxu0 %v1539
        %v1704 = vpop.f32.mrb[0].mxu0
        %v1705 = vadd.f32 0.0, %v1704
        %v1706 = vpop.f32.mrb[0].mxu0
        %v1707 = vpop.f32.mrb[0].mxu0
        %v1708 = vadd.f32 0.0, %v1707
        %v1709 = vpop.f32.mrb[0].mxu0
        %1710 = vmatprep.mubr.bf16.mxu0 0
        %1711 = vmatmul.mubr.bf16.gmra.mrb[0].mxu0 %v1542
        %v1712 = vpop.f32.mrb[0].mxu0
        %v1713 = vadd.f32 0.0, %v1712
        %v1714 = vpop.f32.mrb[0].mxu0
        %v1715 = vpop.f32.mrb[0].mxu0
        %v1716 = vadd.f32 0.0, %v1715
        %v1717 = vpop.f32.mrb[0].mxu0
        %1718 = vmatprep.mubr.bf16.mxu0 0
        %1719 = vmatmul.mubr.bf16.gmra.mrb[0].mxu0 %v1545
        %v1720 = vpop.f32.mrb[0].mxu0
        %v1721 = vadd.f32 0.0, %v1720
        %v1722 = vpop.f32.mrb[0].mxu0
        %v1723 = vpop.f32.mrb[0].mxu0
        %v1724 = vadd.f32 0.0, %v1723
        %v1725 = vpop.f32.mrb[0].mxu0
        %1726 = vmatprep.mubr.bf16.mxu0 0
        %1727 = vmatmul.mubr.bf16.gmra.mrb[0].mxu0 %v1548
        %v1728 = vpop.f32.mrb[0].mxu0
        %v1729 = vadd.f32 0.0, %v1728
        %v1730 = vpop.f32.mrb[0].mxu0
        %v1731 = vpop.f32.mrb[0].mxu0
        %v1732 = vadd.f32 0.0, %v1731
        %v1733 = vpop.f32.mrb[0].mxu0
        %1734 = vmatprep.mubr.bf16.mxu0 0
        %1735 = vmatmul.mubr.bf16.gmra.mrb[0].mxu0 %v1551
        %v1736 = vpop.f32.mrb[0].mxu0
        %v1737 = vadd.f32 0.0, %v1736
        %v1738 = vpop.f32.mrb[0].mxu0
        %v1739 = vpop.f32.mrb[0].mxu0
        %v1740 = vadd.f32 0.0, %v1739
        %v1741 = vpop.f32.mrb[0].mxu0
        %1742 = vmatprep.mubr.bf16.mxu0 0
        %1743 = vmatmul.mubr.bf16.gmra.mrb[0].mxu0 %v1554
        %v1744 = vpop.f32.mrb[0].mxu0
        %v1745 = vadd.f32 0.0, %v1744
        %v1746 = vpop.f32.mrb[0].mxu0
        %v1747 = vpop.f32.mrb[0].mxu0
        %v1748 = vadd.f32 0.0, %v1747
        %v1749 = vpop.f32.mrb[0].mxu0
        %1750 = vmatprep.mubr.bf16.mxu0 0
        %1751 = vmatmul.mubr.bf16.gmra.mrb[0].mxu0 %v1557
        %v1752 = vpop.f32.mrb[0].mxu0
        %v1753 = vadd.f32 0.0, %v1752
        %v1754 = vpop.f32.mrb[0].mxu0
        %v1755 = vpop.f32.mrb[0].mxu0
        %v1756 = vadd.f32 0.0, %v1755
        %v1757 = vpop.f32.mrb[0].mxu0
        %1758 = vmatprep.mubr.bf16.mxu0 0
        %1759 = vmatmul.mubr.bf16.gmra.mrb[0].mxu0 %v1560
        %v1760 = vpop.f32.mrb[0].mxu0
        %v1761 = vadd.f32 0.0, %v1760
        %v1762 = vpop.f32.mrb[0].mxu0
        %v1763 = vpop.f32.mrb[0].mxu0
        %v1764 = vadd.f32 0.0, %v1763
        %v1765 = vpop.f32.mrb[0].mxu0
        %1766 = vmatprep.mubr.bf16.mxu0 0
        %1767 = vmatmul.mubr.bf16.gmra.mrb[0].mxu0 %v1563
        %v1768 = vpop.f32.mrb[0].mxu0
        %v1769 = vadd.f32 0.0, %v1768
        %v1770 = vpop.f32.mrb[0].mxu0
        %v1771 = vpop.f32.mrb[0].mxu0
        %v1772 = vadd.f32 0.0, %v1771
        %v1773 = vpop.f32.mrb[0].mxu0
        %1774 = vmatprep.mubr.bf16.mxu0 0
        %1775 = vmatmul.mubr.bf16.gmra.mrb[0].mxu0 %v1566
        %v1776 = vpop.f32.mrb[0].mxu0
        %v1777 = vadd.f32 0.0, %v1776
        %v1778 = vpop.f32.mrb[0].mxu0
        %v1779 = vpop.f32.mrb[0].mxu0
        %v1780 = vadd.f32 0.0, %v1779
        %v1781 = vpop.f32.mrb[0].mxu0
        %1782 = vmatprep.mubr.bf16.mxu0 0
        %1783 = vmatmul.mubr.bf16.gmra.mrb[0].mxu0 %v1569
        %v1784 = vpop.f32.mrb[0].mxu0
        %v1785 = vadd.f32 0.0, %v1784
        %v1786 = vpop.f32.mrb[0].mxu0
        %v1787 = vpop.f32.mrb[0].mxu0
        %v1788 = vadd.f32 0.0, %v1787
        %v1789 = vpop.f32.mrb[0].mxu0
        %1790 = vmatprep.mubr.bf16.mxu0 0
        %1791 = vmatmul.mubr.bf16.gmra.mrb[0].mxu0 %v1572
        %v1792 = vpop.f32.mrb[0].mxu0
        %v1793 = vadd.f32 0.0, %v1792
        %v1794 = vpop.f32.mrb[0].mxu0
        %v1795 = vpop.f32.mrb[0].mxu0
        %v1796 = vadd.f32 0.0, %v1795
        %v1797 = vpop.f32.mrb[0].mxu0
        %1798 = vdwg.mxu0
        %v1799 = vadd.f32 %v1241, %v1609
        %v1800 = vadd.f32 %v1244, %v1612
        %v1801 = vadd.f32 %v1249, %v1617
        %v1802 = vadd.f32 %v1252, %v1620
        %v1803 = vadd.f32 %v1257, %v1625
        %v1804 = vadd.f32 %v1260, %v1628
        %v1805 = vadd.f32 %v1265, %v1633
        %v1806 = vadd.f32 %v1268, %v1636
        %v1807 = vadd.f32 %v1273, %v1641
        %v1808 = vadd.f32 %v1276, %v1644
        %v1809 = vadd.f32 %v1281, %v1649
        %v1810 = vadd.f32 %v1284, %v1652
        %v1811 = vadd.f32 %v1289, %v1657
        %v1812 = vadd.f32 %v1292, %v1660
        %v1813 = vadd.f32 %v1297, %v1665
        %v1814 = vadd.f32 %v1300, %v1668
        %v1815 = vadd.f32 %v1305, %v1673
        %v1816 = vadd.f32 %v1308, %v1676
        %v1817 = vadd.f32 %v1313, %v1681
        %v1818 = vadd.f32 %v1316, %v1684
        %v1819 = vadd.f32 %v1321, %v1689
        %v1820 = vadd.f32 %v1324, %v1692
        %v1821 = vadd.f32 %v1329, %v1697
        %v1822 = vadd.f32 %v1332, %v1700
        %v1823 = vadd.f32 %v1337, %v1705
        %v1824 = vadd.f32 %v1340, %v1708
        %v1825 = vadd.f32 %v1345, %v1713
        %v1826 = vadd.f32 %v1348, %v1716
        %v1827 = vadd.f32 %v1353, %v1721
        %v1828 = vadd.f32 %v1356, %v1724
        %v1829 = vadd.f32 %v1361, %v1729
        %v1830 = vadd.f32 %v1364, %v1732
        %v1831 = vadd.f32 %v1369, %v1737
        %v1832 = vadd.f32 %v1372, %v1740
        %v1833 = vadd.f32 %v1377, %v1745
        %v1834 = vadd.f32 %v1380, %v1748
        %v1835 = vadd.f32 %v1385, %v1753
        %v1836 = vadd.f32 %v1388, %v1756
        %v1837 = vadd.f32 %v1393, %v1761
        %v1838 = vadd.f32 %v1396, %v1764
        %v1839 = vadd.f32 %v1401, %v1769
        %v1840 = vadd.f32 %v1404, %v1772
        %v1841 = vadd.f32 %v1409, %v1777
        %v1842 = vadd.f32 %v1412, %v1780
        %v1843 = vadd.f32 %v1417, %v1785
        %v1844 = vadd.f32 %v1420, %v1788
        %v1845 = vadd.f32 %v1425, %v1793
        %v1846 = vadd.f32 %v1428, %v1796
        %v1847 = vld [vmem:[%s389 + $0xc] sm:$0xf]
        %v1848 = vld [vmem:[%s389 + $0x10] sm:$0xf]
        %v1849 = vld [vmem:[%s389 + $0x14] sm:$0xf]
        %v1850 = vld [vmem:[%s389 + $0x18] sm:$0xf]
        %v1851 = vld [vmem:[%s389 + $0x1c] sm:$0xf]
        %v1852 = vld [vmem:[%s389 + $0x20] sm:$0xf]
        %v1853 = vld [vmem:[%s389 + $0x24] sm:$0xf]
        %v1854 = vld [vmem:[%s389 + $0x28] sm:$0xf]
        %v1855 = vld [vmem:[%s389 + $0x2c] sm:$0xf]
        %v1856 = vld [vmem:[%s389 + $0x30] sm:$0xf]
        %v1857 = vld [vmem:[%s389 + $0x34] sm:$0xf]
        %v1858 = vld [vmem:[%s389 + $0x38] sm:$0xf]
        %v1859 = vld [vmem:[%s389 + $0x3c] sm:$0xf]
        %v1860 = vld [vmem:[%s389 + $0x40] sm:$0xf]
        %v1861 = vld [vmem:[%s389 + $0x44] sm:$0xf]
        %v1862 = vld [vmem:[%s389 + $0x48] sm:$0xf]
        %v1863 = vld [vmem:[%s389 + $0x4c] sm:$0xf]
        %v1864 = vld [vmem:[%s389 + $0x50] sm:$0xf]
        %v1865 = vld [vmem:[%s389 + $0x54] sm:$0xf]
        %v1866 = vld [vmem:[%s389 + $0x58] sm:$0xf]
        %v1867 = vld [vmem:[%s389 + $0x5c] sm:$0xf]
        %v1868 = vld [vmem:[%s389 + $0x60] sm:$0xf]
        %v1869 = vld [vmem:[%s389 + $0x64] sm:$0xf]
        %v1870 = vld [vmem:[%s389 + $0x68] sm:$0xf]
        %v1871 = vld [vmem:[%s389 + $0x6c] sm:$0xf]
        %v1872 = vld [vmem:[%s389 + $0x70] sm:$0xf]
        %v1873 = vld [vmem:[%s389 + $0x74] sm:$0xf]
        %v1874 = vld [vmem:[%s389 + $0x78] sm:$0xf]
        %v1875 = vld [vmem:[%s389 + $0x7c] sm:$0xf]
        %v1876 = vld [vmem:[%s389 + $0x80] sm:$0xf]
        %v1877 = vld [vmem:[%s389 + $0x84] sm:$0xf]
        %v1878 = vld [vmem:[%s389 + $0x88] sm:$0xf]
        %v1879 = vld [vmem:[%s389 + $0x8c] sm:$0xf]
        %v1880 = vld [vmem:[%s389 + $0x90] sm:$0xf]
        %v1881 = vld [vmem:[%s389 + $0x94] sm:$0xf]
        %v1882 = vld [vmem:[%s389 + $0x98] sm:$0xf]
        %v1883 = vld [vmem:[%s389 + $0x9c] sm:$0xf]
        %v1884 = vld [vmem:[%s389 + $0xa0] sm:$0xf]
        %v1885 = vld [vmem:[%s389 + $0xa4] sm:$0xf]
        %v1886 = vld [vmem:[%s389 + $0xa8] sm:$0xf]
        %v1887 = vld [vmem:[%s389 + $0xac] sm:$0xf]
        %v1888 = vld [vmem:[%s389 + $0xb0] sm:$0xf]
        %v1889 = vld [vmem:[%s389 + $0xb4] sm:$0xf]
        %v1890 = vld [vmem:[%s389 + $0xb8] sm:$0xf]
        %v1891 = vld [vmem:[%s389 + $0xbc] sm:$0xf]
        %v1892 = vld [vmem:[%s389 + $0xc0] sm:$0xf]
        %v1893 = vld [vmem:[%s389 + $0xc4] sm:$0xf]
        %v1894 = vld [vmem:[%s389 + $0xc8] sm:$0xf]
        %s1895 = scalar_lea.vmem [#allocation8], 48
        %v1896 = vld [vmem:[%s1895] sm:$0xf]
        %v1897 = vld [vmem:[%s1895 + $0x4] sm:$0xf]
        %v1898 = vld [vmem:[%s1895 + $0x8] sm:$0xf]
        %v1899 = vld [vmem:[%s1895 + $0xc] sm:$0xf]
        %v1948 = vunpack.c.l.b16 %v1847
        %v1949 = vunpack.c.l.b16 %v1848
        %v1950 = vunpack.c.l.b16 %v1849
        %v1951 = vunpack.c.l.b16 %v1850
        %v1952 = vunpack.c.l.b16 %v1851
        %v1953 = vunpack.c.l.b16 %v1852
        %v1954 = vunpack.c.l.b16 %v1853
        %v1955 = vunpack.c.l.b16 %v1854
        %v1956 = vunpack.c.l.b16 %v1855
        %v1957 = vunpack.c.l.b16 %v1856
        %v1958 = vunpack.c.l.b16 %v1857
        %v1959 = vunpack.c.l.b16 %v1858
        %v1960 = vunpack.c.l.b16 %v1859
        %v1961 = vunpack.c.l.b16 %v1860
        %v1962 = vunpack.c.l.b16 %v1861
        %v1963 = vunpack.c.l.b16 %v1862
        %v1964 = vunpack.c.l.b16 %v1863
        %v1965 = vunpack.c.l.b16 %v1864
        %v1966 = vunpack.c.l.b16 %v1865
        %v1967 = vunpack.c.l.b16 %v1866
        %v1968 = vunpack.c.l.b16 %v1867
        %v1969 = vunpack.c.l.b16 %v1868
        %v1970 = vunpack.c.l.b16 %v1869
        %v1971 = vunpack.c.l.b16 %v1870
        %v1972 = vunpack.c.l.b16 %v1871
        %v1973 = vunpack.c.l.b16 %v1872
        %v1974 = vunpack.c.l.b16 %v1873
        %v1975 = vunpack.c.l.b16 %v1874
        %v1976 = vunpack.c.l.b16 %v1875
        %v1977 = vunpack.c.l.b16 %v1876
        %v1978 = vunpack.c.l.b16 %v1877
        %v1979 = vunpack.c.l.b16 %v1878
        %v1980 = vunpack.c.l.b16 %v1879
        %v1981 = vunpack.c.l.b16 %v1880
        %v1982 = vunpack.c.l.b16 %v1881
        %v1983 = vunpack.c.l.b16 %v1882
        %v1984 = vunpack.c.l.b16 %v1883
        %v1985 = vunpack.c.l.b16 %v1884
        %v1986 = vunpack.c.l.b16 %v1885
        %v1987 = vunpack.c.l.b16 %v1886
        %v1988 = vunpack.c.l.b16 %v1887
        %v1989 = vunpack.c.l.b16 %v1888
        %v1990 = vunpack.c.l.b16 %v1889
        %v1991 = vunpack.c.l.b16 %v1890
        %v1992 = vunpack.c.l.b16 %v1891
        %v1993 = vunpack.c.l.b16 %v1892
        %v1994 = vunpack.c.l.b16 %v1893
        %v1995 = vunpack.c.l.b16 %v1894
        %v1996 = vpack.c.b16 %v1949, %v1948
        %v1997 = vpack.c.b16 %v1951, %v1950
        %v1998 = vpack.c.b16 %v1953, %v1952
        %v1999 = vpack.c.b16 %v1955, %v1954
        %v2000 = vpack.c.b16 %v1957, %v1956
        %v2001 = vpack.c.b16 %v1959, %v1958
        %v2002 = vpack.c.b16 %v1961, %v1960
        %v2003 = vpack.c.b16 %v1963, %v1962
        %v2004 = vpack.c.b16 %v1965, %v1964
        %v2005 = vpack.c.b16 %v1967, %v1966
        %v2006 = vpack.c.b16 %v1969, %v1968
        %v2007 = vpack.c.b16 %v1971, %v1970
        %v2008 = vpack.c.b16 %v1973, %v1972
        %v2009 = vpack.c.b16 %v1975, %v1974
        %v2010 = vpack.c.b16 %v1977, %v1976
        %v2011 = vpack.c.b16 %v1979, %v1978
        %v2012 = vpack.c.b16 %v1981, %v1980
        %v2013 = vpack.c.b16 %v1983, %v1982
        %v2014 = vpack.c.b16 %v1985, %v1984
        %v2015 = vpack.c.b16 %v1987, %v1986
        %v2016 = vpack.c.b16 %v1989, %v1988
        %v2017 = vpack.c.b16 %v1991, %v1990
        %v2018 = vpack.c.b16 %v1993, %v1992
        %v2019 = vpack.c.b16 %v1995, %v1994
        %v2024 = vunpack.c.l.b16 %v1896
        %v2025 = vunpack.c.l.b16 %v1897
        %v2026 = vunpack.c.l.b16 %v1898
        %v2027 = vunpack.c.l.b16 %v1899
        %v2028 = vpack.c.b16 %v2025, %v2024
        %v2029 = vpack.c.b16 %v2027, %v2026
        %v2033 = vsel %vm848, %v1996, 0
        %v2036 = vsel %vm848, %v1997, 0
        %v2039 = vsel %vm848, %v1998, 0
        %v2042 = vsel %vm848, %v1999, 0
        %v2045 = vsel %vm848, %v2000, 0
        %v2048 = vsel %vm848, %v2001, 0
        %v2051 = vsel %vm848, %v2002, 0
        %v2054 = vsel %vm848, %v2003, 0
        %v2057 = vsel %vm848, %v2004, 0
        %v2060 = vsel %vm848, %v2005, 0
        %v2063 = vsel %vm848, %v2006, 0
        %v2066 = vsel %vm848, %v2007, 0
        %v2069 = vsel %vm848, %v2008, 0
        %v2072 = vsel %vm848, %v2009, 0
        %v2075 = vsel %vm848, %v2010, 0
        %v2078 = vsel %vm848, %v2011, 0
        %v2081 = vsel %vm848, %v2012, 0
        %v2084 = vsel %vm848, %v2013, 0
        %v2087 = vsel %vm848, %v2014, 0
        %v2090 = vsel %vm848, %v2015, 0
        %v2093 = vsel %vm848, %v2016, 0
        %v2096 = vsel %vm848, %v2017, 0
        %v2099 = vsel %vm848, %v2018, 0
        %v2102 = vsel %vm848, %v2019, 0
        %2104 = vmatprep.subr.bf16.mxu0 0
        %2105 = vmatpush1.bf16.msra.mxu0 %v2028
        %2106 = vmatprep.subr.bf16.mxu0 0
        %2107 = vmatpush1.bf16.msra.mxu0 %v2029
        %2108 = vmatprep.subr.bf16.mxu0 0
        %2109 = vmatpush1.bf16.msra.mxu0 0
        %2110 = vmatprep.subr.bf16.mxu0 0
        %2111 = vmatpush1.bf16.msra.mxu0 0
        %2112 = vmatprep.subr.bf16.mxu0 0
        %2113 = vmatpush1.bf16.msra.mxu0 0
        %2114 = vmatprep.subr.bf16.mxu0 0
        %2115 = vmatpush1.bf16.msra.mxu0 0
        %2116 = vmatprep.subr.bf16.mxu0 0
        %2117 = vmatpush1.bf16.msra.mxu0 0
        %2118 = vmatprep.subr.bf16.mxu0 0
        %2119 = vmatpush1.bf16.msra.mxu0 0
        %2120 = vmatprep.subr.bf16.mxu0 0
        %2121 = vmatpush1.bf16.msra.mxu0 0
        %2122 = vmatprep.subr.bf16.mxu0 0
        %2123 = vmatpush1.bf16.msra.mxu0 0
        %2124 = vmatprep.subr.bf16.mxu0 0
        %2125 = vmatpush1.bf16.msra.mxu0 0
        %2126 = vmatprep.subr.bf16.mxu0 0
        %2127 = vmatpush1.bf16.msra.mxu0 0
        %2128 = vmatprep.subr.bf16.mxu0 0
        %2129 = vmatpush1.bf16.msra.mxu0 0
        %2130 = vmatprep.subr.bf16.mxu0 0
        %2131 = vmatpush1.bf16.msra.mxu0 0
        %2132 = vmatprep.subr.bf16.mxu0 0
        %2133 = vmatpush1.bf16.msra.mxu0 0
        %2134 = vmatprep.subr.bf16.mxu0 0
        %2135 = vmatpush1.bf16.msra.mxu0 0
        %2136 = vmatprep.mubr.bf16.mxu0 0
        %2137 = vmatmul.mubr.bf16.gmra.mrb[0].mxu0 %v2033
        %v2138 = vpop.f32.mrb[0].mxu0
        %v2139 = vadd.f32 0.0, %v2138
        %v2140 = vpop.f32.mrb[0].mxu0
        %v2141 = vpop.f32.mrb[0].mxu0
        %v2142 = vadd.f32 0.0, %v2141
        %v2143 = vpop.f32.mrb[0].mxu0
        %2144 = vmatprep.mubr.bf16.mxu0 0
        %2145 = vmatmul.mubr.bf16.gmra.mrb[0].mxu0 %v2036
        %v2146 = vpop.f32.mrb[0].mxu0
        %v2147 = vadd.f32 0.0, %v2146
        %v2148 = vpop.f32.mrb[0].mxu0
        %v2149 = vpop.f32.mrb[0].mxu0
        %v2150 = vadd.f32 0.0, %v2149
        %v2151 = vpop.f32.mrb[0].mxu0
        %2152 = vmatprep.mubr.bf16.mxu0 0
        %2153 = vmatmul.mubr.bf16.gmra.mrb[0].mxu0 %v2039
        %v2154 = vpop.f32.mrb[0].mxu0
        %v2155 = vadd.f32 0.0, %v2154
        %v2156 = vpop.f32.mrb[0].mxu0
        %v2157 = vpop.f32.mrb[0].mxu0
        %v2158 = vadd.f32 0.0, %v2157
        %v2159 = vpop.f32.mrb[0].mxu0
        %2160 = vmatprep.mubr.bf16.mxu0 0
        %2161 = vmatmul.mubr.bf16.gmra.mrb[0].mxu0 %v2042
        %v2162 = vpop.f32.mrb[0].mxu0
        %v2163 = vadd.f32 0.0, %v2162
        %v2164 = vpop.f32.mrb[0].mxu0
        %v2165 = vpop.f32.mrb[0].mxu0
        %v2166 = vadd.f32 0.0, %v2165
        %v2167 = vpop.f32.mrb[0].mxu0
        %2168 = vmatprep.mubr.bf16.mxu0 0
        %2169 = vmatmul.mubr.bf16.gmra.mrb[0].mxu0 %v2045
        %v2170 = vpop.f32.mrb[0].mxu0
        %v2171 = vadd.f32 0.0, %v2170
        %v2172 = vpop.f32.mrb[0].mxu0
        %v2173 = vpop.f32.mrb[0].mxu0
        %v2174 = vadd.f32 0.0, %v2173
        %v2175 = vpop.f32.mrb[0].mxu0
        %2176 = vmatprep.mubr.bf16.mxu0 0
        %2177 = vmatmul.mubr.bf16.gmra.mrb[0].mxu0 %v2048
        %v2178 = vpop.f32.mrb[0].mxu0
        %v2179 = vadd.f32 0.0, %v2178
        %v2180 = vpop.f32.mrb[0].mxu0
        %v2181 = vpop.f32.mrb[0].mxu0
        %v2182 = vadd.f32 0.0, %v2181
        %v2183 = vpop.f32.mrb[0].mxu0
        %2184 = vmatprep.mubr.bf16.mxu0 0
        %2185 = vmatmul.mubr.bf16.gmra.mrb[0].mxu0 %v2051
        %v2186 = vpop.f32.mrb[0].mxu0
        %v2187 = vadd.f32 0.0, %v2186
        %v2188 = vpop.f32.mrb[0].mxu0
        %v2189 = vpop.f32.mrb[0].mxu0
        %v2190 = vadd.f32 0.0, %v2189
        %v2191 = vpop.f32.mrb[0].mxu0
        %2192 = vmatprep.mubr.bf16.mxu0 0
        %2193 = vmatmul.mubr.bf16.gmra.mrb[0].mxu0 %v2054
        %v2194 = vpop.f32.mrb[0].mxu0
        %v2195 = vadd.f32 0.0, %v2194
        %v2196 = vpop.f32.mrb[0].mxu0
        %v2197 = vpop.f32.mrb[0].mxu0
        %v2198 = vadd.f32 0.0, %v2197
        %v2199 = vpop.f32.mrb[0].mxu0
        %2200 = vmatprep.mubr.bf16.mxu0 0
        %2201 = vmatmul.mubr.bf16.gmra.mrb[0].mxu0 %v2057
        %v2202 = vpop.f32.mrb[0].mxu0
        %v2203 = vadd.f32 0.0, %v2202
        %v2204 = vpop.f32.mrb[0].mxu0
        %v2205 = vpop.f32.mrb[0].mxu0
        %v2206 = vadd.f32 0.0, %v2205
        %v2207 = vpop.f32.mrb[0].mxu0
        %2208 = vmatprep.mubr.bf16.mxu0 0
        %2209 = vmatmul.mubr.bf16.gmra.mrb[0].mxu0 %v2060
        %v2210 = vpop.f32.mrb[0].mxu0
        %v2211 = vadd.f32 0.0, %v2210
        %v2212 = vpop.f32.mrb[0].mxu0
        %v2213 = vpop.f32.mrb[0].mxu0
        %v2214 = vadd.f32 0.0, %v2213
        %v2215 = vpop.f32.mrb[0].mxu0
        %2216 = vmatprep.mubr.bf16.mxu0 0
        %2217 = vmatmul.mubr.bf16.gmra.mrb[0].mxu0 %v2063
        %v2218 = vpop.f32.mrb[0].mxu0
        %v2219 = vadd.f32 0.0, %v2218
        %v2220 = vpop.f32.mrb[0].mxu0
        %v2221 = vpop.f32.mrb[0].mxu0
        %v2222 = vadd.f32 0.0, %v2221
        %v2223 = vpop.f32.mrb[0].mxu0
        %2224 = vmatprep.mubr.bf16.mxu0 0
        %2225 = vmatmul.mubr.bf16.gmra.mrb[0].mxu0 %v2066
        %v2226 = vpop.f32.mrb[0].mxu0
        %v2227 = vadd.f32 0.0, %v2226
        %v2228 = vpop.f32.mrb[0].mxu0
        %v2229 = vpop.f32.mrb[0].mxu0
        %v2230 = vadd.f32 0.0, %v2229
        %v2231 = vpop.f32.mrb[0].mxu0
        %2232 = vmatprep.mubr.bf16.mxu0 0
        %2233 = vmatmul.mubr.bf16.gmra.mrb[0].mxu0 %v2069
        %v2234 = vpop.f32.mrb[0].mxu0
        %v2235 = vadd.f32 0.0, %v2234
        %v2236 = vpop.f32.mrb[0].mxu0
        %v2237 = vpop.f32.mrb[0].mxu0
        %v2238 = vadd.f32 0.0, %v2237
        %v2239 = vpop.f32.mrb[0].mxu0
        %2240 = vmatprep.mubr.bf16.mxu0 0
        %2241 = vmatmul.mubr.bf16.gmra.mrb[0].mxu0 %v2072
        %v2242 = vpop.f32.mrb[0].mxu0
        %v2243 = vadd.f32 0.0, %v2242
        %v2244 = vpop.f32.mrb[0].mxu0
        %v2245 = vpop.f32.mrb[0].mxu0
        %v2246 = vadd.f32 0.0, %v2245
        %v2247 = vpop.f32.mrb[0].mxu0
        %2248 = vmatprep.mubr.bf16.mxu0 0
        %2249 = vmatmul.mubr.bf16.gmra.mrb[0].mxu0 %v2075
        %v2250 = vpop.f32.mrb[0].mxu0
        %v2251 = vadd.f32 0.0, %v2250
        %v2252 = vpop.f32.mrb[0].mxu0
        %v2253 = vpop.f32.mrb[0].mxu0
        %v2254 = vadd.f32 0.0, %v2253
        %v2255 = vpop.f32.mrb[0].mxu0
        %2256 = vmatprep.mubr.bf16.mxu0 0
        %2257 = vmatmul.mubr.bf16.gmra.mrb[0].mxu0 %v2078
        %v2258 = vpop.f32.mrb[0].mxu0
        %v2259 = vadd.f32 0.0, %v2258
        %v2260 = vpop.f32.mrb[0].mxu0
        %v2261 = vpop.f32.mrb[0].mxu0
        %v2262 = vadd.f32 0.0, %v2261
        %v2263 = vpop.f32.mrb[0].mxu0
        %2264 = vmatprep.mubr.bf16.mxu0 0
        %2265 = vmatmul.mubr.bf16.gmra.mrb[0].mxu0 %v2081
        %v2266 = vpop.f32.mrb[0].mxu0
        %v2267 = vadd.f32 0.0, %v2266
        %v2268 = vpop.f32.mrb[0].mxu0
        %v2269 = vpop.f32.mrb[0].mxu0
        %v2270 = vadd.f32 0.0, %v2269
        %v2271 = vpop.f32.mrb[0].mxu0
        %2272 = vmatprep.mubr.bf16.mxu0 0
        %2273 = vmatmul.mubr.bf16.gmra.mrb[0].mxu0 %v2084
        %v2274 = vpop.f32.mrb[0].mxu0
        %v2275 = vadd.f32 0.0, %v2274
        %v2276 = vpop.f32.mrb[0].mxu0
        %v2277 = vpop.f32.mrb[0].mxu0
        %v2278 = vadd.f32 0.0, %v2277
        %v2279 = vpop.f32.mrb[0].mxu0
        %2280 = vmatprep.mubr.bf16.mxu0 0
        %2281 = vmatmul.mubr.bf16.gmra.mrb[0].mxu0 %v2087
        %v2282 = vpop.f32.mrb[0].mxu0
        %v2283 = vadd.f32 0.0, %v2282
        %v2284 = vpop.f32.mrb[0].mxu0
        %v2285 = vpop.f32.mrb[0].mxu0
        %v2286 = vadd.f32 0.0, %v2285
        %v2287 = vpop.f32.mrb[0].mxu0
        %2288 = vmatprep.mubr.bf16.mxu0 0
        %2289 = vmatmul.mubr.bf16.gmra.mrb[0].mxu0 %v2090
        %v2290 = vpop.f32.mrb[0].mxu0
        %v2291 = vadd.f32 0.0, %v2290
        %v2292 = vpop.f32.mrb[0].mxu0
        %v2293 = vpop.f32.mrb[0].mxu0
        %v2294 = vadd.f32 0.0, %v2293
        %v2295 = vpop.f32.mrb[0].mxu0
        %2296 = vmatprep.mubr.bf16.mxu0 0
        %2297 = vmatmul.mubr.bf16.gmra.mrb[0].mxu0 %v2093
        %v2298 = vpop.f32.mrb[0].mxu0
        %v2299 = vadd.f32 0.0, %v2298
        %v2300 = vpop.f32.mrb[0].mxu0
        %v2301 = vpop.f32.mrb[0].mxu0
        %v2302 = vadd.f32 0.0, %v2301
        %v2303 = vpop.f32.mrb[0].mxu0
        %2304 = vmatprep.mubr.bf16.mxu0 0
        %2305 = vmatmul.mubr.bf16.gmra.mrb[0].mxu0 %v2096
        %v2306 = vpop.f32.mrb[0].mxu0
        %v2307 = vadd.f32 0.0, %v2306
        %v2308 = vpop.f32.mrb[0].mxu0
        %v2309 = vpop.f32.mrb[0].mxu0
        %v2310 = vadd.f32 0.0, %v2309
        %v2311 = vpop.f32.mrb[0].mxu0
        %2312 = vmatprep.mubr.bf16.mxu0 0
        %2313 = vmatmul.mubr.bf16.gmra.mrb[0].mxu0 %v2099
        %v2314 = vpop.f32.mrb[0].mxu0
        %v2315 = vadd.f32 0.0, %v2314
        %v2316 = vpop.f32.mrb[0].mxu0
        %v2317 = vpop.f32.mrb[0].mxu0
        %v2318 = vadd.f32 0.0, %v2317
        %v2319 = vpop.f32.mrb[0].mxu0
        %2320 = vmatprep.mubr.bf16.mxu0 0
        %2321 = vmatmul.mubr.bf16.gmra.mrb[0].mxu0 %v2102
        %v2322 = vpop.f32.mrb[0].mxu0
        %v2323 = vadd.f32 0.0, %v2322
        %v2324 = vpop.f32.mrb[0].mxu0
        %v2325 = vpop.f32.mrb[0].mxu0
        %v2326 = vadd.f32 0.0, %v2325
        %v2327 = vpop.f32.mrb[0].mxu0
        %2328 = vdwg.mxu0
        %v2329 = vadd.f32 %v1799, %v2139
        %v2330 = vadd.f32 %v1800, %v2142
        %v2331 = vadd.f32 %v1801, %v2147
        %v2332 = vadd.f32 %v1802, %v2150
        %v2333 = vadd.f32 %v1803, %v2155
        %v2334 = vadd.f32 %v1804, %v2158
        %v2335 = vadd.f32 %v1805, %v2163
        %v2336 = vadd.f32 %v1806, %v2166
        %v2337 = vadd.f32 %v1807, %v2171
        %v2338 = vadd.f32 %v1808, %v2174
        %v2339 = vadd.f32 %v1809, %v2179
        %v2340 = vadd.f32 %v1810, %v2182
        %v2341 = vadd.f32 %v1811, %v2187
        %v2342 = vadd.f32 %v1812, %v2190
        %v2343 = vadd.f32 %v1813, %v2195
        %v2344 = vadd.f32 %v1814, %v2198
        %v2345 = vadd.f32 %v1815, %v2203
        %v2346 = vadd.f32 %v1816, %v2206
        %v2347 = vadd.f32 %v1817, %v2211
        %v2348 = vadd.f32 %v1818, %v2214
        %v2349 = vadd.f32 %v1819, %v2219
        %v2350 = vadd.f32 %v1820, %v2222
        %v2351 = vadd.f32 %v1821, %v2227
        %v2352 = vadd.f32 %v1822, %v2230
        %v2353 = vadd.f32 %v1823, %v2235
        %v2354 = vadd.f32 %v1824, %v2238
        %v2355 = vadd.f32 %v1825, %v2243
        %v2356 = vadd.f32 %v1826, %v2246
        %v2357 = vadd.f32 %v1827, %v2251
        %v2358 = vadd.f32 %v1828, %v2254
        %v2359 = vadd.f32 %v1829, %v2259
        %v2360 = vadd.f32 %v1830, %v2262
        %v2361 = vadd.f32 %v1831, %v2267
        %v2362 = vadd.f32 %v1832, %v2270
        %v2363 = vadd.f32 %v1833, %v2275
        %v2364 = vadd.f32 %v1834, %v2278
        %v2365 = vadd.f32 %v1835, %v2283
        %v2366 = vadd.f32 %v1836, %v2286
        %v2367 = vadd.f32 %v1837, %v2291
        %v2368 = vadd.f32 %v1838, %v2294
        %v2369 = vadd.f32 %v1839, %v2299
        %v2370 = vadd.f32 %v1840, %v2302
        %v2371 = vadd.f32 %v1841, %v2307
        %v2372 = vadd.f32 %v1842, %v2310
        %v2373 = vadd.f32 %v1843, %v2315
        %v2374 = vadd.f32 %v1844, %v2318
        %v2375 = vadd.f32 %v1845, %v2323
        %v2376 = vadd.f32 %v1846, %v2326
        %v2377 = vld [vmem:[%s389 + $0xc] sm:$0xf]
        %v2378 = vld [vmem:[%s389 + $0x10] sm:$0xf]
        %v2379 = vld [vmem:[%s389 + $0x14] sm:$0xf]
        %v2380 = vld [vmem:[%s389 + $0x18] sm:$0xf]
        %v2381 = vld [vmem:[%s389 + $0x1c] sm:$0xf]
        %v2382 = vld [vmem:[%s389 + $0x20] sm:$0xf]
        %v2383 = vld [vmem:[%s389 + $0x24] sm:$0xf]
        %v2384 = vld [vmem:[%s389 + $0x28] sm:$0xf]
        %v2385 = vld [vmem:[%s389 + $0x2c] sm:$0xf]
        %v2386 = vld [vmem:[%s389 + $0x30] sm:$0xf]
        %v2387 = vld [vmem:[%s389 + $0x34] sm:$0xf]
        %v2388 = vld [vmem:[%s389 + $0x38] sm:$0xf]
        %v2389 = vld [vmem:[%s389 + $0x3c] sm:$0xf]
        %v2390 = vld [vmem:[%s389 + $0x40] sm:$0xf]
        %v2391 = vld [vmem:[%s389 + $0x44] sm:$0xf]
        %v2392 = vld [vmem:[%s389 + $0x48] sm:$0xf]
        %v2393 = vld [vmem:[%s389 + $0x4c] sm:$0xf]
        %v2394 = vld [vmem:[%s389 + $0x50] sm:$0xf]
        %v2395 = vld [vmem:[%s389 + $0x54] sm:$0xf]
        %v2396 = vld [vmem:[%s389 + $0x58] sm:$0xf]
        %v2397 = vld [vmem:[%s389 + $0x5c] sm:$0xf]
        %v2398 = vld [vmem:[%s389 + $0x60] sm:$0xf]
        %v2399 = vld [vmem:[%s389 + $0x64] sm:$0xf]
        %v2400 = vld [vmem:[%s389 + $0x68] sm:$0xf]
        %v2401 = vld [vmem:[%s389 + $0x6c] sm:$0xf]
        %v2402 = vld [vmem:[%s389 + $0x70] sm:$0xf]
        %v2403 = vld [vmem:[%s389 + $0x74] sm:$0xf]
        %v2404 = vld [vmem:[%s389 + $0x78] sm:$0xf]
        %v2405 = vld [vmem:[%s389 + $0x7c] sm:$0xf]
        %v2406 = vld [vmem:[%s389 + $0x80] sm:$0xf]
        %v2407 = vld [vmem:[%s389 + $0x84] sm:$0xf]
        %v2408 = vld [vmem:[%s389 + $0x88] sm:$0xf]
        %v2409 = vld [vmem:[%s389 + $0x8c] sm:$0xf]
        %v2410 = vld [vmem:[%s389 + $0x90] sm:$0xf]
        %v2411 = vld [vmem:[%s389 + $0x94] sm:$0xf]
        %v2412 = vld [vmem:[%s389 + $0x98] sm:$0xf]
        %v2413 = vld [vmem:[%s389 + $0x9c] sm:$0xf]
        %v2414 = vld [vmem:[%s389 + $0xa0] sm:$0xf]
        %v2415 = vld [vmem:[%s389 + $0xa4] sm:$0xf]
        %v2416 = vld [vmem:[%s389 + $0xa8] sm:$0xf]
        %v2417 = vld [vmem:[%s389 + $0xac] sm:$0xf]
        %v2418 = vld [vmem:[%s389 + $0xb0] sm:$0xf]
        %v2419 = vld [vmem:[%s389 + $0xb4] sm:$0xf]
        %v2420 = vld [vmem:[%s389 + $0xb8] sm:$0xf]
        %v2421 = vld [vmem:[%s389 + $0xbc] sm:$0xf]
        %v2422 = vld [vmem:[%s389 + $0xc0] sm:$0xf]
        %v2423 = vld [vmem:[%s389 + $0xc4] sm:$0xf]
        %v2424 = vld [vmem:[%s389 + $0xc8] sm:$0xf]
        %v2425 = vld [vmem:[%s389 + $0xcc] sm:$0x1]
        %s2426 = scalar_lea.vmem [#allocation8], 64
        %v2427 = vld [vmem:[%s2426] sm:$0xf]
        %v2428 = vld [vmem:[%s2426 + $0x4] sm:$0xf]
        %v2429 = vld [vmem:[%s2426 + $0x8] sm:$0xf]
        %v2430 = vld [vmem:[%s2426 + $0xc] sm:$0xf]
        %v2480 = vunpack.c.l.b16 %v2377
        %v2481 = vunpack.c.l.b16 %v2378
        %v2482 = vunpack.c.l.b16 %v2379
        %v2483 = vunpack.c.l.b16 %v2380
        %v2484 = vunpack.c.l.b16 %v2381
        %v2485 = vunpack.c.l.b16 %v2382
        %v2486 = vunpack.c.l.b16 %v2383
        %v2487 = vunpack.c.l.b16 %v2384
        %v2488 = vunpack.c.l.b16 %v2385
        %v2489 = vunpack.c.l.b16 %v2386
        %v2490 = vunpack.c.l.b16 %v2387
        %v2491 = vunpack.c.l.b16 %v2388
        %v2492 = vunpack.c.l.b16 %v2389
        %v2493 = vunpack.c.l.b16 %v2390
        %v2494 = vunpack.c.l.b16 %v2391
        %v2495 = vunpack.c.l.b16 %v2392
        %v2496 = vunpack.c.l.b16 %v2393
        %v2497 = vunpack.c.l.b16 %v2394
        %v2498 = vunpack.c.l.b16 %v2395
        %v2499 = vunpack.c.l.b16 %v2396
        %v2500 = vunpack.c.l.b16 %v2397
        %v2501 = vunpack.c.l.b16 %v2398
        %v2502 = vunpack.c.l.b16 %v2399
        %v2503 = vunpack.c.l.b16 %v2400
        %v2504 = vunpack.c.l.b16 %v2401
        %v2505 = vunpack.c.l.b16 %v2402
        %v2506 = vunpack.c.l.b16 %v2403
        %v2507 = vunpack.c.l.b16 %v2404
        %v2508 = vunpack.c.l.b16 %v2405
        %v2509 = vunpack.c.l.b16 %v2406
        %v2510 = vunpack.c.l.b16 %v2407
        %v2511 = vunpack.c.l.b16 %v2408
        %v2512 = vunpack.c.l.b16 %v2409
        %v2513 = vunpack.c.l.b16 %v2410
        %v2514 = vunpack.c.l.b16 %v2411
        %v2515 = vunpack.c.l.b16 %v2412
        %v2516 = vunpack.c.l.b16 %v2413
        %v2517 = vunpack.c.l.b16 %v2414
        %v2518 = vunpack.c.l.b16 %v2415
        %v2519 = vunpack.c.l.b16 %v2416
        %v2520 = vunpack.c.l.b16 %v2417
        %v2521 = vunpack.c.l.b16 %v2418
        %v2522 = vunpack.c.l.b16 %v2419
        %v2523 = vunpack.c.l.b16 %v2420
        %v2524 = vunpack.c.l.b16 %v2421
        %v2525 = vunpack.c.l.b16 %v2422
        %v2526 = vunpack.c.l.b16 %v2423
        %v2527 = vunpack.c.l.b16 %v2424
        %v2528 = vunpack.c.l.b16 %v2425
        %v2529 = vpack.c.b16 %v2481, %v2480
        %v2530 = vpack.c.b16 %v2483, %v2482
        %v2531 = vpack.c.b16 %v2485, %v2484
        %v2532 = vpack.c.b16 %v2487, %v2486
        %v2533 = vpack.c.b16 %v2489, %v2488
        %v2534 = vpack.c.b16 %v2491, %v2490
        %v2535 = vpack.c.b16 %v2493, %v2492
        %v2536 = vpack.c.b16 %v2495, %v2494
        %v2537 = vpack.c.b16 %v2497, %v2496
        %v2538 = vpack.c.b16 %v2499, %v2498
        %v2539 = vpack.c.b16 %v2501, %v2500
        %v2540 = vpack.c.b16 %v2503, %v2502
        %v2541 = vpack.c.b16 %v2505, %v2504
        %v2542 = vpack.c.b16 %v2507, %v2506
        %v2543 = vpack.c.b16 %v2509, %v2508
        %v2544 = vpack.c.b16 %v2511, %v2510
        %v2545 = vpack.c.b16 %v2513, %v2512
        %v2546 = vpack.c.b16 %v2515, %v2514
        %v2547 = vpack.c.b16 %v2517, %v2516
        %v2548 = vpack.c.b16 %v2519, %v2518
        %v2549 = vpack.c.b16 %v2521, %v2520
        %v2550 = vpack.c.b16 %v2523, %v2522
        %v2551 = vpack.c.b16 %v2525, %v2524
        %v2552 = vpack.c.b16 %v2527, %v2526
        %v2553 = vpack.c.b16 %v2528, %v2528
        %v2555 = vshrl.u32 %v2529, 16
        %v2557 = vshll.u32 %v2529, 16
        %v2559 = vrot.slane %v2557, 1
        %v2560 = vor.u32 %v2555, %v2559
        %v2562 = vshll.u32 %v2530, 16
        %v2564 = vrot.slane %v2562, 1
        %v2565 = vsel %vm639, %v2560, %v2564
        %v2566 = vshrl.u32 %v2530, 16
        %v2568 = vor.u32 %v2566, %v2564
        %v2570 = vshll.u32 %v2531, 16
        %v2572 = vrot.slane %v2570, 1
        %v2573 = vsel %vm639, %v2568, %v2572
        %v2574 = vshrl.u32 %v2531, 16
        %v2576 = vor.u32 %v2574, %v2572
        %v2578 = vshll.u32 %v2532, 16
        %v2580 = vrot.slane %v2578, 1
        %v2581 = vsel %vm639, %v2576, %v2580
        %v2582 = vshrl.u32 %v2532, 16
        %v2584 = vor.u32 %v2582, %v2580
        %v2586 = vshll.u32 %v2533, 16
        %v2588 = vrot.slane %v2586, 1
        %v2589 = vsel %vm639, %v2584, %v2588
        %v2590 = vshrl.u32 %v2533, 16
        %v2592 = vor.u32 %v2590, %v2588
        %v2594 = vshll.u32 %v2534, 16
        %v2596 = vrot.slane %v2594, 1
        %v2597 = vsel %vm639, %v2592, %v2596
        %v2598 = vshrl.u32 %v2534, 16
        %v2600 = vor.u32 %v2598, %v2596
        %v2602 = vshll.u32 %v2535, 16
        %v2604 = vrot.slane %v2602, 1
        %v2605 = vsel %vm639, %v2600, %v2604
        %v2606 = vshrl.u32 %v2535, 16
        %v2608 = vor.u32 %v2606, %v2604
        %v2610 = vshll.u32 %v2536, 16
        %v2612 = vrot.slane %v2610, 1
        %v2613 = vsel %vm639, %v2608, %v2612
        %v2614 = vshrl.u32 %v2536, 16
        %v2616 = vor.u32 %v2614, %v2612
        %v2618 = vshll.u32 %v2537, 16
        %v2620 = vrot.slane %v2618, 1
        %v2621 = vsel %vm639, %v2616, %v2620
        %v2622 = vshrl.u32 %v2537, 16
        %v2624 = vor.u32 %v2622, %v2620
        %v2626 = vshll.u32 %v2538, 16
        %v2628 = vrot.slane %v2626, 1
        %v2629 = vsel %vm639, %v2624, %v2628
        %v2630 = vshrl.u32 %v2538, 16
        %v2632 = vor.u32 %v2630, %v2628
        %v2634 = vshll.u32 %v2539, 16
        %v2636 = vrot.slane %v2634, 1
        %v2637 = vsel %vm639, %v2632, %v2636
        %v2638 = vshrl.u32 %v2539, 16
        %v2640 = vor.u32 %v2638, %v2636
        %v2642 = vshll.u32 %v2540, 16
        %v2644 = vrot.slane %v2642, 1
        %v2645 = vsel %vm639, %v2640, %v2644
        %v2646 = vshrl.u32 %v2540, 16
        %v2648 = vor.u32 %v2646, %v2644
        %v2650 = vshll.u32 %v2541, 16
        %v2652 = vrot.slane %v2650, 1
        %v2653 = vsel %vm639, %v2648, %v2652
        %v2654 = vshrl.u32 %v2541, 16
        %v2656 = vor.u32 %v2654, %v2652
        %v2658 = vshll.u32 %v2542, 16
        %v2660 = vrot.slane %v2658, 1
        %v2661 = vsel %vm639, %v2656, %v2660
        %v2662 = vshrl.u32 %v2542, 16
        %v2664 = vor.u32 %v2662, %v2660
        %v2666 = vshll.u32 %v2543, 16
        %v2668 = vrot.slane %v2666, 1
        %v2669 = vsel %vm639, %v2664, %v2668
        %v2670 = vshrl.u32 %v2543, 16
        %v2672 = vor.u32 %v2670, %v2668
        %v2674 = vshll.u32 %v2544, 16
        %v2676 = vrot.slane %v2674, 1
        %v2677 = vsel %vm639, %v2672, %v2676
        %v2678 = vshrl.u32 %v2544, 16
        %v2680 = vor.u32 %v2678, %v2676
        %v2682 = vshll.u32 %v2545, 16
        %v2684 = vrot.slane %v2682, 1
        %v2685 = vsel %vm639, %v2680, %v2684
        %v2686 = vshrl.u32 %v2545, 16
        %v2688 = vor.u32 %v2686, %v2684
        %v2690 = vshll.u32 %v2546, 16
        %v2692 = vrot.slane %v2690, 1
        %v2693 = vsel %vm639, %v2688, %v2692
        %v2694 = vshrl.u32 %v2546, 16
        %v2696 = vor.u32 %v2694, %v2692
        %v2698 = vshll.u32 %v2547, 16
        %v2700 = vrot.slane %v2698, 1
        %v2701 = vsel %vm639, %v2696, %v2700
        %v2702 = vshrl.u32 %v2547, 16
        %v2704 = vor.u32 %v2702, %v2700
        %v2706 = vshll.u32 %v2548, 16
        %v2708 = vrot.slane %v2706, 1
        %v2709 = vsel %vm639, %v2704, %v2708
        %v2710 = vshrl.u32 %v2548, 16
        %v2712 = vor.u32 %v2710, %v2708
        %v2714 = vshll.u32 %v2549, 16
        %v2716 = vrot.slane %v2714, 1
        %v2717 = vsel %vm639, %v2712, %v2716
        %v2718 = vshrl.u32 %v2549, 16
        %v2720 = vor.u32 %v2718, %v2716
        %v2722 = vshll.u32 %v2550, 16
        %v2724 = vrot.slane %v2722, 1
        %v2725 = vsel %vm639, %v2720, %v2724
        %v2726 = vshrl.u32 %v2550, 16
        %v2728 = vor.u32 %v2726, %v2724
        %v2730 = vshll.u32 %v2551, 16
        %v2732 = vrot.slane %v2730, 1
        %v2733 = vsel %vm639, %v2728, %v2732
        %v2734 = vshrl.u32 %v2551, 16
        %v2736 = vor.u32 %v2734, %v2732
        %v2738 = vshll.u32 %v2552, 16
        %v2740 = vrot.slane %v2738, 1
        %v2741 = vsel %vm639, %v2736, %v2740
        %v2742 = vshrl.u32 %v2552, 16
        %v2744 = vor.u32 %v2742, %v2740
        %v2746 = vshll.u32 %v2553, 16
        %v2748 = vrot.slane %v2746, 1
        %v2749 = vsel %vm639, %v2744, %v2748
        %v2754 = vunpack.c.l.b16 %v2427
        %v2755 = vunpack.c.l.b16 %v2428
        %v2756 = vunpack.c.l.b16 %v2429
        %v2757 = vunpack.c.l.b16 %v2430
        %v2758 = vpack.c.b16 %v2755, %v2754
        %v2759 = vpack.c.b16 %v2757, %v2756
        %v2763 = vsel %vm848, %v2565, 0
        %v2766 = vsel %vm848, %v2573, 0
        %v2769 = vsel %vm848, %v2581, 0
        %v2772 = vsel %vm848, %v2589, 0
        %v2775 = vsel %vm848, %v2597, 0
        %v2778 = vsel %vm848, %v2605, 0
        %v2781 = vsel %vm848, %v2613, 0
        %v2784 = vsel %vm848, %v2621, 0
        %v2787 = vsel %vm848, %v2629, 0
        %v2790 = vsel %vm848, %v2637, 0
        %v2793 = vsel %vm848, %v2645, 0
        %v2796 = vsel %vm848, %v2653, 0
        %v2799 = vsel %vm848, %v2661, 0
        %v2802 = vsel %vm848, %v2669, 0
        %v2805 = vsel %vm848, %v2677, 0
        %v2808 = vsel %vm848, %v2685, 0
        %v2811 = vsel %vm848, %v2693, 0
        %v2814 = vsel %vm848, %v2701, 0
        %v2817 = vsel %vm848, %v2709, 0
        %v2820 = vsel %vm848, %v2717, 0
        %v2823 = vsel %vm848, %v2725, 0
        %v2826 = vsel %vm848, %v2733, 0
        %v2829 = vsel %vm848, %v2741, 0
        %v2832 = vsel %vm848, %v2749, 0
        %2834 = vmatprep.subr.bf16.mxu0 0
        %2835 = vmatpush1.bf16.msra.mxu0 %v2758
        %2836 = vmatprep.subr.bf16.mxu0 0
        %2837 = vmatpush1.bf16.msra.mxu0 %v2759
        %2838 = vmatprep.subr.bf16.mxu0 0
        %2839 = vmatpush1.bf16.msra.mxu0 0
        %2840 = vmatprep.subr.bf16.mxu0 0
        %2841 = vmatpush1.bf16.msra.mxu0 0
        %2842 = vmatprep.subr.bf16.mxu0 0
        %2843 = vmatpush1.bf16.msra.mxu0 0
        %2844 = vmatprep.subr.bf16.mxu0 0
        %2845 = vmatpush1.bf16.msra.mxu0 0
        %2846 = vmatprep.subr.bf16.mxu0 0
        %2847 = vmatpush1.bf16.msra.mxu0 0
        %2848 = vmatprep.subr.bf16.mxu0 0
        %2849 = vmatpush1.bf16.msra.mxu0 0
        %2850 = vmatprep.subr.bf16.mxu0 0
        %2851 = vmatpush1.bf16.msra.mxu0 0
        %2852 = vmatprep.subr.bf16.mxu0 0
        %2853 = vmatpush1.bf16.msra.mxu0 0
        %2854 = vmatprep.subr.bf16.mxu0 0
        %2855 = vmatpush1.bf16.msra.mxu0 0
        %2856 = vmatprep.subr.bf16.mxu0 0
        %2857 = vmatpush1.bf16.msra.mxu0 0
        %2858 = vmatprep.subr.bf16.mxu0 0
        %2859 = vmatpush1.bf16.msra.mxu0 0
        %2860 = vmatprep.subr.bf16.mxu0 0
        %2861 = vmatpush1.bf16.msra.mxu0 0
        %2862 = vmatprep.subr.bf16.mxu0 0
        %2863 = vmatpush1.bf16.msra.mxu0 0
        %2864 = vmatprep.subr.bf16.mxu0 0
        %2865 = vmatpush1.bf16.msra.mxu0 0
        %2866 = vmatprep.mubr.bf16.mxu0 0
        %2867 = vmatmul.mubr.bf16.gmra.mrb[0].mxu0 %v2763
        %v2868 = vpop.f32.mrb[0].mxu0
        %v2869 = vadd.f32 0.0, %v2868
        %v2870 = vpop.f32.mrb[0].mxu0
        %v2871 = vpop.f32.mrb[0].mxu0
        %v2872 = vadd.f32 0.0, %v2871
        %v2873 = vpop.f32.mrb[0].mxu0
        %2874 = vmatprep.mubr.bf16.mxu0 0
        %2875 = vmatmul.mubr.bf16.gmra.mrb[0].mxu0 %v2766
        %v2876 = vpop.f32.mrb[0].mxu0
        %v2877 = vadd.f32 0.0, %v2876
        %v2878 = vpop.f32.mrb[0].mxu0
        %v2879 = vpop.f32.mrb[0].mxu0
        %v2880 = vadd.f32 0.0, %v2879
        %v2881 = vpop.f32.mrb[0].mxu0
        %2882 = vmatprep.mubr.bf16.mxu0 0
        %2883 = vmatmul.mubr.bf16.gmra.mrb[0].mxu0 %v2769
        %v2884 = vpop.f32.mrb[0].mxu0
        %v2885 = vadd.f32 0.0, %v2884
        %v2886 = vpop.f32.mrb[0].mxu0
        %v2887 = vpop.f32.mrb[0].mxu0
        %v2888 = vadd.f32 0.0, %v2887
        %v2889 = vpop.f32.mrb[0].mxu0
        %2890 = vmatprep.mubr.bf16.mxu0 0
        %2891 = vmatmul.mubr.bf16.gmra.mrb[0].mxu0 %v2772
        %v2892 = vpop.f32.mrb[0].mxu0
        %v2893 = vadd.f32 0.0, %v2892
        %v2894 = vpop.f32.mrb[0].mxu0
        %v2895 = vpop.f32.mrb[0].mxu0
        %v2896 = vadd.f32 0.0, %v2895
        %v2897 = vpop.f32.mrb[0].mxu0
        %2898 = vmatprep.mubr.bf16.mxu0 0
        %2899 = vmatmul.mubr.bf16.gmra.mrb[0].mxu0 %v2775
        %v2900 = vpop.f32.mrb[0].mxu0
        %v2901 = vadd.f32 0.0, %v2900
        %v2902 = vpop.f32.mrb[0].mxu0
        %v2903 = vpop.f32.mrb[0].mxu0
        %v2904 = vadd.f32 0.0, %v2903
        %v2905 = vpop.f32.mrb[0].mxu0
        %2906 = vmatprep.mubr.bf16.mxu0 0
        %2907 = vmatmul.mubr.bf16.gmra.mrb[0].mxu0 %v2778
        %v2908 = vpop.f32.mrb[0].mxu0
        %v2909 = vadd.f32 0.0, %v2908
        %v2910 = vpop.f32.mrb[0].mxu0
        %v2911 = vpop.f32.mrb[0].mxu0
        %v2912 = vadd.f32 0.0, %v2911
        %v2913 = vpop.f32.mrb[0].mxu0
        %2914 = vmatprep.mubr.bf16.mxu0 0
        %2915 = vmatmul.mubr.bf16.gmra.mrb[0].mxu0 %v2781
        %v2916 = vpop.f32.mrb[0].mxu0
        %v2917 = vadd.f32 0.0, %v2916
        %v2918 = vpop.f32.mrb[0].mxu0
        %v2919 = vpop.f32.mrb[0].mxu0
        %v2920 = vadd.f32 0.0, %v2919
        %v2921 = vpop.f32.mrb[0].mxu0
        %2922 = vmatprep.mubr.bf16.mxu0 0
        %2923 = vmatmul.mubr.bf16.gmra.mrb[0].mxu0 %v2784
        %v2924 = vpop.f32.mrb[0].mxu0
        %v2925 = vadd.f32 0.0, %v2924
        %v2926 = vpop.f32.mrb[0].mxu0
        %v2927 = vpop.f32.mrb[0].mxu0
        %v2928 = vadd.f32 0.0, %v2927
        %v2929 = vpop.f32.mrb[0].mxu0
        %2930 = vmatprep.mubr.bf16.mxu0 0
        %2931 = vmatmul.mubr.bf16.gmra.mrb[0].mxu0 %v2787
        %v2932 = vpop.f32.mrb[0].mxu0
        %v2933 = vadd.f32 0.0, %v2932
        %v2934 = vpop.f32.mrb[0].mxu0
        %v2935 = vpop.f32.mrb[0].mxu0
        %v2936 = vadd.f32 0.0, %v2935
        %v2937 = vpop.f32.mrb[0].mxu0
        %2938 = vmatprep.mubr.bf16.mxu0 0
        %2939 = vmatmul.mubr.bf16.gmra.mrb[0].mxu0 %v2790
        %v2940 = vpop.f32.mrb[0].mxu0
        %v2941 = vadd.f32 0.0, %v2940
        %v2942 = vpop.f32.mrb[0].mxu0
        %v2943 = vpop.f32.mrb[0].mxu0
        %v2944 = vadd.f32 0.0, %v2943
        %v2945 = vpop.f32.mrb[0].mxu0
        %2946 = vmatprep.mubr.bf16.mxu0 0
        %2947 = vmatmul.mubr.bf16.gmra.mrb[0].mxu0 %v2793
        %v2948 = vpop.f32.mrb[0].mxu0
        %v2949 = vadd.f32 0.0, %v2948
        %v2950 = vpop.f32.mrb[0].mxu0
        %v2951 = vpop.f32.mrb[0].mxu0
        %v2952 = vadd.f32 0.0, %v2951
        %v2953 = vpop.f32.mrb[0].mxu0
        %2954 = vmatprep.mubr.bf16.mxu0 0
        %2955 = vmatmul.mubr.bf16.gmra.mrb[0].mxu0 %v2796
        %v2956 = vpop.f32.mrb[0].mxu0
        %v2957 = vadd.f32 0.0, %v2956
        %v2958 = vpop.f32.mrb[0].mxu0
        %v2959 = vpop.f32.mrb[0].mxu0
        %v2960 = vadd.f32 0.0, %v2959
        %v2961 = vpop.f32.mrb[0].mxu0
        %2962 = vmatprep.mubr.bf16.mxu0 0
        %2963 = vmatmul.mubr.bf16.gmra.mrb[0].mxu0 %v2799
        %v2964 = vpop.f32.mrb[0].mxu0
        %v2965 = vadd.f32 0.0, %v2964
        %v2966 = vpop.f32.mrb[0].mxu0
        %v2967 = vpop.f32.mrb[0].mxu0
        %v2968 = vadd.f32 0.0, %v2967
        %v2969 = vpop.f32.mrb[0].mxu0
        %2970 = vmatprep.mubr.bf16.mxu0 0
        %2971 = vmatmul.mubr.bf16.gmra.mrb[0].mxu0 %v2802
        %v2972 = vpop.f32.mrb[0].mxu0
        %v2973 = vadd.f32 0.0, %v2972
        %v2974 = vpop.f32.mrb[0].mxu0
        %v2975 = vpop.f32.mrb[0].mxu0
        %v2976 = vadd.f32 0.0, %v2975
        %v2977 = vpop.f32.mrb[0].mxu0
        %2978 = vmatprep.mubr.bf16.mxu0 0
        %2979 = vmatmul.mubr.bf16.gmra.mrb[0].mxu0 %v2805
        %v2980 = vpop.f32.mrb[0].mxu0
        %v2981 = vadd.f32 0.0, %v2980
        %v2982 = vpop.f32.mrb[0].mxu0
        %v2983 = vpop.f32.mrb[0].mxu0
        %v2984 = vadd.f32 0.0, %v2983
        %v2985 = vpop.f32.mrb[0].mxu0
        %2986 = vmatprep.mubr.bf16.mxu0 0
        %2987 = vmatmul.mubr.bf16.gmra.mrb[0].mxu0 %v2808
        %v2988 = vpop.f32.mrb[0].mxu0
        %v2989 = vadd.f32 0.0, %v2988
        %v2990 = vpop.f32.mrb[0].mxu0
        %v2991 = vpop.f32.mrb[0].mxu0
        %v2992 = vadd.f32 0.0, %v2991
        %v2993 = vpop.f32.mrb[0].mxu0
        %2994 = vmatprep.mubr.bf16.mxu0 0
        %2995 = vmatmul.mubr.bf16.gmra.mrb[0].mxu0 %v2811
        %v2996 = vpop.f32.mrb[0].mxu0
        %v2997 = vadd.f32 0.0, %v2996
        %v2998 = vpop.f32.mrb[0].mxu0
        %v2999 = vpop.f32.mrb[0].mxu0
        %v3000 = vadd.f32 0.0, %v2999
        %v3001 = vpop.f32.mrb[0].mxu0
        %3002 = vmatprep.mubr.bf16.mxu0 0
        %3003 = vmatmul.mubr.bf16.gmra.mrb[0].mxu0 %v2814
        %v3004 = vpop.f32.mrb[0].mxu0
        %v3005 = vadd.f32 0.0, %v3004
        %v3006 = vpop.f32.mrb[0].mxu0
        %v3007 = vpop.f32.mrb[0].mxu0
        %v3008 = vadd.f32 0.0, %v3007
        %v3009 = vpop.f32.mrb[0].mxu0
        %3010 = vmatprep.mubr.bf16.mxu0 0
        %3011 = vmatmul.mubr.bf16.gmra.mrb[0].mxu0 %v2817
        %v3012 = vpop.f32.mrb[0].mxu0
        %v3013 = vadd.f32 0.0, %v3012
        %v3014 = vpop.f32.mrb[0].mxu0
        %v3015 = vpop.f32.mrb[0].mxu0
        %v3016 = vadd.f32 0.0, %v3015
        %v3017 = vpop.f32.mrb[0].mxu0
        %3018 = vmatprep.mubr.bf16.mxu0 0
        %3019 = vmatmul.mubr.bf16.gmra.mrb[0].mxu0 %v2820
        %v3020 = vpop.f32.mrb[0].mxu0
        %v3021 = vadd.f32 0.0, %v3020
        %v3022 = vpop.f32.mrb[0].mxu0
        %v3023 = vpop.f32.mrb[0].mxu0
        %v3024 = vadd.f32 0.0, %v3023
        %v3025 = vpop.f32.mrb[0].mxu0
        %3026 = vmatprep.mubr.bf16.mxu0 0
        %3027 = vmatmul.mubr.bf16.gmra.mrb[0].mxu0 %v2823
        %v3028 = vpop.f32.mrb[0].mxu0
        %v3029 = vadd.f32 0.0, %v3028
        %v3030 = vpop.f32.mrb[0].mxu0
        %v3031 = vpop.f32.mrb[0].mxu0
        %v3032 = vadd.f32 0.0, %v3031
        %v3033 = vpop.f32.mrb[0].mxu0
        %3034 = vmatprep.mubr.bf16.mxu0 0
        %3035 = vmatmul.mubr.bf16.gmra.mrb[0].mxu0 %v2826
        %v3036 = vpop.f32.mrb[0].mxu0
        %v3037 = vadd.f32 0.0, %v3036
        %v3038 = vpop.f32.mrb[0].mxu0
        %v3039 = vpop.f32.mrb[0].mxu0
        %v3040 = vadd.f32 0.0, %v3039
        %v3041 = vpop.f32.mrb[0].mxu0
        %3042 = vmatprep.mubr.bf16.mxu0 0
        %3043 = vmatmul.mubr.bf16.gmra.mrb[0].mxu0 %v2829
        %v3044 = vpop.f32.mrb[0].mxu0
        %v3045 = vadd.f32 0.0, %v3044
        %v3046 = vpop.f32.mrb[0].mxu0
        %v3047 = vpop.f32.mrb[0].mxu0
        %v3048 = vadd.f32 0.0, %v3047
        %v3049 = vpop.f32.mrb[0].mxu0
        %3050 = vmatprep.mubr.bf16.mxu0 0
        %3051 = vmatmul.mubr.bf16.gmra.mrb[0].mxu0 %v2832
        %v3052 = vpop.f32.mrb[0].mxu0
        %v3053 = vadd.f32 0.0, %v3052
        %v3054 = vpop.f32.mrb[0].mxu0
        %v3055 = vpop.f32.mrb[0].mxu0
        %v3056 = vadd.f32 0.0, %v3055
        %v3057 = vpop.f32.mrb[0].mxu0
        %3058 = vdwg.mxu0
        %v3059 = vadd.f32 %v2329, %v2869
        %v3060 = vadd.f32 %v2330, %v2872
        %v3061 = vadd.f32 %v2331, %v2877
        %v3062 = vadd.f32 %v2332, %v2880
        %v3063 = vadd.f32 %v2333, %v2885
        %v3064 = vadd.f32 %v2334, %v2888
        %v3065 = vadd.f32 %v2335, %v2893
        %v3066 = vadd.f32 %v2336, %v2896
        %v3067 = vadd.f32 %v2337, %v2901
        %v3068 = vadd.f32 %v2338, %v2904
        %v3069 = vadd.f32 %v2339, %v2909
        %v3070 = vadd.f32 %v2340, %v2912
        %v3071 = vadd.f32 %v2341, %v2917
        %v3072 = vadd.f32 %v2342, %v2920
        %v3073 = vadd.f32 %v2343, %v2925
        %v3074 = vadd.f32 %v2344, %v2928
        %v3075 = vadd.f32 %v2345, %v2933
        %v3076 = vadd.f32 %v2346, %v2936
        %v3077 = vadd.f32 %v2347, %v2941
        %v3078 = vadd.f32 %v2348, %v2944
        %v3079 = vadd.f32 %v2349, %v2949
        %v3080 = vadd.f32 %v2350, %v2952
        %v3081 = vadd.f32 %v2351, %v2957
        %v3082 = vadd.f32 %v2352, %v2960
        %v3083 = vadd.f32 %v2353, %v2965
        %v3084 = vadd.f32 %v2354, %v2968
        %v3085 = vadd.f32 %v2355, %v2973
        %v3086 = vadd.f32 %v2356, %v2976
        %v3087 = vadd.f32 %v2357, %v2981
        %v3088 = vadd.f32 %v2358, %v2984
        %v3089 = vadd.f32 %v2359, %v2989
        %v3090 = vadd.f32 %v2360, %v2992
        %v3091 = vadd.f32 %v2361, %v2997
        %v3092 = vadd.f32 %v2362, %v3000
        %v3093 = vadd.f32 %v2363, %v3005
        %v3094 = vadd.f32 %v2364, %v3008
        %v3095 = vadd.f32 %v2365, %v3013
        %v3096 = vadd.f32 %v2366, %v3016
        %v3097 = vadd.f32 %v2367, %v3021
        %v3098 = vadd.f32 %v2368, %v3024
        %v3099 = vadd.f32 %v2369, %v3029
        %v3100 = vadd.f32 %v2370, %v3032
        %v3101 = vadd.f32 %v2371, %v3037
        %v3102 = vadd.f32 %v2372, %v3040
        %v3103 = vadd.f32 %v2373, %v3045
        %v3104 = vadd.f32 %v2374, %v3048
        %v3105 = vadd.f32 %v2375, %v3053
        %v3106 = vadd.f32 %v2376, %v3056
        %v3107 = vld [vmem:[%s389 + $0xc] sm:$0xe]
        %s3108 = scalar_lea.vmem [#allocation8], 80
        %v3109 = vld [vmem:[%s3108] sm:$0xf]
        %v3110 = vld [vmem:[%s3108 + $0x4] sm:$0xf]
        %v3111 = vld [vmem:[%s3108 + $0x8] sm:$0xf]
        %v3112 = vld [vmem:[%s3108 + $0xc] sm:$0xf]
        %v3114 = vunpack.c.l.b16 %v3107
        %v3115 = vpack.c.b16 %v2481, %v3114
        %v3116 = vrot.slane %v3115, 1
        %v3117 = vrot.slane %v2530, 1
        %v3118 = vsel %vm1440, %v3116, %v3117
        %v3119 = vrot.slane %v2531, 1
        %v3120 = vsel %vm1440, %v3117, %v3119
        %v3121 = vrot.slane %v2532, 1
        %v3122 = vsel %vm1440, %v3119, %v3121
        %v3123 = vrot.slane %v2533, 1
        %v3124 = vsel %vm1440, %v3121, %v3123
        %v3125 = vrot.slane %v2534, 1
        %v3126 = vsel %vm1440, %v3123, %v3125
        %v3127 = vrot.slane %v2535, 1
        %v3128 = vsel %vm1440, %v3125, %v3127
        %v3129 = vrot.slane %v2536, 1
        %v3130 = vsel %vm1440, %v3127, %v3129
        %v3131 = vrot.slane %v2537, 1
        %v3132 = vsel %vm1440, %v3129, %v3131
        %v3133 = vrot.slane %v2538, 1
        %v3134 = vsel %vm1440, %v3131, %v3133
        %v3135 = vrot.slane %v2539, 1
        %v3136 = vsel %vm1440, %v3133, %v3135
        %v3137 = vrot.slane %v2540, 1
        %v3138 = vsel %vm1440, %v3135, %v3137
        %v3139 = vrot.slane %v2541, 1
        %v3140 = vsel %vm1440, %v3137, %v3139
        %v3141 = vrot.slane %v2542, 1
        %v3142 = vsel %vm1440, %v3139, %v3141
        %v3143 = vrot.slane %v2543, 1
        %v3144 = vsel %vm1440, %v3141, %v3143
        %v3145 = vrot.slane %v2544, 1
        %v3146 = vsel %vm1440, %v3143, %v3145
        %v3147 = vrot.slane %v2545, 1
        %v3148 = vsel %vm1440, %v3145, %v3147
        %v3149 = vrot.slane %v2546, 1
        %v3150 = vsel %vm1440, %v3147, %v3149
        %v3151 = vrot.slane %v2547, 1
        %v3152 = vsel %vm1440, %v3149, %v3151
        %v3153 = vrot.slane %v2548, 1
        %v3154 = vsel %vm1440, %v3151, %v3153
        %v3155 = vrot.slane %v2549, 1
        %v3156 = vsel %vm1440, %v3153, %v3155
        %v3157 = vrot.slane %v2550, 1
        %v3158 = vsel %vm1440, %v3155, %v3157
        %v3159 = vrot.slane %v2551, 1
        %v3160 = vsel %vm1440, %v3157, %v3159
        %v3161 = vrot.slane %v2552, 1
        %v3162 = vsel %vm1440, %v3159, %v3161
        %v3163 = vrot.slane %v2553, 1
        %v3164 = vsel %vm1440, %v3161, %v3163
        %v3169 = vunpack.c.l.b16 %v3109
        %v3170 = vunpack.c.l.b16 %v3110
        %v3171 = vunpack.c.l.b16 %v3111
        %v3172 = vunpack.c.l.b16 %v3112
        %v3173 = vpack.c.b16 %v3170, %v3169
        %v3174 = vpack.c.b16 %v3172, %v3171
        %v3178 = vsel %vm848, %v3118, 0
        %v3181 = vsel %vm848, %v3120, 0
        %v3184 = vsel %vm848, %v3122, 0
        %v3187 = vsel %vm848, %v3124, 0
        %v3190 = vsel %vm848, %v3126, 0
        %v3193 = vsel %vm848, %v3128, 0
        %v3196 = vsel %vm848, %v3130, 0
        %v3199 = vsel %vm848, %v3132, 0
        %v3202 = vsel %vm848, %v3134, 0
        %v3205 = vsel %vm848, %v3136, 0
        %v3208 = vsel %vm848, %v3138, 0
        %v3211 = vsel %vm848, %v3140, 0
        %v3214 = vsel %vm848, %v3142, 0
        %v3217 = vsel %vm848, %v3144, 0
        %v3220 = vsel %vm848, %v3146, 0
        %v3223 = vsel %vm848, %v3148, 0
        %v3226 = vsel %vm848, %v3150, 0
        %v3229 = vsel %vm848, %v3152, 0
        %v3232 = vsel %vm848, %v3154, 0
        %v3235 = vsel %vm848, %v3156, 0
        %v3238 = vsel %vm848, %v3158, 0
        %v3241 = vsel %vm848, %v3160, 0
        %v3244 = vsel %vm848, %v3162, 0
        %v3247 = vsel %vm848, %v3164, 0
        %3249 = vmatprep.subr.bf16.mxu0 0
        %3250 = vmatpush1.bf16.msra.mxu0 %v3173
        %3251 = vmatprep.subr.bf16.mxu0 0
        %3252 = vmatpush1.bf16.msra.mxu0 %v3174
        %3253 = vmatprep.subr.bf16.mxu0 0
        %3254 = vmatpush1.bf16.msra.mxu0 0
        %3255 = vmatprep.subr.bf16.mxu0 0
        %3256 = vmatpush1.bf16.msra.mxu0 0
        %3257 = vmatprep.subr.bf16.mxu0 0
        %3258 = vmatpush1.bf16.msra.mxu0 0
        %3259 = vmatprep.subr.bf16.mxu0 0
        %3260 = vmatpush1.bf16.msra.mxu0 0
        %3261 = vmatprep.subr.bf16.mxu0 0
        %3262 = vmatpush1.bf16.msra.mxu0 0
        %3263 = vmatprep.subr.bf16.mxu0 0
        %3264 = vmatpush1.bf16.msra.mxu0 0
        %3265 = vmatprep.subr.bf16.mxu0 0
        %3266 = vmatpush1.bf16.msra.mxu0 0
        %3267 = vmatprep.subr.bf16.mxu0 0
        %3268 = vmatpush1.bf16.msra.mxu0 0
        %3269 = vmatprep.subr.bf16.mxu0 0
        %3270 = vmatpush1.bf16.msra.mxu0 0
        %3271 = vmatprep.subr.bf16.mxu0 0
        %3272 = vmatpush1.bf16.msra.mxu0 0
        %3273 = vmatprep.subr.bf16.mxu0 0
        %3274 = vmatpush1.bf16.msra.mxu0 0
        %3275 = vmatprep.subr.bf16.mxu0 0
        %3276 = vmatpush1.bf16.msra.mxu0 0
        %3277 = vmatprep.subr.bf16.mxu0 0
        %3278 = vmatpush1.bf16.msra.mxu0 0
        %3279 = vmatprep.subr.bf16.mxu0 0
        %3280 = vmatpush1.bf16.msra.mxu0 0
        %3281 = vmatprep.mubr.bf16.mxu0 0
        %3282 = vmatmul.mubr.bf16.gmra.mrb[0].mxu0 %v3178
        %v3283 = vpop.f32.mrb[0].mxu0
        %v3284 = vadd.f32 0.0, %v3283
        %v3285 = vpop.f32.mrb[0].mxu0
        %v3286 = vpop.f32.mrb[0].mxu0
        %v3287 = vadd.f32 0.0, %v3286
        %v3288 = vpop.f32.mrb[0].mxu0
        %3289 = vmatprep.mubr.bf16.mxu0 0
        %3290 = vmatmul.mubr.bf16.gmra.mrb[0].mxu0 %v3181
        %v3291 = vpop.f32.mrb[0].mxu0
        %v3292 = vadd.f32 0.0, %v3291
        %v3293 = vpop.f32.mrb[0].mxu0
        %v3294 = vpop.f32.mrb[0].mxu0
        %v3295 = vadd.f32 0.0, %v3294
        %v3296 = vpop.f32.mrb[0].mxu0
        %3297 = vmatprep.mubr.bf16.mxu0 0
        %3298 = vmatmul.mubr.bf16.gmra.mrb[0].mxu0 %v3184
        %v3299 = vpop.f32.mrb[0].mxu0
        %v3300 = vadd.f32 0.0, %v3299
        %v3301 = vpop.f32.mrb[0].mxu0
        %v3302 = vpop.f32.mrb[0].mxu0
        %v3303 = vadd.f32 0.0, %v3302
        %v3304 = vpop.f32.mrb[0].mxu0
        %3305 = vmatprep.mubr.bf16.mxu0 0
        %3306 = vmatmul.mubr.bf16.gmra.mrb[0].mxu0 %v3187
        %v3307 = vpop.f32.mrb[0].mxu0
        %v3308 = vadd.f32 0.0, %v3307
        %v3309 = vpop.f32.mrb[0].mxu0
        %v3310 = vpop.f32.mrb[0].mxu0
        %v3311 = vadd.f32 0.0, %v3310
        %v3312 = vpop.f32.mrb[0].mxu0
        %3313 = vmatprep.mubr.bf16.mxu0 0
        %3314 = vmatmul.mubr.bf16.gmra.mrb[0].mxu0 %v3190
        %v3315 = vpop.f32.mrb[0].mxu0
        %v3316 = vadd.f32 0.0, %v3315
        %v3317 = vpop.f32.mrb[0].mxu0
        %v3318 = vpop.f32.mrb[0].mxu0
        %v3319 = vadd.f32 0.0, %v3318
        %v3320 = vpop.f32.mrb[0].mxu0
        %3321 = vmatprep.mubr.bf16.mxu0 0
        %3322 = vmatmul.mubr.bf16.gmra.mrb[0].mxu0 %v3193
        %v3323 = vpop.f32.mrb[0].mxu0
        %v3324 = vadd.f32 0.0, %v3323
        %v3325 = vpop.f32.mrb[0].mxu0
        %v3326 = vpop.f32.mrb[0].mxu0
        %v3327 = vadd.f32 0.0, %v3326
        %v3328 = vpop.f32.mrb[0].mxu0
        %3329 = vmatprep.mubr.bf16.mxu0 0
        %3330 = vmatmul.mubr.bf16.gmra.mrb[0].mxu0 %v3196
        %v3331 = vpop.f32.mrb[0].mxu0
        %v3332 = vadd.f32 0.0, %v3331
        %v3333 = vpop.f32.mrb[0].mxu0
        %v3334 = vpop.f32.mrb[0].mxu0
        %v3335 = vadd.f32 0.0, %v3334
        %v3336 = vpop.f32.mrb[0].mxu0
        %3337 = vmatprep.mubr.bf16.mxu0 0
        %3338 = vmatmul.mubr.bf16.gmra.mrb[0].mxu0 %v3199
        %v3339 = vpop.f32.mrb[0].mxu0
        %v3340 = vadd.f32 0.0, %v3339
        %v3341 = vpop.f32.mrb[0].mxu0
        %v3342 = vpop.f32.mrb[0].mxu0
        %v3343 = vadd.f32 0.0, %v3342
        %v3344 = vpop.f32.mrb[0].mxu0
        %3345 = vmatprep.mubr.bf16.mxu0 0
        %3346 = vmatmul.mubr.bf16.gmra.mrb[0].mxu0 %v3202
        %v3347 = vpop.f32.mrb[0].mxu0
        %v3348 = vadd.f32 0.0, %v3347
        %v3349 = vpop.f32.mrb[0].mxu0
        %v3350 = vpop.f32.mrb[0].mxu0
        %v3351 = vadd.f32 0.0, %v3350
        %v3352 = vpop.f32.mrb[0].mxu0
        %3353 = vmatprep.mubr.bf16.mxu0 0
        %3354 = vmatmul.mubr.bf16.gmra.mrb[0].mxu0 %v3205
        %v3355 = vpop.f32.mrb[0].mxu0
        %v3356 = vadd.f32 0.0, %v3355
        %v3357 = vpop.f32.mrb[0].mxu0
        %v3358 = vpop.f32.mrb[0].mxu0
        %v3359 = vadd.f32 0.0, %v3358
        %v3360 = vpop.f32.mrb[0].mxu0
        %3361 = vmatprep.mubr.bf16.mxu0 0
        %3362 = vmatmul.mubr.bf16.gmra.mrb[0].mxu0 %v3208
        %v3363 = vpop.f32.mrb[0].mxu0
        %v3364 = vadd.f32 0.0, %v3363
        %v3365 = vpop.f32.mrb[0].mxu0
        %v3366 = vpop.f32.mrb[0].mxu0
        %v3367 = vadd.f32 0.0, %v3366
        %v3368 = vpop.f32.mrb[0].mxu0
        %3369 = vmatprep.mubr.bf16.mxu0 0
        %3370 = vmatmul.mubr.bf16.gmra.mrb[0].mxu0 %v3211
        %v3371 = vpop.f32.mrb[0].mxu0
        %v3372 = vadd.f32 0.0, %v3371
        %v3373 = vpop.f32.mrb[0].mxu0
        %v3374 = vpop.f32.mrb[0].mxu0
        %v3375 = vadd.f32 0.0, %v3374
        %v3376 = vpop.f32.mrb[0].mxu0
        %3377 = vmatprep.mubr.bf16.mxu0 0
        %3378 = vmatmul.mubr.bf16.gmra.mrb[0].mxu0 %v3214
        %v3379 = vpop.f32.mrb[0].mxu0
        %v3380 = vadd.f32 0.0, %v3379
        %v3381 = vpop.f32.mrb[0].mxu0
        %v3382 = vpop.f32.mrb[0].mxu0
        %v3383 = vadd.f32 0.0, %v3382
        %v3384 = vpop.f32.mrb[0].mxu0
        %3385 = vmatprep.mubr.bf16.mxu0 0
        %3386 = vmatmul.mubr.bf16.gmra.mrb[0].mxu0 %v3217
        %v3387 = vpop.f32.mrb[0].mxu0
        %v3388 = vadd.f32 0.0, %v3387
        %v3389 = vpop.f32.mrb[0].mxu0
        %v3390 = vpop.f32.mrb[0].mxu0
        %v3391 = vadd.f32 0.0, %v3390
        %v3392 = vpop.f32.mrb[0].mxu0
        %3393 = vmatprep.mubr.bf16.mxu0 0
        %3394 = vmatmul.mubr.bf16.gmra.mrb[0].mxu0 %v3220
        %v3395 = vpop.f32.mrb[0].mxu0
        %v3396 = vadd.f32 0.0, %v3395
        %v3397 = vpop.f32.mrb[0].mxu0
        %v3398 = vpop.f32.mrb[0].mxu0
        %v3399 = vadd.f32 0.0, %v3398
        %v3400 = vpop.f32.mrb[0].mxu0
        %3401 = vmatprep.mubr.bf16.mxu0 0
        %3402 = vmatmul.mubr.bf16.gmra.mrb[0].mxu0 %v3223
        %v3403 = vpop.f32.mrb[0].mxu0
        %v3404 = vadd.f32 0.0, %v3403
        %v3405 = vpop.f32.mrb[0].mxu0
        %v3406 = vpop.f32.mrb[0].mxu0
        %v3407 = vadd.f32 0.0, %v3406
        %v3408 = vpop.f32.mrb[0].mxu0
        %3409 = vmatprep.mubr.bf16.mxu0 0
        %3410 = vmatmul.mubr.bf16.gmra.mrb[0].mxu0 %v3226
        %v3411 = vpop.f32.mrb[0].mxu0
        %v3412 = vadd.f32 0.0, %v3411
        %v3413 = vpop.f32.mrb[0].mxu0
        %v3414 = vpop.f32.mrb[0].mxu0
        %v3415 = vadd.f32 0.0, %v3414
        %v3416 = vpop.f32.mrb[0].mxu0
        %3417 = vmatprep.mubr.bf16.mxu0 0
        %3418 = vmatmul.mubr.bf16.gmra.mrb[0].mxu0 %v3229
        %v3419 = vpop.f32.mrb[0].mxu0
        %v3420 = vadd.f32 0.0, %v3419
        %v3421 = vpop.f32.mrb[0].mxu0
        %v3422 = vpop.f32.mrb[0].mxu0
        %v3423 = vadd.f32 0.0, %v3422
        %v3424 = vpop.f32.mrb[0].mxu0
        %3425 = vmatprep.mubr.bf16.mxu0 0
        %3426 = vmatmul.mubr.bf16.gmra.mrb[0].mxu0 %v3232
        %v3427 = vpop.f32.mrb[0].mxu0
        %v3428 = vadd.f32 0.0, %v3427
        %v3429 = vpop.f32.mrb[0].mxu0
        %v3430 = vpop.f32.mrb[0].mxu0
        %v3431 = vadd.f32 0.0, %v3430
        %v3432 = vpop.f32.mrb[0].mxu0
        %3433 = vmatprep.mubr.bf16.mxu0 0
        %3434 = vmatmul.mubr.bf16.gmra.mrb[0].mxu0 %v3235
        %v3435 = vpop.f32.mrb[0].mxu0
        %v3436 = vadd.f32 0.0, %v3435
        %v3437 = vpop.f32.mrb[0].mxu0
        %v3438 = vpop.f32.mrb[0].mxu0
        %v3439 = vadd.f32 0.0, %v3438
        %v3440 = vpop.f32.mrb[0].mxu0
        %3441 = vmatprep.mubr.bf16.mxu0 0
        %3442 = vmatmul.mubr.bf16.gmra.mrb[0].mxu0 %v3238
        %v3443 = vpop.f32.mrb[0].mxu0
        %v3444 = vadd.f32 0.0, %v3443
        %v3445 = vpop.f32.mrb[0].mxu0
        %v3446 = vpop.f32.mrb[0].mxu0
        %v3447 = vadd.f32 0.0, %v3446
        %v3448 = vpop.f32.mrb[0].mxu0
        %3449 = vmatprep.mubr.bf16.mxu0 0
        %3450 = vmatmul.mubr.bf16.gmra.mrb[0].mxu0 %v3241
        %v3451 = vpop.f32.mrb[0].mxu0
        %v3452 = vadd.f32 0.0, %v3451
        %v3453 = vpop.f32.mrb[0].mxu0
        %v3454 = vpop.f32.mrb[0].mxu0
        %v3455 = vadd.f32 0.0, %v3454
        %v3456 = vpop.f32.mrb[0].mxu0
        %3457 = vmatprep.mubr.bf16.mxu0 0
        %3458 = vmatmul.mubr.bf16.gmra.mrb[0].mxu0 %v3244
        %v3459 = vpop.f32.mrb[0].mxu0
        %v3460 = vadd.f32 0.0, %v3459
        %v3461 = vpop.f32.mrb[0].mxu0
        %v3462 = vpop.f32.mrb[0].mxu0
        %v3463 = vadd.f32 0.0, %v3462
        %v3464 = vpop.f32.mrb[0].mxu0
        %3465 = vmatprep.mubr.bf16.mxu0 0
        %3466 = vmatmul.mubr.bf16.gmra.mrb[0].mxu0 %v3247
        %v3467 = vpop.f32.mrb[0].mxu0
        %v3468 = vadd.f32 0.0, %v3467
        %v3469 = vpop.f32.mrb[0].mxu0
        %v3470 = vpop.f32.mrb[0].mxu0
        %v3471 = vadd.f32 0.0, %v3470
        %v3472 = vpop.f32.mrb[0].mxu0
        %3473 = vdwg.mxu0
        %v3474 = vadd.f32 %v3059, %v3284
        %v3475 = vadd.f32 %v3060, %v3287
        %v3476 = vadd.f32 %v3061, %v3292
        %v3477 = vadd.f32 %v3062, %v3295
        %v3478 = vadd.f32 %v3063, %v3300
        %v3479 = vadd.f32 %v3064, %v3303
        %v3480 = vadd.f32 %v3065, %v3308
        %v3481 = vadd.f32 %v3066, %v3311
        %v3482 = vadd.f32 %v3067, %v3316
        %v3483 = vadd.f32 %v3068, %v3319
        %v3484 = vadd.f32 %v3069, %v3324
        %v3485 = vadd.f32 %v3070, %v3327
        %v3486 = vadd.f32 %v3071, %v3332
        %v3487 = vadd.f32 %v3072, %v3335
        %v3488 = vadd.f32 %v3073, %v3340
        %v3489 = vadd.f32 %v3074, %v3343
        %v3490 = vadd.f32 %v3075, %v3348
        %v3491 = vadd.f32 %v3076, %v3351
        %v3492 = vadd.f32 %v3077, %v3356
        %v3493 = vadd.f32 %v3078, %v3359
        %v3494 = vadd.f32 %v3079, %v3364
        %v3495 = vadd.f32 %v3080, %v3367
        %v3496 = vadd.f32 %v3081, %v3372
        %v3497 = vadd.f32 %v3082, %v3375
        %v3498 = vadd.f32 %v3083, %v3380
        %v3499 = vadd.f32 %v3084, %v3383
        %v3500 = vadd.f32 %v3085, %v3388
        %v3501 = vadd.f32 %v3086, %v3391
        %v3502 = vadd.f32 %v3087, %v3396
        %v3503 = vadd.f32 %v3088, %v3399
        %v3504 = vadd.f32 %v3089, %v3404
        %v3505 = vadd.f32 %v3090, %v3407
        %v3506 = vadd.f32 %v3091, %v3412
        %v3507 = vadd.f32 %v3092, %v3415
        %v3508 = vadd.f32 %v3093, %v3420
        %v3509 = vadd.f32 %v3094, %v3423
        %v3510 = vadd.f32 %v3095, %v3428
        %v3511 = vadd.f32 %v3096, %v3431
        %v3512 = vadd.f32 %v3097, %v3436
        %v3513 = vadd.f32 %v3098, %v3439
        %v3514 = vadd.f32 %v3099, %v3444
        %v3515 = vadd.f32 %v3100, %v3447
        %v3516 = vadd.f32 %v3101, %v3452
        %v3517 = vadd.f32 %v3102, %v3455
        %v3518 = vadd.f32 %v3103, %v3460
        %v3519 = vadd.f32 %v3104, %v3463
        %v3520 = vadd.f32 %v3105, %v3468
        %v3521 = vadd.f32 %v3106, %v3471
        %v3522 = vld [vmem:[%s389 + $0x18] sm:$0xf]
        %v3523 = vld [vmem:[%s389 + $0x1c] sm:$0xf]
        %v3524 = vld [vmem:[%s389 + $0x20] sm:$0xf]
        %v3525 = vld [vmem:[%s389 + $0x24] sm:$0xf]
        %v3526 = vld [vmem:[%s389 + $0x28] sm:$0xf]
        %v3527 = vld [vmem:[%s389 + $0x2c] sm:$0xf]
        %v3528 = vld [vmem:[%s389 + $0x30] sm:$0xf]
        %v3529 = vld [vmem:[%s389 + $0x34] sm:$0xf]
        %v3530 = vld [vmem:[%s389 + $0x38] sm:$0xf]
        %v3531 = vld [vmem:[%s389 + $0x3c] sm:$0xf]
        %v3532 = vld [vmem:[%s389 + $0x40] sm:$0xf]
        %v3533 = vld [vmem:[%s389 + $0x44] sm:$0xf]
        %v3534 = vld [vmem:[%s389 + $0x48] sm:$0xf]
        %v3535 = vld [vmem:[%s389 + $0x4c] sm:$0xf]
        %v3536 = vld [vmem:[%s389 + $0x50] sm:$0xf]
        %v3537 = vld [vmem:[%s389 + $0x54] sm:$0xf]
        %v3538 = vld [vmem:[%s389 + $0x58] sm:$0xf]
        %v3539 = vld [vmem:[%s389 + $0x5c] sm:$0xf]
        %v3540 = vld [vmem:[%s389 + $0x60] sm:$0xf]
        %v3541 = vld [vmem:[%s389 + $0x64] sm:$0xf]
        %v3542 = vld [vmem:[%s389 + $0x68] sm:$0xf]
        %v3543 = vld [vmem:[%s389 + $0x6c] sm:$0xf]
        %v3544 = vld [vmem:[%s389 + $0x70] sm:$0xf]
        %v3545 = vld [vmem:[%s389 + $0x74] sm:$0xf]
        %v3546 = vld [vmem:[%s389 + $0x78] sm:$0xf]
        %v3547 = vld [vmem:[%s389 + $0x7c] sm:$0xf]
        %v3548 = vld [vmem:[%s389 + $0x80] sm:$0xf]
        %v3549 = vld [vmem:[%s389 + $0x84] sm:$0xf]
        %v3550 = vld [vmem:[%s389 + $0x88] sm:$0xf]
        %v3551 = vld [vmem:[%s389 + $0x8c] sm:$0xf]
        %v3552 = vld [vmem:[%s389 + $0x90] sm:$0xf]
        %v3553 = vld [vmem:[%s389 + $0x94] sm:$0xf]
        %v3554 = vld [vmem:[%s389 + $0x98] sm:$0xf]
        %v3555 = vld [vmem:[%s389 + $0x9c] sm:$0xf]
        %v3556 = vld [vmem:[%s389 + $0xa0] sm:$0xf]
        %v3557 = vld [vmem:[%s389 + $0xa4] sm:$0xf]
        %v3558 = vld [vmem:[%s389 + $0xa8] sm:$0xf]
        %v3559 = vld [vmem:[%s389 + $0xac] sm:$0xf]
        %v3560 = vld [vmem:[%s389 + $0xb0] sm:$0xf]
        %v3561 = vld [vmem:[%s389 + $0xb4] sm:$0xf]
        %v3562 = vld [vmem:[%s389 + $0xb8] sm:$0xf]
        %v3563 = vld [vmem:[%s389 + $0xbc] sm:$0xf]
        %v3564 = vld [vmem:[%s389 + $0xc0] sm:$0xf]
        %v3565 = vld [vmem:[%s389 + $0xc4] sm:$0xf]
        %v3566 = vld [vmem:[%s389 + $0xc8] sm:$0xf]
        %v3567 = vld [vmem:[%s389 + $0xcc] sm:$0xf]
        %v3568 = vld [vmem:[%s389 + $0xd0] sm:$0xf]
        %v3569 = vld [vmem:[%s389 + $0xd4] sm:$0xf]
        %s3570 = scalar_lea.vmem [#allocation8], 96
        %v3571 = vld [vmem:[%s3570] sm:$0xf]
        %v3572 = vld [vmem:[%s3570 + $0x4] sm:$0xf]
        %v3573 = vld [vmem:[%s3570 + $0x8] sm:$0xf]
        %v3574 = vld [vmem:[%s3570 + $0xc] sm:$0xf]
        %v3623 = vunpack.c.l.b16 %v3522
        %v3624 = vunpack.c.l.b16 %v3523
        %v3625 = vunpack.c.l.b16 %v3524
        %v3626 = vunpack.c.l.b16 %v3525
        %v3627 = vunpack.c.l.b16 %v3526
        %v3628 = vunpack.c.l.b16 %v3527
        %v3629 = vunpack.c.l.b16 %v3528
        %v3630 = vunpack.c.l.b16 %v3529
        %v3631 = vunpack.c.l.b16 %v3530
        %v3632 = vunpack.c.l.b16 %v3531
        %v3633 = vunpack.c.l.b16 %v3532
        %v3634 = vunpack.c.l.b16 %v3533
        %v3635 = vunpack.c.l.b16 %v3534
        %v3636 = vunpack.c.l.b16 %v3535
        %v3637 = vunpack.c.l.b16 %v3536
        %v3638 = vunpack.c.l.b16 %v3537
        %v3639 = vunpack.c.l.b16 %v3538
        %v3640 = vunpack.c.l.b16 %v3539
        %v3641 = vunpack.c.l.b16 %v3540
        %v3642 = vunpack.c.l.b16 %v3541
        %v3643 = vunpack.c.l.b16 %v3542
        %v3644 = vunpack.c.l.b16 %v3543
        %v3645 = vunpack.c.l.b16 %v3544
        %v3646 = vunpack.c.l.b16 %v3545
        %v3647 = vunpack.c.l.b16 %v3546
        %v3648 = vunpack.c.l.b16 %v3547
        %v3649 = vunpack.c.l.b16 %v3548
        %v3650 = vunpack.c.l.b16 %v3549
        %v3651 = vunpack.c.l.b16 %v3550
        %v3652 = vunpack.c.l.b16 %v3551
        %v3653 = vunpack.c.l.b16 %v3552
        %v3654 = vunpack.c.l.b16 %v3553
        %v3655 = vunpack.c.l.b16 %v3554
        %v3656 = vunpack.c.l.b16 %v3555
        %v3657 = vunpack.c.l.b16 %v3556
        %v3658 = vunpack.c.l.b16 %v3557
        %v3659 = vunpack.c.l.b16 %v3558
        %v3660 = vunpack.c.l.b16 %v3559
        %v3661 = vunpack.c.l.b16 %v3560
        %v3662 = vunpack.c.l.b16 %v3561
        %v3663 = vunpack.c.l.b16 %v3562
        %v3664 = vunpack.c.l.b16 %v3563
        %v3665 = vunpack.c.l.b16 %v3564
        %v3666 = vunpack.c.l.b16 %v3565
        %v3667 = vunpack.c.l.b16 %v3566
        %v3668 = vunpack.c.l.b16 %v3567
        %v3669 = vunpack.c.l.b16 %v3568
        %v3670 = vunpack.c.l.b16 %v3569
        %v3671 = vpack.c.b16 %v3624, %v3623
        %v3672 = vpack.c.b16 %v3626, %v3625
        %v3673 = vpack.c.b16 %v3628, %v3627
        %v3674 = vpack.c.b16 %v3630, %v3629
        %v3675 = vpack.c.b16 %v3632, %v3631
        %v3676 = vpack.c.b16 %v3634, %v3633
        %v3677 = vpack.c.b16 %v3636, %v3635
        %v3678 = vpack.c.b16 %v3638, %v3637
        %v3679 = vpack.c.b16 %v3640, %v3639
        %v3680 = vpack.c.b16 %v3642, %v3641
        %v3681 = vpack.c.b16 %v3644, %v3643
        %v3682 = vpack.c.b16 %v3646, %v3645
        %v3683 = vpack.c.b16 %v3648, %v3647
        %v3684 = vpack.c.b16 %v3650, %v3649
        %v3685 = vpack.c.b16 %v3652, %v3651
        %v3686 = vpack.c.b16 %v3654, %v3653
        %v3687 = vpack.c.b16 %v3656, %v3655
        %v3688 = vpack.c.b16 %v3658, %v3657
        %v3689 = vpack.c.b16 %v3660, %v3659
        %v3690 = vpack.c.b16 %v3662, %v3661
        %v3691 = vpack.c.b16 %v3664, %v3663
        %v3692 = vpack.c.b16 %v3666, %v3665
        %v3693 = vpack.c.b16 %v3668, %v3667
        %v3694 = vpack.c.b16 %v3670, %v3669
        %v3699 = vunpack.c.l.b16 %v3571
        %v3700 = vunpack.c.l.b16 %v3572
        %v3701 = vunpack.c.l.b16 %v3573
        %v3702 = vunpack.c.l.b16 %v3574
        %v3703 = vpack.c.b16 %v3700, %v3699
        %v3704 = vpack.c.b16 %v3702, %v3701
        %v3708 = vsel %vm848, %v3671, 0
        %v3711 = vsel %vm848, %v3672, 0
        %v3714 = vsel %vm848, %v3673, 0
        %v3717 = vsel %vm848, %v3674, 0
        %v3720 = vsel %vm848, %v3675, 0
        %v3723 = vsel %vm848, %v3676, 0
        %v3726 = vsel %vm848, %v3677, 0
        %v3729 = vsel %vm848, %v3678, 0
        %v3732 = vsel %vm848, %v3679, 0
        %v3735 = vsel %vm848, %v3680, 0
        %v3738 = vsel %vm848, %v3681, 0
        %v3741 = vsel %vm848, %v3682, 0
        %v3744 = vsel %vm848, %v3683, 0
        %v3747 = vsel %vm848, %v3684, 0
        %v3750 = vsel %vm848, %v3685, 0
        %v3753 = vsel %vm848, %v3686, 0
        %v3756 = vsel %vm848, %v3687, 0
        %v3759 = vsel %vm848, %v3688, 0
        %v3762 = vsel %vm848, %v3689, 0
        %v3765 = vsel %vm848, %v3690, 0
        %v3768 = vsel %vm848, %v3691, 0
        %v3771 = vsel %vm848, %v3692, 0
        %v3774 = vsel %vm848, %v3693, 0
        %v3777 = vsel %vm848, %v3694, 0
        %3779 = vmatprep.subr.bf16.mxu0 0
        %3780 = vmatpush1.bf16.msra.mxu0 %v3703
        %3781 = vmatprep.subr.bf16.mxu0 0
        %3782 = vmatpush1.bf16.msra.mxu0 %v3704
        %3783 = vmatprep.subr.bf16.mxu0 0
        %3784 = vmatpush1.bf16.msra.mxu0 0
        %3785 = vmatprep.subr.bf16.mxu0 0
        %3786 = vmatpush1.bf16.msra.mxu0 0
        %3787 = vmatprep.subr.bf16.mxu0 0
        %3788 = vmatpush1.bf16.msra.mxu0 0
        %3789 = vmatprep.subr.bf16.mxu0 0
        %3790 = vmatpush1.bf16.msra.mxu0 0
        %3791 = vmatprep.subr.bf16.mxu0 0
        %3792 = vmatpush1.bf16.msra.mxu0 0
        %3793 = vmatprep.subr.bf16.mxu0 0
        %3794 = vmatpush1.bf16.msra.mxu0 0
        %3795 = vmatprep.subr.bf16.mxu0 0
        %3796 = vmatpush1.bf16.msra.mxu0 0
        %3797 = vmatprep.subr.bf16.mxu0 0
        %3798 = vmatpush1.bf16.msra.mxu0 0
        %3799 = vmatprep.subr.bf16.mxu0 0
        %3800 = vmatpush1.bf16.msra.mxu0 0
        %3801 = vmatprep.subr.bf16.mxu0 0
        %3802 = vmatpush1.bf16.msra.mxu0 0
        %3803 = vmatprep.subr.bf16.mxu0 0
        %3804 = vmatpush1.bf16.msra.mxu0 0
        %3805 = vmatprep.subr.bf16.mxu0 0
        %3806 = vmatpush1.bf16.msra.mxu0 0
        %3807 = vmatprep.subr.bf16.mxu0 0
        %3808 = vmatpush1.bf16.msra.mxu0 0
        %3809 = vmatprep.subr.bf16.mxu0 0
        %3810 = vmatpush1.bf16.msra.mxu0 0
        %3811 = vmatprep.mubr.bf16.mxu0 0
        %3812 = vmatmul.mubr.bf16.gmra.mrb[0].mxu0 %v3708
        %v3813 = vpop.f32.mrb[0].mxu0
        %v3814 = vadd.f32 0.0, %v3813
        %v3815 = vpop.f32.mrb[0].mxu0
        %v3816 = vpop.f32.mrb[0].mxu0
        %v3817 = vadd.f32 0.0, %v3816
        %v3818 = vpop.f32.mrb[0].mxu0
        %3819 = vmatprep.mubr.bf16.mxu0 0
        %3820 = vmatmul.mubr.bf16.gmra.mrb[0].mxu0 %v3711
        %v3821 = vpop.f32.mrb[0].mxu0
        %v3822 = vadd.f32 0.0, %v3821
        %v3823 = vpop.f32.mrb[0].mxu0
        %v3824 = vpop.f32.mrb[0].mxu0
        %v3825 = vadd.f32 0.0, %v3824
        %v3826 = vpop.f32.mrb[0].mxu0
        %3827 = vmatprep.mubr.bf16.mxu0 0
        %3828 = vmatmul.mubr.bf16.gmra.mrb[0].mxu0 %v3714
        %v3829 = vpop.f32.mrb[0].mxu0
        %v3830 = vadd.f32 0.0, %v3829
        %v3831 = vpop.f32.mrb[0].mxu0
        %v3832 = vpop.f32.mrb[0].mxu0
        %v3833 = vadd.f32 0.0, %v3832
        %v3834 = vpop.f32.mrb[0].mxu0
        %3835 = vmatprep.mubr.bf16.mxu0 0
        %3836 = vmatmul.mubr.bf16.gmra.mrb[0].mxu0 %v3717
        %v3837 = vpop.f32.mrb[0].mxu0
        %v3838 = vadd.f32 0.0, %v3837
        %v3839 = vpop.f32.mrb[0].mxu0
        %v3840 = vpop.f32.mrb[0].mxu0
        %v3841 = vadd.f32 0.0, %v3840
        %v3842 = vpop.f32.mrb[0].mxu0
        %3843 = vmatprep.mubr.bf16.mxu0 0
        %3844 = vmatmul.mubr.bf16.gmra.mrb[0].mxu0 %v3720
        %v3845 = vpop.f32.mrb[0].mxu0
        %v3846 = vadd.f32 0.0, %v3845
        %v3847 = vpop.f32.mrb[0].mxu0
        %v3848 = vpop.f32.mrb[0].mxu0
        %v3849 = vadd.f32 0.0, %v3848
        %v3850 = vpop.f32.mrb[0].mxu0
        %3851 = vmatprep.mubr.bf16.mxu0 0
        %3852 = vmatmul.mubr.bf16.gmra.mrb[0].mxu0 %v3723
        %v3853 = vpop.f32.mrb[0].mxu0
        %v3854 = vadd.f32 0.0, %v3853
        %v3855 = vpop.f32.mrb[0].mxu0
        %v3856 = vpop.f32.mrb[0].mxu0
        %v3857 = vadd.f32 0.0, %v3856
        %v3858 = vpop.f32.mrb[0].mxu0
        %3859 = vmatprep.mubr.bf16.mxu0 0
        %3860 = vmatmul.mubr.bf16.gmra.mrb[0].mxu0 %v3726
        %v3861 = vpop.f32.mrb[0].mxu0
        %v3862 = vadd.f32 0.0, %v3861
        %v3863 = vpop.f32.mrb[0].mxu0
        %v3864 = vpop.f32.mrb[0].mxu0
        %v3865 = vadd.f32 0.0, %v3864
        %v3866 = vpop.f32.mrb[0].mxu0
        %3867 = vmatprep.mubr.bf16.mxu0 0
        %3868 = vmatmul.mubr.bf16.gmra.mrb[0].mxu0 %v3729
        %v3869 = vpop.f32.mrb[0].mxu0
        %v3870 = vadd.f32 0.0, %v3869
        %v3871 = vpop.f32.mrb[0].mxu0
        %v3872 = vpop.f32.mrb[0].mxu0
        %v3873 = vadd.f32 0.0, %v3872
        %v3874 = vpop.f32.mrb[0].mxu0
        %3875 = vmatprep.mubr.bf16.mxu0 0
        %3876 = vmatmul.mubr.bf16.gmra.mrb[0].mxu0 %v3732
        %v3877 = vpop.f32.mrb[0].mxu0
        %v3878 = vadd.f32 0.0, %v3877
        %v3879 = vpop.f32.mrb[0].mxu0
        %v3880 = vpop.f32.mrb[0].mxu0
        %v3881 = vadd.f32 0.0, %v3880
        %v3882 = vpop.f32.mrb[0].mxu0
        %3883 = vmatprep.mubr.bf16.mxu0 0
        %3884 = vmatmul.mubr.bf16.gmra.mrb[0].mxu0 %v3735
        %v3885 = vpop.f32.mrb[0].mxu0
        %v3886 = vadd.f32 0.0, %v3885
        %v3887 = vpop.f32.mrb[0].mxu0
        %v3888 = vpop.f32.mrb[0].mxu0
        %v3889 = vadd.f32 0.0, %v3888
        %v3890 = vpop.f32.mrb[0].mxu0
        %3891 = vmatprep.mubr.bf16.mxu0 0
        %3892 = vmatmul.mubr.bf16.gmra.mrb[0].mxu0 %v3738
        %v3893 = vpop.f32.mrb[0].mxu0
        %v3894 = vadd.f32 0.0, %v3893
        %v3895 = vpop.f32.mrb[0].mxu0
        %v3896 = vpop.f32.mrb[0].mxu0
        %v3897 = vadd.f32 0.0, %v3896
        %v3898 = vpop.f32.mrb[0].mxu0
        %3899 = vmatprep.mubr.bf16.mxu0 0
        %3900 = vmatmul.mubr.bf16.gmra.mrb[0].mxu0 %v3741
        %v3901 = vpop.f32.mrb[0].mxu0
        %v3902 = vadd.f32 0.0, %v3901
        %v3903 = vpop.f32.mrb[0].mxu0
        %v3904 = vpop.f32.mrb[0].mxu0
        %v3905 = vadd.f32 0.0, %v3904
        %v3906 = vpop.f32.mrb[0].mxu0
        %3907 = vmatprep.mubr.bf16.mxu0 0
        %3908 = vmatmul.mubr.bf16.gmra.mrb[0].mxu0 %v3744
        %v3909 = vpop.f32.mrb[0].mxu0
        %v3910 = vadd.f32 0.0, %v3909
        %v3911 = vpop.f32.mrb[0].mxu0
        %v3912 = vpop.f32.mrb[0].mxu0
        %v3913 = vadd.f32 0.0, %v3912
        %v3914 = vpop.f32.mrb[0].mxu0
        %3915 = vmatprep.mubr.bf16.mxu0 0
        %3916 = vmatmul.mubr.bf16.gmra.mrb[0].mxu0 %v3747
        %v3917 = vpop.f32.mrb[0].mxu0
        %v3918 = vadd.f32 0.0, %v3917
        %v3919 = vpop.f32.mrb[0].mxu0
        %v3920 = vpop.f32.mrb[0].mxu0
        %v3921 = vadd.f32 0.0, %v3920
        %v3922 = vpop.f32.mrb[0].mxu0
        %3923 = vmatprep.mubr.bf16.mxu0 0
        %3924 = vmatmul.mubr.bf16.gmra.mrb[0].mxu0 %v3750
        %v3925 = vpop.f32.mrb[0].mxu0
        %v3926 = vadd.f32 0.0, %v3925
        %v3927 = vpop.f32.mrb[0].mxu0
        %v3928 = vpop.f32.mrb[0].mxu0
        %v3929 = vadd.f32 0.0, %v3928
        %v3930 = vpop.f32.mrb[0].mxu0
        %3931 = vmatprep.mubr.bf16.mxu0 0
        %3932 = vmatmul.mubr.bf16.gmra.mrb[0].mxu0 %v3753
        %v3933 = vpop.f32.mrb[0].mxu0
        %v3934 = vadd.f32 0.0, %v3933
        %v3935 = vpop.f32.mrb[0].mxu0
        %v3936 = vpop.f32.mrb[0].mxu0
        %v3937 = vadd.f32 0.0, %v3936
        %v3938 = vpop.f32.mrb[0].mxu0
        %3939 = vmatprep.mubr.bf16.mxu0 0
        %3940 = vmatmul.mubr.bf16.gmra.mrb[0].mxu0 %v3756
        %v3941 = vpop.f32.mrb[0].mxu0
        %v3942 = vadd.f32 0.0, %v3941
        %v3943 = vpop.f32.mrb[0].mxu0
        %v3944 = vpop.f32.mrb[0].mxu0
        %v3945 = vadd.f32 0.0, %v3944
        %v3946 = vpop.f32.mrb[0].mxu0
        %3947 = vmatprep.mubr.bf16.mxu0 0
        %3948 = vmatmul.mubr.bf16.gmra.mrb[0].mxu0 %v3759
        %v3949 = vpop.f32.mrb[0].mxu0
        %v3950 = vadd.f32 0.0, %v3949
        %v3951 = vpop.f32.mrb[0].mxu0
        %v3952 = vpop.f32.mrb[0].mxu0
        %v3953 = vadd.f32 0.0, %v3952
        %v3954 = vpop.f32.mrb[0].mxu0
        %3955 = vmatprep.mubr.bf16.mxu0 0
        %3956 = vmatmul.mubr.bf16.gmra.mrb[0].mxu0 %v3762
        %v3957 = vpop.f32.mrb[0].mxu0
        %v3958 = vadd.f32 0.0, %v3957
        %v3959 = vpop.f32.mrb[0].mxu0
        %v3960 = vpop.f32.mrb[0].mxu0
        %v3961 = vadd.f32 0.0, %v3960
        %v3962 = vpop.f32.mrb[0].mxu0
        %3963 = vmatprep.mubr.bf16.mxu0 0
        %3964 = vmatmul.mubr.bf16.gmra.mrb[0].mxu0 %v3765
        %v3965 = vpop.f32.mrb[0].mxu0
        %v3966 = vadd.f32 0.0, %v3965
        %v3967 = vpop.f32.mrb[0].mxu0
        %v3968 = vpop.f32.mrb[0].mxu0
        %v3969 = vadd.f32 0.0, %v3968
        %v3970 = vpop.f32.mrb[0].mxu0
        %3971 = vmatprep.mubr.bf16.mxu0 0
        %3972 = vmatmul.mubr.bf16.gmra.mrb[0].mxu0 %v3768
        %v3973 = vpop.f32.mrb[0].mxu0
        %v3974 = vadd.f32 0.0, %v3973
        %v3975 = vpop.f32.mrb[0].mxu0
        %v3976 = vpop.f32.mrb[0].mxu0
        %v3977 = vadd.f32 0.0, %v3976
        %v3978 = vpop.f32.mrb[0].mxu0
        %3979 = vmatprep.mubr.bf16.mxu0 0
        %3980 = vmatmul.mubr.bf16.gmra.mrb[0].mxu0 %v3771
        %v3981 = vpop.f32.mrb[0].mxu0
        %v3982 = vadd.f32 0.0, %v3981
        %v3983 = vpop.f32.mrb[0].mxu0
        %v3984 = vpop.f32.mrb[0].mxu0
        %v3985 = vadd.f32 0.0, %v3984
        %v3986 = vpop.f32.mrb[0].mxu0
        %3987 = vmatprep.mubr.bf16.mxu0 0
        %3988 = vmatmul.mubr.bf16.gmra.mrb[0].mxu0 %v3774
        %v3989 = vpop.f32.mrb[0].mxu0
        %v3990 = vadd.f32 0.0, %v3989
        %v3991 = vpop.f32.mrb[0].mxu0
        %v3992 = vpop.f32.mrb[0].mxu0
        %v3993 = vadd.f32 0.0, %v3992
        %v3994 = vpop.f32.mrb[0].mxu0
        %3995 = vmatprep.mubr.bf16.mxu0 0
        %3996 = vmatmul.mubr.bf16.gmra.mrb[0].mxu0 %v3777
        %v3997 = vpop.f32.mrb[0].mxu0
        %v3998 = vadd.f32 0.0, %v3997
        %v3999 = vpop.f32.mrb[0].mxu0
        %v4000 = vpop.f32.mrb[0].mxu0
        %v4001 = vadd.f32 0.0, %v4000
        %v4002 = vpop.f32.mrb[0].mxu0
        %4003 = vdwg.mxu0
        %v4004 = vadd.f32 %v3474, %v3814
        %v4005 = vadd.f32 %v3475, %v3817
        %v4006 = vadd.f32 %v3476, %v3822
        %v4007 = vadd.f32 %v3477, %v3825
        %v4008 = vadd.f32 %v3478, %v3830
        %v4009 = vadd.f32 %v3479, %v3833
        %v4010 = vadd.f32 %v3480, %v3838
        %v4011 = vadd.f32 %v3481, %v3841
        %v4012 = vadd.f32 %v3482, %v3846
        %v4013 = vadd.f32 %v3483, %v3849
        %v4014 = vadd.f32 %v3484, %v3854
        %v4015 = vadd.f32 %v3485, %v3857
        %v4016 = vadd.f32 %v3486, %v3862
        %v4017 = vadd.f32 %v3487, %v3865
        %v4018 = vadd.f32 %v3488, %v3870
        %v4019 = vadd.f32 %v3489, %v3873
        %v4020 = vadd.f32 %v3490, %v3878
        %v4021 = vadd.f32 %v3491, %v3881
        %v4022 = vadd.f32 %v3492, %v3886
        %v4023 = vadd.f32 %v3493, %v3889
        %v4024 = vadd.f32 %v3494, %v3894
        %v4025 = vadd.f32 %v3495, %v3897
        %v4026 = vadd.f32 %v3496, %v3902
        %v4027 = vadd.f32 %v3497, %v3905
        %v4028 = vadd.f32 %v3498, %v3910
        %v4029 = vadd.f32 %v3499, %v3913
        %v4030 = vadd.f32 %v3500, %v3918
        %v4031 = vadd.f32 %v3501, %v3921
        %v4032 = vadd.f32 %v3502, %v3926
        %v4033 = vadd.f32 %v3503, %v3929
        %v4034 = vadd.f32 %v3504, %v3934
        %v4035 = vadd.f32 %v3505, %v3937
        %v4036 = vadd.f32 %v3506, %v3942
        %v4037 = vadd.f32 %v3507, %v3945
        %v4038 = vadd.f32 %v3508, %v3950
        %v4039 = vadd.f32 %v3509, %v3953
        %v4040 = vadd.f32 %v3510, %v3958
        %v4041 = vadd.f32 %v3511, %v3961
        %v4042 = vadd.f32 %v3512, %v3966
        %v4043 = vadd.f32 %v3513, %v3969
        %v4044 = vadd.f32 %v3514, %v3974
        %v4045 = vadd.f32 %v3515, %v3977
        %v4046 = vadd.f32 %v3516, %v3982
        %v4047 = vadd.f32 %v3517, %v3985
        %v4048 = vadd.f32 %v3518, %v3990
        %v4049 = vadd.f32 %v3519, %v3993
        %v4050 = vadd.f32 %v3520, %v3998
        %v4051 = vadd.f32 %v3521, %v4001
        %v4052 = vld [vmem:[%s389 + $0x18] sm:$0xf]
        %v4053 = vld [vmem:[%s389 + $0x1c] sm:$0xf]
        %v4054 = vld [vmem:[%s389 + $0x20] sm:$0xf]
        %v4055 = vld [vmem:[%s389 + $0x24] sm:$0xf]
        %v4056 = vld [vmem:[%s389 + $0x28] sm:$0xf]
        %v4057 = vld [vmem:[%s389 + $0x2c] sm:$0xf]
        %v4058 = vld [vmem:[%s389 + $0x30] sm:$0xf]
        %v4059 = vld [vmem:[%s389 + $0x34] sm:$0xf]
        %v4060 = vld [vmem:[%s389 + $0x38] sm:$0xf]
        %v4061 = vld [vmem:[%s389 + $0x3c] sm:$0xf]
        %v4062 = vld [vmem:[%s389 + $0x40] sm:$0xf]
        %v4063 = vld [vmem:[%s389 + $0x44] sm:$0xf]
        %v4064 = vld [vmem:[%s389 + $0x48] sm:$0xf]
        %v4065 = vld [vmem:[%s389 + $0x4c] sm:$0xf]
        %v4066 = vld [vmem:[%s389 + $0x50] sm:$0xf]
        %v4067 = vld [vmem:[%s389 + $0x54] sm:$0xf]
        %v4068 = vld [vmem:[%s389 + $0x58] sm:$0xf]
        %v4069 = vld [vmem:[%s389 + $0x5c] sm:$0xf]
        %v4070 = vld [vmem:[%s389 + $0x60] sm:$0xf]
        %v4071 = vld [vmem:[%s389 + $0x64] sm:$0xf]
        %v4072 = vld [vmem:[%s389 + $0x68] sm:$0xf]
        %v4073 = vld [vmem:[%s389 + $0x6c] sm:$0xf]
        %v4074 = vld [vmem:[%s389 + $0x70] sm:$0xf]
        %v4075 = vld [vmem:[%s389 + $0x74] sm:$0xf]
        %v4076 = vld [vmem:[%s389 + $0x78] sm:$0xf]
        %v4077 = vld [vmem:[%s389 + $0x7c] sm:$0xf]
        %v4078 = vld [vmem:[%s389 + $0x80] sm:$0xf]
        %v4079 = vld [vmem:[%s389 + $0x84] sm:$0xf]
        %v4080 = vld [vmem:[%s389 + $0x88] sm:$0xf]
        %v4081 = vld [vmem:[%s389 + $0x8c] sm:$0xf]
        %v4082 = vld [vmem:[%s389 + $0x90] sm:$0xf]
        %v4083 = vld [vmem:[%s389 + $0x94] sm:$0xf]
        %v4084 = vld [vmem:[%s389 + $0x98] sm:$0xf]
        %v4085 = vld [vmem:[%s389 + $0x9c] sm:$0xf]
        %v4086 = vld [vmem:[%s389 + $0xa0] sm:$0xf]
        %v4087 = vld [vmem:[%s389 + $0xa4] sm:$0xf]
        %v4088 = vld [vmem:[%s389 + $0xa8] sm:$0xf]
        %v4089 = vld [vmem:[%s389 + $0xac] sm:$0xf]
        %v4090 = vld [vmem:[%s389 + $0xb0] sm:$0xf]
        %v4091 = vld [vmem:[%s389 + $0xb4] sm:$0xf]
        %v4092 = vld [vmem:[%s389 + $0xb8] sm:$0xf]
        %v4093 = vld [vmem:[%s389 + $0xbc] sm:$0xf]
        %v4094 = vld [vmem:[%s389 + $0xc0] sm:$0xf]
        %v4095 = vld [vmem:[%s389 + $0xc4] sm:$0xf]
        %v4096 = vld [vmem:[%s389 + $0xc8] sm:$0xf]
        %v4097 = vld [vmem:[%s389 + $0xcc] sm:$0xf]
        %v4098 = vld [vmem:[%s389 + $0xd0] sm:$0xf]
        %v4099 = vld [vmem:[%s389 + $0xd4] sm:$0xf]
        %v4100 = vld [vmem:[%s389 + $0xd8] sm:$0x1]
        %s4101 = scalar_lea.vmem [#allocation8], 112
        %v4102 = vld [vmem:[%s4101] sm:$0xf]
        %v4103 = vld [vmem:[%s4101 + $0x4] sm:$0xf]
        %v4104 = vld [vmem:[%s4101 + $0x8] sm:$0xf]
        %v4105 = vld [vmem:[%s4101 + $0xc] sm:$0xf]
        %v4155 = vunpack.c.l.b16 %v4052
        %v4156 = vunpack.c.l.b16 %v4053
        %v4157 = vunpack.c.l.b16 %v4054
        %v4158 = vunpack.c.l.b16 %v4055
        %v4159 = vunpack.c.l.b16 %v4056
        %v4160 = vunpack.c.l.b16 %v4057
        %v4161 = vunpack.c.l.b16 %v4058
        %v4162 = vunpack.c.l.b16 %v4059
        %v4163 = vunpack.c.l.b16 %v4060
        %v4164 = vunpack.c.l.b16 %v4061
        %v4165 = vunpack.c.l.b16 %v4062
        %v4166 = vunpack.c.l.b16 %v4063
        %v4167 = vunpack.c.l.b16 %v4064
        %v4168 = vunpack.c.l.b16 %v4065
        %v4169 = vunpack.c.l.b16 %v4066
        %v4170 = vunpack.c.l.b16 %v4067
        %v4171 = vunpack.c.l.b16 %v4068
        %v4172 = vunpack.c.l.b16 %v4069
        %v4173 = vunpack.c.l.b16 %v4070
        %v4174 = vunpack.c.l.b16 %v4071
        %v4175 = vunpack.c.l.b16 %v4072
        %v4176 = vunpack.c.l.b16 %v4073
        %v4177 = vunpack.c.l.b16 %v4074
        %v4178 = vunpack.c.l.b16 %v4075
        %v4179 = vunpack.c.l.b16 %v4076
        %v4180 = vunpack.c.l.b16 %v4077
        %v4181 = vunpack.c.l.b16 %v4078
        %v4182 = vunpack.c.l.b16 %v4079
        %v4183 = vunpack.c.l.b16 %v4080
        %v4184 = vunpack.c.l.b16 %v4081
        %v4185 = vunpack.c.l.b16 %v4082
        %v4186 = vunpack.c.l.b16 %v4083
        %v4187 = vunpack.c.l.b16 %v4084
        %v4188 = vunpack.c.l.b16 %v4085
        %v4189 = vunpack.c.l.b16 %v4086
        %v4190 = vunpack.c.l.b16 %v4087
        %v4191 = vunpack.c.l.b16 %v4088
        %v4192 = vunpack.c.l.b16 %v4089
        %v4193 = vunpack.c.l.b16 %v4090
        %v4194 = vunpack.c.l.b16 %v4091
        %v4195 = vunpack.c.l.b16 %v4092
        %v4196 = vunpack.c.l.b16 %v4093
        %v4197 = vunpack.c.l.b16 %v4094
        %v4198 = vunpack.c.l.b16 %v4095
        %v4199 = vunpack.c.l.b16 %v4096
        %v4200 = vunpack.c.l.b16 %v4097
        %v4201 = vunpack.c.l.b16 %v4098
        %v4202 = vunpack.c.l.b16 %v4099
        %v4203 = vunpack.c.l.b16 %v4100
        %v4204 = vpack.c.b16 %v4156, %v4155
        %v4205 = vpack.c.b16 %v4158, %v4157
        %v4206 = vpack.c.b16 %v4160, %v4159
        %v4207 = vpack.c.b16 %v4162, %v4161
        %v4208 = vpack.c.b16 %v4164, %v4163
        %v4209 = vpack.c.b16 %v4166, %v4165
        %v4210 = vpack.c.b16 %v4168, %v4167
        %v4211 = vpack.c.b16 %v4170, %v4169
        %v4212 = vpack.c.b16 %v4172, %v4171
        %v4213 = vpack.c.b16 %v4174, %v4173
        %v4214 = vpack.c.b16 %v4176, %v4175
        %v4215 = vpack.c.b16 %v4178, %v4177
        %v4216 = vpack.c.b16 %v4180, %v4179
        %v4217 = vpack.c.b16 %v4182, %v4181
        %v4218 = vpack.c.b16 %v4184, %v4183
        %v4219 = vpack.c.b16 %v4186, %v4185
        %v4220 = vpack.c.b16 %v4188, %v4187
        %v4221 = vpack.c.b16 %v4190, %v4189
        %v4222 = vpack.c.b16 %v4192, %v4191
        %v4223 = vpack.c.b16 %v4194, %v4193
        %v4224 = vpack.c.b16 %v4196, %v4195
        %v4225 = vpack.c.b16 %v4198, %v4197
        %v4226 = vpack.c.b16 %v4200, %v4199
        %v4227 = vpack.c.b16 %v4202, %v4201
        %v4228 = vpack.c.b16 %v4203, %v4203
        %v4230 = vshrl.u32 %v4204, 16
        %v4232 = vshll.u32 %v4204, 16
        %v4234 = vrot.slane %v4232, 1
        %v4235 = vor.u32 %v4230, %v4234
        %v4237 = vshll.u32 %v4205, 16
        %v4239 = vrot.slane %v4237, 1
        %v4240 = vsel %vm639, %v4235, %v4239
        %v4241 = vshrl.u32 %v4205, 16
        %v4243 = vor.u32 %v4241, %v4239
        %v4245 = vshll.u32 %v4206, 16
        %v4247 = vrot.slane %v4245, 1
        %v4248 = vsel %vm639, %v4243, %v4247
        %v4249 = vshrl.u32 %v4206, 16
        %v4251 = vor.u32 %v4249, %v4247
        %v4253 = vshll.u32 %v4207, 16
        %v4255 = vrot.slane %v4253, 1
        %v4256 = vsel %vm639, %v4251, %v4255
        %v4257 = vshrl.u32 %v4207, 16
        %v4259 = vor.u32 %v4257, %v4255
        %v4261 = vshll.u32 %v4208, 16
        %v4263 = vrot.slane %v4261, 1
        %v4264 = vsel %vm639, %v4259, %v4263
        %v4265 = vshrl.u32 %v4208, 16
        %v4267 = vor.u32 %v4265, %v4263
        %v4269 = vshll.u32 %v4209, 16
        %v4271 = vrot.slane %v4269, 1
        %v4272 = vsel %vm639, %v4267, %v4271
        %v4273 = vshrl.u32 %v4209, 16
        %v4275 = vor.u32 %v4273, %v4271
        %v4277 = vshll.u32 %v4210, 16
        %v4279 = vrot.slane %v4277, 1
        %v4280 = vsel %vm639, %v4275, %v4279
        %v4281 = vshrl.u32 %v4210, 16
        %v4283 = vor.u32 %v4281, %v4279
        %v4285 = vshll.u32 %v4211, 16
        %v4287 = vrot.slane %v4285, 1
        %v4288 = vsel %vm639, %v4283, %v4287
        %v4289 = vshrl.u32 %v4211, 16
        %v4291 = vor.u32 %v4289, %v4287
        %v4293 = vshll.u32 %v4212, 16
        %v4295 = vrot.slane %v4293, 1
        %v4296 = vsel %vm639, %v4291, %v4295
        %v4297 = vshrl.u32 %v4212, 16
        %v4299 = vor.u32 %v4297, %v4295
        %v4301 = vshll.u32 %v4213, 16
        %v4303 = vrot.slane %v4301, 1
        %v4304 = vsel %vm639, %v4299, %v4303
        %v4305 = vshrl.u32 %v4213, 16
        %v4307 = vor.u32 %v4305, %v4303
        %v4309 = vshll.u32 %v4214, 16
        %v4311 = vrot.slane %v4309, 1
        %v4312 = vsel %vm639, %v4307, %v4311
        %v4313 = vshrl.u32 %v4214, 16
        %v4315 = vor.u32 %v4313, %v4311
        %v4317 = vshll.u32 %v4215, 16
        %v4319 = vrot.slane %v4317, 1
        %v4320 = vsel %vm639, %v4315, %v4319
        %v4321 = vshrl.u32 %v4215, 16
        %v4323 = vor.u32 %v4321, %v4319
        %v4325 = vshll.u32 %v4216, 16
        %v4327 = vrot.slane %v4325, 1
        %v4328 = vsel %vm639, %v4323, %v4327
        %v4329 = vshrl.u32 %v4216, 16
        %v4331 = vor.u32 %v4329, %v4327
        %v4333 = vshll.u32 %v4217, 16
        %v4335 = vrot.slane %v4333, 1
        %v4336 = vsel %vm639, %v4331, %v4335
        %v4337 = vshrl.u32 %v4217, 16
        %v4339 = vor.u32 %v4337, %v4335
        %v4341 = vshll.u32 %v4218, 16
        %v4343 = vrot.slane %v4341, 1
        %v4344 = vsel %vm639, %v4339, %v4343
        %v4345 = vshrl.u32 %v4218, 16
        %v4347 = vor.u32 %v4345, %v4343
        %v4349 = vshll.u32 %v4219, 16
        %v4351 = vrot.slane %v4349, 1
        %v4352 = vsel %vm639, %v4347, %v4351
        %v4353 = vshrl.u32 %v4219, 16
        %v4355 = vor.u32 %v4353, %v4351
        %v4357 = vshll.u32 %v4220, 16
        %v4359 = vrot.slane %v4357, 1
        %v4360 = vsel %vm639, %v4355, %v4359
        %v4361 = vshrl.u32 %v4220, 16
        %v4363 = vor.u32 %v4361, %v4359
        %v4365 = vshll.u32 %v4221, 16
        %v4367 = vrot.slane %v4365, 1
        %v4368 = vsel %vm639, %v4363, %v4367
        %v4369 = vshrl.u32 %v4221, 16
        %v4371 = vor.u32 %v4369, %v4367
        %v4373 = vshll.u32 %v4222, 16
        %v4375 = vrot.slane %v4373, 1
        %v4376 = vsel %vm639, %v4371, %v4375
        %v4377 = vshrl.u32 %v4222, 16
        %v4379 = vor.u32 %v4377, %v4375
        %v4381 = vshll.u32 %v4223, 16
        %v4383 = vrot.slane %v4381, 1
        %v4384 = vsel %vm639, %v4379, %v4383
        %v4385 = vshrl.u32 %v4223, 16
        %v4387 = vor.u32 %v4385, %v4383
        %v4389 = vshll.u32 %v4224, 16
        %v4391 = vrot.slane %v4389, 1
        %v4392 = vsel %vm639, %v4387, %v4391
        %v4393 = vshrl.u32 %v4224, 16
        %v4395 = vor.u32 %v4393, %v4391
        %v4397 = vshll.u32 %v4225, 16
        %v4399 = vrot.slane %v4397, 1
        %v4400 = vsel %vm639, %v4395, %v4399
        %v4401 = vshrl.u32 %v4225, 16
        %v4403 = vor.u32 %v4401, %v4399
        %v4405 = vshll.u32 %v4226, 16
        %v4407 = vrot.slane %v4405, 1
        %v4408 = vsel %vm639, %v4403, %v4407
        %v4409 = vshrl.u32 %v4226, 16
        %v4411 = vor.u32 %v4409, %v4407
        %v4413 = vshll.u32 %v4227, 16
        %v4415 = vrot.slane %v4413, 1
        %v4416 = vsel %vm639, %v4411, %v4415
        %v4417 = vshrl.u32 %v4227, 16
        %v4419 = vor.u32 %v4417, %v4415
        %v4421 = vshll.u32 %v4228, 16
        %v4423 = vrot.slane %v4421, 1
        %v4424 = vsel %vm639, %v4419, %v4423
        %v4429 = vunpack.c.l.b16 %v4102
        %v4430 = vunpack.c.l.b16 %v4103
        %v4431 = vunpack.c.l.b16 %v4104
        %v4432 = vunpack.c.l.b16 %v4105
        %v4433 = vpack.c.b16 %v4430, %v4429
        %v4434 = vpack.c.b16 %v4432, %v4431
        %v4438 = vsel %vm848, %v4240, 0
        %v4441 = vsel %vm848, %v4248, 0
        %v4444 = vsel %vm848, %v4256, 0
        %v4447 = vsel %vm848, %v4264, 0
        %v4450 = vsel %vm848, %v4272, 0
        %v4453 = vsel %vm848, %v4280, 0
        %v4456 = vsel %vm848, %v4288, 0
        %v4459 = vsel %vm848, %v4296, 0
        %v4462 = vsel %vm848, %v4304, 0
        %v4465 = vsel %vm848, %v4312, 0
        %v4468 = vsel %vm848, %v4320, 0
        %v4471 = vsel %vm848, %v4328, 0
        %v4474 = vsel %vm848, %v4336, 0
        %v4477 = vsel %vm848, %v4344, 0
        %v4480 = vsel %vm848, %v4352, 0
        %v4483 = vsel %vm848, %v4360, 0
        %v4486 = vsel %vm848, %v4368, 0
        %v4489 = vsel %vm848, %v4376, 0
        %v4492 = vsel %vm848, %v4384, 0
        %v4495 = vsel %vm848, %v4392, 0
        %v4498 = vsel %vm848, %v4400, 0
        %v4501 = vsel %vm848, %v4408, 0
        %v4504 = vsel %vm848, %v4416, 0
        %v4507 = vsel %vm848, %v4424, 0
        %4509 = vmatprep.subr.bf16.mxu0 0
        %4510 = vmatpush1.bf16.msra.mxu0 %v4433
        %4511 = vmatprep.subr.bf16.mxu0 0
        %4512 = vmatpush1.bf16.msra.mxu0 %v4434
        %4513 = vmatprep.subr.bf16.mxu0 0
        %4514 = vmatpush1.bf16.msra.mxu0 0
        %4515 = vmatprep.subr.bf16.mxu0 0
        %4516 = vmatpush1.bf16.msra.mxu0 0
        %4517 = vmatprep.subr.bf16.mxu0 0
        %4518 = vmatpush1.bf16.msra.mxu0 0
        %4519 = vmatprep.subr.bf16.mxu0 0
        %4520 = vmatpush1.bf16.msra.mxu0 0
        %4521 = vmatprep.subr.bf16.mxu0 0
        %4522 = vmatpush1.bf16.msra.mxu0 0
        %4523 = vmatprep.subr.bf16.mxu0 0
        %4524 = vmatpush1.bf16.msra.mxu0 0
        %4525 = vmatprep.subr.bf16.mxu0 0
        %4526 = vmatpush1.bf16.msra.mxu0 0
        %4527 = vmatprep.subr.bf16.mxu0 0
        %4528 = vmatpush1.bf16.msra.mxu0 0
        %4529 = vmatprep.subr.bf16.mxu0 0
        %4530 = vmatpush1.bf16.msra.mxu0 0
        %4531 = vmatprep.subr.bf16.mxu0 0
        %4532 = vmatpush1.bf16.msra.mxu0 0
        %4533 = vmatprep.subr.bf16.mxu0 0
        %4534 = vmatpush1.bf16.msra.mxu0 0
        %4535 = vmatprep.subr.bf16.mxu0 0
        %4536 = vmatpush1.bf16.msra.mxu0 0
        %4537 = vmatprep.subr.bf16.mxu0 0
        %4538 = vmatpush1.bf16.msra.mxu0 0
        %4539 = vmatprep.subr.bf16.mxu0 0
        %4540 = vmatpush1.bf16.msra.mxu0 0
        %4541 = vmatprep.mubr.bf16.mxu0 0
        %4542 = vmatmul.mubr.bf16.gmra.mrb[0].mxu0 %v4438
        %v4543 = vpop.f32.mrb[0].mxu0
        %v4544 = vadd.f32 0.0, %v4543
        %v4545 = vpop.f32.mrb[0].mxu0
        %v4546 = vpop.f32.mrb[0].mxu0
        %v4547 = vadd.f32 0.0, %v4546
        %v4548 = vpop.f32.mrb[0].mxu0
        %4549 = vmatprep.mubr.bf16.mxu0 0
        %4550 = vmatmul.mubr.bf16.gmra.mrb[0].mxu0 %v4441
        %v4551 = vpop.f32.mrb[0].mxu0
        %v4552 = vadd.f32 0.0, %v4551
        %v4553 = vpop.f32.mrb[0].mxu0
        %v4554 = vpop.f32.mrb[0].mxu0
        %v4555 = vadd.f32 0.0, %v4554
        %v4556 = vpop.f32.mrb[0].mxu0
        %4557 = vmatprep.mubr.bf16.mxu0 0
        %4558 = vmatmul.mubr.bf16.gmra.mrb[0].mxu0 %v4444
        %v4559 = vpop.f32.mrb[0].mxu0
        %v4560 = vadd.f32 0.0, %v4559
        %v4561 = vpop.f32.mrb[0].mxu0
        %v4562 = vpop.f32.mrb[0].mxu0
        %v4563 = vadd.f32 0.0, %v4562
        %v4564 = vpop.f32.mrb[0].mxu0
        %4565 = vmatprep.mubr.bf16.mxu0 0
        %4566 = vmatmul.mubr.bf16.gmra.mrb[0].mxu0 %v4447
        %v4567 = vpop.f32.mrb[0].mxu0
        %v4568 = vadd.f32 0.0, %v4567
        %v4569 = vpop.f32.mrb[0].mxu0
        %v4570 = vpop.f32.mrb[0].mxu0
        %v4571 = vadd.f32 0.0, %v4570
        %v4572 = vpop.f32.mrb[0].mxu0
        %4573 = vmatprep.mubr.bf16.mxu0 0
        %4574 = vmatmul.mubr.bf16.gmra.mrb[0].mxu0 %v4450
        %v4575 = vpop.f32.mrb[0].mxu0
        %v4576 = vadd.f32 0.0, %v4575
        %v4577 = vpop.f32.mrb[0].mxu0
        %v4578 = vpop.f32.mrb[0].mxu0
        %v4579 = vadd.f32 0.0, %v4578
        %v4580 = vpop.f32.mrb[0].mxu0
        %4581 = vmatprep.mubr.bf16.mxu0 0
        %4582 = vmatmul.mubr.bf16.gmra.mrb[0].mxu0 %v4453
        %v4583 = vpop.f32.mrb[0].mxu0
        %v4584 = vadd.f32 0.0, %v4583
        %v4585 = vpop.f32.mrb[0].mxu0
        %v4586 = vpop.f32.mrb[0].mxu0
        %v4587 = vadd.f32 0.0, %v4586
        %v4588 = vpop.f32.mrb[0].mxu0
        %4589 = vmatprep.mubr.bf16.mxu0 0
        %4590 = vmatmul.mubr.bf16.gmra.mrb[0].mxu0 %v4456
        %v4591 = vpop.f32.mrb[0].mxu0
        %v4592 = vadd.f32 0.0, %v4591
        %v4593 = vpop.f32.mrb[0].mxu0
        %v4594 = vpop.f32.mrb[0].mxu0
        %v4595 = vadd.f32 0.0, %v4594
        %v4596 = vpop.f32.mrb[0].mxu0
        %4597 = vmatprep.mubr.bf16.mxu0 0
        %4598 = vmatmul.mubr.bf16.gmra.mrb[0].mxu0 %v4459
        %v4599 = vpop.f32.mrb[0].mxu0
        %v4600 = vadd.f32 0.0, %v4599
        %v4601 = vpop.f32.mrb[0].mxu0
        %v4602 = vpop.f32.mrb[0].mxu0
        %v4603 = vadd.f32 0.0, %v4602
        %v4604 = vpop.f32.mrb[0].mxu0
        %4605 = vmatprep.mubr.bf16.mxu0 0
        %4606 = vmatmul.mubr.bf16.gmra.mrb[0].mxu0 %v4462
        %v4607 = vpop.f32.mrb[0].mxu0
        %v4608 = vadd.f32 0.0, %v4607
        %v4609 = vpop.f32.mrb[0].mxu0
        %v4610 = vpop.f32.mrb[0].mxu0
        %v4611 = vadd.f32 0.0, %v4610
        %v4612 = vpop.f32.mrb[0].mxu0
        %4613 = vmatprep.mubr.bf16.mxu0 0
        %4614 = vmatmul.mubr.bf16.gmra.mrb[0].mxu0 %v4465
        %v4615 = vpop.f32.mrb[0].mxu0
        %v4616 = vadd.f32 0.0, %v4615
        %v4617 = vpop.f32.mrb[0].mxu0
        %v4618 = vpop.f32.mrb[0].mxu0
        %v4619 = vadd.f32 0.0, %v4618
        %v4620 = vpop.f32.mrb[0].mxu0
        %4621 = vmatprep.mubr.bf16.mxu0 0
        %4622 = vmatmul.mubr.bf16.gmra.mrb[0].mxu0 %v4468
        %v4623 = vpop.f32.mrb[0].mxu0
        %v4624 = vadd.f32 0.0, %v4623
        %v4625 = vpop.f32.mrb[0].mxu0
        %v4626 = vpop.f32.mrb[0].mxu0
        %v4627 = vadd.f32 0.0, %v4626
        %v4628 = vpop.f32.mrb[0].mxu0
        %4629 = vmatprep.mubr.bf16.mxu0 0
        %4630 = vmatmul.mubr.bf16.gmra.mrb[0].mxu0 %v4471
        %v4631 = vpop.f32.mrb[0].mxu0
        %v4632 = vadd.f32 0.0, %v4631
        %v4633 = vpop.f32.mrb[0].mxu0
        %v4634 = vpop.f32.mrb[0].mxu0
        %v4635 = vadd.f32 0.0, %v4634
        %v4636 = vpop.f32.mrb[0].mxu0
        %4637 = vmatprep.mubr.bf16.mxu0 0
        %4638 = vmatmul.mubr.bf16.gmra.mrb[0].mxu0 %v4474
        %v4639 = vpop.f32.mrb[0].mxu0
        %v4640 = vadd.f32 0.0, %v4639
        %v4641 = vpop.f32.mrb[0].mxu0
        %v4642 = vpop.f32.mrb[0].mxu0
        %v4643 = vadd.f32 0.0, %v4642
        %v4644 = vpop.f32.mrb[0].mxu0
        %4645 = vmatprep.mubr.bf16.mxu0 0
        %4646 = vmatmul.mubr.bf16.gmra.mrb[0].mxu0 %v4477
        %v4647 = vpop.f32.mrb[0].mxu0
        %v4648 = vadd.f32 0.0, %v4647
        %v4649 = vpop.f32.mrb[0].mxu0
        %v4650 = vpop.f32.mrb[0].mxu0
        %v4651 = vadd.f32 0.0, %v4650
        %v4652 = vpop.f32.mrb[0].mxu0
        %4653 = vmatprep.mubr.bf16.mxu0 0
        %4654 = vmatmul.mubr.bf16.gmra.mrb[0].mxu0 %v4480
        %v4655 = vpop.f32.mrb[0].mxu0
        %v4656 = vadd.f32 0.0, %v4655
        %v4657 = vpop.f32.mrb[0].mxu0
        %v4658 = vpop.f32.mrb[0].mxu0
        %v4659 = vadd.f32 0.0, %v4658
        %v4660 = vpop.f32.mrb[0].mxu0
        %4661 = vmatprep.mubr.bf16.mxu0 0
        %4662 = vmatmul.mubr.bf16.gmra.mrb[0].mxu0 %v4483
        %v4663 = vpop.f32.mrb[0].mxu0
        %v4664 = vadd.f32 0.0, %v4663
        %v4665 = vpop.f32.mrb[0].mxu0
        %v4666 = vpop.f32.mrb[0].mxu0
        %v4667 = vadd.f32 0.0, %v4666
        %v4668 = vpop.f32.mrb[0].mxu0
        %4669 = vmatprep.mubr.bf16.mxu0 0
        %4670 = vmatmul.mubr.bf16.gmra.mrb[0].mxu0 %v4486
        %v4671 = vpop.f32.mrb[0].mxu0
        %v4672 = vadd.f32 0.0, %v4671
        %v4673 = vpop.f32.mrb[0].mxu0
        %v4674 = vpop.f32.mrb[0].mxu0
        %v4675 = vadd.f32 0.0, %v4674
        %v4676 = vpop.f32.mrb[0].mxu0
        %4677 = vmatprep.mubr.bf16.mxu0 0
        %4678 = vmatmul.mubr.bf16.gmra.mrb[0].mxu0 %v4489
        %v4679 = vpop.f32.mrb[0].mxu0
        %v4680 = vadd.f32 0.0, %v4679
        %v4681 = vpop.f32.mrb[0].mxu0
        %v4682 = vpop.f32.mrb[0].mxu0
        %v4683 = vadd.f32 0.0, %v4682
        %v4684 = vpop.f32.mrb[0].mxu0
        %4685 = vmatprep.mubr.bf16.mxu0 0
        %4686 = vmatmul.mubr.bf16.gmra.mrb[0].mxu0 %v4492
        %v4687 = vpop.f32.mrb[0].mxu0
        %v4688 = vadd.f32 0.0, %v4687
        %v4689 = vpop.f32.mrb[0].mxu0
        %v4690 = vpop.f32.mrb[0].mxu0
        %v4691 = vadd.f32 0.0, %v4690
        %v4692 = vpop.f32.mrb[0].mxu0
        %4693 = vmatprep.mubr.bf16.mxu0 0
        %4694 = vmatmul.mubr.bf16.gmra.mrb[0].mxu0 %v4495
        %v4695 = vpop.f32.mrb[0].mxu0
        %v4696 = vadd.f32 0.0, %v4695
        %v4697 = vpop.f32.mrb[0].mxu0
        %v4698 = vpop.f32.mrb[0].mxu0
        %v4699 = vadd.f32 0.0, %v4698
        %v4700 = vpop.f32.mrb[0].mxu0
        %4701 = vmatprep.mubr.bf16.mxu0 0
        %4702 = vmatmul.mubr.bf16.gmra.mrb[0].mxu0 %v4498
        %v4703 = vpop.f32.mrb[0].mxu0
        %v4704 = vadd.f32 0.0, %v4703
        %v4705 = vpop.f32.mrb[0].mxu0
        %v4706 = vpop.f32.mrb[0].mxu0
        %v4707 = vadd.f32 0.0, %v4706
        %v4708 = vpop.f32.mrb[0].mxu0
        %4709 = vmatprep.mubr.bf16.mxu0 0
        %4710 = vmatmul.mubr.bf16.gmra.mrb[0].mxu0 %v4501
        %v4711 = vpop.f32.mrb[0].mxu0
        %v4712 = vadd.f32 0.0, %v4711
        %v4713 = vpop.f32.mrb[0].mxu0
        %v4714 = vpop.f32.mrb[0].mxu0
        %v4715 = vadd.f32 0.0, %v4714
        %v4716 = vpop.f32.mrb[0].mxu0
        %4717 = vmatprep.mubr.bf16.mxu0 0
        %4718 = vmatmul.mubr.bf16.gmra.mrb[0].mxu0 %v4504
        %v4719 = vpop.f32.mrb[0].mxu0
        %v4720 = vadd.f32 0.0, %v4719
        %v4721 = vpop.f32.mrb[0].mxu0
        %v4722 = vpop.f32.mrb[0].mxu0
        %v4723 = vadd.f32 0.0, %v4722
        %v4724 = vpop.f32.mrb[0].mxu0
        %4725 = vmatprep.mubr.bf16.mxu0 0
        %4726 = vmatmul.mubr.bf16.gmra.mrb[0].mxu0 %v4507
        %v4727 = vpop.f32.mrb[0].mxu0
        %v4728 = vadd.f32 0.0, %v4727
        %v4729 = vpop.f32.mrb[0].mxu0
        %v4730 = vpop.f32.mrb[0].mxu0
        %v4731 = vadd.f32 0.0, %v4730
        %v4732 = vpop.f32.mrb[0].mxu0
        %4733 = vdwg.mxu0
        %v4734 = vadd.f32 %v4004, %v4544
        %v4735 = vadd.f32 %v4005, %v4547
        %v4736 = vadd.f32 %v4006, %v4552
        %v4737 = vadd.f32 %v4007, %v4555
        %v4738 = vadd.f32 %v4008, %v4560
        %v4739 = vadd.f32 %v4009, %v4563
        %v4740 = vadd.f32 %v4010, %v4568
        %v4741 = vadd.f32 %v4011, %v4571
        %v4742 = vadd.f32 %v4012, %v4576
        %v4743 = vadd.f32 %v4013, %v4579
        %v4744 = vadd.f32 %v4014, %v4584
        %v4745 = vadd.f32 %v4015, %v4587
        %v4746 = vadd.f32 %v4016, %v4592
        %v4747 = vadd.f32 %v4017, %v4595
        %v4748 = vadd.f32 %v4018, %v4600
        %v4749 = vadd.f32 %v4019, %v4603
        %v4750 = vadd.f32 %v4020, %v4608
        %v4751 = vadd.f32 %v4021, %v4611
        %v4752 = vadd.f32 %v4022, %v4616
        %v4753 = vadd.f32 %v4023, %v4619
        %v4754 = vadd.f32 %v4024, %v4624
        %v4755 = vadd.f32 %v4025, %v4627
        %v4756 = vadd.f32 %v4026, %v4632
        %v4757 = vadd.f32 %v4027, %v4635
        %v4758 = vadd.f32 %v4028, %v4640
        %v4759 = vadd.f32 %v4029, %v4643
        %v4760 = vadd.f32 %v4030, %v4648
        %v4761 = vadd.f32 %v4031, %v4651
        %v4762 = vadd.f32 %v4032, %v4656
        %v4763 = vadd.f32 %v4033, %v4659
        %v4764 = vadd.f32 %v4034, %v4664
        %v4765 = vadd.f32 %v4035, %v4667
        %v4766 = vadd.f32 %v4036, %v4672
        %v4767 = vadd.f32 %v4037, %v4675
        %v4768 = vadd.f32 %v4038, %v4680
        %v4769 = vadd.f32 %v4039, %v4683
        %v4770 = vadd.f32 %v4040, %v4688
        %v4771 = vadd.f32 %v4041, %v4691
        %v4772 = vadd.f32 %v4042, %v4696
        %v4773 = vadd.f32 %v4043, %v4699
        %v4774 = vadd.f32 %v4044, %v4704
        %v4775 = vadd.f32 %v4045, %v4707
        %v4776 = vadd.f32 %v4046, %v4712
        %v4777 = vadd.f32 %v4047, %v4715
        %v4778 = vadd.f32 %v4048, %v4720
        %v4779 = vadd.f32 %v4049, %v4723
        %v4780 = vadd.f32 %v4050, %v4728
        %v4781 = vadd.f32 %v4051, %v4731
        %v4782 = vld [vmem:[%s389 + $0x18] sm:$0xe]
        %s4783 = scalar_lea.vmem [#allocation8], 128
        %v4784 = vld [vmem:[%s4783] sm:$0xf]
        %v4785 = vld [vmem:[%s4783 + $0x4] sm:$0xf]
        %v4786 = vld [vmem:[%s4783 + $0x8] sm:$0xf]
        %v4787 = vld [vmem:[%s4783 + $0xc] sm:$0xf]
        %v4789 = vunpack.c.l.b16 %v4782
        %v4790 = vpack.c.b16 %v4156, %v4789
        %v4791 = vrot.slane %v4790, 1
        %v4792 = vrot.slane %v4205, 1
        %v4793 = vsel %vm1440, %v4791, %v4792
        %v4794 = vrot.slane %v4206, 1
        %v4795 = vsel %vm1440, %v4792, %v4794
        %v4796 = vrot.slane %v4207, 1
        %v4797 = vsel %vm1440, %v4794, %v4796
        %v4798 = vrot.slane %v4208, 1
        %v4799 = vsel %vm1440, %v4796, %v4798
        %v4800 = vrot.slane %v4209, 1
        %v4801 = vsel %vm1440, %v4798, %v4800
        %v4802 = vrot.slane %v4210, 1
        %v4803 = vsel %vm1440, %v4800, %v4802
        %v4804 = vrot.slane %v4211, 1
        %v4805 = vsel %vm1440, %v4802, %v4804
        %v4806 = vrot.slane %v4212, 1
        %v4807 = vsel %vm1440, %v4804, %v4806
        %v4808 = vrot.slane %v4213, 1
        %v4809 = vsel %vm1440, %v4806, %v4808
        %v4810 = vrot.slane %v4214, 1
        %v4811 = vsel %vm1440, %v4808, %v4810
        %v4812 = vrot.slane %v4215, 1
        %v4813 = vsel %vm1440, %v4810, %v4812
        %v4814 = vrot.slane %v4216, 1
        %v4815 = vsel %vm1440, %v4812, %v4814
        %v4816 = vrot.slane %v4217, 1
        %v4817 = vsel %vm1440, %v4814, %v4816
        %v4818 = vrot.slane %v4218, 1
        %v4819 = vsel %vm1440, %v4816, %v4818
        %v4820 = vrot.slane %v4219, 1
        %v4821 = vsel %vm1440, %v4818, %v4820
        %v4822 = vrot.slane %v4220, 1
        %v4823 = vsel %vm1440, %v4820, %v4822
        %v4824 = vrot.slane %v4221, 1
        %v4825 = vsel %vm1440, %v4822, %v4824
        %v4826 = vrot.slane %v4222, 1
        %v4827 = vsel %vm1440, %v4824, %v4826
        %v4828 = vrot.slane %v4223, 1
        %v4829 = vsel %vm1440, %v4826, %v4828
        %v4830 = vrot.slane %v4224, 1
        %v4831 = vsel %vm1440, %v4828, %v4830
        %v4832 = vrot.slane %v4225, 1
        %v4833 = vsel %vm1440, %v4830, %v4832
        %v4834 = vrot.slane %v4226, 1
        %v4835 = vsel %vm1440, %v4832, %v4834
        %v4836 = vrot.slane %v4227, 1
        %v4837 = vsel %vm1440, %v4834, %v4836
        %v4838 = vrot.slane %v4228, 1
        %v4839 = vsel %vm1440, %v4836, %v4838
        %v4844 = vunpack.c.l.b16 %v4784
        %v4845 = vunpack.c.l.b16 %v4785
        %v4846 = vunpack.c.l.b16 %v4786
        %v4847 = vunpack.c.l.b16 %v4787
        %v4848 = vpack.c.b16 %v4845, %v4844
        %v4849 = vpack.c.b16 %v4847, %v4846
        %v4853 = vsel %vm848, %v4793, 0
        %v4856 = vsel %vm848, %v4795, 0
        %v4859 = vsel %vm848, %v4797, 0
        %v4862 = vsel %vm848, %v4799, 0
        %v4865 = vsel %vm848, %v4801, 0
        %v4868 = vsel %vm848, %v4803, 0
        %v4871 = vsel %vm848, %v4805, 0
        %v4874 = vsel %vm848, %v4807, 0
        %v4877 = vsel %vm848, %v4809, 0
        %v4880 = vsel %vm848, %v4811, 0
        %v4883 = vsel %vm848, %v4813, 0
        %v4886 = vsel %vm848, %v4815, 0
        %v4889 = vsel %vm848, %v4817, 0
        %v4892 = vsel %vm848, %v4819, 0
        %v4895 = vsel %vm848, %v4821, 0
        %v4898 = vsel %vm848, %v4823, 0
        %v4901 = vsel %vm848, %v4825, 0
        %v4904 = vsel %vm848, %v4827, 0
        %v4907 = vsel %vm848, %v4829, 0
        %v4910 = vsel %vm848, %v4831, 0
        %v4913 = vsel %vm848, %v4833, 0
        %v4916 = vsel %vm848, %v4835, 0
        %v4919 = vsel %vm848, %v4837, 0
        %v4922 = vsel %vm848, %v4839, 0
        %4924 = vmatprep.subr.bf16.mxu0 0
        %4925 = vmatpush1.bf16.msra.mxu0 %v4848
        %4926 = vmatprep.subr.bf16.mxu0 0
        %4927 = vmatpush1.bf16.msra.mxu0 %v4849
        %4928 = vmatprep.subr.bf16.mxu0 0
        %4929 = vmatpush1.bf16.msra.mxu0 0
        %4930 = vmatprep.subr.bf16.mxu0 0
        %4931 = vmatpush1.bf16.msra.mxu0 0
        %4932 = vmatprep.subr.bf16.mxu0 0
        %4933 = vmatpush1.bf16.msra.mxu0 0
        %4934 = vmatprep.subr.bf16.mxu0 0
        %4935 = vmatpush1.bf16.msra.mxu0 0
        %4936 = vmatprep.subr.bf16.mxu0 0
        %4937 = vmatpush1.bf16.msra.mxu0 0
        %4938 = vmatprep.subr.bf16.mxu0 0
        %4939 = vmatpush1.bf16.msra.mxu0 0
        %4940 = vmatprep.subr.bf16.mxu0 0
        %4941 = vmatpush1.bf16.msra.mxu0 0
        %4942 = vmatprep.subr.bf16.mxu0 0
        %4943 = vmatpush1.bf16.msra.mxu0 0
        %4944 = vmatprep.subr.bf16.mxu0 0
        %4945 = vmatpush1.bf16.msra.mxu0 0
        %4946 = vmatprep.subr.bf16.mxu0 0
        %4947 = vmatpush1.bf16.msra.mxu0 0
        %4948 = vmatprep.subr.bf16.mxu0 0
        %4949 = vmatpush1.bf16.msra.mxu0 0
        %4950 = vmatprep.subr.bf16.mxu0 0
        %4951 = vmatpush1.bf16.msra.mxu0 0
        %4952 = vmatprep.subr.bf16.mxu0 0
        %4953 = vmatpush1.bf16.msra.mxu0 0
        %4954 = vmatprep.subr.bf16.mxu0 0
        %4955 = vmatpush1.bf16.msra.mxu0 0
        %4956 = vmatprep.mubr.bf16.mxu0 0
        %4957 = vmatmul.mubr.bf16.gmra.mrb[0].mxu0 %v4853
        %v4958 = vpop.f32.mrb[0].mxu0
        %v4959 = vadd.f32 0.0, %v4958
        %v4960 = vpop.f32.mrb[0].mxu0
        %v4961 = vpop.f32.mrb[0].mxu0
        %v4962 = vadd.f32 0.0, %v4961
        %v4963 = vpop.f32.mrb[0].mxu0
        %4964 = vmatprep.mubr.bf16.mxu0 0
        %4965 = vmatmul.mubr.bf16.gmra.mrb[0].mxu0 %v4856
        %v4966 = vpop.f32.mrb[0].mxu0
        %v4967 = vadd.f32 0.0, %v4966
        %v4968 = vpop.f32.mrb[0].mxu0
        %v4969 = vpop.f32.mrb[0].mxu0
        %v4970 = vadd.f32 0.0, %v4969
        %v4971 = vpop.f32.mrb[0].mxu0
        %4972 = vmatprep.mubr.bf16.mxu0 0
        %4973 = vmatmul.mubr.bf16.gmra.mrb[0].mxu0 %v4859
        %v4974 = vpop.f32.mrb[0].mxu0
        %v4975 = vadd.f32 0.0, %v4974
        %v4976 = vpop.f32.mrb[0].mxu0
        %v4977 = vpop.f32.mrb[0].mxu0
        %v4978 = vadd.f32 0.0, %v4977
        %v4979 = vpop.f32.mrb[0].mxu0
        %4980 = vmatprep.mubr.bf16.mxu0 0
        %4981 = vmatmul.mubr.bf16.gmra.mrb[0].mxu0 %v4862
        %v4982 = vpop.f32.mrb[0].mxu0
        %v4983 = vadd.f32 0.0, %v4982
        %v4984 = vpop.f32.mrb[0].mxu0
        %v4985 = vpop.f32.mrb[0].mxu0
        %v4986 = vadd.f32 0.0, %v4985
        %v4987 = vpop.f32.mrb[0].mxu0
        %4988 = vmatprep.mubr.bf16.mxu0 0
        %4989 = vmatmul.mubr.bf16.gmra.mrb[0].mxu0 %v4865
        %v4990 = vpop.f32.mrb[0].mxu0
        %v4991 = vadd.f32 0.0, %v4990
        %v4992 = vpop.f32.mrb[0].mxu0
        %v4993 = vpop.f32.mrb[0].mxu0
        %v4994 = vadd.f32 0.0, %v4993
        %v4995 = vpop.f32.mrb[0].mxu0
        %4996 = vmatprep.mubr.bf16.mxu0 0
        %4997 = vmatmul.mubr.bf16.gmra.mrb[0].mxu0 %v4868
        %v4998 = vpop.f32.mrb[0].mxu0
        %v4999 = vadd.f32 0.0, %v4998
        %v5000 = vpop.f32.mrb[0].mxu0
        %v5001 = vpop.f32.mrb[0].mxu0
        %v5002 = vadd.f32 0.0, %v5001
        %v5003 = vpop.f32.mrb[0].mxu0
        %5004 = vmatprep.mubr.bf16.mxu0 0
        %5005 = vmatmul.mubr.bf16.gmra.mrb[0].mxu0 %v4871
        %v5006 = vpop.f32.mrb[0].mxu0
        %v5007 = vadd.f32 0.0, %v5006
        %v5008 = vpop.f32.mrb[0].mxu0
        %v5009 = vpop.f32.mrb[0].mxu0
        %v5010 = vadd.f32 0.0, %v5009
        %v5011 = vpop.f32.mrb[0].mxu0
        %5012 = vmatprep.mubr.bf16.mxu0 0
        %5013 = vmatmul.mubr.bf16.gmra.mrb[0].mxu0 %v4874
        %v5014 = vpop.f32.mrb[0].mxu0
        %v5015 = vadd.f32 0.0, %v5014
        %v5016 = vpop.f32.mrb[0].mxu0
        %v5017 = vpop.f32.mrb[0].mxu0
        %v5018 = vadd.f32 0.0, %v5017
        %v5019 = vpop.f32.mrb[0].mxu0
        %5020 = vmatprep.mubr.bf16.mxu0 0
        %5021 = vmatmul.mubr.bf16.gmra.mrb[0].mxu0 %v4877
        %v5022 = vpop.f32.mrb[0].mxu0
        %v5023 = vadd.f32 0.0, %v5022
        %v5024 = vpop.f32.mrb[0].mxu0
        %v5025 = vpop.f32.mrb[0].mxu0
        %v5026 = vadd.f32 0.0, %v5025
        %v5027 = vpop.f32.mrb[0].mxu0
        %5028 = vmatprep.mubr.bf16.mxu0 0
        %5029 = vmatmul.mubr.bf16.gmra.mrb[0].mxu0 %v4880
        %v5030 = vpop.f32.mrb[0].mxu0
        %v5031 = vadd.f32 0.0, %v5030
        %v5032 = vpop.f32.mrb[0].mxu0
        %v5033 = vpop.f32.mrb[0].mxu0
        %v5034 = vadd.f32 0.0, %v5033
        %v5035 = vpop.f32.mrb[0].mxu0
        %5036 = vmatprep.mubr.bf16.mxu0 0
        %5037 = vmatmul.mubr.bf16.gmra.mrb[0].mxu0 %v4883
        %v5038 = vpop.f32.mrb[0].mxu0
        %v5039 = vadd.f32 0.0, %v5038
        %v5040 = vpop.f32.mrb[0].mxu0
        %v5041 = vpop.f32.mrb[0].mxu0
        %v5042 = vadd.f32 0.0, %v5041
        %v5043 = vpop.f32.mrb[0].mxu0
        %5044 = vmatprep.mubr.bf16.mxu0 0
        %5045 = vmatmul.mubr.bf16.gmra.mrb[0].mxu0 %v4886
        %v5046 = vpop.f32.mrb[0].mxu0
        %v5047 = vadd.f32 0.0, %v5046
        %v5048 = vpop.f32.mrb[0].mxu0
        %v5049 = vpop.f32.mrb[0].mxu0
        %v5050 = vadd.f32 0.0, %v5049
        %v5051 = vpop.f32.mrb[0].mxu0
        %5052 = vmatprep.mubr.bf16.mxu0 0
        %5053 = vmatmul.mubr.bf16.gmra.mrb[0].mxu0 %v4889
        %v5054 = vpop.f32.mrb[0].mxu0
        %v5055 = vadd.f32 0.0, %v5054
        %v5056 = vpop.f32.mrb[0].mxu0
        %v5057 = vpop.f32.mrb[0].mxu0
        %v5058 = vadd.f32 0.0, %v5057
        %v5059 = vpop.f32.mrb[0].mxu0
        %5060 = vmatprep.mubr.bf16.mxu0 0
        %5061 = vmatmul.mubr.bf16.gmra.mrb[0].mxu0 %v4892
        %v5062 = vpop.f32.mrb[0].mxu0
        %v5063 = vadd.f32 0.0, %v5062
        %v5064 = vpop.f32.mrb[0].mxu0
        %v5065 = vpop.f32.mrb[0].mxu0
        %v5066 = vadd.f32 0.0, %v5065
        %v5067 = vpop.f32.mrb[0].mxu0
        %5068 = vmatprep.mubr.bf16.mxu0 0
        %5069 = vmatmul.mubr.bf16.gmra.mrb[0].mxu0 %v4895
        %v5070 = vpop.f32.mrb[0].mxu0
        %v5071 = vadd.f32 0.0, %v5070
        %v5072 = vpop.f32.mrb[0].mxu0
        %v5073 = vpop.f32.mrb[0].mxu0
        %v5074 = vadd.f32 0.0, %v5073
        %v5075 = vpop.f32.mrb[0].mxu0
        %5076 = vmatprep.mubr.bf16.mxu0 0
        %5077 = vmatmul.mubr.bf16.gmra.mrb[0].mxu0 %v4898
        %v5078 = vpop.f32.mrb[0].mxu0
        %v5079 = vadd.f32 0.0, %v5078
        %v5080 = vpop.f32.mrb[0].mxu0
        %v5081 = vpop.f32.mrb[0].mxu0
        %v5082 = vadd.f32 0.0, %v5081
        %v5083 = vpop.f32.mrb[0].mxu0
        %5084 = vmatprep.mubr.bf16.mxu0 0
        %5085 = vmatmul.mubr.bf16.gmra.mrb[0].mxu0 %v4901
        %v5086 = vpop.f32.mrb[0].mxu0
        %v5087 = vadd.f32 0.0, %v5086
        %v5088 = vpop.f32.mrb[0].mxu0
        %v5089 = vpop.f32.mrb[0].mxu0
        %v5090 = vadd.f32 0.0, %v5089
        %v5091 = vpop.f32.mrb[0].mxu0
        %5092 = vmatprep.mubr.bf16.mxu0 0
        %5093 = vmatmul.mubr.bf16.gmra.mrb[0].mxu0 %v4904
        %v5094 = vpop.f32.mrb[0].mxu0
        %v5095 = vadd.f32 0.0, %v5094
        %v5096 = vpop.f32.mrb[0].mxu0
        %v5097 = vpop.f32.mrb[0].mxu0
        %v5098 = vadd.f32 0.0, %v5097
        %v5099 = vpop.f32.mrb[0].mxu0
        %5100 = vmatprep.mubr.bf16.mxu0 0
        %5101 = vmatmul.mubr.bf16.gmra.mrb[0].mxu0 %v4907
        %v5102 = vpop.f32.mrb[0].mxu0
        %v5103 = vadd.f32 0.0, %v5102
        %v5104 = vpop.f32.mrb[0].mxu0
        %v5105 = vpop.f32.mrb[0].mxu0
        %v5106 = vadd.f32 0.0, %v5105
        %v5107 = vpop.f32.mrb[0].mxu0
        %5108 = vmatprep.mubr.bf16.mxu0 0
        %5109 = vmatmul.mubr.bf16.gmra.mrb[0].mxu0 %v4910
        %v5110 = vpop.f32.mrb[0].mxu0
        %v5111 = vadd.f32 0.0, %v5110
        %v5112 = vpop.f32.mrb[0].mxu0
        %v5113 = vpop.f32.mrb[0].mxu0
        %v5114 = vadd.f32 0.0, %v5113
        %v5115 = vpop.f32.mrb[0].mxu0
        %5116 = vmatprep.mubr.bf16.mxu0 0
        %5117 = vmatmul.mubr.bf16.gmra.mrb[0].mxu0 %v4913
        %v5118 = vpop.f32.mrb[0].mxu0
        %v5119 = vadd.f32 0.0, %v5118
        %v5120 = vpop.f32.mrb[0].mxu0
        %v5121 = vpop.f32.mrb[0].mxu0
        %v5122 = vadd.f32 0.0, %v5121
        %v5123 = vpop.f32.mrb[0].mxu0
        %5124 = vmatprep.mubr.bf16.mxu0 0
        %5125 = vmatmul.mubr.bf16.gmra.mrb[0].mxu0 %v4916
        %v5126 = vpop.f32.mrb[0].mxu0
        %v5127 = vadd.f32 0.0, %v5126
        %v5128 = vpop.f32.mrb[0].mxu0
        %v5129 = vpop.f32.mrb[0].mxu0
        %v5130 = vadd.f32 0.0, %v5129
        %v5131 = vpop.f32.mrb[0].mxu0
        %5132 = vmatprep.mubr.bf16.mxu0 0
        %5133 = vmatmul.mubr.bf16.gmra.mrb[0].mxu0 %v4919
        %v5134 = vpop.f32.mrb[0].mxu0
        %v5135 = vadd.f32 0.0, %v5134
        %v5136 = vpop.f32.mrb[0].mxu0
        %v5137 = vpop.f32.mrb[0].mxu0
        %v5138 = vadd.f32 0.0, %v5137
        %v5139 = vpop.f32.mrb[0].mxu0
        %5140 = vmatprep.mubr.bf16.mxu0 0
        %5141 = vmatmul.mubr.bf16.gmra.mrb[0].mxu0 %v4922
        %v5142 = vpop.f32.mrb[0].mxu0
        %v5143 = vadd.f32 0.0, %v5142
        %v5144 = vpop.f32.mrb[0].mxu0
        %v5145 = vpop.f32.mrb[0].mxu0
        %v5146 = vadd.f32 0.0, %v5145
        %v5147 = vpop.f32.mrb[0].mxu0
        %5148 = vdwg.mxu0
        %v5149 = vadd.f32 %v4734, %v4959
        %v5150 = vadd.f32 %v4735, %v4962
        %v5151 = vadd.f32 %v4736, %v4967
        %v5152 = vadd.f32 %v4737, %v4970
        %v5153 = vadd.f32 %v4738, %v4975
        %v5154 = vadd.f32 %v4739, %v4978
        %v5155 = vadd.f32 %v4740, %v4983
        %v5156 = vadd.f32 %v4741, %v4986
        %v5157 = vadd.f32 %v4742, %v4991
        %v5158 = vadd.f32 %v4743, %v4994
        %v5159 = vadd.f32 %v4744, %v4999
        %v5160 = vadd.f32 %v4745, %v5002
        %v5161 = vadd.f32 %v4746, %v5007
        %v5162 = vadd.f32 %v4747, %v5010
        %v5163 = vadd.f32 %v4748, %v5015
        %v5164 = vadd.f32 %v4749, %v5018
        %v5165 = vadd.f32 %v4750, %v5023
        %v5166 = vadd.f32 %v4751, %v5026
        %v5167 = vadd.f32 %v4752, %v5031
        %v5168 = vadd.f32 %v4753, %v5034
        %v5169 = vadd.f32 %v4754, %v5039
        %v5170 = vadd.f32 %v4755, %v5042
        %v5171 = vadd.f32 %v4756, %v5047
        %v5172 = vadd.f32 %v4757, %v5050
        %v5173 = vadd.f32 %v4758, %v5055
        %v5174 = vadd.f32 %v4759, %v5058
        %v5175 = vadd.f32 %v4760, %v5063
        %v5176 = vadd.f32 %v4761, %v5066
        %v5177 = vadd.f32 %v4762, %v5071
        %v5178 = vadd.f32 %v4763, %v5074
        %v5179 = vadd.f32 %v4764, %v5079
        %v5180 = vadd.f32 %v4765, %v5082
        %v5181 = vadd.f32 %v4766, %v5087
        %v5182 = vadd.f32 %v4767, %v5090
        %v5183 = vadd.f32 %v4768, %v5095
        %v5184 = vadd.f32 %v4769, %v5098
        %v5185 = vadd.f32 %v4770, %v5103
        %v5186 = vadd.f32 %v4771, %v5106
        %v5187 = vadd.f32 %v4772, %v5111
        %v5188 = vadd.f32 %v4773, %v5114
        %v5189 = vadd.f32 %v4774, %v5119
        %v5190 = vadd.f32 %v4775, %v5122
        %v5191 = vadd.f32 %v4776, %v5127
        %v5192 = vadd.f32 %v4777, %v5130
        %v5193 = vadd.f32 %v4778, %v5135
        %v5194 = vadd.f32 %v4779, %v5138
        %v5195 = vadd.f32 %v4780, %v5143
        %v5196 = vadd.f32 %v4781, %v5146
        %v5197 = vld [vmem:[#allocation10] sm:$0x1]
        %v5199 = vlaneseq
        %v5200 = vshrl.u32 %v5199, 7
        %v5201 = vsub.s32 0, %v5200
        %v5202 = vrot.slane %v5197, %v5201
        %v5204 = vadd.f32 %v5149, %v5202
        %v5205 = vadd.f32 %v5150, %v5202
        %v5206 = vadd.f32 %v5151, %v5202
        %v5207 = vadd.f32 %v5152, %v5202
        %v5208 = vadd.f32 %v5153, %v5202
        %v5209 = vadd.f32 %v5154, %v5202
        %v5210 = vadd.f32 %v5155, %v5202
        %v5211 = vadd.f32 %v5156, %v5202
        %v5212 = vadd.f32 %v5157, %v5202
        %v5213 = vadd.f32 %v5158, %v5202
        %v5214 = vadd.f32 %v5159, %v5202
        %v5215 = vadd.f32 %v5160, %v5202
        %v5216 = vadd.f32 %v5161, %v5202
        %v5217 = vadd.f32 %v5162, %v5202
        %v5218 = vadd.f32 %v5163, %v5202
        %v5219 = vadd.f32 %v5164, %v5202
        %v5220 = vadd.f32 %v5165, %v5202
        %v5221 = vadd.f32 %v5166, %v5202
        %v5222 = vadd.f32 %v5167, %v5202
        %v5223 = vadd.f32 %v5168, %v5202
        %v5224 = vadd.f32 %v5169, %v5202
        %v5225 = vadd.f32 %v5170, %v5202
        %v5226 = vadd.f32 %v5171, %v5202
        %v5227 = vadd.f32 %v5172, %v5202
        %v5228 = vadd.f32 %v5173, %v5202
        %v5229 = vadd.f32 %v5174, %v5202
        %v5230 = vadd.f32 %v5175, %v5202
        %v5231 = vadd.f32 %v5176, %v5202
        %v5232 = vadd.f32 %v5177, %v5202
        %v5233 = vadd.f32 %v5178, %v5202
        %v5234 = vadd.f32 %v5179, %v5202
        %v5235 = vadd.f32 %v5180, %v5202
        %v5236 = vadd.f32 %v5181, %v5202
        %v5237 = vadd.f32 %v5182, %v5202
        %v5238 = vadd.f32 %v5183, %v5202
        %v5239 = vadd.f32 %v5184, %v5202
        %v5240 = vadd.f32 %v5185, %v5202
        %v5241 = vadd.f32 %v5186, %v5202
        %v5242 = vadd.f32 %v5187, %v5202
        %v5243 = vadd.f32 %v5188, %v5202
        %v5244 = vadd.f32 %v5189, %v5202
        %v5245 = vadd.f32 %v5190, %v5202
        %v5246 = vadd.f32 %v5191, %v5202
        %v5247 = vadd.f32 %v5192, %v5202
        %v5248 = vadd.f32 %v5193, %v5202
        %v5249 = vadd.f32 %v5194, %v5202
        %v5250 = vadd.f32 %v5195, %v5202
        %v5251 = vadd.f32 %v5196, %v5202
        %5252 = vst.msk [vmem:[#allocation2 + $0x48] sm:$0xff] %vm848, %v5204
        %5253 = vst.msk [vmem:[#allocation2 + $0x50] sm:$0xff] %vm848, %v5205
        %5254 = vst.msk [vmem:[#allocation2 + $0x58] sm:$0xff] %vm848, %v5206
        %5255 = vst.msk [vmem:[#allocation2 + $0x60] sm:$0xff] %vm848, %v5207
        %5256 = vst.msk [vmem:[#allocation2 + $0x68] sm:$0xff] %vm848, %v5208
        %5257 = vst.msk [vmem:[#allocation2 + $0x70] sm:$0xff] %vm848, %v5209
        %5258 = vst.msk [vmem:[#allocation2 + $0x78] sm:$0xff] %vm848, %v5210
        %5259 = vst.msk [vmem:[#allocation2 + $0x80] sm:$0xff] %vm848, %v5211
        %5260 = vst.msk [vmem:[#allocation2 + $0x88] sm:$0xff] %vm848, %v5212
        %5261 = vst.msk [vmem:[#allocation2 + $0x90] sm:$0xff] %vm848, %v5213
        %5262 = vst.msk [vmem:[#allocation2 + $0x98] sm:$0xff] %vm848, %v5214
        %5263 = vst.msk [vmem:[#allocation2 + $0xa0] sm:$0xff] %vm848, %v5215
        %5264 = vst.msk [vmem:[#allocation2 + $0xa8] sm:$0xff] %vm848, %v5216
        %5265 = vst.msk [vmem:[#allocation2 + $0xb0] sm:$0xff] %vm848, %v5217
        %5266 = vst.msk [vmem:[#allocation2 + $0xb8] sm:$0xff] %vm848, %v5218
        %5267 = vst.msk [vmem:[#allocation2 + $0xc0] sm:$0xff] %vm848, %v5219
        %5268 = vst.msk [vmem:[#allocation2 + $0xc8] sm:$0xff] %vm848, %v5220
        %5269 = vst.msk [vmem:[#allocation2 + $0xd0] sm:$0xff] %vm848, %v5221
        %5270 = vst.msk [vmem:[#allocation2 + $0xd8] sm:$0xff] %vm848, %v5222
        %5271 = vst.msk [vmem:[#allocation2 + $0xe0] sm:$0xff] %vm848, %v5223
        %5272 = vst.msk [vmem:[#allocation2 + $0xe8] sm:$0xff] %vm848, %v5224
        %5273 = vst.msk [vmem:[#allocation2 + $0xf0] sm:$0xff] %vm848, %v5225
        %5274 = vst.msk [vmem:[#allocation2 + $0xf8] sm:$0xff] %vm848, %v5226
        %5275 = vst.msk [vmem:[#allocation2 + $0x100] sm:$0xff] %vm848, %v5227
        %5276 = vst.msk [vmem:[#allocation2 + $0x108] sm:$0xff] %vm848, %v5228
        %5277 = vst.msk [vmem:[#allocation2 + $0x110] sm:$0xff] %vm848, %v5229
        %5278 = vst.msk [vmem:[#allocation2 + $0x118] sm:$0xff] %vm848, %v5230
        %5279 = vst.msk [vmem:[#allocation2 + $0x120] sm:$0xff] %vm848, %v5231
        %5280 = vst.msk [vmem:[#allocation2 + $0x128] sm:$0xff] %vm848, %v5232
        %5281 = vst.msk [vmem:[#allocation2 + $0x130] sm:$0xff] %vm848, %v5233
        %5282 = vst.msk [vmem:[#allocation2 + $0x138] sm:$0xff] %vm848, %v5234
        %5283 = vst.msk [vmem:[#allocation2 + $0x140] sm:$0xff] %vm848, %v5235
        %5284 = vst.msk [vmem:[#allocation2 + $0x148] sm:$0xff] %vm848, %v5236
        %5285 = vst.msk [vmem:[#allocation2 + $0x150] sm:$0xff] %vm848, %v5237
        %5286 = vst.msk [vmem:[#allocation2 + $0x158] sm:$0xff] %vm848, %v5238
        %5287 = vst.msk [vmem:[#allocation2 + $0x160] sm:$0xff] %vm848, %v5239
        %5288 = vst.msk [vmem:[#allocation2 + $0x168] sm:$0xff] %vm848, %v5240
        %5289 = vst.msk [vmem:[#allocation2 + $0x170] sm:$0xff] %vm848, %v5241
        %5290 = vst.msk [vmem:[#allocation2 + $0x178] sm:$0xff] %vm848, %v5242
        %5291 = vst.msk [vmem:[#allocation2 + $0x180] sm:$0xff] %vm848, %v5243
        %5292 = vst.msk [vmem:[#allocation2 + $0x188] sm:$0xff] %vm848, %v5244
        %5293 = vst.msk [vmem:[#allocation2 + $0x190] sm:$0xff] %vm848, %v5245
        %5294 = vst.msk [vmem:[#allocation2 + $0x198] sm:$0xff] %vm848, %v5246
        %5295 = vst.msk [vmem:[#allocation2 + $0x1a0] sm:$0xff] %vm848, %v5247
        %5296 = vst.msk [vmem:[#allocation2 + $0x1a8] sm:$0xff] %vm848, %v5248
        %5297 = vst.msk [vmem:[#allocation2 + $0x1b0] sm:$0xff] %vm848, %v5249
        %5298 = vst.msk [vmem:[#allocation2 + $0x1b8] sm:$0xff] %vm848, %v5250
        %5299 = vst.msk [vmem:[#allocation2 + $0x1c0] sm:$0xff] %vm848, %v5251
        %5300 = vst.msk [vmem:[#allocation2] sm:$0xff] %vm848, 0.0
        %5301 = vst.msk [vmem:[#allocation2 + $0x8] sm:$0xff] %vm848, 0.0
        %5302 = vst.msk [vmem:[#allocation2 + $0x10] sm:$0xff] %vm848, 0.0
        %5303 = vst.msk [vmem:[#allocation2 + $0x18] sm:$0xff] %vm848, 0.0
        %5304 = vst.msk [vmem:[#allocation2 + $0x20] sm:$0xff] %vm848, 0.0
        %5305 = vst.msk [vmem:[#allocation2 + $0x28] sm:$0xff] %vm848, 0.0
        %5306 = vst.msk [vmem:[#allocation2 + $0x30] sm:$0xff] %vm848, 0.0
        %5307 = vst.msk [vmem:[#allocation2 + $0x38] sm:$0xff] %vm848, 0.0
        %5308 = vst.msk [vmem:[#allocation2 + $0x40] sm:$0xff] %vm848, 0.0
        %vm5309 = vcmask 256000
        %5310 = vst.msk [vmem:[#allocation2 + $0x48] sm:$0x7] %vm5309, 0.0
        %5311 = vst.msk [vmem:[#allocation2 + $0x5b] sm:$0xff] %vm848, 0.0
        %5312 = vst.msk [vmem:[#allocation2 + $0x73] sm:$0xff] %vm848, 0.0
        %5313 = vst.msk [vmem:[#allocation2 + $0x8b] sm:$0xff] %vm848, 0.0
        %5314 = vst.msk [vmem:[#allocation2 + $0xa3] sm:$0xff] %vm848, 0.0
        %5315 = vst.msk [vmem:[#allocation2 + $0xbb] sm:$0xff] %vm848, 0.0
        %5316 = vst.msk [vmem:[#allocation2 + $0xd3] sm:$0xff] %vm848, 0.0
        %5317 = vst.msk [vmem:[#allocation2 + $0xeb] sm:$0xff] %vm848, 0.0
        %5318 = vst.msk [vmem:[#allocation2 + $0x103] sm:$0xff] %vm848, 0.0
        %5319 = vst.msk [vmem:[#allocation2 + $0x11b] sm:$0xff] %vm848, 0.0
        %5320 = vst.msk [vmem:[#allocation2 + $0x133] sm:$0xff] %vm848, 0.0
        %5321 = vst.msk [vmem:[#allocation2 + $0x14b] sm:$0xff] %vm848, 0.0
        %5322 = vst.msk [vmem:[#allocation2 + $0x163] sm:$0xff] %vm848, 0.0
        %5323 = vst.msk [vmem:[#allocation2 + $0x17b] sm:$0xff] %vm848, 0.0
        %5324 = vst.msk [vmem:[#allocation2 + $0x193] sm:$0xff] %vm848, 0.0
        %5325 = vst.msk [vmem:[#allocation2 + $0x1ab] sm:$0xff] %vm848, 0.0
        %5326 = vst.msk [vmem:[#allocation2 + $0x1c3] sm:$0xff] %vm848, 0.0
        %5327 = vst.msk [vmem:[#allocation2 + $0x1c8] sm:$0xff] %vm848, 0.0
        %5328 = vst.msk [vmem:[#allocation2 + $0x1d0] sm:$0xff] %vm848, 0.0
        %5329 = vst.msk [vmem:[#allocation2 + $0x1d8] sm:$0xff] %vm848, 0.0
        %5330 = vst.msk [vmem:[#allocation2 + $0x1e0] sm:$0xff] %vm848, 0.0
        %5331 = vst.msk [vmem:[#allocation2 + $0x1e8] sm:$0xff] %vm848, 0.0
        %5332 = vst.msk [vmem:[#allocation2 + $0x1f0] sm:$0xff] %vm848, 0.0
        %5333 = vst.msk [vmem:[#allocation2 + $0x1f8] sm:$0xff] %vm848, 0.0
        %5334 = vst.msk [vmem:[#allocation2 + $0x200] sm:$0xff] %vm848, 0.0
        %5335 = vst.msk [vmem:[#allocation2 + $0x208] sm:$0xff] %vm848, 0.0
        %5336 = vst.msk [vmem:[#allocation2 + $0x210] sm:$0xff] %vm848, 0.0
        %5337 = vst.msk [vmem:[#allocation2 + $0x218] sm:$0xff] %vm848, 0.0
        %5338 = vst.msk [vmem:[#allocation2 + $0x220] sm:$0xff] %vm848, 0.0
        %v5339 = vld [vmem:[#allocation2] sm:$0xff]
        %v5340 = vld [vmem:[#allocation2 + $0x8] sm:$0xff]
        %v5341 = vld [vmem:[#allocation2 + $0x18] sm:$0xff]
        %v5342 = vld [vmem:[#allocation2 + $0x20] sm:$0xff]
        %v5343 = vld [vmem:[#allocation2 + $0x30] sm:$0xff]
        %v5344 = vld [vmem:[#allocation2 + $0x38] sm:$0xff]
        %v5345 = vld [vmem:[#allocation2 + $0x48] sm:$0xff]
        %v5346 = vld [vmem:[#allocation2 + $0x50] sm:$0xff]
        %v5347 = vld [vmem:[#allocation2 + $0x60] sm:$0xff]
        %v5348 = vld [vmem:[#allocation2 + $0x68] sm:$0xff]
        %v5349 = vld [vmem:[#allocation2 + $0x78] sm:$0xff]
        %v5350 = vld [vmem:[#allocation2 + $0x80] sm:$0xff]
        %v5351 = vld [vmem:[#allocation2 + $0x90] sm:$0xff]
        %v5352 = vld [vmem:[#allocation2 + $0x98] sm:$0xff]
        %v5353 = vld [vmem:[#allocation2 + $0xa8] sm:$0xff]
        %v5354 = vld [vmem:[#allocation2 + $0xb0] sm:$0xff]
        %v5355 = vld [vmem:[#allocation2 + $0xc0] sm:$0xff]
        %v5356 = vld [vmem:[#allocation2 + $0xc8] sm:$0xff]
        %v5357 = vld [vmem:[#allocation2 + $0xd8] sm:$0xff]
        %v5358 = vld [vmem:[#allocation2 + $0xe0] sm:$0xff]
        %v5359 = vld [vmem:[#allocation2 + $0xf0] sm:$0xff]
        %v5360 = vld [vmem:[#allocation2 + $0xf8] sm:$0xff]
        %v5361 = vld [vmem:[#allocation2 + $0x108] sm:$0xff]
        %v5362 = vld [vmem:[#allocation2 + $0x110] sm:$0xff]
        %v5363 = vld [vmem:[#allocation2 + $0x120] sm:$0xff]
        %v5364 = vld [vmem:[#allocation2 + $0x128] sm:$0xff]
        %v5365 = vld [vmem:[#allocation2 + $0x138] sm:$0xff]
        %v5366 = vld [vmem:[#allocation2 + $0x140] sm:$0xff]
        %v5367 = vld [vmem:[#allocation2 + $0x150] sm:$0xff]
        %v5368 = vld [vmem:[#allocation2 + $0x158] sm:$0xff]
        %v5369 = vld [vmem:[#allocation2 + $0x168] sm:$0xff]
        %v5370 = vld [vmem:[#allocation2 + $0x170] sm:$0xff]
        %v5371 = vld [vmem:[#allocation11] sm:$0x1]
        %v5372 = vlaneseq
        %v5373 = vshrl.u32 %v5372, 7
        %v5374 = vsub.s32 0, %v5373
        %v5375 = vrot.slane %v5371, %v5374
        %v5376 = vmul.f32 %v5339, %v5375
        %v5377 = vmul.f32 %v5340, %v5375
        %v5378 = vmul.f32 %v5341, %v5375
        %v5379 = vmul.f32 %v5342, %v5375
        %v5380 = vmul.f32 %v5343, %v5375
        %v5381 = vmul.f32 %v5344, %v5375
        %v5382 = vmul.f32 %v5345, %v5375
        %v5383 = vmul.f32 %v5346, %v5375
        %v5384 = vmul.f32 %v5347, %v5375
        %v5385 = vmul.f32 %v5348, %v5375
        %v5386 = vmul.f32 %v5349, %v5375
        %v5387 = vmul.f32 %v5350, %v5375
        %v5388 = vmul.f32 %v5351, %v5375
        %v5389 = vmul.f32 %v5352, %v5375
        %v5390 = vmul.f32 %v5353, %v5375
        %v5391 = vmul.f32 %v5354, %v5375
        %v5392 = vmul.f32 %v5355, %v5375
        %v5393 = vmul.f32 %v5356, %v5375
        %v5394 = vmul.f32 %v5357, %v5375
        %v5395 = vmul.f32 %v5358, %v5375
        %v5396 = vmul.f32 %v5359, %v5375
        %v5397 = vmul.f32 %v5360, %v5375
        %v5398 = vmul.f32 %v5361, %v5375
        %v5399 = vmul.f32 %v5362, %v5375
        %v5400 = vmul.f32 %v5363, %v5375
        %v5401 = vmul.f32 %v5364, %v5375
        %v5402 = vmul.f32 %v5365, %v5375
        %v5403 = vmul.f32 %v5366, %v5375
        %v5404 = vmul.f32 %v5367, %v5375
        %v5405 = vmul.f32 %v5368, %v5375
        %v5406 = vmul.f32 %v5369, %v5375
        %v5407 = vmul.f32 %v5370, %v5375
        %v5408 = vadd.f32 %v5376, 0.0
        %v5409 = vadd.f32 %v5377, 0.0
        %v5410 = vadd.f32 %v5378, 0.0
        %v5411 = vadd.f32 %v5379, 0.0
        %v5412 = vadd.f32 %v5380, 0.0
        %v5413 = vadd.f32 %v5381, 0.0
        %v5414 = vadd.f32 %v5382, 0.0
        %v5415 = vadd.f32 %v5383, 0.0
        %v5416 = vadd.f32 %v5384, 0.0
        %v5417 = vadd.f32 %v5385, 0.0
        %v5418 = vadd.f32 %v5386, 0.0
        %v5419 = vadd.f32 %v5387, 0.0
        %v5420 = vadd.f32 %v5388, 0.0
        %v5421 = vadd.f32 %v5389, 0.0
        %v5422 = vadd.f32 %v5390, 0.0
        %v5423 = vadd.f32 %v5391, 0.0
        %v5424 = vadd.f32 %v5392, 0.0
        %v5425 = vadd.f32 %v5393, 0.0
        %v5426 = vadd.f32 %v5394, 0.0
        %v5427 = vadd.f32 %v5395, 0.0
        %v5428 = vadd.f32 %v5396, 0.0
        %v5429 = vadd.f32 %v5397, 0.0
        %v5430 = vadd.f32 %v5398, 0.0
        %v5431 = vadd.f32 %v5399, 0.0
        %v5432 = vadd.f32 %v5400, 0.0
        %v5433 = vadd.f32 %v5401, 0.0
        %v5434 = vadd.f32 %v5402, 0.0
        %v5435 = vadd.f32 %v5403, 0.0
        %v5436 = vadd.f32 %v5404, 0.0
        %v5437 = vadd.f32 %v5405, 0.0
        %v5438 = vadd.f32 %v5406, 0.0
        %v5439 = vadd.f32 %v5407, 0.0
        %v5440 = vld [vmem:[#allocation2 + $0x3] sm:$0xff]
        %v5441 = vld [vmem:[#allocation2 + $0xb] sm:$0xff]
        %v5442 = vld [vmem:[#allocation2 + $0x1b] sm:$0xff]
        %v5443 = vld [vmem:[#allocation2 + $0x23] sm:$0xff]
        %v5444 = vld [vmem:[#allocation2 + $0x33] sm:$0xff]
        %v5445 = vld [vmem:[#allocation2 + $0x3b] sm:$0xff]
        %v5446 = vld [vmem:[#allocation2 + $0x4b] sm:$0xff]
        %v5447 = vld [vmem:[#allocation2 + $0x53] sm:$0xff]
        %v5448 = vld [vmem:[#allocation2 + $0x63] sm:$0xff]
        %v5449 = vld [vmem:[#allocation2 + $0x6b] sm:$0xff]
        %v5450 = vld [vmem:[#allocation2 + $0x7b] sm:$0xff]
        %v5451 = vld [vmem:[#allocation2 + $0x83] sm:$0xff]
        %v5452 = vld [vmem:[#allocation2 + $0x93] sm:$0xff]
        %v5453 = vld [vmem:[#allocation2 + $0x9b] sm:$0xff]
        %v5454 = vld [vmem:[#allocation2 + $0xab] sm:$0xff]
        %v5455 = vld [vmem:[#allocation2 + $0xb3] sm:$0xff]
        %v5456 = vld [vmem:[#allocation2 + $0xc3] sm:$0xff]
        %v5457 = vld [vmem:[#allocation2 + $0xcb] sm:$0xff]
        %v5458 = vld [vmem:[#allocation2 + $0xdb] sm:$0xff]
        %v5459 = vld [vmem:[#allocation2 + $0xe3] sm:$0xff]
        %v5460 = vld [vmem:[#allocation2 + $0xf3] sm:$0xff]
        %v5461 = vld [vmem:[#allocation2 + $0xfb] sm:$0xff]
        %v5462 = vld [vmem:[#allocation2 + $0x10b] sm:$0xff]
        %v5463 = vld [vmem:[#allocation2 + $0x113] sm:$0xff]
        %v5464 = vld [vmem:[#allocation2 + $0x123] sm:$0xff]
        %v5465 = vld [vmem:[#allocation2 + $0x12b] sm:$0xff]
        %v5466 = vld [vmem:[#allocation2 + $0x13b] sm:$0xff]
        %v5467 = vld [vmem:[#allocation2 + $0x143] sm:$0xff]
        %v5468 = vld [vmem:[#allocation2 + $0x153] sm:$0xff]
        %v5469 = vld [vmem:[#allocation2 + $0x15b] sm:$0xff]
        %v5470 = vld [vmem:[#allocation2 + $0x16b] sm:$0xff]
        %v5471 = vld [vmem:[#allocation2 + $0x173] sm:$0xff]
        %v5472 = vld [vmem:[#allocation11 + $0x1] sm:$0x1]
        %v5473 = vlaneseq
        %v5474 = vshrl.u32 %v5473, 7
        %v5475 = vsub.s32 0, %v5474
        %v5476 = vrot.slane %v5472, %v5475
        %v5477 = vmul.f32 %v5440, %v5476
        %v5478 = vmul.f32 %v5441, %v5476
        %v5479 = vmul.f32 %v5442, %v5476
        %v5480 = vmul.f32 %v5443, %v5476
        %v5481 = vmul.f32 %v5444, %v5476
        %v5482 = vmul.f32 %v5445, %v5476
        %v5483 = vmul.f32 %v5446, %v5476
        %v5484 = vmul.f32 %v5447, %v5476
        %v5485 = vmul.f32 %v5448, %v5476
        %v5486 = vmul.f32 %v5449, %v5476
        %v5487 = vmul.f32 %v5450, %v5476
        %v5488 = vmul.f32 %v5451, %v5476
        %v5489 = vmul.f32 %v5452, %v5476
        %v5490 = vmul.f32 %v5453, %v5476
        %v5491 = vmul.f32 %v5454, %v5476
        %v5492 = vmul.f32 %v5455, %v5476
        %v5493 = vmul.f32 %v5456, %v5476
        %v5494 = vmul.f32 %v5457, %v5476
        %v5495 = vmul.f32 %v5458, %v5476
        %v5496 = vmul.f32 %v5459, %v5476
        %v5497 = vmul.f32 %v5460, %v5476
        %v5498 = vmul.f32 %v5461, %v5476
        %v5499 = vmul.f32 %v5462, %v5476
        %v5500 = vmul.f32 %v5463, %v5476
        %v5501 = vmul.f32 %v5464, %v5476
        %v5502 = vmul.f32 %v5465, %v5476
        %v5503 = vmul.f32 %v5466, %v5476
        %v5504 = vmul.f32 %v5467, %v5476
        %v5505 = vmul.f32 %v5468, %v5476
        %v5506 = vmul.f32 %v5469, %v5476
        %v5507 = vmul.f32 %v5470, %v5476
        %v5508 = vmul.f32 %v5471, %v5476
        %v5509 = vadd.f32 %v5408, %v5477
        %v5510 = vadd.f32 %v5409, %v5478
        %v5511 = vadd.f32 %v5410, %v5479
        %v5512 = vadd.f32 %v5411, %v5480
        %v5513 = vadd.f32 %v5412, %v5481
        %v5514 = vadd.f32 %v5413, %v5482
        %v5515 = vadd.f32 %v5414, %v5483
        %v5516 = vadd.f32 %v5415, %v5484
        %v5517 = vadd.f32 %v5416, %v5485
        %v5518 = vadd.f32 %v5417, %v5486
        %v5519 = vadd.f32 %v5418, %v5487
        %v5520 = vadd.f32 %v5419, %v5488
        %v5521 = vadd.f32 %v5420, %v5489
        %v5522 = vadd.f32 %v5421, %v5490
        %v5523 = vadd.f32 %v5422, %v5491
        %v5524 = vadd.f32 %v5423, %v5492
        %v5525 = vadd.f32 %v5424, %v5493
        %v5526 = vadd.f32 %v5425, %v5494
        %v5527 = vadd.f32 %v5426, %v5495
        %v5528 = vadd.f32 %v5427, %v5496
        %v5529 = vadd.f32 %v5428, %v5497
        %v5530 = vadd.f32 %v5429, %v5498
        %v5531 = vadd.f32 %v5430, %v5499
        %v5532 = vadd.f32 %v5431, %v5500
        %v5533 = vadd.f32 %v5432, %v5501
        %v5534 = vadd.f32 %v5433, %v5502
        %v5535 = vadd.f32 %v5434, %v5503
        %v5536 = vadd.f32 %v5435, %v5504
        %v5537 = vadd.f32 %v5436, %v5505
        %v5538 = vadd.f32 %v5437, %v5506
        %v5539 = vadd.f32 %v5438, %v5507
        %v5540 = vadd.f32 %v5439, %v5508
        %v5541 = vld [vmem:[#allocation2 + $0x6] sm:$0xff]
        %v5542 = vld [vmem:[#allocation2 + $0xe] sm:$0xff]
        %v5543 = vld [vmem:[#allocation2 + $0x1e] sm:$0xff]
        %v5544 = vld [vmem:[#allocation2 + $0x26] sm:$0xff]
        %v5545 = vld [vmem:[#allocation2 + $0x36] sm:$0xff]
        %v5546 = vld [vmem:[#allocation2 + $0x3e] sm:$0xff]
        %v5547 = vld [vmem:[#allocation2 + $0x4e] sm:$0xff]
        %v5548 = vld [vmem:[#allocation2 + $0x56] sm:$0xff]
        %v5549 = vld [vmem:[#allocation2 + $0x66] sm:$0xff]
        %v5550 = vld [vmem:[#allocation2 + $0x6e] sm:$0xff]
        %v5551 = vld [vmem:[#allocation2 + $0x7e] sm:$0xff]
        %v5552 = vld [vmem:[#allocation2 + $0x86] sm:$0xff]
        %v5553 = vld [vmem:[#allocation2 + $0x96] sm:$0xff]
        %v5554 = vld [vmem:[#allocation2 + $0x9e] sm:$0xff]
        %v5555 = vld [vmem:[#allocation2 + $0xae] sm:$0xff]
        %v5556 = vld [vmem:[#allocation2 + $0xb6] sm:$0xff]
        %v5557 = vld [vmem:[#allocation2 + $0xc6] sm:$0xff]
        %v5558 = vld [vmem:[#allocation2 + $0xce] sm:$0xff]
        %v5559 = vld [vmem:[#allocation2 + $0xde] sm:$0xff]
        %v5560 = vld [vmem:[#allocation2 + $0xe6] sm:$0xff]
        %v5561 = vld [vmem:[#allocation2 + $0xf6] sm:$0xff]
        %v5562 = vld [vmem:[#allocation2 + $0xfe] sm:$0xff]
        %v5563 = vld [vmem:[#allocation2 + $0x10e] sm:$0xff]
        %v5564 = vld [vmem:[#allocation2 + $0x116] sm:$0xff]
        %v5565 = vld [vmem:[#allocation2 + $0x126] sm:$0xff]
        %v5566 = vld [vmem:[#allocation2 + $0x12e] sm:$0xff]
        %v5567 = vld [vmem:[#allocation2 + $0x13e] sm:$0xff]
        %v5568 = vld [vmem:[#allocation2 + $0x146] sm:$0xff]
        %v5569 = vld [vmem:[#allocation2 + $0x156] sm:$0xff]
        %v5570 = vld [vmem:[#allocation2 + $0x15e] sm:$0xff]
        %v5571 = vld [vmem:[#allocation2 + $0x16e] sm:$0xff]
        %v5572 = vld [vmem:[#allocation2 + $0x176] sm:$0xff]
        %v5573 = vld [vmem:[#allocation11 + $0x2] sm:$0x1]
        %v5574 = vlaneseq
        %v5575 = vshrl.u32 %v5574, 7
        %v5576 = vsub.s32 0, %v5575
        %v5577 = vrot.slane %v5573, %v5576
        %v5578 = vmul.f32 %v5541, %v5577
        %v5579 = vmul.f32 %v5542, %v5577
        %v5580 = vmul.f32 %v5543, %v5577
        %v5581 = vmul.f32 %v5544, %v5577
        %v5582 = vmul.f32 %v5545, %v5577
        %v5583 = vmul.f32 %v5546, %v5577
        %v5584 = vmul.f32 %v5547, %v5577
        %v5585 = vmul.f32 %v5548, %v5577
        %v5586 = vmul.f32 %v5549, %v5577
        %v5587 = vmul.f32 %v5550, %v5577
        %v5588 = vmul.f32 %v5551, %v5577
        %v5589 = vmul.f32 %v5552, %v5577
        %v5590 = vmul.f32 %v5553, %v5577
        %v5591 = vmul.f32 %v5554, %v5577
        %v5592 = vmul.f32 %v5555, %v5577
        %v5593 = vmul.f32 %v5556, %v5577
        %v5594 = vmul.f32 %v5557, %v5577
        %v5595 = vmul.f32 %v5558, %v5577
        %v5596 = vmul.f32 %v5559, %v5577
        %v5597 = vmul.f32 %v5560, %v5577
        %v5598 = vmul.f32 %v5561, %v5577
        %v5599 = vmul.f32 %v5562, %v5577
        %v5600 = vmul.f32 %v5563, %v5577
        %v5601 = vmul.f32 %v5564, %v5577
        %v5602 = vmul.f32 %v5565, %v5577
        %v5603 = vmul.f32 %v5566, %v5577
        %v5604 = vmul.f32 %v5567, %v5577
        %v5605 = vmul.f32 %v5568, %v5577
        %v5606 = vmul.f32 %v5569, %v5577
        %v5607 = vmul.f32 %v5570, %v5577
        %v5608 = vmul.f32 %v5571, %v5577
        %v5609 = vmul.f32 %v5572, %v5577
        %v5610 = vadd.f32 %v5509, %v5578
        %v5611 = vadd.f32 %v5510, %v5579
        %v5612 = vadd.f32 %v5511, %v5580
        %v5613 = vadd.f32 %v5512, %v5581
        %v5614 = vadd.f32 %v5513, %v5582
        %v5615 = vadd.f32 %v5514, %v5583
        %v5616 = vadd.f32 %v5515, %v5584
        %v5617 = vadd.f32 %v5516, %v5585
        %v5618 = vadd.f32 %v5517, %v5586
        %v5619 = vadd.f32 %v5518, %v5587
        %v5620 = vadd.f32 %v5519, %v5588
        %v5621 = vadd.f32 %v5520, %v5589
        %v5622 = vadd.f32 %v5521, %v5590
        %v5623 = vadd.f32 %v5522, %v5591
        %v5624 = vadd.f32 %v5523, %v5592
        %v5625 = vadd.f32 %v5524, %v5593
        %v5626 = vadd.f32 %v5525, %v5594
        %v5627 = vadd.f32 %v5526, %v5595
        %v5628 = vadd.f32 %v5527, %v5596
        %v5629 = vadd.f32 %v5528, %v5597
        %v5630 = vadd.f32 %v5529, %v5598
        %v5631 = vadd.f32 %v5530, %v5599
        %v5632 = vadd.f32 %v5531, %v5600
        %v5633 = vadd.f32 %v5532, %v5601
        %v5634 = vadd.f32 %v5533, %v5602
        %v5635 = vadd.f32 %v5534, %v5603
        %v5636 = vadd.f32 %v5535, %v5604
        %v5637 = vadd.f32 %v5536, %v5605
        %v5638 = vadd.f32 %v5537, %v5606
        %v5639 = vadd.f32 %v5538, %v5607
        %v5640 = vadd.f32 %v5539, %v5608
        %v5641 = vadd.f32 %v5540, %v5609
        %v5642 = vld [vmem:[#allocation2 + $0x180] sm:$0xff]
        %v5643 = vld [vmem:[#allocation2 + $0x188] sm:$0xff]
        %v5644 = vld [vmem:[#allocation2 + $0x198] sm:$0xff]
        %v5645 = vld [vmem:[#allocation2 + $0x1a0] sm:$0xff]
        %v5646 = vld [vmem:[#allocation2 + $0x1b0] sm:$0xff]
        %v5647 = vld [vmem:[#allocation2 + $0x1b8] sm:$0xff]
        %v5648 = vld [vmem:[#allocation11 + $0x3] sm:$0x1]
        %v5649 = vlaneseq
        %v5650 = vshrl.u32 %v5649, 7
        %v5651 = vsub.s32 0, %v5650
        %v5652 = vrot.slane %v5648, %v5651
        %v5653 = vmul.f32 %v5345, %v5652
        %v5654 = vmul.f32 %v5346, %v5652
        %v5655 = vmul.f32 %v5347, %v5652
        %v5656 = vmul.f32 %v5348, %v5652
        %v5657 = vmul.f32 %v5349, %v5652
        %v5658 = vmul.f32 %v5350, %v5652
        %v5659 = vmul.f32 %v5351, %v5652
        %v5660 = vmul.f32 %v5352, %v5652
        %v5661 = vmul.f32 %v5353, %v5652
        %v5662 = vmul.f32 %v5354, %v5652
        %v5663 = vmul.f32 %v5355, %v5652
        %v5664 = vmul.f32 %v5356, %v5652
        %v5665 = vmul.f32 %v5357, %v5652
        %v5666 = vmul.f32 %v5358, %v5652
        %v5667 = vmul.f32 %v5359, %v5652
        %v5668 = vmul.f32 %v5360, %v5652
        %v5669 = vmul.f32 %v5361, %v5652
        %v5670 = vmul.f32 %v5362, %v5652
        %v5671 = vmul.f32 %v5363, %v5652
        %v5672 = vmul.f32 %v5364, %v5652
        %v5673 = vmul.f32 %v5365, %v5652
        %v5674 = vmul.f32 %v5366, %v5652
        %v5675 = vmul.f32 %v5367, %v5652
        %v5676 = vmul.f32 %v5368, %v5652
        %v5677 = vmul.f32 %v5369, %v5652
        %v5678 = vmul.f32 %v5370, %v5652
        %v5679 = vmul.f32 %v5642, %v5652
        %v5680 = vmul.f32 %v5643, %v5652
        %v5681 = vmul.f32 %v5644, %v5652
        %v5682 = vmul.f32 %v5645, %v5652
        %v5683 = vmul.f32 %v5646, %v5652
        %v5684 = vmul.f32 %v5647, %v5652
        %v5685 = vadd.f32 %v5610, %v5653
        %v5686 = vadd.f32 %v5611, %v5654
        %v5687 = vadd.f32 %v5612, %v5655
        %v5688 = vadd.f32 %v5613, %v5656
        %v5689 = vadd.f32 %v5614, %v5657
        %v5690 = vadd.f32 %v5615, %v5658
        %v5691 = vadd.f32 %v5616, %v5659
        %v5692 = vadd.f32 %v5617, %v5660
        %v5693 = vadd.f32 %v5618, %v5661
        %v5694 = vadd.f32 %v5619, %v5662
        %v5695 = vadd.f32 %v5620, %v5663
        %v5696 = vadd.f32 %v5621, %v5664
        %v5697 = vadd.f32 %v5622, %v5665
        %v5698 = vadd.f32 %v5623, %v5666
        %v5699 = vadd.f32 %v5624, %v5667
        %v5700 = vadd.f32 %v5625, %v5668
        %v5701 = vadd.f32 %v5626, %v5669
        %v5702 = vadd.f32 %v5627, %v5670
        %v5703 = vadd.f32 %v5628, %v5671
        %v5704 = vadd.f32 %v5629, %v5672
        %v5705 = vadd.f32 %v5630, %v5673
        %v5706 = vadd.f32 %v5631, %v5674
        %v5707 = vadd.f32 %v5632, %v5675
        %v5708 = vadd.f32 %v5633, %v5676
        %v5709 = vadd.f32 %v5634, %v5677
        %v5710 = vadd.f32 %v5635, %v5678
        %v5711 = vadd.f32 %v5636, %v5679
        %v5712 = vadd.f32 %v5637, %v5680
        %v5713 = vadd.f32 %v5638, %v5681
        %v5714 = vadd.f32 %v5639, %v5682
        %v5715 = vadd.f32 %v5640, %v5683
        %v5716 = vadd.f32 %v5641, %v5684
        %v5717 = vld [vmem:[#allocation2 + $0x183] sm:$0xff]
        %v5718 = vld [vmem:[#allocation2 + $0x18b] sm:$0xff]
        %v5719 = vld [vmem:[#allocation2 + $0x19b] sm:$0xff]
        %v5720 = vld [vmem:[#allocation2 + $0x1a3] sm:$0xff]
        %v5721 = vld [vmem:[#allocation2 + $0x1b3] sm:$0xff]
        %v5722 = vld [vmem:[#allocation2 + $0x1bb] sm:$0xff]
        %v5723 = vld [vmem:[#allocation11 + $0x4] sm:$0x1]
        %v5724 = vlaneseq
        %v5725 = vshrl.u32 %v5724, 7
        %v5726 = vsub.s32 0, %v5725
        %v5727 = vrot.slane %v5723, %v5726
        %v5728 = vmul.f32 %v5446, %v5727
        %v5729 = vmul.f32 %v5447, %v5727
        %v5730 = vmul.f32 %v5448, %v5727
        %v5731 = vmul.f32 %v5449, %v5727
        %v5732 = vmul.f32 %v5450, %v5727
        %v5733 = vmul.f32 %v5451, %v5727
        %v5734 = vmul.f32 %v5452, %v5727
        %v5735 = vmul.f32 %v5453, %v5727
        %v5736 = vmul.f32 %v5454, %v5727
        %v5737 = vmul.f32 %v5455, %v5727
        %v5738 = vmul.f32 %v5456, %v5727
        %v5739 = vmul.f32 %v5457, %v5727
        %v5740 = vmul.f32 %v5458, %v5727
        %v5741 = vmul.f32 %v5459, %v5727
        %v5742 = vmul.f32 %v5460, %v5727
        %v5743 = vmul.f32 %v5461, %v5727
        %v5744 = vmul.f32 %v5462, %v5727
        %v5745 = vmul.f32 %v5463, %v5727
        %v5746 = vmul.f32 %v5464, %v5727
        %v5747 = vmul.f32 %v5465, %v5727
        %v5748 = vmul.f32 %v5466, %v5727
        %v5749 = vmul.f32 %v5467, %v5727
        %v5750 = vmul.f32 %v5468, %v5727
        %v5751 = vmul.f32 %v5469, %v5727
        %v5752 = vmul.f32 %v5470, %v5727
        %v5753 = vmul.f32 %v5471, %v5727
        %v5754 = vmul.f32 %v5717, %v5727
        %v5755 = vmul.f32 %v5718, %v5727
        %v5756 = vmul.f32 %v5719, %v5727
        %v5757 = vmul.f32 %v5720, %v5727
        %v5758 = vmul.f32 %v5721, %v5727
        %v5759 = vmul.f32 %v5722, %v5727
        %v5760 = vadd.f32 %v5685, %v5728
        %v5761 = vadd.f32 %v5686, %v5729
        %v5762 = vadd.f32 %v5687, %v5730
        %v5763 = vadd.f32 %v5688, %v5731
        %v5764 = vadd.f32 %v5689, %v5732
        %v5765 = vadd.f32 %v5690, %v5733
        %v5766 = vadd.f32 %v5691, %v5734
        %v5767 = vadd.f32 %v5692, %v5735
        %v5768 = vadd.f32 %v5693, %v5736
        %v5769 = vadd.f32 %v5694, %v5737
        %v5770 = vadd.f32 %v5695, %v5738
        %v5771 = vadd.f32 %v5696, %v5739
        %v5772 = vadd.f32 %v5697, %v5740
        %v5773 = vadd.f32 %v5698, %v5741
        %v5774 = vadd.f32 %v5699, %v5742
        %v5775 = vadd.f32 %v5700, %v5743
        %v5776 = vadd.f32 %v5701, %v5744
        %v5777 = vadd.f32 %v5702, %v5745
        %v5778 = vadd.f32 %v5703, %v5746
        %v5779 = vadd.f32 %v5704, %v5747
        %v5780 = vadd.f32 %v5705, %v5748
        %v5781 = vadd.f32 %v5706, %v5749
        %v5782 = vadd.f32 %v5707, %v5750
        %v5783 = vadd.f32 %v5708, %v5751
        %v5784 = vadd.f32 %v5709, %v5752
        %v5785 = vadd.f32 %v5710, %v5753
        %v5786 = vadd.f32 %v5711, %v5754
        %v5787 = vadd.f32 %v5712, %v5755
        %v5788 = vadd.f32 %v5713, %v5756
        %v5789 = vadd.f32 %v5714, %v5757
        %v5790 = vadd.f32 %v5715, %v5758
        %v5791 = vadd.f32 %v5716, %v5759
        %v5792 = vld [vmem:[#allocation2 + $0x186] sm:$0xff]
        %v5793 = vld [vmem:[#allocation2 + $0x18e] sm:$0xff]
        %v5794 = vld [vmem:[#allocation2 + $0x19e] sm:$0xff]
        %v5795 = vld [vmem:[#allocation2 + $0x1a6] sm:$0xff]
        %v5796 = vld [vmem:[#allocation2 + $0x1b6] sm:$0xff]
        %v5797 = vld [vmem:[#allocation2 + $0x1be] sm:$0xff]
        %v5798 = vld [vmem:[#allocation11 + $0x5] sm:$0x1]
        %v5799 = vlaneseq
        %v5800 = vshrl.u32 %v5799, 7
        %v5801 = vsub.s32 0, %v5800
        %v5802 = vrot.slane %v5798, %v5801
        %v5803 = vmul.f32 %v5547, %v5802
        %v5804 = vmul.f32 %v5548, %v5802
        %v5805 = vmul.f32 %v5549, %v5802
        %v5806 = vmul.f32 %v5550, %v5802
        %v5807 = vmul.f32 %v5551, %v5802
        %v5808 = vmul.f32 %v5552, %v5802
        %v5809 = vmul.f32 %v5553, %v5802
        %v5810 = vmul.f32 %v5554, %v5802
        %v5811 = vmul.f32 %v5555, %v5802
        %v5812 = vmul.f32 %v5556, %v5802
        %v5813 = vmul.f32 %v5557, %v5802
        %v5814 = vmul.f32 %v5558, %v5802
        %v5815 = vmul.f32 %v5559, %v5802
        %v5816 = vmul.f32 %v5560, %v5802
        %v5817 = vmul.f32 %v5561, %v5802
        %v5818 = vmul.f32 %v5562, %v5802
        %v5819 = vmul.f32 %v5563, %v5802
        %v5820 = vmul.f32 %v5564, %v5802
        %v5821 = vmul.f32 %v5565, %v5802
        %v5822 = vmul.f32 %v5566, %v5802
        %v5823 = vmul.f32 %v5567, %v5802
        %v5824 = vmul.f32 %v5568, %v5802
        %v5825 = vmul.f32 %v5569, %v5802
        %v5826 = vmul.f32 %v5570, %v5802
        %v5827 = vmul.f32 %v5571, %v5802
        %v5828 = vmul.f32 %v5572, %v5802
        %v5829 = vmul.f32 %v5792, %v5802
        %v5830 = vmul.f32 %v5793, %v5802
        %v5831 = vmul.f32 %v5794, %v5802
        %v5832 = vmul.f32 %v5795, %v5802
        %v5833 = vmul.f32 %v5796, %v5802
        %v5834 = vmul.f32 %v5797, %v5802
        %v5835 = vadd.f32 %v5760, %v5803
        %v5836 = vadd.f32 %v5761, %v5804
        %v5837 = vadd.f32 %v5762, %v5805
        %v5838 = vadd.f32 %v5763, %v5806
        %v5839 = vadd.f32 %v5764, %v5807
        %v5840 = vadd.f32 %v5765, %v5808
        %v5841 = vadd.f32 %v5766, %v5809
        %v5842 = vadd.f32 %v5767, %v5810
        %v5843 = vadd.f32 %v5768, %v5811
        %v5844 = vadd.f32 %v5769, %v5812
        %v5845 = vadd.f32 %v5770, %v5813
        %v5846 = vadd.f32 %v5771, %v5814
        %v5847 = vadd.f32 %v5772, %v5815
        %v5848 = vadd.f32 %v5773, %v5816
        %v5849 = vadd.f32 %v5774, %v5817
        %v5850 = vadd.f32 %v5775, %v5818
        %v5851 = vadd.f32 %v5776, %v5819
        %v5852 = vadd.f32 %v5777, %v5820
        %v5853 = vadd.f32 %v5778, %v5821
        %v5854 = vadd.f32 %v5779, %v5822
        %v5855 = vadd.f32 %v5780, %v5823
        %v5856 = vadd.f32 %v5781, %v5824
        %v5857 = vadd.f32 %v5782, %v5825
        %v5858 = vadd.f32 %v5783, %v5826
        %v5859 = vadd.f32 %v5784, %v5827
        %v5860 = vadd.f32 %v5785, %v5828
        %v5861 = vadd.f32 %v5786, %v5829
        %v5862 = vadd.f32 %v5787, %v5830
        %v5863 = vadd.f32 %v5788, %v5831
        %v5864 = vadd.f32 %v5789, %v5832
        %v5865 = vadd.f32 %v5790, %v5833
        %v5866 = vadd.f32 %v5791, %v5834
        %v5867 = vld [vmem:[#allocation2 + $0x1c8] sm:$0xff]
        %v5868 = vld [vmem:[#allocation2 + $0x1d0] sm:$0xff]
        %v5869 = vld [vmem:[#allocation2 + $0x1e0] sm:$0xff]
        %v5870 = vld [vmem:[#allocation2 + $0x1e8] sm:$0xff]
        %v5871 = vld [vmem:[#allocation2 + $0x1f8] sm:$0xff]
        %v5872 = vld [vmem:[#allocation2 + $0x200] sm:$0xff]
        %v5873 = vld [vmem:[#allocation11 + $0x6] sm:$0x1]
        %v5874 = vlaneseq
        %v5875 = vshrl.u32 %v5874, 7
        %v5876 = vsub.s32 0, %v5875
        %v5877 = vrot.slane %v5873, %v5876
        %v5878 = vmul.f32 %v5351, %v5877
        %v5879 = vmul.f32 %v5352, %v5877
        %v5880 = vmul.f32 %v5353, %v5877
        %v5881 = vmul.f32 %v5354, %v5877
        %v5882 = vmul.f32 %v5355, %v5877
        %v5883 = vmul.f32 %v5356, %v5877
        %v5884 = vmul.f32 %v5357, %v5877
        %v5885 = vmul.f32 %v5358, %v5877
        %v5886 = vmul.f32 %v5359, %v5877
        %v5887 = vmul.f32 %v5360, %v5877
        %v5888 = vmul.f32 %v5361, %v5877
        %v5889 = vmul.f32 %v5362, %v5877
        %v5890 = vmul.f32 %v5363, %v5877
        %v5891 = vmul.f32 %v5364, %v5877
        %v5892 = vmul.f32 %v5365, %v5877
        %v5893 = vmul.f32 %v5366, %v5877
        %v5894 = vmul.f32 %v5367, %v5877
        %v5895 = vmul.f32 %v5368, %v5877
        %v5896 = vmul.f32 %v5369, %v5877
        %v5897 = vmul.f32 %v5370, %v5877
        %v5898 = vmul.f32 %v5642, %v5877
        %v5899 = vmul.f32 %v5643, %v5877
        %v5900 = vmul.f32 %v5644, %v5877
        %v5901 = vmul.f32 %v5645, %v5877
        %v5902 = vmul.f32 %v5646, %v5877
        %v5903 = vmul.f32 %v5647, %v5877
        %v5904 = vmul.f32 %v5867, %v5877
        %v5905 = vmul.f32 %v5868, %v5877
        %v5906 = vmul.f32 %v5869, %v5877
        %v5907 = vmul.f32 %v5870, %v5877
        %v5908 = vmul.f32 %v5871, %v5877
        %v5909 = vmul.f32 %v5872, %v5877
        %v5910 = vadd.f32 %v5835, %v5878
        %v5911 = vadd.f32 %v5836, %v5879
        %v5912 = vadd.f32 %v5837, %v5880
        %v5913 = vadd.f32 %v5838, %v5881
        %v5914 = vadd.f32 %v5839, %v5882
        %v5915 = vadd.f32 %v5840, %v5883
        %v5916 = vadd.f32 %v5841, %v5884
        %v5917 = vadd.f32 %v5842, %v5885
        %v5918 = vadd.f32 %v5843, %v5886
        %v5919 = vadd.f32 %v5844, %v5887
        %v5920 = vadd.f32 %v5845, %v5888
        %v5921 = vadd.f32 %v5846, %v5889
        %v5922 = vadd.f32 %v5847, %v5890
        %v5923 = vadd.f32 %v5848, %v5891
        %v5924 = vadd.f32 %v5849, %v5892
        %v5925 = vadd.f32 %v5850, %v5893
        %v5926 = vadd.f32 %v5851, %v5894
        %v5927 = vadd.f32 %v5852, %v5895
        %v5928 = vadd.f32 %v5853, %v5896
        %v5929 = vadd.f32 %v5854, %v5897
        %v5930 = vadd.f32 %v5855, %v5898
        %v5931 = vadd.f32 %v5856, %v5899
        %v5932 = vadd.f32 %v5857, %v5900
        %v5933 = vadd.f32 %v5858, %v5901
        %v5934 = vadd.f32 %v5859, %v5902
        %v5935 = vadd.f32 %v5860, %v5903
        %v5936 = vadd.f32 %v5861, %v5904
        %v5937 = vadd.f32 %v5862, %v5905
        %v5938 = vadd.f32 %v5863, %v5906
        %v5939 = vadd.f32 %v5864, %v5907
        %v5940 = vadd.f32 %v5865, %v5908
        %v5941 = vadd.f32 %v5866, %v5909
        %v5942 = vld [vmem:[#allocation2 + $0x1cb] sm:$0xff]
        %v5943 = vld [vmem:[#allocation2 + $0x1d3] sm:$0xff]
        %v5944 = vld [vmem:[#allocation2 + $0x1e3] sm:$0xff]
        %v5945 = vld [vmem:[#allocation2 + $0x1eb] sm:$0xff]
        %v5946 = vld [vmem:[#allocation2 + $0x1fb] sm:$0xff]
        %v5947 = vld [vmem:[#allocation2 + $0x203] sm:$0xff]
        %v5948 = vld [vmem:[#allocation11 + $0x7] sm:$0x1]
        %v5949 = vlaneseq
        %v5950 = vshrl.u32 %v5949, 7
        %v5951 = vsub.s32 0, %v5950
        %v5952 = vrot.slane %v5948, %v5951
        %v5953 = vmul.f32 %v5452, %v5952
        %v5954 = vmul.f32 %v5453, %v5952
        %v5955 = vmul.f32 %v5454, %v5952
        %v5956 = vmul.f32 %v5455, %v5952
        %v5957 = vmul.f32 %v5456, %v5952
        %v5958 = vmul.f32 %v5457, %v5952
        %v5959 = vmul.f32 %v5458, %v5952
        %v5960 = vmul.f32 %v5459, %v5952
        %v5961 = vmul.f32 %v5460, %v5952
        %v5962 = vmul.f32 %v5461, %v5952
        %v5963 = vmul.f32 %v5462, %v5952
        %v5964 = vmul.f32 %v5463, %v5952
        %v5965 = vmul.f32 %v5464, %v5952
        %v5966 = vmul.f32 %v5465, %v5952
        %v5967 = vmul.f32 %v5466, %v5952
        %v5968 = vmul.f32 %v5467, %v5952
        %v5969 = vmul.f32 %v5468, %v5952
        %v5970 = vmul.f32 %v5469, %v5952
        %v5971 = vmul.f32 %v5470, %v5952
        %v5972 = vmul.f32 %v5471, %v5952
        %v5973 = vmul.f32 %v5717, %v5952
        %v5974 = vmul.f32 %v5718, %v5952
        %v5975 = vmul.f32 %v5719, %v5952
        %v5976 = vmul.f32 %v5720, %v5952
        %v5977 = vmul.f32 %v5721, %v5952
        %v5978 = vmul.f32 %v5722, %v5952
        %v5979 = vmul.f32 %v5942, %v5952
        %v5980 = vmul.f32 %v5943, %v5952
        %v5981 = vmul.f32 %v5944, %v5952
        %v5982 = vmul.f32 %v5945, %v5952
        %v5983 = vmul.f32 %v5946, %v5952
        %v5984 = vmul.f32 %v5947, %v5952
        %v5985 = vadd.f32 %v5910, %v5953
        %v5986 = vadd.f32 %v5911, %v5954
        %v5987 = vadd.f32 %v5912, %v5955
        %v5988 = vadd.f32 %v5913, %v5956
        %v5989 = vadd.f32 %v5914, %v5957
        %v5990 = vadd.f32 %v5915, %v5958
        %v5991 = vadd.f32 %v5916, %v5959
        %v5992 = vadd.f32 %v5917, %v5960
        %v5993 = vadd.f32 %v5918, %v5961
        %v5994 = vadd.f32 %v5919, %v5962
        %v5995 = vadd.f32 %v5920, %v5963
        %v5996 = vadd.f32 %v5921, %v5964
        %v5997 = vadd.f32 %v5922, %v5965
        %v5998 = vadd.f32 %v5923, %v5966
        %v5999 = vadd.f32 %v5924, %v5967
        %v6000 = vadd.f32 %v5925, %v5968
        %v6001 = vadd.f32 %v5926, %v5969
        %v6002 = vadd.f32 %v5927, %v5970
        %v6003 = vadd.f32 %v5928, %v5971
        %v6004 = vadd.f32 %v5929, %v5972
        %v6005 = vadd.f32 %v5930, %v5973
        %v6006 = vadd.f32 %v5931, %v5974
        %v6007 = vadd.f32 %v5932, %v5975
        %v6008 = vadd.f32 %v5933, %v5976
        %v6009 = vadd.f32 %v5934, %v5977
        %v6010 = vadd.f32 %v5935, %v5978
        %v6011 = vadd.f32 %v5936, %v5979
        %v6012 = vadd.f32 %v5937, %v5980
        %v6013 = vadd.f32 %v5938, %v5981
        %v6014 = vadd.f32 %v5939, %v5982
        %v6015 = vadd.f32 %v5940, %v5983
        %v6016 = vadd.f32 %v5941, %v5984
        %v6017 = vld [vmem:[#allocation2 + $0x1ce] sm:$0xff]
        %v6018 = vld [vmem:[#allocation2 + $0x1d6] sm:$0xff]
        %v6019 = vld [vmem:[#allocation2 + $0x1e6] sm:$0xff]
        %v6020 = vld [vmem:[#allocation2 + $0x1ee] sm:$0xff]
        %v6021 = vld [vmem:[#allocation2 + $0x1fe] sm:$0xff]
        %v6022 = vld [vmem:[#allocation2 + $0x206] sm:$0xff]
        %v6023 = vld [vmem:[#allocation11 + $0x8] sm:$0x1]
        %v6024 = vlaneseq
        %v6025 = vshrl.u32 %v6024, 7
        %v6026 = vsub.s32 0, %v6025
        %v6027 = vrot.slane %v6023, %v6026
        %v6028 = vmul.f32 %v5553, %v6027
        %v6029 = vmul.f32 %v5554, %v6027
        %v6030 = vmul.f32 %v5555, %v6027
        %v6031 = vmul.f32 %v5556, %v6027
        %v6032 = vmul.f32 %v5557, %v6027
        %v6033 = vmul.f32 %v5558, %v6027
        %v6034 = vmul.f32 %v5559, %v6027
        %v6035 = vmul.f32 %v5560, %v6027
        %v6036 = vmul.f32 %v5561, %v6027
        %v6037 = vmul.f32 %v5562, %v6027
        %v6038 = vmul.f32 %v5563, %v6027
        %v6039 = vmul.f32 %v5564, %v6027
        %v6040 = vmul.f32 %v5565, %v6027
        %v6041 = vmul.f32 %v5566, %v6027
        %v6042 = vmul.f32 %v5567, %v6027
        %v6043 = vmul.f32 %v5568, %v6027
        %v6044 = vmul.f32 %v5569, %v6027
        %v6045 = vmul.f32 %v5570, %v6027
        %v6046 = vmul.f32 %v5571, %v6027
        %v6047 = vmul.f32 %v5572, %v6027
        %v6048 = vmul.f32 %v5792, %v6027
        %v6049 = vmul.f32 %v5793, %v6027
        %v6050 = vmul.f32 %v5794, %v6027
        %v6051 = vmul.f32 %v5795, %v6027
        %v6052 = vmul.f32 %v5796, %v6027
        %v6053 = vmul.f32 %v5797, %v6027
        %v6054 = vmul.f32 %v6017, %v6027
        %v6055 = vmul.f32 %v6018, %v6027
        %v6056 = vmul.f32 %v6019, %v6027
        %v6057 = vmul.f32 %v6020, %v6027
        %v6058 = vmul.f32 %v6021, %v6027
        %v6059 = vmul.f32 %v6022, %v6027
        %v6060 = vadd.f32 %v5985, %v6028
        %v6061 = vadd.f32 %v5986, %v6029
        %v6062 = vadd.f32 %v5987, %v6030
        %v6063 = vadd.f32 %v5988, %v6031
        %v6064 = vadd.f32 %v5989, %v6032
        %v6065 = vadd.f32 %v5990, %v6033
        %v6066 = vadd.f32 %v5991, %v6034
        %v6067 = vadd.f32 %v5992, %v6035
        %v6068 = vadd.f32 %v5993, %v6036
        %v6069 = vadd.f32 %v5994, %v6037
        %v6070 = vadd.f32 %v5995, %v6038
        %v6071 = vadd.f32 %v5996, %v6039
        %v6072 = vadd.f32 %v5997, %v6040
        %v6073 = vadd.f32 %v5998, %v6041
        %v6074 = vadd.f32 %v5999, %v6042
        %v6075 = vadd.f32 %v6000, %v6043
        %v6076 = vadd.f32 %v6001, %v6044
        %v6077 = vadd.f32 %v6002, %v6045
        %v6078 = vadd.f32 %v6003, %v6046
        %v6079 = vadd.f32 %v6004, %v6047
        %v6080 = vadd.f32 %v6005, %v6048
        %v6081 = vadd.f32 %v6006, %v6049
        %v6082 = vadd.f32 %v6007, %v6050
        %v6083 = vadd.f32 %v6008, %v6051
        %v6084 = vadd.f32 %v6009, %v6052
        %v6085 = vadd.f32 %v6010, %v6053
        %v6086 = vadd.f32 %v6011, %v6054
        %v6087 = vadd.f32 %v6012, %v6055
        %v6088 = vadd.f32 %v6013, %v6056
        %v6089 = vadd.f32 %v6014, %v6057
        %v6090 = vadd.f32 %v6015, %v6058
        %v6091 = vadd.f32 %v6016, %v6059
        %v6092 = vld [vmem:[#allocation13] sm:$0x1]
        %v6094 = vlaneseq
        %v6095 = vshrl.u32 %v6094, 7
        %v6096 = vsub.s32 0, %v6095
        %v6097 = vrot.slane %v6092, %v6096
        %v6099 = vadd.f32 %v6060, %v6097
        %v6100 = vadd.f32 %v6061, %v6097
        %v6101 = vadd.f32 %v6062, %v6097
        %v6102 = vadd.f32 %v6063, %v6097
        %v6103 = vadd.f32 %v6064, %v6097
        %v6104 = vadd.f32 %v6065, %v6097
        %v6105 = vadd.f32 %v6066, %v6097
        %v6106 = vadd.f32 %v6067, %v6097
        %v6107 = vadd.f32 %v6068, %v6097
        %v6108 = vadd.f32 %v6069, %v6097
        %v6109 = vadd.f32 %v6070, %v6097
        %v6110 = vadd.f32 %v6071, %v6097
        %v6111 = vadd.f32 %v6072, %v6097
        %v6112 = vadd.f32 %v6073, %v6097
        %v6113 = vadd.f32 %v6074, %v6097
        %v6114 = vadd.f32 %v6075, %v6097
        %v6115 = vadd.f32 %v6076, %v6097
        %v6116 = vadd.f32 %v6077, %v6097
        %v6117 = vadd.f32 %v6078, %v6097
        %v6118 = vadd.f32 %v6079, %v6097
        %v6119 = vadd.f32 %v6080, %v6097
        %v6120 = vadd.f32 %v6081, %v6097
        %v6121 = vadd.f32 %v6082, %v6097
        %v6122 = vadd.f32 %v6083, %v6097
        %v6123 = vadd.f32 %v6084, %v6097
        %v6124 = vadd.f32 %v6085, %v6097
        %v6125 = vadd.f32 %v6086, %v6097
        %v6126 = vadd.f32 %v6087, %v6097
        %v6127 = vadd.f32 %v6088, %v6097
        %v6128 = vadd.f32 %v6089, %v6097
        %v6129 = vadd.f32 %v6090, %v6097
        %v6130 = vadd.f32 %v6091, %v6097
        %v6131 = vsel %vm848, %v6099, 0.0
        %6132 = vadd.xlane.f32.xlu0 %v6131
        %v6133 = vpop.xlane.xlu0 %6132
        %v6134 = vsel %vm848, %v6100, 0.0
        %6135 = vadd.xlane.f32.xlu0 %v6134
        %v6136 = vpop.xlane.xlu0 %6135
        %v6137 = vsel %vm848, %v6101, 0.0
        %6138 = vadd.xlane.f32.xlu0 %v6137
        %v6139 = vpop.xlane.xlu0 %6138
        %v6140 = vsel %vm848, %v6102, 0.0
        %6141 = vadd.xlane.f32.xlu0 %v6140
        %v6142 = vpop.xlane.xlu0 %6141
        %v6143 = vsel %vm848, %v6103, 0.0
        %6144 = vadd.xlane.f32.xlu0 %v6143
        %v6145 = vpop.xlane.xlu0 %6144
        %v6146 = vsel %vm848, %v6104, 0.0
        %6147 = vadd.xlane.f32.xlu0 %v6146
        %v6148 = vpop.xlane.xlu0 %6147
        %v6149 = vsel %vm848, %v6105, 0.0
        %6150 = vadd.xlane.f32.xlu0 %v6149
        %v6151 = vpop.xlane.xlu0 %6150
        %v6152 = vsel %vm848, %v6106, 0.0
        %6153 = vadd.xlane.f32.xlu0 %v6152
        %v6154 = vpop.xlane.xlu0 %6153
        %v6155 = vsel %vm848, %v6107, 0.0
        %6156 = vadd.xlane.f32.xlu0 %v6155
        %v6157 = vpop.xlane.xlu0 %6156
        %v6158 = vsel %vm848, %v6108, 0.0
        %6159 = vadd.xlane.f32.xlu0 %v6158
        %v6160 = vpop.xlane.xlu0 %6159
        %v6161 = vsel %vm848, %v6109, 0.0
        %6162 = vadd.xlane.f32.xlu0 %v6161
        %v6163 = vpop.xlane.xlu0 %6162
        %v6164 = vsel %vm848, %v6110, 0.0
        %6165 = vadd.xlane.f32.xlu0 %v6164
        %v6166 = vpop.xlane.xlu0 %6165
        %v6167 = vsel %vm848, %v6111, 0.0
        %6168 = vadd.xlane.f32.xlu0 %v6167
        %v6169 = vpop.xlane.xlu0 %6168
        %v6170 = vsel %vm848, %v6112, 0.0
        %6171 = vadd.xlane.f32.xlu0 %v6170
        %v6172 = vpop.xlane.xlu0 %6171
        %v6173 = vsel %vm848, %v6113, 0.0
        %6174 = vadd.xlane.f32.xlu0 %v6173
        %v6175 = vpop.xlane.xlu0 %6174
        %v6176 = vsel %vm848, %v6114, 0.0
        %6177 = vadd.xlane.f32.xlu0 %v6176
        %v6178 = vpop.xlane.xlu0 %6177
        %v6179 = vsel %vm848, %v6115, 0.0
        %6180 = vadd.xlane.f32.xlu0 %v6179
        %v6181 = vpop.xlane.xlu0 %6180
        %v6182 = vsel %vm848, %v6116, 0.0
        %6183 = vadd.xlane.f32.xlu0 %v6182
        %v6184 = vpop.xlane.xlu0 %6183
        %v6185 = vsel %vm848, %v6117, 0.0
        %6186 = vadd.xlane.f32.xlu0 %v6185
        %v6187 = vpop.xlane.xlu0 %6186
        %v6188 = vsel %vm848, %v6118, 0.0
        %6189 = vadd.xlane.f32.xlu0 %v6188
        %v6190 = vpop.xlane.xlu0 %6189
        %v6191 = vsel %vm848, %v6119, 0.0
        %6192 = vadd.xlane.f32.xlu0 %v6191
        %v6193 = vpop.xlane.xlu0 %6192
        %v6194 = vsel %vm848, %v6120, 0.0
        %6195 = vadd.xlane.f32.xlu0 %v6194
        %v6196 = vpop.xlane.xlu0 %6195
        %v6197 = vsel %vm848, %v6121, 0.0
        %6198 = vadd.xlane.f32.xlu0 %v6197
        %v6199 = vpop.xlane.xlu0 %6198
        %v6200 = vsel %vm848, %v6122, 0.0
        %6201 = vadd.xlane.f32.xlu0 %v6200
        %v6202 = vpop.xlane.xlu0 %6201
        %v6203 = vsel %vm848, %v6123, 0.0
        %6204 = vadd.xlane.f32.xlu0 %v6203
        %v6205 = vpop.xlane.xlu0 %6204
        %v6206 = vsel %vm848, %v6124, 0.0
        %6207 = vadd.xlane.f32.xlu0 %v6206
        %v6208 = vpop.xlane.xlu0 %6207
        %v6209 = vsel %vm848, %v6125, 0.0
        %6210 = vadd.xlane.f32.xlu0 %v6209
        %v6211 = vpop.xlane.xlu0 %6210
        %v6212 = vsel %vm848, %v6126, 0.0
        %6213 = vadd.xlane.f32.xlu0 %v6212
        %v6214 = vpop.xlane.xlu0 %6213
        %v6215 = vsel %vm848, %v6127, 0.0
        %6216 = vadd.xlane.f32.xlu0 %v6215
        %v6217 = vpop.xlane.xlu0 %6216
        %v6218 = vsel %vm848, %v6128, 0.0
        %6219 = vadd.xlane.f32.xlu0 %v6218
        %v6220 = vpop.xlane.xlu0 %6219
        %v6221 = vsel %vm848, %v6129, 0.0
        %6222 = vadd.xlane.f32.xlu0 %v6221
        %v6223 = vpop.xlane.xlu0 %6222
        %v6224 = vsel %vm848, %v6130, 0.0
        %6225 = vadd.xlane.f32.xlu0 %v6224
        %v6226 = vpop.xlane.xlu0 %6225
        %v6227 = vrcp.pop 32.0
        %v6228 = vmul.f32 %v6133, %v6227
        %v6229 = vmul.f32 %v6136, %v6227
        %v6230 = vmul.f32 %v6139, %v6227
        %v6231 = vmul.f32 %v6142, %v6227
        %v6232 = vmul.f32 %v6145, %v6227
        %v6233 = vmul.f32 %v6148, %v6227
        %v6234 = vmul.f32 %v6151, %v6227
        %v6235 = vmul.f32 %v6154, %v6227
        %v6236 = vmul.f32 %v6157, %v6227
        %v6237 = vmul.f32 %v6160, %v6227
        %v6238 = vmul.f32 %v6163, %v6227
        %v6239 = vmul.f32 %v6166, %v6227
        %v6240 = vmul.f32 %v6169, %v6227
        %v6241 = vmul.f32 %v6172, %v6227
        %v6242 = vmul.f32 %v6175, %v6227
        %v6243 = vmul.f32 %v6178, %v6227
        %v6244 = vmul.f32 %v6181, %v6227
        %v6245 = vmul.f32 %v6184, %v6227
        %v6246 = vmul.f32 %v6187, %v6227
        %v6247 = vmul.f32 %v6190, %v6227
        %v6248 = vmul.f32 %v6193, %v6227
        %v6249 = vmul.f32 %v6196, %v6227
        %v6250 = vmul.f32 %v6199, %v6227
        %v6251 = vmul.f32 %v6202, %v6227
        %v6252 = vmul.f32 %v6205, %v6227
        %v6253 = vmul.f32 %v6208, %v6227
        %v6254 = vmul.f32 %v6211, %v6227
        %v6255 = vmul.f32 %v6214, %v6227
        %v6256 = vmul.f32 %v6217, %v6227
        %v6257 = vmul.f32 %v6220, %v6227
        %v6258 = vmul.f32 %v6223, %v6227
        %v6259 = vmul.f32 %v6226, %v6227
        %vm6260 = vcmask 139264
        %6261 = vst.msk [vmem:[#allocation3] sm:$0x1] %vm6260, 0.0
        %6262 = vst.msk [vmem:[#allocation3 + $0x11] sm:$0x1] %vm6260, 0.0
        %vm6263 = vcmask 7168
        %6264 = vst.msk [vmem:[#allocation3] sm:$0xff] %vm6263, 0.0
        %6265 = vst.msk [vmem:[#allocation3 + $0x8] sm:$0xff] %vm6263, 0.0
        %vm6266 = vcmask 1024
        %6267 = vst.msk [vmem:[#allocation3 + $0x10] sm:$0x3] %vm6266, 0.0
        %vm6268 = vcmask 146568
        %6269 = vst.msk [vmem:[#allocation3] sm:$0xff] %vm6268, 0.0
        %6270 = vst.msk [vmem:[#allocation3 + $0x8] sm:$0xff] %vm6268, 0.0
        %vm6271 = vcmask 140424
        %6272 = vst.msk [vmem:[#allocation3 + $0x10] sm:$0x3] %vm6271, 0.0
        %v6305 = vlaneseq
        %v6306 = vand.u32 %v6305, 127
        %v6307 = vadd.s32 %v6306, 4294967295
        %v6308 = vlaneseq
        %v6309 = vshrl.u32 %v6308, 7
        %v6310 = vsub.s32 %v6307, %v6309
        %v6311 = vrot.slane %v6228, %v6310
        %v6312 = vadd.s32 %v6306, 4294967287
        %v6313 = vlaneseq
        %v6314 = vshrl.u32 %v6313, 7
        %v6315 = vsub.s32 %v6312, %v6314
        %v6316 = vrot.slane %v6229, %v6315
        %vm6317 = vcmask 138312
        %v6318 = vsel %vm6317, %v6316, %v6311
        %v6319 = vlaneseq
        %v6320 = vshrl.u32 %v6319, 7
        %v6321 = vsub.s32 %v6307, %v6320
        %v6322 = vrot.slane %v6230, %v6321
        %v6323 = vlaneseq
        %v6324 = vshrl.u32 %v6323, 7
        %v6325 = vsub.s32 %v6312, %v6324
        %v6326 = vrot.slane %v6231, %v6325
        %v6327 = vsel %vm6317, %v6326, %v6322
        %v6328 = vlaneseq
        %v6329 = vshrl.u32 %v6328, 7
        %v6330 = vsub.s32 %v6307, %v6329
        %v6331 = vrot.slane %v6232, %v6330
        %v6332 = vlaneseq
        %v6333 = vshrl.u32 %v6332, 7
        %v6334 = vsub.s32 %v6312, %v6333
        %v6335 = vrot.slane %v6233, %v6334
        %v6336 = vsel %vm6317, %v6335, %v6331
        %v6337 = vlaneseq
        %v6338 = vshrl.u32 %v6337, 7
        %v6339 = vsub.s32 %v6307, %v6338
        %v6340 = vrot.slane %v6234, %v6339
        %v6341 = vlaneseq
        %v6342 = vshrl.u32 %v6341, 7
        %v6343 = vsub.s32 %v6312, %v6342
        %v6344 = vrot.slane %v6235, %v6343
        %v6345 = vsel %vm6317, %v6344, %v6340
        %v6346 = vlaneseq
        %v6347 = vshrl.u32 %v6346, 7
        %v6348 = vsub.s32 %v6307, %v6347
        %v6349 = vrot.slane %v6236, %v6348
        %v6350 = vlaneseq
        %v6351 = vshrl.u32 %v6350, 7
        %v6352 = vsub.s32 %v6312, %v6351
        %v6353 = vrot.slane %v6237, %v6352
        %v6354 = vsel %vm6317, %v6353, %v6349
        %v6355 = vlaneseq
        %v6356 = vshrl.u32 %v6355, 7
        %v6357 = vsub.s32 %v6307, %v6356
        %v6358 = vrot.slane %v6238, %v6357
        %v6359 = vlaneseq
        %v6360 = vshrl.u32 %v6359, 7
        %v6361 = vsub.s32 %v6312, %v6360
        %v6362 = vrot.slane %v6239, %v6361
        %v6363 = vsel %vm6317, %v6362, %v6358
        %v6364 = vlaneseq
        %v6365 = vshrl.u32 %v6364, 7
        %v6366 = vsub.s32 %v6307, %v6365
        %v6367 = vrot.slane %v6240, %v6366
        %v6368 = vlaneseq
        %v6369 = vshrl.u32 %v6368, 7
        %v6370 = vsub.s32 %v6312, %v6369
        %v6371 = vrot.slane %v6241, %v6370
        %v6372 = vsel %vm6317, %v6371, %v6367
        %v6373 = vlaneseq
        %v6374 = vshrl.u32 %v6373, 7
        %v6375 = vsub.s32 %v6307, %v6374
        %v6376 = vrot.slane %v6242, %v6375
        %v6377 = vlaneseq
        %v6378 = vshrl.u32 %v6377, 7
        %v6379 = vsub.s32 %v6312, %v6378
        %v6380 = vrot.slane %v6243, %v6379
        %v6381 = vsel %vm6317, %v6380, %v6376
        %v6382 = vlaneseq
        %v6383 = vshrl.u32 %v6382, 7
        %v6384 = vsub.s32 %v6307, %v6383
        %v6385 = vrot.slane %v6244, %v6384
        %v6386 = vlaneseq
        %v6387 = vshrl.u32 %v6386, 7
        %v6388 = vsub.s32 %v6312, %v6387
        %v6389 = vrot.slane %v6245, %v6388
        %v6390 = vsel %vm6317, %v6389, %v6385
        %v6391 = vlaneseq
        %v6392 = vshrl.u32 %v6391, 7
        %v6393 = vsub.s32 %v6307, %v6392
        %v6394 = vrot.slane %v6246, %v6393
        %v6395 = vlaneseq
        %v6396 = vshrl.u32 %v6395, 7
        %v6397 = vsub.s32 %v6312, %v6396
        %v6398 = vrot.slane %v6247, %v6397
        %v6399 = vsel %vm6317, %v6398, %v6394
        %v6400 = vlaneseq
        %v6401 = vshrl.u32 %v6400, 7
        %v6402 = vsub.s32 %v6307, %v6401
        %v6403 = vrot.slane %v6248, %v6402
        %v6404 = vlaneseq
        %v6405 = vshrl.u32 %v6404, 7
        %v6406 = vsub.s32 %v6312, %v6405
        %v6407 = vrot.slane %v6249, %v6406
        %v6408 = vsel %vm6317, %v6407, %v6403
        %v6409 = vlaneseq
        %v6410 = vshrl.u32 %v6409, 7
        %v6411 = vsub.s32 %v6307, %v6410
        %v6412 = vrot.slane %v6250, %v6411
        %v6413 = vlaneseq
        %v6414 = vshrl.u32 %v6413, 7
        %v6415 = vsub.s32 %v6312, %v6414
        %v6416 = vrot.slane %v6251, %v6415
        %v6417 = vsel %vm6317, %v6416, %v6412
        %v6418 = vlaneseq
        %v6419 = vshrl.u32 %v6418, 7
        %v6420 = vsub.s32 %v6307, %v6419
        %v6421 = vrot.slane %v6252, %v6420
        %v6422 = vlaneseq
        %v6423 = vshrl.u32 %v6422, 7
        %v6424 = vsub.s32 %v6312, %v6423
        %v6425 = vrot.slane %v6253, %v6424
        %v6426 = vsel %vm6317, %v6425, %v6421
        %v6427 = vlaneseq
        %v6428 = vshrl.u32 %v6427, 7
        %v6429 = vsub.s32 %v6307, %v6428
        %v6430 = vrot.slane %v6254, %v6429
        %v6431 = vlaneseq
        %v6432 = vshrl.u32 %v6431, 7
        %v6433 = vsub.s32 %v6312, %v6432
        %v6434 = vrot.slane %v6255, %v6433
        %v6435 = vsel %vm6317, %v6434, %v6430
        %v6436 = vlaneseq
        %v6437 = vshrl.u32 %v6436, 7
        %v6438 = vsub.s32 %v6307, %v6437
        %v6439 = vrot.slane %v6256, %v6438
        %v6440 = vlaneseq
        %v6441 = vshrl.u32 %v6440, 7
        %v6442 = vsub.s32 %v6312, %v6441
        %v6443 = vrot.slane %v6257, %v6442
        %v6444 = vsel %vm6317, %v6443, %v6439
        %v6445 = vlaneseq
        %v6446 = vshrl.u32 %v6445, 7
        %v6447 = vsub.s32 %v6307, %v6446
        %v6448 = vrot.slane %v6258, %v6447
        %v6449 = vlaneseq
        %v6450 = vshrl.u32 %v6449, 7
        %v6451 = vsub.s32 %v6312, %v6450
        %v6452 = vrot.slane %v6259, %v6451
        %v6453 = vsel %vm6317, %v6452, %v6448
        %vm6454 = vcmask 1041409
        %v6455 = vsel %vm6454, %v6327, %v6318
        %vm6456 = vcmask 1042434
        %v6457 = vsel %vm6456, %v6336, %v6455
        %vm6458 = vcmask 1043459
        %v6459 = vsel %vm6458, %v6345, %v6457
        %vm6460 = vcmask 1044484
        %v6461 = vsel %vm6460, %v6354, %v6459
        %vm6462 = vcmask 1045509
        %v6463 = vsel %vm6462, %v6363, %v6461
        %vm6464 = vcmask 1046534
        %v6465 = vsel %vm6464, %v6372, %v6463
        %vm6466 = vcmask 1047559
        %v6467 = vsel %vm6466, %v6381, %v6465
        %v6468 = vsel %vm6454, %v6399, %v6390
        %v6469 = vsel %vm6456, %v6408, %v6468
        %v6470 = vsel %vm6458, %v6417, %v6469
        %v6471 = vsel %vm6460, %v6426, %v6470
        %v6472 = vsel %vm6462, %v6435, %v6471
        %v6473 = vsel %vm6464, %v6444, %v6472
        %v6474 = vsel %vm6466, %v6453, %v6473
        %vm6477 = vcmask 138248
        %6478 = vst.msk [vmem:[#allocation3 + $0x1] sm:$0xff] %vm6477, %v6467
        %6479 = vst.msk [vmem:[#allocation3 + $0x9] sm:$0xff] %vm6477, %v6474
        %v6480 = vld [vmem:[#allocation3] sm:$0xff]
        %v6481 = vld [vmem:[#allocation3 + $0x8] sm:$0xff]
        %s6482 = sld [smem:[#allocation14]]
        %v6483 = vstv %s6482
        %v6484 = vmul.f32 %v6480, %v6483
        %v6485 = vmul.f32 %v6481, %v6483
        %v6486 = vadd.f32 %v6484, 0.0
        %v6487 = vadd.f32 %v6485, 0.0
        %s6488 = sld [smem:[#allocation14 + $0x1]]
        %v6489 = vstv %s6488
        %v6490 = vmul.f32 %v6480, %v6489
        %v6491 = vmul.f32 %v6481, %v6489
        %6494 = vrot.lane.b32.xlu0 %v6490, 127
        %v6495 = vpop.permute.xlu0 %6494
        %6496 = vrot.lane.b32.xlu0 %v6491, 127
        %v6497 = vpop.permute.xlu0 %6496
        %v6500 = vadd.f32 %v6486, %v6495
        %v6501 = vadd.f32 %v6487, %v6497
        %s6502 = sld [smem:[#allocation14 + $0x2]]
        %v6503 = vstv %s6502
        %v6504 = vmul.f32 %v6480, %v6503
        %v6505 = vmul.f32 %v6481, %v6503
        %6508 = vrot.lane.b32.xlu0 %v6504, 126
        %v6509 = vpop.permute.xlu0 %6508
        %6510 = vrot.lane.b32.xlu0 %v6505, 126
        %v6511 = vpop.permute.xlu0 %6510
        %v6514 = vadd.f32 %v6500, %v6509
        %v6515 = vadd.f32 %v6501, %v6511
        %v6516 = vld [vmem:[#allocation3 + $0x1] sm:$0xff]
        %v6517 = vld [vmem:[#allocation3 + $0x9] sm:$0xff]
        %s6518 = sld [smem:[#allocation14 + $0x3]]
        %v6519 = vstv %s6518
        %v6520 = vmul.f32 %v6516, %v6519
        %v6521 = vmul.f32 %v6517, %v6519
        %v6522 = vadd.f32 %v6514, %v6520
        %v6523 = vadd.f32 %v6515, %v6521
        %s6524 = sld [smem:[#allocation14 + $0x4]]
        %v6525 = vstv %s6524
        %v6526 = vmul.f32 %v6516, %v6525
        %v6527 = vmul.f32 %v6517, %v6525
        %6530 = vrot.lane.b32.xlu0 %v6526, 127
        %v6531 = vpop.permute.xlu0 %6530
        %6532 = vrot.lane.b32.xlu0 %v6527, 127
        %v6533 = vpop.permute.xlu0 %6532
        %v6536 = vadd.f32 %v6522, %v6531
        %v6537 = vadd.f32 %v6523, %v6533
        %s6538 = sld [smem:[#allocation14 + $0x5]]
        %v6539 = vstv %s6538
        %v6540 = vmul.f32 %v6516, %v6539
        %v6541 = vmul.f32 %v6517, %v6539
        %6544 = vrot.lane.b32.xlu0 %v6540, 126
        %v6545 = vpop.permute.xlu0 %6544
        %6546 = vrot.lane.b32.xlu0 %v6541, 126
        %v6547 = vpop.permute.xlu0 %6546
        %v6550 = vadd.f32 %v6536, %v6545
        %v6551 = vadd.f32 %v6537, %v6547
        %v6552 = vld [vmem:[#allocation3 + $0x2] sm:$0xff]
        %v6553 = vld [vmem:[#allocation3 + $0xa] sm:$0xff]
        %s6554 = sld [smem:[#allocation14 + $0x6]]
        %v6555 = vstv %s6554
        %v6556 = vmul.f32 %v6552, %v6555
        %v6557 = vmul.f32 %v6553, %v6555
        %v6558 = vadd.f32 %v6550, %v6556
        %v6559 = vadd.f32 %v6551, %v6557
        %s6560 = sld [smem:[#allocation14 + $0x7]]
        %v6561 = vstv %s6560
        %v6562 = vmul.f32 %v6552, %v6561
        %v6563 = vmul.f32 %v6553, %v6561
        %6566 = vrot.lane.b32.xlu0 %v6562, 127
        %v6567 = vpop.permute.xlu0 %6566
        %6568 = vrot.lane.b32.xlu0 %v6563, 127
        %v6569 = vpop.permute.xlu0 %6568
        %v6572 = vadd.f32 %v6558, %v6567
        %v6573 = vadd.f32 %v6559, %v6569
        %s6574 = sld [smem:[#allocation14 + $0x8]]
        %v6575 = vstv %s6574
        %v6576 = vmul.f32 %v6552, %v6575
        %v6577 = vmul.f32 %v6553, %v6575
        %6580 = vrot.lane.b32.xlu0 %v6576, 126
        %v6581 = vpop.permute.xlu0 %6580
        %6582 = vrot.lane.b32.xlu0 %v6577, 126
        %v6583 = vpop.permute.xlu0 %6582
        %v6586 = vadd.f32 %v6572, %v6581
        %v6587 = vadd.f32 %v6573, %v6583
        %s6588 = sld [smem:[#allocation14 + $0x9]]
        %s6589 = smul.f32 %s6588, 0.999995
        %v6590 = vstv %s6589
        %v6591 = vmul.f32 %v6586, %v6590
        %v6592 = vmul.f32 %v6587, %v6590
        %s6593 = sld [smem:[#allocation14 + $0xa]]
        %v6594 = vstv %s6593
        %v6595 = vadd.f32 %v6591, %v6594
        %v6596 = vadd.f32 %v6592, %v6594
        %v6597 = vmax.f32 %v6595, 0.0
        %v6598 = vmax.f32 %v6596, 0.0
        %s6599 = sld [smem:[#allocation14 + $0xb]]
        %v6600 = vstv %s6599
        %v6601 = vmul.f32 %v6597, %v6600
        %v6602 = vmul.f32 %v6598, %v6600
        %v6603 = vxor.u32 %v6601, 2147483648
        %v6604 = vxor.u32 %v6602, 2147483648
        %v6605 = vmul.f32 %v6603, 1.442695
        %v6606 = vpow.pop %v6605
        %v6607 = vmul.f32 %v6604, 1.442695
        %v6608 = vpow.pop %v6607
        %v6609 = vadd.f32 %v6606, 1.0
        %v6610 = vadd.f32 %v6608, 1.0
        %v6611 = vrcp.pop %v6609
        %v6612 = vmul.f32 1.0, %v6611
        %v6613 = vrcp.pop %v6610
        %v6614 = vmul.f32 1.0, %v6613
        %v6615 = vlaneseq
        %v6616 = vshrl.u32 %v6615, 7
        %v6617 = vsub.s32 0, %v6616
        %v6618 = vrot.slane %v6612, %v6617
        %6620 = vbcast.lane.b32.xlu0 %v6618, 256
        %v6621 = vpop.permute.xlu0 %6620
        %s6623 = sor.u32 256, 8
        %6624 = vbcast.lane.b32.xlu0 %v6618, %s6623
        %v6625 = vpop.permute.xlu0 %6624
        %v6626 = vlaneseq
        %v6627 = vshrl.u32 %v6626, 7
        %v6628 = vsub.s32 1, %v6627
        %v6629 = vrot.slane %v6612, %v6628
        %6631 = vbcast.lane.b32.xlu0 %v6629, 256
        %v6632 = vpop.permute.xlu0 %6631
        %s6634 = sor.u32 256, 8
        %6635 = vbcast.lane.b32.xlu0 %v6629, %s6634
        %v6636 = vpop.permute.xlu0 %6635
        %v6637 = vlaneseq
        %v6638 = vshrl.u32 %v6637, 7
        %v6639 = vsub.s32 2, %v6638
        %v6640 = vrot.slane %v6612, %v6639
        %6642 = vbcast.lane.b32.xlu0 %v6640, 256
        %v6643 = vpop.permute.xlu0 %6642
        %s6645 = sor.u32 256, 8
        %6646 = vbcast.lane.b32.xlu0 %v6640, %s6645
        %v6647 = vpop.permute.xlu0 %6646
        %v6648 = vlaneseq
        %v6649 = vshrl.u32 %v6648, 7
        %v6650 = vsub.s32 3, %v6649
        %v6651 = vrot.slane %v6612, %v6650
        %6653 = vbcast.lane.b32.xlu0 %v6651, 256
        %v6654 = vpop.permute.xlu0 %6653
        %s6656 = sor.u32 256, 8
        %6657 = vbcast.lane.b32.xlu0 %v6651, %s6656
        %v6658 = vpop.permute.xlu0 %6657
        %v6659 = vlaneseq
        %v6660 = vshrl.u32 %v6659, 7
        %v6661 = vsub.s32 4, %v6660
        %v6662 = vrot.slane %v6612, %v6661
        %6664 = vbcast.lane.b32.xlu0 %v6662, 256
        %v6665 = vpop.permute.xlu0 %6664
        %s6667 = sor.u32 256, 8
        %6668 = vbcast.lane.b32.xlu0 %v6662, %s6667
        %v6669 = vpop.permute.xlu0 %6668
        %v6670 = vlaneseq
        %v6671 = vshrl.u32 %v6670, 7
        %v6672 = vsub.s32 5, %v6671
        %v6673 = vrot.slane %v6612, %v6672
        %6675 = vbcast.lane.b32.xlu0 %v6673, 256
        %v6676 = vpop.permute.xlu0 %6675
        %s6678 = sor.u32 256, 8
        %6679 = vbcast.lane.b32.xlu0 %v6673, %s6678
        %v6680 = vpop.permute.xlu0 %6679
        %v6681 = vlaneseq
        %v6682 = vshrl.u32 %v6681, 7
        %v6683 = vsub.s32 6, %v6682
        %v6684 = vrot.slane %v6612, %v6683
        %6686 = vbcast.lane.b32.xlu0 %v6684, 256
        %v6687 = vpop.permute.xlu0 %6686
        %s6689 = sor.u32 256, 8
        %6690 = vbcast.lane.b32.xlu0 %v6684, %s6689
        %v6691 = vpop.permute.xlu0 %6690
        %v6692 = vlaneseq
        %v6693 = vshrl.u32 %v6692, 7
        %v6694 = vsub.s32 7, %v6693
        %v6695 = vrot.slane %v6612, %v6694
        %6697 = vbcast.lane.b32.xlu0 %v6695, 256
        %v6698 = vpop.permute.xlu0 %6697
        %s6700 = sor.u32 256, 8
        %6701 = vbcast.lane.b32.xlu0 %v6695, %s6700
        %v6702 = vpop.permute.xlu0 %6701
        %v6703 = vlaneseq
        %v6704 = vshrl.u32 %v6703, 7
        %v6705 = vsub.s32 0, %v6704
        %v6706 = vrot.slane %v6614, %v6705
        %6708 = vbcast.lane.b32.xlu0 %v6706, 256
        %v6709 = vpop.permute.xlu0 %6708
        %s6711 = sor.u32 256, 8
        %6712 = vbcast.lane.b32.xlu0 %v6706, %s6711
        %v6713 = vpop.permute.xlu0 %6712
        %v6714 = vlaneseq
        %v6715 = vshrl.u32 %v6714, 7
        %v6716 = vsub.s32 1, %v6715
        %v6717 = vrot.slane %v6614, %v6716
        %6719 = vbcast.lane.b32.xlu0 %v6717, 256
        %v6720 = vpop.permute.xlu0 %6719
        %s6722 = sor.u32 256, 8
        %6723 = vbcast.lane.b32.xlu0 %v6717, %s6722
        %v6724 = vpop.permute.xlu0 %6723
        %v6725 = vlaneseq
        %v6726 = vshrl.u32 %v6725, 7
        %v6727 = vsub.s32 2, %v6726
        %v6728 = vrot.slane %v6614, %v6727
        %6730 = vbcast.lane.b32.xlu0 %v6728, 256
        %v6731 = vpop.permute.xlu0 %6730
        %s6733 = sor.u32 256, 8
        %6734 = vbcast.lane.b32.xlu0 %v6728, %s6733
        %v6735 = vpop.permute.xlu0 %6734
        %v6736 = vlaneseq
        %v6737 = vshrl.u32 %v6736, 7
        %v6738 = vsub.s32 3, %v6737
        %v6739 = vrot.slane %v6614, %v6738
        %6741 = vbcast.lane.b32.xlu0 %v6739, 256
        %v6742 = vpop.permute.xlu0 %6741
        %s6744 = sor.u32 256, 8
        %6745 = vbcast.lane.b32.xlu0 %v6739, %s6744
        %v6746 = vpop.permute.xlu0 %6745
        %v6747 = vlaneseq
        %v6748 = vshrl.u32 %v6747, 7
        %v6749 = vsub.s32 4, %v6748
        %v6750 = vrot.slane %v6614, %v6749
        %6752 = vbcast.lane.b32.xlu0 %v6750, 256
        %v6753 = vpop.permute.xlu0 %6752
        %s6755 = sor.u32 256, 8
        %6756 = vbcast.lane.b32.xlu0 %v6750, %s6755
        %v6757 = vpop.permute.xlu0 %6756
        %v6758 = vlaneseq
        %v6759 = vshrl.u32 %v6758, 7
        %v6760 = vsub.s32 5, %v6759
        %v6761 = vrot.slane %v6614, %v6760
        %6763 = vbcast.lane.b32.xlu0 %v6761, 256
        %v6764 = vpop.permute.xlu0 %6763
        %s6766 = sor.u32 256, 8
        %6767 = vbcast.lane.b32.xlu0 %v6761, %s6766
        %v6768 = vpop.permute.xlu0 %6767
        %v6769 = vlaneseq
        %v6770 = vshrl.u32 %v6769, 7
        %v6771 = vsub.s32 6, %v6770
        %v6772 = vrot.slane %v6614, %v6771
        %6774 = vbcast.lane.b32.xlu0 %v6772, 256
        %v6775 = vpop.permute.xlu0 %6774
        %s6777 = sor.u32 256, 8
        %6778 = vbcast.lane.b32.xlu0 %v6772, %s6777
        %v6779 = vpop.permute.xlu0 %6778
        %v6780 = vlaneseq
        %v6781 = vshrl.u32 %v6780, 7
        %v6782 = vsub.s32 7, %v6781
        %v6783 = vrot.slane %v6614, %v6782
        %6785 = vbcast.lane.b32.xlu0 %v6783, 256
        %v6786 = vpop.permute.xlu0 %6785
        %s6788 = sor.u32 256, 8
        %6789 = vbcast.lane.b32.xlu0 %v6783, %s6788
        %v6790 = vpop.permute.xlu0 %6789
        %v6791 = vadd.f32 %v6099, %v6621
        %v6792 = vadd.f32 %v6100, %v6625
        %v6793 = vadd.f32 %v6101, %v6632
        %v6794 = vadd.f32 %v6102, %v6636
        %v6795 = vadd.f32 %v6103, %v6643
        %v6796 = vadd.f32 %v6104, %v6647
        %v6797 = vadd.f32 %v6105, %v6654
        %v6798 = vadd.f32 %v6106, %v6658
        %v6799 = vadd.f32 %v6107, %v6665
        %v6800 = vadd.f32 %v6108, %v6669
        %v6801 = vadd.f32 %v6109, %v6676
        %v6802 = vadd.f32 %v6110, %v6680
        %v6803 = vadd.f32 %v6111, %v6687
        %v6804 = vadd.f32 %v6112, %v6691
        %v6805 = vadd.f32 %v6113, %v6698
        %v6806 = vadd.f32 %v6114, %v6702
        %v6807 = vadd.f32 %v6115, %v6709
        %v6808 = vadd.f32 %v6116, %v6713
        %v6809 = vadd.f32 %v6117, %v6720
        %v6810 = vadd.f32 %v6118, %v6724
        %v6811 = vadd.f32 %v6119, %v6731
        %v6812 = vadd.f32 %v6120, %v6735
        %v6813 = vadd.f32 %v6121, %v6742
        %v6814 = vadd.f32 %v6122, %v6746
        %v6815 = vadd.f32 %v6123, %v6753
        %v6816 = vadd.f32 %v6124, %v6757
        %v6817 = vadd.f32 %v6125, %v6764
        %v6818 = vadd.f32 %v6126, %v6768
        %v6819 = vadd.f32 %v6127, %v6775
        %v6820 = vadd.f32 %v6128, %v6779
        %v6821 = vadd.f32 %v6129, %v6786
        %v6822 = vadd.f32 %v6130, %v6790
        %v6823 = vld [vmem:[#allocation15] sm:$0xff]
        %v6824 = vld [vmem:[#allocation15 + $0x8] sm:$0xff]
        %v6825 = vld [vmem:[#allocation15 + $0x10] sm:$0xff]
        %v6826 = vld [vmem:[#allocation15 + $0x18] sm:$0xff]
        %v6828 = vsel %vm848, %v6791, 0
        %v6831 = vsel %vm848, %v6792, 0
        %v6834 = vsel %vm848, %v6793, 0
        %v6837 = vsel %vm848, %v6794, 0
        %v6840 = vsel %vm848, %v6795, 0
        %v6843 = vsel %vm848, %v6796, 0
        %v6846 = vsel %vm848, %v6797, 0
        %v6849 = vsel %vm848, %v6798, 0
        %v6852 = vsel %vm848, %v6799, 0
        %v6855 = vsel %vm848, %v6800, 0
        %v6858 = vsel %vm848, %v6801, 0
        %v6861 = vsel %vm848, %v6802, 0
        %v6864 = vsel %vm848, %v6803, 0
        %v6867 = vsel %vm848, %v6804, 0
        %v6870 = vsel %vm848, %v6805, 0
        %v6873 = vsel %vm848, %v6806, 0
        %v6876 = vsel %vm848, %v6807, 0
        %v6879 = vsel %vm848, %v6808, 0
        %v6882 = vsel %vm848, %v6809, 0
        %v6885 = vsel %vm848, %v6810, 0
        %v6888 = vsel %vm848, %v6811, 0
        %v6891 = vsel %vm848, %v6812, 0
        %v6894 = vsel %vm848, %v6813, 0
        %v6897 = vsel %vm848, %v6814, 0
        %v6900 = vsel %vm848, %v6815, 0
        %v6903 = vsel %vm848, %v6816, 0
        %v6906 = vsel %vm848, %v6817, 0
        %v6909 = vsel %vm848, %v6818, 0
        %v6912 = vsel %vm848, %v6819, 0
        %v6915 = vsel %vm848, %v6820, 0
        %v6918 = vsel %vm848, %v6821, 0
        %v6921 = vsel %vm848, %v6822, 0
        %6923 = vmatprep.subr.mxu0 0.0
        %6924 = vmatpush1.msra.mxu0 %v6823
        %6925 = vmatprep.subr.mxu0 0.0
        %6926 = vmatpush1.msra.mxu0 %v6824
        %6927 = vmatprep.subr.mxu0 0.0
        %6928 = vmatpush1.msra.mxu0 %v6825
        %6929 = vmatprep.subr.mxu0 0.0
        %6930 = vmatpush1.msra.mxu0 %v6826
        %6931 = vmatprep.subr.mxu0 0.0
        %6932 = vmatpush1.msra.mxu0 0.0
        %6933 = vmatprep.subr.mxu0 0.0
        %6934 = vmatpush1.msra.mxu0 0.0
        %6935 = vmatprep.subr.mxu0 0.0
        %6936 = vmatpush1.msra.mxu0 0.0
        %6937 = vmatprep.subr.mxu0 0.0
        %6938 = vmatpush1.msra.mxu0 0.0
        %6939 = vmatprep.subr.mxu0 0.0
        %6940 = vmatpush1.msra.mxu0 0.0
        %6941 = vmatprep.subr.mxu0 0.0
        %6942 = vmatpush1.msra.mxu0 0.0
        %6943 = vmatprep.subr.mxu0 0.0
        %6944 = vmatpush1.msra.mxu0 0.0
        %6945 = vmatprep.subr.mxu0 0.0
        %6946 = vmatpush1.msra.mxu0 0.0
        %6947 = vmatprep.subr.mxu0 0.0
        %6948 = vmatpush1.msra.mxu0 0.0
        %6949 = vmatprep.subr.mxu0 0.0
        %6950 = vmatpush1.msra.mxu0 0.0
        %6951 = vmatprep.subr.mxu0 0.0
        %6952 = vmatpush1.msra.mxu0 0.0
        %6953 = vmatprep.subr.mxu0 0.0
        %6954 = vmatpush1.msra.mxu0 0.0
        %6955 = vmatprep.subr.mxu0 0.0
        %6956 = vmatpush1.msra.mxu0 0.0
        %6957 = vmatprep.subr.mxu0 0.0
        %6958 = vmatpush1.msra.mxu0 0.0
        %6959 = vmatprep.subr.mxu0 0.0
        %6960 = vmatpush1.msra.mxu0 0.0
        %6961 = vmatprep.subr.mxu0 0.0
        %6962 = vmatpush1.msra.mxu0 0.0
        %6963 = vmatprep.subr.mxu0 0.0
        %6964 = vmatpush1.msra.mxu0 0.0
        %6965 = vmatprep.subr.mxu0 0.0
        %6966 = vmatpush1.msra.mxu0 0.0
        %6967 = vmatprep.subr.mxu0 0.0
        %6968 = vmatpush1.msra.mxu0 0.0
        %6969 = vmatprep.subr.mxu0 0.0
        %6970 = vmatpush1.msra.mxu0 0.0
        %6971 = vmatprep.subr.mxu0 0.0
        %6972 = vmatpush1.msra.mxu0 0.0
        %6973 = vmatprep.subr.mxu0 0.0
        %6974 = vmatpush1.msra.mxu0 0.0
        %6975 = vmatprep.subr.mxu0 0.0
        %6976 = vmatpush1.msra.mxu0 0.0
        %6977 = vmatprep.subr.mxu0 0.0
        %6978 = vmatpush1.msra.mxu0 0.0
        %6979 = vmatprep.subr.mxu0 0.0
        %6980 = vmatpush1.msra.mxu0 0.0
        %6981 = vmatprep.subr.mxu0 0.0
        %6982 = vmatpush1.msra.mxu0 0.0
        %6983 = vmatprep.subr.mxu0 0.0
        %6984 = vmatpush1.msra.mxu0 0.0
        %6985 = vmatprep.subr.mxu0 0.0
        %6986 = vmatpush1.msra.mxu0 0.0
        %6987 = vmatprep.mubr.f32.mxu0 0.0
        %6988 = vmatmul.mubr.f32.gmra.mrb[0].mxu0 %v6828
        %v6989 = vpop.f32.mrb[0].mxu0
        %v6990 = vadd.f32 0.0, %v6989
        %v6991 = vpop.f32.mrb[0].mxu0
        %6992 = vmatprep.mubr.f32.mxu0 0.0
        %6993 = vmatmul.mubr.f32.gmra.mrb[0].mxu0 %v6831
        %v6994 = vpop.f32.mrb[0].mxu0
        %v6995 = vadd.f32 0.0, %v6994
        %v6996 = vpop.f32.mrb[0].mxu0
        %6997 = vmatprep.mubr.f32.mxu0 0.0
        %6998 = vmatmul.mubr.f32.gmra.mrb[0].mxu0 %v6834
        %v6999 = vpop.f32.mrb[0].mxu0
        %v7000 = vadd.f32 0.0, %v6999
        %v7001 = vpop.f32.mrb[0].mxu0
        %7002 = vmatprep.mubr.f32.mxu0 0.0
        %7003 = vmatmul.mubr.f32.gmra.mrb[0].mxu0 %v6837
        %v7004 = vpop.f32.mrb[0].mxu0
        %v7005 = vadd.f32 0.0, %v7004
        %v7006 = vpop.f32.mrb[0].mxu0
        %7007 = vmatprep.mubr.f32.mxu0 0.0
        %7008 = vmatmul.mubr.f32.gmra.mrb[0].mxu0 %v6840
        %v7009 = vpop.f32.mrb[0].mxu0
        %v7010 = vadd.f32 0.0, %v7009
        %v7011 = vpop.f32.mrb[0].mxu0
        %7012 = vmatprep.mubr.f32.mxu0 0.0
        %7013 = vmatmul.mubr.f32.gmra.mrb[0].mxu0 %v6843
        %v7014 = vpop.f32.mrb[0].mxu0
        %v7015 = vadd.f32 0.0, %v7014
        %v7016 = vpop.f32.mrb[0].mxu0
        %7017 = vmatprep.mubr.f32.mxu0 0.0
        %7018 = vmatmul.mubr.f32.gmra.mrb[0].mxu0 %v6846
        %v7019 = vpop.f32.mrb[0].mxu0
        %v7020 = vadd.f32 0.0, %v7019
        %v7021 = vpop.f32.mrb[0].mxu0
        %7022 = vmatprep.mubr.f32.mxu0 0.0
        %7023 = vmatmul.mubr.f32.gmra.mrb[0].mxu0 %v6849
        %v7024 = vpop.f32.mrb[0].mxu0
        %v7025 = vadd.f32 0.0, %v7024
        %v7026 = vpop.f32.mrb[0].mxu0
        %7027 = vmatprep.mubr.f32.mxu0 0.0
        %7028 = vmatmul.mubr.f32.gmra.mrb[0].mxu0 %v6852
        %v7029 = vpop.f32.mrb[0].mxu0
        %v7030 = vadd.f32 0.0, %v7029
        %v7031 = vpop.f32.mrb[0].mxu0
        %7032 = vmatprep.mubr.f32.mxu0 0.0
        %7033 = vmatmul.mubr.f32.gmra.mrb[0].mxu0 %v6855
        %v7034 = vpop.f32.mrb[0].mxu0
        %v7035 = vadd.f32 0.0, %v7034
        %v7036 = vpop.f32.mrb[0].mxu0
        %7037 = vmatprep.mubr.f32.mxu0 0.0
        %7038 = vmatmul.mubr.f32.gmra.mrb[0].mxu0 %v6858
        %v7039 = vpop.f32.mrb[0].mxu0
        %v7040 = vadd.f32 0.0, %v7039
        %v7041 = vpop.f32.mrb[0].mxu0
        %7042 = vmatprep.mubr.f32.mxu0 0.0
        %7043 = vmatmul.mubr.f32.gmra.mrb[0].mxu0 %v6861
        %v7044 = vpop.f32.mrb[0].mxu0
        %v7045 = vadd.f32 0.0, %v7044
        %v7046 = vpop.f32.mrb[0].mxu0
        %7047 = vmatprep.mubr.f32.mxu0 0.0
        %7048 = vmatmul.mubr.f32.gmra.mrb[0].mxu0 %v6864
        %v7049 = vpop.f32.mrb[0].mxu0
        %v7050 = vadd.f32 0.0, %v7049
        %v7051 = vpop.f32.mrb[0].mxu0
        %7052 = vmatprep.mubr.f32.mxu0 0.0
        %7053 = vmatmul.mubr.f32.gmra.mrb[0].mxu0 %v6867
        %v7054 = vpop.f32.mrb[0].mxu0
        %v7055 = vadd.f32 0.0, %v7054
        %v7056 = vpop.f32.mrb[0].mxu0
        %7057 = vmatprep.mubr.f32.mxu0 0.0
        %7058 = vmatmul.mubr.f32.gmra.mrb[0].mxu0 %v6870
        %v7059 = vpop.f32.mrb[0].mxu0
        %v7060 = vadd.f32 0.0, %v7059
        %v7061 = vpop.f32.mrb[0].mxu0
        %7062 = vmatprep.mubr.f32.mxu0 0.0
        %7063 = vmatmul.mubr.f32.gmra.mrb[0].mxu0 %v6873
        %v7064 = vpop.f32.mrb[0].mxu0
        %v7065 = vadd.f32 0.0, %v7064
        %v7066 = vpop.f32.mrb[0].mxu0
        %7067 = vmatprep.mubr.f32.mxu0 0.0
        %7068 = vmatmul.mubr.f32.gmra.mrb[0].mxu0 %v6876
        %v7069 = vpop.f32.mrb[0].mxu0
        %v7070 = vadd.f32 0.0, %v7069
        %v7071 = vpop.f32.mrb[0].mxu0
        %7072 = vmatprep.mubr.f32.mxu0 0.0
        %7073 = vmatmul.mubr.f32.gmra.mrb[0].mxu0 %v6879
        %v7074 = vpop.f32.mrb[0].mxu0
        %v7075 = vadd.f32 0.0, %v7074
        %v7076 = vpop.f32.mrb[0].mxu0
        %7077 = vmatprep.mubr.f32.mxu0 0.0
        %7078 = vmatmul.mubr.f32.gmra.mrb[0].mxu0 %v6882
        %v7079 = vpop.f32.mrb[0].mxu0
        %v7080 = vadd.f32 0.0, %v7079
        %v7081 = vpop.f32.mrb[0].mxu0
        %7082 = vmatprep.mubr.f32.mxu0 0.0
        %7083 = vmatmul.mubr.f32.gmra.mrb[0].mxu0 %v6885
        %v7084 = vpop.f32.mrb[0].mxu0
        %v7085 = vadd.f32 0.0, %v7084
        %v7086 = vpop.f32.mrb[0].mxu0
        %7087 = vmatprep.mubr.f32.mxu0 0.0
        %7088 = vmatmul.mubr.f32.gmra.mrb[0].mxu0 %v6888
        %v7089 = vpop.f32.mrb[0].mxu0
        %v7090 = vadd.f32 0.0, %v7089
        %v7091 = vpop.f32.mrb[0].mxu0
        %7092 = vmatprep.mubr.f32.mxu0 0.0
        %7093 = vmatmul.mubr.f32.gmra.mrb[0].mxu0 %v6891
        %v7094 = vpop.f32.mrb[0].mxu0
        %v7095 = vadd.f32 0.0, %v7094
        %v7096 = vpop.f32.mrb[0].mxu0
        %7097 = vmatprep.mubr.f32.mxu0 0.0
        %7098 = vmatmul.mubr.f32.gmra.mrb[0].mxu0 %v6894
        %v7099 = vpop.f32.mrb[0].mxu0
        %v7100 = vadd.f32 0.0, %v7099
        %v7101 = vpop.f32.mrb[0].mxu0
        %7102 = vmatprep.mubr.f32.mxu0 0.0
        %7103 = vmatmul.mubr.f32.gmra.mrb[0].mxu0 %v6897
        %v7104 = vpop.f32.mrb[0].mxu0
        %v7105 = vadd.f32 0.0, %v7104
        %v7106 = vpop.f32.mrb[0].mxu0
        %7107 = vmatprep.mubr.f32.mxu0 0.0
        %7108 = vmatmul.mubr.f32.gmra.mrb[0].mxu0 %v6900
        %v7109 = vpop.f32.mrb[0].mxu0
        %v7110 = vadd.f32 0.0, %v7109
        %v7111 = vpop.f32.mrb[0].mxu0
        %7112 = vmatprep.mubr.f32.mxu0 0.0
        %7113 = vmatmul.mubr.f32.gmra.mrb[0].mxu0 %v6903
        %v7114 = vpop.f32.mrb[0].mxu0
        %v7115 = vadd.f32 0.0, %v7114
        %v7116 = vpop.f32.mrb[0].mxu0
        %7117 = vmatprep.mubr.f32.mxu0 0.0
        %7118 = vmatmul.mubr.f32.gmra.mrb[0].mxu0 %v6906
        %v7119 = vpop.f32.mrb[0].mxu0
        %v7120 = vadd.f32 0.0, %v7119
        %v7121 = vpop.f32.mrb[0].mxu0
        %7122 = vmatprep.mubr.f32.mxu0 0.0
        %7123 = vmatmul.mubr.f32.gmra.mrb[0].mxu0 %v6909
        %v7124 = vpop.f32.mrb[0].mxu0
        %v7125 = vadd.f32 0.0, %v7124
        %v7126 = vpop.f32.mrb[0].mxu0
        %7127 = vmatprep.mubr.f32.mxu0 0.0
        %7128 = vmatmul.mubr.f32.gmra.mrb[0].mxu0 %v6912
        %v7129 = vpop.f32.mrb[0].mxu0
        %v7130 = vadd.f32 0.0, %v7129
        %v7131 = vpop.f32.mrb[0].mxu0
        %7132 = vmatprep.mubr.f32.mxu0 0.0
        %7133 = vmatmul.mubr.f32.gmra.mrb[0].mxu0 %v6915
        %v7134 = vpop.f32.mrb[0].mxu0
        %v7135 = vadd.f32 0.0, %v7134
        %v7136 = vpop.f32.mrb[0].mxu0
        %7137 = vmatprep.mubr.f32.mxu0 0.0
        %7138 = vmatmul.mubr.f32.gmra.mrb[0].mxu0 %v6918
        %v7139 = vpop.f32.mrb[0].mxu0
        %v7140 = vadd.f32 0.0, %v7139
        %v7141 = vpop.f32.mrb[0].mxu0
        %7142 = vmatprep.mubr.f32.mxu0 0.0
        %7143 = vmatmul.mubr.f32.gmra.mrb[0].mxu0 %v6921
        %v7144 = vpop.f32.mrb[0].mxu0
        %v7145 = vadd.f32 0.0, %v7144
        %v7146 = vpop.f32.mrb[0].mxu0
        %7147 = vdwg.mxu0
        %v7148 = vxor.u32 %v6990, 2147483648
        %v7149 = vxor.u32 %v6995, 2147483648
        %v7150 = vxor.u32 %v7000, 2147483648
        %v7151 = vxor.u32 %v7005, 2147483648
        %v7152 = vxor.u32 %v7010, 2147483648
        %v7153 = vxor.u32 %v7015, 2147483648
        %v7154 = vxor.u32 %v7020, 2147483648
        %v7155 = vxor.u32 %v7025, 2147483648
        %v7156 = vxor.u32 %v7030, 2147483648
        %v7157 = vxor.u32 %v7035, 2147483648
        %v7158 = vxor.u32 %v7040, 2147483648
        %v7159 = vxor.u32 %v7045, 2147483648
        %v7160 = vxor.u32 %v7050, 2147483648
        %v7161 = vxor.u32 %v7055, 2147483648
        %v7162 = vxor.u32 %v7060, 2147483648
        %v7163 = vxor.u32 %v7065, 2147483648
        %v7164 = vxor.u32 %v7070, 2147483648
        %v7165 = vxor.u32 %v7075, 2147483648
        %v7166 = vxor.u32 %v7080, 2147483648
        %v7167 = vxor.u32 %v7085, 2147483648
        %v7168 = vxor.u32 %v7090, 2147483648
        %v7169 = vxor.u32 %v7095, 2147483648
        %v7170 = vxor.u32 %v7100, 2147483648
        %v7171 = vxor.u32 %v7105, 2147483648
        %v7172 = vxor.u32 %v7110, 2147483648
        %v7173 = vxor.u32 %v7115, 2147483648
        %v7174 = vxor.u32 %v7120, 2147483648
        %v7175 = vxor.u32 %v7125, 2147483648
        %v7176 = vxor.u32 %v7130, 2147483648
        %v7177 = vxor.u32 %v7135, 2147483648
        %v7178 = vxor.u32 %v7140, 2147483648
        %v7179 = vxor.u32 %v7145, 2147483648
        %v7180 = vmul.f32 %v7148, 1.442695
        %v7181 = vpow.pop %v7180
        %v7182 = vmul.f32 %v7149, 1.442695
        %v7183 = vpow.pop %v7182
        %v7184 = vmul.f32 %v7150, 1.442695
        %v7185 = vpow.pop %v7184
        %v7186 = vmul.f32 %v7151, 1.442695
        %v7187 = vpow.pop %v7186
        %v7188 = vmul.f32 %v7152, 1.442695
        %v7189 = vpow.pop %v7188
        %v7190 = vmul.f32 %v7153, 1.442695
        %v7191 = vpow.pop %v7190
        %v7192 = vmul.f32 %v7154, 1.442695
        %v7193 = vpow.pop %v7192
        %v7194 = vmul.f32 %v7155, 1.442695
        %v7195 = vpow.pop %v7194
        %v7196 = vmul.f32 %v7156, 1.442695
        %v7197 = vpow.pop %v7196
        %v7198 = vmul.f32 %v7157, 1.442695
        %v7199 = vpow.pop %v7198
        %v7200 = vmul.f32 %v7158, 1.442695
        %v7201 = vpow.pop %v7200
        %v7202 = vmul.f32 %v7159, 1.442695
        %v7203 = vpow.pop %v7202
        %v7204 = vmul.f32 %v7160, 1.442695
        %v7205 = vpow.pop %v7204
        %v7206 = vmul.f32 %v7161, 1.442695
        %v7207 = vpow.pop %v7206
        %v7208 = vmul.f32 %v7162, 1.442695
        %v7209 = vpow.pop %v7208
        %v7210 = vmul.f32 %v7163, 1.442695
        %v7211 = vpow.pop %v7210
        %v7212 = vmul.f32 %v7164, 1.442695
        %v7213 = vpow.pop %v7212
        %v7214 = vmul.f32 %v7165, 1.442695
        %v7215 = vpow.pop %v7214
        %v7216 = vmul.f32 %v7166, 1.442695
        %v7217 = vpow.pop %v7216
        %v7218 = vmul.f32 %v7167, 1.442695
        %v7219 = vpow.pop %v7218
        %v7220 = vmul.f32 %v7168, 1.442695
        %v7221 = vpow.pop %v7220
        %v7222 = vmul.f32 %v7169, 1.442695
        %v7223 = vpow.pop %v7222
        %v7224 = vmul.f32 %v7170, 1.442695
        %v7225 = vpow.pop %v7224
        %v7226 = vmul.f32 %v7171, 1.442695
        %v7227 = vpow.pop %v7226
        %v7228 = vmul.f32 %v7172, 1.442695
        %v7229 = vpow.pop %v7228
        %v7230 = vmul.f32 %v7173, 1.442695
        %v7231 = vpow.pop %v7230
        %v7232 = vmul.f32 %v7174, 1.442695
        %v7233 = vpow.pop %v7232
        %v7234 = vmul.f32 %v7175, 1.442695
        %v7235 = vpow.pop %v7234
        %v7236 = vmul.f32 %v7176, 1.442695
        %v7237 = vpow.pop %v7236
        %v7238 = vmul.f32 %v7177, 1.442695
        %v7239 = vpow.pop %v7238
        %v7240 = vmul.f32 %v7178, 1.442695
        %v7241 = vpow.pop %v7240
        %v7242 = vmul.f32 %v7179, 1.442695
        %v7243 = vpow.pop %v7242
        %v7244 = vadd.f32 %v7181, 1.0
        %v7245 = vadd.f32 %v7183, 1.0
        %v7246 = vadd.f32 %v7185, 1.0
        %v7247 = vadd.f32 %v7187, 1.0
        %v7248 = vadd.f32 %v7189, 1.0
        %v7249 = vadd.f32 %v7191, 1.0
        %v7250 = vadd.f32 %v7193, 1.0
        %v7251 = vadd.f32 %v7195, 1.0
        %v7252 = vadd.f32 %v7197, 1.0
        %v7253 = vadd.f32 %v7199, 1.0
        %v7254 = vadd.f32 %v7201, 1.0
        %v7255 = vadd.f32 %v7203, 1.0
        %v7256 = vadd.f32 %v7205, 1.0
        %v7257 = vadd.f32 %v7207, 1.0
        %v7258 = vadd.f32 %v7209, 1.0
        %v7259 = vadd.f32 %v7211, 1.0
        %v7260 = vadd.f32 %v7213, 1.0
        %v7261 = vadd.f32 %v7215, 1.0
        %v7262 = vadd.f32 %v7217, 1.0
        %v7263 = vadd.f32 %v7219, 1.0
        %v7264 = vadd.f32 %v7221, 1.0
        %v7265 = vadd.f32 %v7223, 1.0
        %v7266 = vadd.f32 %v7225, 1.0
        %v7267 = vadd.f32 %v7227, 1.0
        %v7268 = vadd.f32 %v7229, 1.0
        %v7269 = vadd.f32 %v7231, 1.0
        %v7270 = vadd.f32 %v7233, 1.0
        %v7271 = vadd.f32 %v7235, 1.0
        %v7272 = vadd.f32 %v7237, 1.0
        %v7273 = vadd.f32 %v7239, 1.0
        %v7274 = vadd.f32 %v7241, 1.0
        %v7275 = vadd.f32 %v7243, 1.0
        %v7276 = vrcp.pop %v7244
        %v7277 = vmul.f32 1.0, %v7276
        %v7278 = vrcp.pop %v7245
        %v7279 = vmul.f32 1.0, %v7278
        %v7280 = vrcp.pop %v7246
        %v7281 = vmul.f32 1.0, %v7280
        %v7282 = vrcp.pop %v7247
        %v7283 = vmul.f32 1.0, %v7282
        %v7284 = vrcp.pop %v7248
        %v7285 = vmul.f32 1.0, %v7284
        %v7286 = vrcp.pop %v7249
        %v7287 = vmul.f32 1.0, %v7286
        %v7288 = vrcp.pop %v7250
        %v7289 = vmul.f32 1.0, %v7288
        %v7290 = vrcp.pop %v7251
        %v7291 = vmul.f32 1.0, %v7290
        %v7292 = vrcp.pop %v7252
        %v7293 = vmul.f32 1.0, %v7292
        %v7294 = vrcp.pop %v7253
        %v7295 = vmul.f32 1.0, %v7294
        %v7296 = vrcp.pop %v7254
        %v7297 = vmul.f32 1.0, %v7296
        %v7298 = vrcp.pop %v7255
        %v7299 = vmul.f32 1.0, %v7298
        %v7300 = vrcp.pop %v7256
        %v7301 = vmul.f32 1.0, %v7300
        %v7302 = vrcp.pop %v7257
        %v7303 = vmul.f32 1.0, %v7302
        %v7304 = vrcp.pop %v7258
        %v7305 = vmul.f32 1.0, %v7304
        %v7306 = vrcp.pop %v7259
        %v7307 = vmul.f32 1.0, %v7306
        %v7308 = vrcp.pop %v7260
        %v7309 = vmul.f32 1.0, %v7308
        %v7310 = vrcp.pop %v7261
        %v7311 = vmul.f32 1.0, %v7310
        %v7312 = vrcp.pop %v7262
        %v7313 = vmul.f32 1.0, %v7312
        %v7314 = vrcp.pop %v7263
        %v7315 = vmul.f32 1.0, %v7314
        %v7316 = vrcp.pop %v7264
        %v7317 = vmul.f32 1.0, %v7316
        %v7318 = vrcp.pop %v7265
        %v7319 = vmul.f32 1.0, %v7318
        %v7320 = vrcp.pop %v7266
        %v7321 = vmul.f32 1.0, %v7320
        %v7322 = vrcp.pop %v7267
        %v7323 = vmul.f32 1.0, %v7322
        %v7324 = vrcp.pop %v7268
        %v7325 = vmul.f32 1.0, %v7324
        %v7326 = vrcp.pop %v7269
        %v7327 = vmul.f32 1.0, %v7326
        %v7328 = vrcp.pop %v7270
        %v7329 = vmul.f32 1.0, %v7328
        %v7330 = vrcp.pop %v7271
        %v7331 = vmul.f32 1.0, %v7330
        %v7332 = vrcp.pop %v7272
        %v7333 = vmul.f32 1.0, %v7332
        %v7334 = vrcp.pop %v7273
        %v7335 = vmul.f32 1.0, %v7334
        %v7336 = vrcp.pop %v7274
        %v7337 = vmul.f32 1.0, %v7336
        %v7338 = vrcp.pop %v7275
        %v7339 = vmul.f32 1.0, %v7338
        %v7340 = vlaneseq
        %v7341 = vshrl.u32 %v7340, 7
        %v7342 = vmul.u32 %v7341, 8
        %vm7343 = vcmp.ge.s32.totalorder %v6306, %v7342
        %v7344 = vadd.s32 %v7341, 1
        %v7345 = vmul.u32 %v7344, 8
        %vm7346 = vcmp.lt.s32.totalorder %v6306, %v7345
        %vm7347 = vmand %vm7343, %vm7346
        %v7348 = vsel %vm7347, 1.0, 0.0
        %vm7349 = vcmask 31744
        %v7351 = vsel %vm7349, %v7277, 0
        %v7354 = vsel %vm7349, %v7279, 0
        %v7357 = vsel %vm7349, %v7281, 0
        %v7360 = vsel %vm7349, %v7283, 0
        %v7363 = vsel %vm7349, %v7285, 0
        %v7366 = vsel %vm7349, %v7287, 0
        %v7369 = vsel %vm7349, %v7289, 0
        %v7372 = vsel %vm7349, %v7291, 0
        %v7375 = vsel %vm7349, %v7293, 0
        %v7378 = vsel %vm7349, %v7295, 0
        %v7381 = vsel %vm7349, %v7297, 0
        %v7384 = vsel %vm7349, %v7299, 0
        %v7387 = vsel %vm7349, %v7301, 0
        %v7390 = vsel %vm7349, %v7303, 0
        %v7393 = vsel %vm7349, %v7305, 0
        %v7396 = vsel %vm7349, %v7307, 0
        %v7399 = vsel %vm7349, %v7309, 0
        %v7402 = vsel %vm7349, %v7311, 0
        %v7405 = vsel %vm7349, %v7313, 0
        %v7408 = vsel %vm7349, %v7315, 0
        %v7411 = vsel %vm7349, %v7317, 0
        %v7414 = vsel %vm7349, %v7319, 0
        %v7417 = vsel %vm7349, %v7321, 0
        %v7420 = vsel %vm7349, %v7323, 0
        %v7423 = vsel %vm7349, %v7325, 0
        %v7426 = vsel %vm7349, %v7327, 0
        %v7429 = vsel %vm7349, %v7329, 0
        %v7432 = vsel %vm7349, %v7331, 0
        %v7435 = vsel %vm7349, %v7333, 0
        %v7438 = vsel %vm7349, %v7335, 0
        %v7441 = vsel %vm7349, %v7337, 0
        %v7444 = vsel %vm7349, %v7339, 0
        %vm7446 = vcmask 1043456
        %v7448 = vsel %vm7446, %v7348, 0
        %7450 = vmatprep.subr.mxu0 0.0
        %7451 = vmatpush1.msra.mxu0 %v7448
        %7452 = vmatprep.subr.mxu0 0.0
        %7453 = vmatpush1.msra.mxu0 0.0
        %7454 = vmatprep.subr.mxu0 0.0
        %7455 = vmatpush1.msra.mxu0 0.0
        %7456 = vmatprep.subr.mxu0 0.0
        %7457 = vmatpush1.msra.mxu0 0.0
        %7458 = vmatprep.subr.mxu0 0.0
        %7459 = vmatpush1.msra.mxu0 0.0
        %7460 = vmatprep.subr.mxu0 0.0
        %7461 = vmatpush1.msra.mxu0 0.0
        %7462 = vmatprep.subr.mxu0 0.0
        %7463 = vmatpush1.msra.mxu0 0.0
        %7464 = vmatprep.subr.mxu0 0.0
        %7465 = vmatpush1.msra.mxu0 0.0
        %7466 = vmatprep.subr.mxu0 0.0
        %7467 = vmatpush1.msra.mxu0 0.0
        %7468 = vmatprep.subr.mxu0 0.0
        %7469 = vmatpush1.msra.mxu0 0.0
        %7470 = vmatprep.subr.mxu0 0.0
        %7471 = vmatpush1.msra.mxu0 0.0
        %7472 = vmatprep.subr.mxu0 0.0
        %7473 = vmatpush1.msra.mxu0 0.0
        %7474 = vmatprep.subr.mxu0 0.0
        %7475 = vmatpush1.msra.mxu0 0.0
        %7476 = vmatprep.subr.mxu0 0.0
        %7477 = vmatpush1.msra.mxu0 0.0
        %7478 = vmatprep.subr.mxu0 0.0
        %7479 = vmatpush1.msra.mxu0 0.0
        %7480 = vmatprep.subr.mxu0 0.0
        %7481 = vmatpush1.msra.mxu0 0.0
        %7482 = vmatprep.subr.mxu0 0.0
        %7483 = vmatpush1.msra.mxu0 0.0
        %7484 = vmatprep.subr.mxu0 0.0
        %7485 = vmatpush1.msra.mxu0 0.0
        %7486 = vmatprep.subr.mxu0 0.0
        %7487 = vmatpush1.msra.mxu0 0.0
        %7488 = vmatprep.subr.mxu0 0.0
        %7489 = vmatpush1.msra.mxu0 0.0
        %7490 = vmatprep.subr.mxu0 0.0
        %7491 = vmatpush1.msra.mxu0 0.0
        %7492 = vmatprep.subr.mxu0 0.0
        %7493 = vmatpush1.msra.mxu0 0.0
        %7494 = vmatprep.subr.mxu0 0.0
        %7495 = vmatpush1.msra.mxu0 0.0
        %7496 = vmatprep.subr.mxu0 0.0
        %7497 = vmatpush1.msra.mxu0 0.0
        %7498 = vmatprep.subr.mxu0 0.0
        %7499 = vmatpush1.msra.mxu0 0.0
        %7500 = vmatprep.subr.mxu0 0.0
        %7501 = vmatpush1.msra.mxu0 0.0
        %7502 = vmatprep.subr.mxu0 0.0
        %7503 = vmatpush1.msra.mxu0 0.0
        %7504 = vmatprep.subr.mxu0 0.0
        %7505 = vmatpush1.msra.mxu0 0.0
        %7506 = vmatprep.subr.mxu0 0.0
        %7507 = vmatpush1.msra.mxu0 0.0
        %7508 = vmatprep.subr.mxu0 0.0
        %7509 = vmatpush1.msra.mxu0 0.0
        %7510 = vmatprep.subr.mxu0 0.0
        %7511 = vmatpush1.msra.mxu0 0.0
        %7512 = vmatprep.subr.mxu0 0.0
        %7513 = vmatpush1.msra.mxu0 0.0
        %7514 = vmatprep.mubr.f32.mxu0 0.0
        %7515 = vmatmul.mubr.f32.gmra.mrb[0].mxu0 %v7351
        %v7516 = vpop.f32.mrb[0].mxu0
        %v7517 = vadd.f32 0.0, %v7516
        %v7518 = vpop.f32.mrb[0].mxu0
        %7519 = vmatprep.mubr.f32.mxu0 0.0
        %7520 = vmatmul.mubr.f32.gmra.mrb[0].mxu0 %v7354
        %v7521 = vpop.f32.mrb[0].mxu0
        %v7522 = vadd.f32 0.0, %v7521
        %v7523 = vpop.f32.mrb[0].mxu0
        %7524 = vmatprep.mubr.f32.mxu0 0.0
        %7525 = vmatmul.mubr.f32.gmra.mrb[0].mxu0 %v7357
        %v7526 = vpop.f32.mrb[0].mxu0
        %v7527 = vadd.f32 0.0, %v7526
        %v7528 = vpop.f32.mrb[0].mxu0
        %7529 = vmatprep.mubr.f32.mxu0 0.0
        %7530 = vmatmul.mubr.f32.gmra.mrb[0].mxu0 %v7360
        %v7531 = vpop.f32.mrb[0].mxu0
        %v7532 = vadd.f32 0.0, %v7531
        %v7533 = vpop.f32.mrb[0].mxu0
        %7534 = vmatprep.mubr.f32.mxu0 0.0
        %7535 = vmatmul.mubr.f32.gmra.mrb[0].mxu0 %v7363
        %v7536 = vpop.f32.mrb[0].mxu0
        %v7537 = vadd.f32 0.0, %v7536
        %v7538 = vpop.f32.mrb[0].mxu0
        %7539 = vmatprep.mubr.f32.mxu0 0.0
        %7540 = vmatmul.mubr.f32.gmra.mrb[0].mxu0 %v7366
        %v7541 = vpop.f32.mrb[0].mxu0
        %v7542 = vadd.f32 0.0, %v7541
        %v7543 = vpop.f32.mrb[0].mxu0
        %7544 = vmatprep.mubr.f32.mxu0 0.0
        %7545 = vmatmul.mubr.f32.gmra.mrb[0].mxu0 %v7369
        %v7546 = vpop.f32.mrb[0].mxu0
        %v7547 = vadd.f32 0.0, %v7546
        %v7548 = vpop.f32.mrb[0].mxu0
        %7549 = vmatprep.mubr.f32.mxu0 0.0
        %7550 = vmatmul.mubr.f32.gmra.mrb[0].mxu0 %v7372
        %v7551 = vpop.f32.mrb[0].mxu0
        %v7552 = vadd.f32 0.0, %v7551
        %v7553 = vpop.f32.mrb[0].mxu0
        %7554 = vmatprep.mubr.f32.mxu0 0.0
        %7555 = vmatmul.mubr.f32.gmra.mrb[0].mxu0 %v7375
        %v7556 = vpop.f32.mrb[0].mxu0
        %v7557 = vadd.f32 0.0, %v7556
        %v7558 = vpop.f32.mrb[0].mxu0
        %7559 = vmatprep.mubr.f32.mxu0 0.0
        %7560 = vmatmul.mubr.f32.gmra.mrb[0].mxu0 %v7378
        %v7561 = vpop.f32.mrb[0].mxu0
        %v7562 = vadd.f32 0.0, %v7561
        %v7563 = vpop.f32.mrb[0].mxu0
        %7564 = vmatprep.mubr.f32.mxu0 0.0
        %7565 = vmatmul.mubr.f32.gmra.mrb[0].mxu0 %v7381
        %v7566 = vpop.f32.mrb[0].mxu0
        %v7567 = vadd.f32 0.0, %v7566
        %v7568 = vpop.f32.mrb[0].mxu0
        %7569 = vmatprep.mubr.f32.mxu0 0.0
        %7570 = vmatmul.mubr.f32.gmra.mrb[0].mxu0 %v7384
        %v7571 = vpop.f32.mrb[0].mxu0
        %v7572 = vadd.f32 0.0, %v7571
        %v7573 = vpop.f32.mrb[0].mxu0
        %7574 = vmatprep.mubr.f32.mxu0 0.0
        %7575 = vmatmul.mubr.f32.gmra.mrb[0].mxu0 %v7387
        %v7576 = vpop.f32.mrb[0].mxu0
        %v7577 = vadd.f32 0.0, %v7576
        %v7578 = vpop.f32.mrb[0].mxu0
        %7579 = vmatprep.mubr.f32.mxu0 0.0
        %7580 = vmatmul.mubr.f32.gmra.mrb[0].mxu0 %v7390
        %v7581 = vpop.f32.mrb[0].mxu0
        %v7582 = vadd.f32 0.0, %v7581
        %v7583 = vpop.f32.mrb[0].mxu0
        %7584 = vmatprep.mubr.f32.mxu0 0.0
        %7585 = vmatmul.mubr.f32.gmra.mrb[0].mxu0 %v7393
        %v7586 = vpop.f32.mrb[0].mxu0
        %v7587 = vadd.f32 0.0, %v7586
        %v7588 = vpop.f32.mrb[0].mxu0
        %7589 = vmatprep.mubr.f32.mxu0 0.0
        %7590 = vmatmul.mubr.f32.gmra.mrb[0].mxu0 %v7396
        %v7591 = vpop.f32.mrb[0].mxu0
        %v7592 = vadd.f32 0.0, %v7591
        %v7593 = vpop.f32.mrb[0].mxu0
        %7594 = vmatprep.mubr.f32.mxu0 0.0
        %7595 = vmatmul.mubr.f32.gmra.mrb[0].mxu0 %v7399
        %v7596 = vpop.f32.mrb[0].mxu0
        %v7597 = vadd.f32 0.0, %v7596
        %v7598 = vpop.f32.mrb[0].mxu0
        %7599 = vmatprep.mubr.f32.mxu0 0.0
        %7600 = vmatmul.mubr.f32.gmra.mrb[0].mxu0 %v7402
        %v7601 = vpop.f32.mrb[0].mxu0
        %v7602 = vadd.f32 0.0, %v7601
        %v7603 = vpop.f32.mrb[0].mxu0
        %7604 = vmatprep.mubr.f32.mxu0 0.0
        %7605 = vmatmul.mubr.f32.gmra.mrb[0].mxu0 %v7405
        %v7606 = vpop.f32.mrb[0].mxu0
        %v7607 = vadd.f32 0.0, %v7606
        %v7608 = vpop.f32.mrb[0].mxu0
        %7609 = vmatprep.mubr.f32.mxu0 0.0
        %7610 = vmatmul.mubr.f32.gmra.mrb[0].mxu0 %v7408
        %v7611 = vpop.f32.mrb[0].mxu0
        %v7612 = vadd.f32 0.0, %v7611
        %v7613 = vpop.f32.mrb[0].mxu0
        %7614 = vmatprep.mubr.f32.mxu0 0.0
        %7615 = vmatmul.mubr.f32.gmra.mrb[0].mxu0 %v7411
        %v7616 = vpop.f32.mrb[0].mxu0
        %v7617 = vadd.f32 0.0, %v7616
        %v7618 = vpop.f32.mrb[0].mxu0
        %7619 = vmatprep.mubr.f32.mxu0 0.0
        %7620 = vmatmul.mubr.f32.gmra.mrb[0].mxu0 %v7414
        %v7621 = vpop.f32.mrb[0].mxu0
        %v7622 = vadd.f32 0.0, %v7621
        %v7623 = vpop.f32.mrb[0].mxu0
        %7624 = vmatprep.mubr.f32.mxu0 0.0
        %7625 = vmatmul.mubr.f32.gmra.mrb[0].mxu0 %v7417
        %v7626 = vpop.f32.mrb[0].mxu0
        %v7627 = vadd.f32 0.0, %v7626
        %v7628 = vpop.f32.mrb[0].mxu0
        %7629 = vmatprep.mubr.f32.mxu0 0.0
        %7630 = vmatmul.mubr.f32.gmra.mrb[0].mxu0 %v7420
        %v7631 = vpop.f32.mrb[0].mxu0
        %v7632 = vadd.f32 0.0, %v7631
        %v7633 = vpop.f32.mrb[0].mxu0
        %7634 = vmatprep.mubr.f32.mxu0 0.0
        %7635 = vmatmul.mubr.f32.gmra.mrb[0].mxu0 %v7423
        %v7636 = vpop.f32.mrb[0].mxu0
        %v7637 = vadd.f32 0.0, %v7636
        %v7638 = vpop.f32.mrb[0].mxu0
        %7639 = vmatprep.mubr.f32.mxu0 0.0
        %7640 = vmatmul.mubr.f32.gmra.mrb[0].mxu0 %v7426
        %v7641 = vpop.f32.mrb[0].mxu0
        %v7642 = vadd.f32 0.0, %v7641
        %v7643 = vpop.f32.mrb[0].mxu0
        %7644 = vmatprep.mubr.f32.mxu0 0.0
        %7645 = vmatmul.mubr.f32.gmra.mrb[0].mxu0 %v7429
        %v7646 = vpop.f32.mrb[0].mxu0
        %v7647 = vadd.f32 0.0, %v7646
        %v7648 = vpop.f32.mrb[0].mxu0
        %7649 = vmatprep.mubr.f32.mxu0 0.0
        %7650 = vmatmul.mubr.f32.gmra.mrb[0].mxu0 %v7432
        %v7651 = vpop.f32.mrb[0].mxu0
        %v7652 = vadd.f32 0.0, %v7651
        %v7653 = vpop.f32.mrb[0].mxu0
        %7654 = vmatprep.mubr.f32.mxu0 0.0
        %7655 = vmatmul.mubr.f32.gmra.mrb[0].mxu0 %v7435
        %v7656 = vpop.f32.mrb[0].mxu0
        %v7657 = vadd.f32 0.0, %v7656
        %v7658 = vpop.f32.mrb[0].mxu0
        %7659 = vmatprep.mubr.f32.mxu0 0.0
        %7660 = vmatmul.mubr.f32.gmra.mrb[0].mxu0 %v7438
        %v7661 = vpop.f32.mrb[0].mxu0
        %v7662 = vadd.f32 0.0, %v7661
        %v7663 = vpop.f32.mrb[0].mxu0
        %7664 = vmatprep.mubr.f32.mxu0 0.0
        %7665 = vmatmul.mubr.f32.gmra.mrb[0].mxu0 %v7441
        %v7666 = vpop.f32.mrb[0].mxu0
        %v7667 = vadd.f32 0.0, %v7666
        %v7668 = vpop.f32.mrb[0].mxu0
        %7669 = vmatprep.mubr.f32.mxu0 0.0
        %7670 = vmatmul.mubr.f32.gmra.mrb[0].mxu0 %v7444
        %v7671 = vpop.f32.mrb[0].mxu0
        %v7672 = vadd.f32 0.0, %v7671
        %v7673 = vpop.f32.mrb[0].mxu0
        %7674 = vdwg.mxu0
        %v7675 = vmul.f32 %v6099, %v7517
        %v7676 = vmul.f32 %v6100, %v7522
        %v7677 = vmul.f32 %v6101, %v7527
        %v7678 = vmul.f32 %v6102, %v7532
        %v7679 = vmul.f32 %v6103, %v7537
        %v7680 = vmul.f32 %v6104, %v7542
        %v7681 = vmul.f32 %v6105, %v7547
        %v7682 = vmul.f32 %v6106, %v7552
        %v7683 = vmul.f32 %v6107, %v7557
        %v7684 = vmul.f32 %v6108, %v7562
        %v7685 = vmul.f32 %v6109, %v7567
        %v7686 = vmul.f32 %v6110, %v7572
        %v7687 = vmul.f32 %v6111, %v7577
        %v7688 = vmul.f32 %v6112, %v7582
        %v7689 = vmul.f32 %v6113, %v7587
        %v7690 = vmul.f32 %v6114, %v7592
        %v7691 = vmul.f32 %v6115, %v7597
        %v7692 = vmul.f32 %v6116, %v7602
        %v7693 = vmul.f32 %v6117, %v7607
        %v7694 = vmul.f32 %v6118, %v7612
        %v7695 = vmul.f32 %v6119, %v7617
        %v7696 = vmul.f32 %v6120, %v7622
        %v7697 = vmul.f32 %v6121, %v7627
        %v7698 = vmul.f32 %v6122, %v7632
        %v7699 = vmul.f32 %v6123, %v7637
        %v7700 = vmul.f32 %v6124, %v7642
        %v7701 = vmul.f32 %v6125, %v7647
        %v7702 = vmul.f32 %v6126, %v7652
        %v7703 = vmul.f32 %v6127, %v7657
        %v7704 = vmul.f32 %v6128, %v7662
        %v7705 = vmul.f32 %v6129, %v7667
        %v7706 = vmul.f32 %v6130, %v7672
        %v7707 = vld [vmem:[#allocation17] sm:$0x1]
        %v7708 = vmul.f32 %v7707, 0.999995
        %v7710 = vlaneseq
        %v7711 = vshrl.u32 %v7710, 7
        %v7712 = vsub.s32 0, %v7711
        %v7713 = vrot.slane %v7708, %v7712
        %v7715 = vmul.f32 %v7675, %v7713
        %v7716 = vmul.f32 %v7676, %v7713
        %v7717 = vmul.f32 %v7677, %v7713
        %v7718 = vmul.f32 %v7678, %v7713
        %v7719 = vmul.f32 %v7679, %v7713
        %v7720 = vmul.f32 %v7680, %v7713
        %v7721 = vmul.f32 %v7681, %v7713
        %v7722 = vmul.f32 %v7682, %v7713
        %v7723 = vmul.f32 %v7683, %v7713
        %v7724 = vmul.f32 %v7684, %v7713
        %v7725 = vmul.f32 %v7685, %v7713
        %v7726 = vmul.f32 %v7686, %v7713
        %v7727 = vmul.f32 %v7687, %v7713
        %v7728 = vmul.f32 %v7688, %v7713
        %v7729 = vmul.f32 %v7689, %v7713
        %v7730 = vmul.f32 %v7690, %v7713
        %v7731 = vmul.f32 %v7691, %v7713
        %v7732 = vmul.f32 %v7692, %v7713
        %v7733 = vmul.f32 %v7693, %v7713
        %v7734 = vmul.f32 %v7694, %v7713
        %v7735 = vmul.f32 %v7695, %v7713
        %v7736 = vmul.f32 %v7696, %v7713
        %v7737 = vmul.f32 %v7697, %v7713
        %v7738 = vmul.f32 %v7698, %v7713
        %v7739 = vmul.f32 %v7699, %v7713
        %v7740 = vmul.f32 %v7700, %v7713
        %v7741 = vmul.f32 %v7701, %v7713
        %v7742 = vmul.f32 %v7702, %v7713
        %v7743 = vmul.f32 %v7703, %v7713
        %v7744 = vmul.f32 %v7704, %v7713
        %v7745 = vmul.f32 %v7705, %v7713
        %v7746 = vmul.f32 %v7706, %v7713
        %v7747 = vld [vmem:[#allocation18] sm:$0x1]
        %v7749 = vlaneseq
        %v7750 = vshrl.u32 %v7749, 7
        %v7751 = vsub.s32 0, %v7750
        %v7752 = vrot.slane %v7747, %v7751
        %v7754 = vadd.f32 %v7715, %v7752
        %v7755 = vadd.f32 %v7716, %v7752
        %v7756 = vadd.f32 %v7717, %v7752
        %v7757 = vadd.f32 %v7718, %v7752
        %v7758 = vadd.f32 %v7719, %v7752
        %v7759 = vadd.f32 %v7720, %v7752
        %v7760 = vadd.f32 %v7721, %v7752
        %v7761 = vadd.f32 %v7722, %v7752
        %v7762 = vadd.f32 %v7723, %v7752
        %v7763 = vadd.f32 %v7724, %v7752
        %v7764 = vadd.f32 %v7725, %v7752
        %v7765 = vadd.f32 %v7726, %v7752
        %v7766 = vadd.f32 %v7727, %v7752
        %v7767 = vadd.f32 %v7728, %v7752
        %v7768 = vadd.f32 %v7729, %v7752
        %v7769 = vadd.f32 %v7730, %v7752
        %v7770 = vadd.f32 %v7731, %v7752
        %v7771 = vadd.f32 %v7732, %v7752
        %v7772 = vadd.f32 %v7733, %v7752
        %v7773 = vadd.f32 %v7734, %v7752
        %v7774 = vadd.f32 %v7735, %v7752
        %v7775 = vadd.f32 %v7736, %v7752
        %v7776 = vadd.f32 %v7737, %v7752
        %v7777 = vadd.f32 %v7738, %v7752
        %v7778 = vadd.f32 %v7739, %v7752
        %v7779 = vadd.f32 %v7740, %v7752
        %v7780 = vadd.f32 %v7741, %v7752
        %v7781 = vadd.f32 %v7742, %v7752
        %v7782 = vadd.f32 %v7743, %v7752
        %v7783 = vadd.f32 %v7744, %v7752
        %v7784 = vadd.f32 %v7745, %v7752
        %v7785 = vadd.f32 %v7746, %v7752
        %v7786 = vmax.f32 %v7754, 0.0
        %v7787 = vmax.f32 %v7755, 0.0
        %v7788 = vmax.f32 %v7756, 0.0
        %v7789 = vmax.f32 %v7757, 0.0
        %v7790 = vmax.f32 %v7758, 0.0
        %v7791 = vmax.f32 %v7759, 0.0
        %v7792 = vmax.f32 %v7760, 0.0
        %v7793 = vmax.f32 %v7761, 0.0
        %v7794 = vmax.f32 %v7762, 0.0
        %v7795 = vmax.f32 %v7763, 0.0
        %v7796 = vmax.f32 %v7764, 0.0
        %v7797 = vmax.f32 %v7765, 0.0
        %v7798 = vmax.f32 %v7766, 0.0
        %v7799 = vmax.f32 %v7767, 0.0
        %v7800 = vmax.f32 %v7768, 0.0
        %v7801 = vmax.f32 %v7769, 0.0
        %v7802 = vmax.f32 %v7770, 0.0
        %v7803 = vmax.f32 %v7771, 0.0
        %v7804 = vmax.f32 %v7772, 0.0
        %v7805 = vmax.f32 %v7773, 0.0
        %v7806 = vmax.f32 %v7774, 0.0
        %v7807 = vmax.f32 %v7775, 0.0
        %v7808 = vmax.f32 %v7776, 0.0
        %v7809 = vmax.f32 %v7777, 0.0
        %v7810 = vmax.f32 %v7778, 0.0
        %v7811 = vmax.f32 %v7779, 0.0
        %v7812 = vmax.f32 %v7780, 0.0
        %v7813 = vmax.f32 %v7781, 0.0
        %v7814 = vmax.f32 %v7782, 0.0
        %v7815 = vmax.f32 %v7783, 0.0
        %v7816 = vmax.f32 %v7784, 0.0
        %v7817 = vmax.f32 %v7785, 0.0
        %7818 = vxpose.xlu0.b32.start [1/16] %v7786, 128
        %7819 = vxpose.xlu0.b32.cont [2/16] %v7787, 128
        %7820 = vxpose.xlu0.b32.cont [3/16] %v7788, 128
        %7821 = vxpose.xlu0.b32.cont [4/16] %v7789, 128
        %7822 = vxpose.xlu0.b32.cont [5/16] %v7790, 128
        %7823 = vxpose.xlu0.b32.cont [6/16] %v7791, 128
        %7824 = vxpose.xlu0.b32.cont [7/16] %v7792, 128
        %7825 = vxpose.xlu0.b32.cont [8/16] %v7793, 128
        %7826 = vxpose.xlu0.b32.cont [9/16] %v7794, 128
        %7827 = vxpose.xlu0.b32.cont [10/16] %v7795, 128
        %7828 = vxpose.xlu0.b32.cont [11/16] %v7796, 128
        %7829 = vxpose.xlu0.b32.cont [12/16] %v7797, 128
        %7830 = vxpose.xlu0.b32.cont [13/16] %v7798, 128
        %7831 = vxpose.xlu0.b32.cont [14/16] %v7799, 128
        %7832 = vxpose.xlu0.b32.cont [15/16] %v7800, 128
        %7833 = vxpose.xlu0.b32.end [16/16] %v7801, 128
        %v7834 = vpop.trf.xlu0
        %v7835 = vpop.trf.xlu0
        %v7836 = vpop.trf.xlu0
        %v7837 = vpop.trf.xlu0
        %v7838 = vpop.trf.xlu0
        %v7839 = vpop.trf.xlu0
        %v7840 = vpop.trf.xlu0
        %v7841 = vpop.trf.xlu0
        %v7842 = vpop.trf.xlu0
        %v7843 = vpop.trf.xlu0
        %v7844 = vpop.trf.xlu0
        %v7845 = vpop.trf.xlu0
        %v7846 = vpop.trf.xlu0
        %v7847 = vpop.trf.xlu0
        %v7848 = vpop.trf.xlu0
        %v7849 = vpop.trf.xlu0
        %7850 = vxpose.xlu0.b32.start [1/16] %v7802, 128
        %7851 = vxpose.xlu0.b32.cont [2/16] %v7803, 128
        %7852 = vxpose.xlu0.b32.cont [3/16] %v7804, 128
        %7853 = vxpose.xlu0.b32.cont [4/16] %v7805, 128
        %7854 = vxpose.xlu0.b32.cont [5/16] %v7806, 128
        %7855 = vxpose.xlu0.b32.cont [6/16] %v7807, 128
        %7856 = vxpose.xlu0.b32.cont [7/16] %v7808, 128
        %7857 = vxpose.xlu0.b32.cont [8/16] %v7809, 128
        %7858 = vxpose.xlu0.b32.cont [9/16] %v7810, 128
        %7859 = vxpose.xlu0.b32.cont [10/16] %v7811, 128
        %7860 = vxpose.xlu0.b32.cont [11/16] %v7812, 128
        %7861 = vxpose.xlu0.b32.cont [12/16] %v7813, 128
        %7862 = vxpose.xlu0.b32.cont [13/16] %v7814, 128
        %7863 = vxpose.xlu0.b32.cont [14/16] %v7815, 128
        %7864 = vxpose.xlu0.b32.cont [15/16] %v7816, 128
        %7865 = vxpose.xlu0.b32.end [16/16] %v7817, 128
        %v7866 = vpop.trf.xlu0
        %v7867 = vpop.trf.xlu0
        %v7868 = vpop.trf.xlu0
        %v7869 = vpop.trf.xlu0
        %v7870 = vpop.trf.xlu0
        %v7871 = vpop.trf.xlu0
        %v7872 = vpop.trf.xlu0
        %v7873 = vpop.trf.xlu0
        %v7874 = vpop.trf.xlu0
        %v7875 = vpop.trf.xlu0
        %v7876 = vpop.trf.xlu0
        %v7877 = vpop.trf.xlu0
        %v7878 = vpop.trf.xlu0
        %v7879 = vpop.trf.xlu0
        %v7880 = vpop.trf.xlu0
        %v7881 = vpop.trf.xlu0
        %7882 = vst [vmem:[%s456] sm:$0xff] %v7834
        %7883 = vst [vmem:[%s456 + $0x8] sm:$0xff] %v7866
        %7884 = vst [vmem:[%s456 + $0x10] sm:$0xff] %v7835
        %7885 = vst [vmem:[%s456 + $0x18] sm:$0xff] %v7867
        %7886 = vst [vmem:[%s456 + $0x20] sm:$0xff] %v7836
        %7887 = vst [vmem:[%s456 + $0x28] sm:$0xff] %v7868
        %7888 = vst [vmem:[%s456 + $0x30] sm:$0xff] %v7837
        %7889 = vst [vmem:[%s456 + $0x38] sm:$0xff] %v7869
        %s7890 = sand.u32 %s233, 1
        %s7891 = scalar_lea.sflag [#allocation6], %s7890
        %s7892 = sand.u32 %s233, 1
        %s7893 = smul.addr %s7892, 64
        %s7894 = scalar_lea.vmem [#allocation20], %s7893
        // Predicated region
        $region93: #{maff_forward.1} parent=55 // pred_check
          %p7895 = pneg %p243
        $region94: #{maff_forward.1} parent=55 // pred_check_branch
          %7897 = sbr.rel (%p7895) target = $region96
        $region95: #{maff_forward.1} parent=55 // pred_region
          %s7899 = ssub.s32 1024, 1024
          %7900 = vsyncadd %s7891, %s7899
          %s7901 = smul.addr %s31, 8
          %s7902 = smul.addr %s7901, 128
          %s7903 = scalar_lea.hbm %s9, %s7902
          %s7904 = sshll.u32 %s7894, 4
          %s7905 = int_to_ptr.vmem [resolvable:$true] %s7904
          %7910 = dma.vmem_to_hbm [thread:$0]  %s7905, 1024, %s7903, %s7891, 256, 256, 16
        $region96: #{maff_forward.1} parent=55 // pred_fallthru
          _
      $region56: #{maff_forward.1} parent=5 // pred_fallthru
        _
      %p7911 = scmp.le.s32.totalorder 2, %s26
      // Predicated region
      $region97: #{maff_forward.1} parent=5 // pred_check
        %p7912 = pneg %p7911
      $region98: #{maff_forward.1} parent=5 // pred_check_branch
        %7914 = sbr.rel (%p7912) target = $region100
      $region99: #{maff_forward.1} parent=5 // pred_region
        %s7915 = ssub.s32 %s26, 2
        // Predicated region
        $region101: #{maff_forward.1} parent=99 // pred_check
          %p7916 = pneg %p249
        $region102: #{maff_forward.1} parent=99 // pred_check_branch
          %7918 = sbr.rel (%p7916) target = $region104
        $region103: #{maff_forward.1} parent=99 // pred_region
          %s7919 = sand.u32 %s234, 1
          %s7920 = scalar_lea.sflag [#allocation6], %s7919
          %s7921 = sand.u32 %s234, 1
          %s7922 = smul.addr %s7921, 64
          %s7923 = scalar_lea.vmem [#allocation20], %s7922
          %7924 = dma.done %s7920, 1024
        $region104: #{maff_forward.1} parent=99 // pred_fallthru
          _
      $region100: #{maff_forward.1} parent=5 // pred_fallthru
        _
    $region6: #{maff_forward.1} parent=1 // loop_footer
      %s30 = sadd.s32 1, %s26
    $region7: #{maff_forward.1} parent=1 // loop_footer_branch
      %25 = sbr.rel target = $region3
    $region8: #{maff_forward.1} parent=1 // loop_exit
      _
    %7925 = vsyncpa [#allocation5], 1
    %s7926 = scalar_lea.sflag [#allocation5], 1
    %7927 = vsyncpa %s7926, 1
    %7928 = vsyncpa [#allocation9], 1
    %7929 = vsyncpa [#allocation12], 1
    %7930 = vsyncpa [#allocation16], 1
    %7931 = vsyncpa [#allocation19], 1
    %7932 = vsyncpa [#allocation6], 1
    %s7933 = scalar_lea.sflag [#allocation6], 1
    %7934 = vsyncpa %s7933, 1
    %7935 = vsyncpa [#allocation7], 1
    %s7936 = scalar_lea.sflag [#allocation7], 1
    %7937 = vsyncpa %s7936, 1

</llo_original>
